<compile_context>
chip_gen: v6e
topology: v6e:2x2x1
jax: 0.10.0
libtpu: 0.0.40
codegen_flags: <defaults>
</compile_context>

<pallas_src>
import math

import jax
import jax.numpy as jnp
import numpy as np
from jax.experimental import pallas as pl
from jax.experimental.pallas import tpu as pltpu

# ----------------------------- model config ----------------------------------
STATE_DIM = 8
CANDIDATE_DIM = 8
NUM_STACKED_LAYERS = 2
NUM_HEADS = 2
DIM_MODEL = 32
DIM_FEEDFORWARD = 64
SLATE_SEQ_LEN = 8
NUM_CANDIDATES = 12
BATCH = 2

# ----------------------------- packed small-param layout ---------------------
# All (1, D)/(k, 1, D) biases, LayerNorm gammas/betas and a few derived rows are
# packed into one (N, D) f32 array ("small_d"); the two F-wide FFN biases go
# into a (2L, F) array ("small_f").
_SMALL_D_FIELDS = (
    ("enc_attn_b", 4 * NUM_STACKED_LAYERS),
    ("enc_ln_g", 2 * NUM_STACKED_LAYERS),
    ("enc_ln_b", 2 * NUM_STACKED_LAYERS),
    ("enc_ff_b2", NUM_STACKED_LAYERS),
    ("enc_norm_g", 1),
    ("enc_norm_b", 1),
    ("dec_self_vo_b", 2 * NUM_STACKED_LAYERS),   # per layer: [bv, bo]
    ("dec_src_b", 4 * NUM_STACKED_LAYERS),
    ("dec_ln_g", 3 * NUM_STACKED_LAYERS),
    ("dec_ln_b", 3 * NUM_STACKED_LAYERS),
    ("dec_ff_b2", NUM_STACKED_LAYERS),
    ("dec_norm_g", 1),
    ("dec_norm_b", 1),
    ("y0", 1),          # colsum(dec_emb_w) + dec_emb_b   (precomputed)
    ("proj_wt", 1),      # proj_w transposed to a (1, D) row
    ("proj_b", 1),       # scalar proj bias in element [0]
)
_SMALL_D_OFF = {}
_off = 0
for _name, _n in _SMALL_D_FIELDS:
    _SMALL_D_OFF[_name] = _off
    _off += _n
N_SMALL_D = _off


# ----------------------------- Pallas kernel ---------------------------------
def _seq2slate_reward_kernel(feat_ref, pe_bias_ref, small_d_ref, small_f_ref,
                             w_emb_ref, enc_attn_w_ref, enc_ff_w1_ref,
                             enc_ff_w2_ref, dec_self_vo_w_ref, dec_src_w_ref,
                             dec_ff_w1_ref, dec_ff_w2_ref, out_ref):
    f32 = jnp.float32
    D, H, L = DIM_MODEL, NUM_HEADS, NUM_STACKED_LAYERS
    dk = D // H
    scale = 1.0 / math.sqrt(dk)
    B = out_ref.shape[0]
    S = feat_ref.shape[0] // B

    small_d = small_d_ref[...]   # (N, D)
    small_f = small_f_ref[...]   # (2L, F)

    def row_d(name, i=0):
        off = _SMALL_D_OFF[name] + i
        return small_d[off:off + 1, :]          # (1, D)

    def row_f(i):
        return small_f[i:i + 1, :]              # (1, F)

    def layer_norm(x, g, b, eps=1e-5):
        mean = jnp.mean(x, axis=-1, keepdims=True)
        c = x - mean
        var = jnp.mean(c * c, axis=-1, keepdims=True)
        return c * jax.lax.rsqrt(var + eps) * g + b

    def softmax(s):
        s = s - jnp.max(s, axis=-1, keepdims=True)
        e = jnp.exp(s)
        return e / jnp.sum(e, axis=-1, keepdims=True)

    def mha_batched(q_rows, kv_rows, w_ref, wbase, bname, bbase, q_len):
        """Multi-head attention with batch folded into sublane rows.

        q_rows: (B*q_len, D), kv_rows: (B*S, D).  The head concat is replaced
        by accumulation against sublane slices of W_out (no lane relayout).
        Attention masks are all-ones in this model -> no masking needed.
        """
        wq = w_ref[wbase + 0]
        wk = w_ref[wbase + 1]
        wv = w_ref[wbase + 2]
        wo = w_ref[wbase + 3]
        q = jnp.dot(q_rows, wq, preferred_element_type=f32) + row_d(bname, bbase + 0)
        k = jnp.dot(kv_rows, wk, preferred_element_type=f32) + row_d(bname, bbase + 1)
        v = jnp.dot(kv_rows, wv, preferred_element_type=f32) + row_d(bname, bbase + 2)
        out = row_d(bname, bbase + 3)           # start from output bias
        for h in range(H):
            lo = h * dk
            qh = q[:, lo:lo + dk].reshape(B, q_len, dk)
            kh = k[:, lo:lo + dk].reshape(B, S, dk)
            vh = v[:, lo:lo + dk].reshape(B, S, dk)
            s = jnp.einsum('bqd,bkd->bqk', qh, kh,
                           preferred_element_type=f32) * scale
            p = softmax(s)
            oh = jnp.einsum('bqk,bkd->bqd', p, vh,
                            preferred_element_type=f32).reshape(B * q_len, dk)
            out = out + jnp.dot(oh, wo[lo:lo + dk, :], preferred_element_type=f32)
        return out

    def ffn(xn, w1_ref, b1_row, w2_ref, b2_row, layer):
        h = jnp.dot(xn, w1_ref[layer], preferred_element_type=f32) + b1_row
        h = jnp.maximum(h, 0.0)
        return jnp.dot(h, w2_ref[layer], preferred_element_type=f32) + b2_row

    # ---- encode(): fused block-diagonal state/candidate embedder; PE + embed
    #      bias pre-folded into pe_bias (built host-side).
    x = (jnp.dot(feat_ref[...], w_emb_ref[...], preferred_element_type=f32)
         + pe_bias_ref[...])                                        # (B*S, D)

    # ---- encoder stack (pre-norm residual sublayers + final LayerNorm) ----
    for l in range(L):
        xn = layer_norm(x, row_d("enc_ln_g", 2 * l), row_d("enc_ln_b", 2 * l))
        x = x + mha_batched(xn, xn, enc_attn_w_ref, 4 * l, "enc_attn_b", 4 * l, S)
        xn = layer_norm(x, row_d("enc_ln_g", 2 * l + 1), row_d("enc_ln_b", 2 * l + 1))
        x = x + ffn(xn, enc_ff_w1_ref, row_f(l), enc_ff_w2_ref,
                    row_d("enc_ff_b2", l), l)
    memory = layer_norm(x, row_d("enc_norm_g"), row_d("enc_norm_b"))   # (B*S, D)

    # ---- decode(): single-step target; y0 precomputed host-side ----
    y = jnp.broadcast_to(row_d("y0"), (B, D))                          # (B, D)
    for l in range(L):
        # DecoderLayer sublayer[0]: self-attention over a length-1 target
        # degenerates to its V and O projections (softmax of a 1x1 score == 1).
        yn = layer_norm(y, row_d("dec_ln_g", 3 * l), row_d("dec_ln_b", 3 * l))
        sa = (jnp.dot(yn, dec_self_vo_w_ref[2 * l], preferred_element_type=f32)
              + row_d("dec_self_vo_b", 2 * l))
        sa = (jnp.dot(sa, dec_self_vo_w_ref[2 * l + 1], preferred_element_type=f32)
              + row_d("dec_self_vo_b", 2 * l + 1))
        y = y + sa
        # DecoderLayer sublayer[1]: cross attention against encoder memory
        yn = layer_norm(y, row_d("dec_ln_g", 3 * l + 1), row_d("dec_ln_b", 3 * l + 1))
        y = y + mha_batched(yn, memory, dec_src_w_ref, 4 * l, "dec_src_b", 4 * l, 1)
        # DecoderLayer sublayer[2]: feed forward
        yn = layer_norm(y, row_d("dec_ln_g", 3 * l + 2), row_d("dec_ln_b", 3 * l + 2))
        y = y + ffn(yn, dec_ff_w1_ref, row_f(L + l), dec_ff_w2_ref,
                    row_d("dec_ff_b2", l), l)
    out = layer_norm(y, row_d("dec_norm_g"), row_d("dec_norm_b"))      # (B, D)

    # ---- final reward projection (proj_w packed as a (1, D) row) ----
    pred = jnp.sum(out * row_d("proj_wt"), axis=-1, keepdims=True)     # (B, 1)
    pred = pred + row_d("proj_b")[:, 0:1]
    out_ref[...] = pred


# ----------------------------- host-side packing / glue ----------------------
def _positional_encoding(seq_len, d_model):
    position = jnp.arange(seq_len, dtype=jnp.float32)[:, None]
    div_term = jnp.exp(jnp.arange(0, d_model, 2, dtype=jnp.float32)
                       * (-math.log(10000.0) / d_model))
    pe = jnp.zeros((seq_len, d_model), jnp.float32)
    pe = pe.at[:, 0::2].set(jnp.sin(position * div_term))
    pe = pe.at[:, 1::2].set(jnp.cos(position * div_term))
    return pe


def make_params(key):
    D, D2 = DIM_MODEL, DIM_MODEL // 2
    L, F = NUM_STACKED_LAYERS, DIM_FEEDFORWARD
    C, Sd = CANDIDATE_DIM, STATE_DIM
    counter = [0]

    def nxt():
        counter[0] += 1
        return jax.random.fold_in(key, counter[0])

    def xavier(shape):
        fan_in, fan_out = shape[-2], shape[-1]
        a = math.sqrt(6.0 / (fan_in + fan_out))
        return jax.random.uniform(nxt(), shape, jnp.float32, -a, a)

    def bias(shape):
        return 0.01 * jax.random.normal(nxt(), shape, jnp.float32)

    return {
        "cand_emb_w": xavier((C, D2)), "cand_emb_b": bias((1, D2)),
        "state_emb_w": xavier((Sd, D2)), "state_emb_b": bias((1, D2)),
        "enc_attn_w": xavier((L * 4, D, D)), "enc_attn_b": bias((L * 4, 1, D)),
        "enc_ln_g": jnp.ones((L * 2, 1, D), jnp.float32),
        "enc_ln_b": jnp.zeros((L * 2, 1, D), jnp.float32),
        "enc_ff_w1": xavier((L, D, F)), "enc_ff_b1": bias((L, 1, F)),
        "enc_ff_w2": xavier((L, F, D)), "enc_ff_b2": bias((L, 1, D)),
        "enc_norm_g": jnp.ones((1, D), jnp.float32),
        "enc_norm_b": jnp.zeros((1, D), jnp.float32),
        "dec_self_w": xavier((L * 4, D, D)), "dec_self_b": bias((L * 4, 1, D)),
        "dec_src_w": xavier((L * 4, D, D)), "dec_src_b": bias((L * 4, 1, D)),
        "dec_ln_g": jnp.ones((L * 3, 1, D), jnp.float32),
        "dec_ln_b": jnp.zeros((L * 3, 1, D), jnp.float32),
        "dec_ff_w1": xavier((L, D, F)), "dec_ff_b1": bias((L, 1, F)),
        "dec_ff_w2": xavier((L, F, D)), "dec_ff_b2": bias((L, 1, D)),
        "dec_norm_g": jnp.ones((1, D), jnp.float32),
        "dec_norm_b": jnp.zeros((1, D), jnp.float32),
        "dec_emb_w": xavier((C, D)), "dec_emb_b": bias((1, D)),
        "proj_w": xavier((D, 1)), "proj_b": bias((1, 1)),
    }


def pack_params(p):
    """One-time host-side packing: fused embedder, derived rows, stacked biases."""
    D, D2, L, F = DIM_MODEL, DIM_MODEL // 2, NUM_STACKED_LAYERS, DIM_FEEDFORWARD
    scale = math.sqrt(D2)

    # fused block-diagonal embedder with the sqrt(D/2) scale folded in
    w_emb = jnp.zeros((STATE_DIM + CANDIDATE_DIM, D), jnp.float32)
    w_emb = w_emb.at[:STATE_DIM, :D2].set(p["state_emb_w"] * scale)
    w_emb = w_emb.at[STATE_DIM:, D2:].set(p["cand_emb_w"] * scale)
    emb_b = jnp.concatenate([p["state_emb_b"], p["cand_emb_b"]], axis=-1) * scale
    pe_bias = _positional_encoding(SLATE_SEQ_LEN, D) + emb_b           # (S, D)

    # decoder target embedding of the all-ones length-1 target sequence
    y0 = jnp.sum(p["dec_emb_w"], axis=0, keepdims=True) + p["dec_emb_b"]   # (1, D)

    # decoder self-attn: only V and O survive the length-1 simplification
    vo_idx = np.asarray([[4 * l + 2, 4 * l + 3] for l in range(L)],
                        dtype=np.int32).reshape(-1)
    dec_self_vo_w = p["dec_self_w"][vo_idx]                            # (2L, D, D)
    dec_self_vo_b = p["dec_self_b"][vo_idx]                            # (2L, 1, D)

    proj_wt = p["proj_w"].T                                            # (1, D)
    proj_b_row = jnp.zeros((1, D), jnp.float32).at[0, 0].set(p["proj_b"][0, 0])

    parts = {
        "enc_attn_b": p["enc_attn_b"].reshape(-1, D),
        "enc_ln_g": p["enc_ln_g"].reshape(-1, D),
        "enc_ln_b": p["enc_ln_b"].reshape(-1, D),
        "enc_ff_b2": p["enc_ff_b2"].reshape(-1, D),
        "enc_norm_g": p["enc_norm_g"].reshape(-1, D),
        "enc_norm_b": p["enc_norm_b"].reshape(-1, D),
        "dec_self_vo_b": dec_self_vo_b.reshape(-1, D),
        "dec_src_b": p["dec_src_b"].reshape(-1, D),
        "dec_ln_g": p["dec_ln_g"].reshape(-1, D),
        "dec_ln_b": p["dec_ln_b"].reshape(-1, D),
        "dec_ff_b2": p["dec_ff_b2"].reshape(-1, D),
        "dec_norm_g": p["dec_norm_g"].reshape(-1, D),
        "dec_norm_b": p["dec_norm_b"].reshape(-1, D),
        "y0": y0,
        "proj_wt": proj_wt,
        "proj_b": proj_b_row,
    }
    small_d = jnp.concatenate([parts[name] for name, _ in _SMALL_D_FIELDS], axis=0)
    assert small_d.shape == (N_SMALL_D, D)
    small_f = jnp.concatenate([p["enc_ff_b1"].reshape(-1, F),
                               p["dec_ff_b1"].reshape(-1, F)], axis=0)   # (2L, F)

    return {
        "pe_bias": pe_bias,
        "small_d": small_d,
        "small_f": small_f,
        "w_emb": w_emb,
        "enc_attn_w": p["enc_attn_w"],
        "enc_ff_w1": p["enc_ff_w1"],
        "enc_ff_w2": p["enc_ff_w2"],
        "dec_self_vo_w": dec_self_vo_w,
        "dec_src_w": p["dec_src_w"],
        "dec_ff_w1": p["dec_ff_w1"],
        "dec_ff_w2": p["dec_ff_w2"],
    }


def seq2slate_reward_forward(user_features, src_features, tgt_out_idx, packed):
    """Equivalent of Seq2SlateRewardModel.forward(Batch(...)) -> (B, 1) reward."""
    B, S = src_features.shape[0], SLATE_SEQ_LEN
    # index plumbing glue (gather + feature concat stay outside the kernel)
    src_seq = src_features[jnp.arange(B)[:, None], tgt_out_idx - 2]    # (B, S, C)
    state_rep = jnp.broadcast_to(user_features[:, None, :], (B, S, STATE_DIM))
    feat = jnp.concatenate([state_rep, src_seq], axis=-1)
    feat = feat.reshape(B * S, STATE_DIM + CANDIDATE_DIM)              # (B*S, 16)
    pe_bias = jnp.tile(packed["pe_bias"], (B, 1))                      # (B*S, D)

    inputs = [feat, pe_bias, packed["small_d"], packed["small_f"],
              packed["w_emb"], packed["enc_attn_w"], packed["enc_ff_w1"],
              packed["enc_ff_w2"], packed["dec_self_vo_w"], packed["dec_src_w"],
              packed["dec_ff_w1"], packed["dec_ff_w2"]]
    return pl.pallas_call(
        _seq2slate_reward_kernel,
        out_shape=jax.ShapeDtypeStruct((B, 1), jnp.float32),
        in_specs=[pl.BlockSpec(memory_space=pltpu.MemorySpace.VMEM)
                  for _ in inputs],
        out_specs=pl.BlockSpec(memory_space=pltpu.MemorySpace.VMEM),
    )(*inputs)


# ----------------------------- pure-JAX reference (original unfused math) ----
def _ref_layer_norm(x, g, b, eps=1e-5):
    mean = jnp.mean(x, axis=-1, keepdims=True)
    c = x - mean
    var = jnp.mean(c * c, axis=-1, keepdims=True)
    return c * jax.lax.rsqrt(var + eps) * g + b


def _ref_softmax(s):
    s = s - jnp.max(s, axis=-1, keepdims=True)
    e = jnp.exp(s)
    return e / jnp.sum(e, axis=-1, keepdims=True)


def _ref_mha(q_in, k_in, v_in, w_stack, b_stack, base, num_heads):
    d_model = q_in.shape[-1]
    d_k = d_model // num_heads
    q = q_in @ w_stack[base + 0] + b_stack[base + 0]
    k = k_in @ w_stack[base + 1] + b_stack[base + 1]
    v = v_in @ w_stack[base + 2] + b_stack[base + 2]
    scale = 1.0 / math.sqrt(d_k)
    heads = []
    for h in range(num_heads):
        lo, hi = h * d_k, (h + 1) * d_k
        scores = q[:, lo:hi] @ k[:, lo:hi].T * scale
        heads.append(_ref_softmax(scores) @ v[:, lo:hi])
    return jnp.concatenate(heads, axis=-1) @ w_stack[base + 3] + b_stack[base + 3]


def _ref_ffn(x, w1, b1, w2, b2):
    return jnp.maximum(x @ w1 + b1, 0.0) @ w2 + b2


def _ref_forward_one(state_b, src_b, pe, p):
    D, D2 = DIM_MODEL, DIM_MODEL // 2
    H, L = NUM_HEADS, NUM_STACKED_LAYERS
    S = src_b.shape[0]
    cand = (src_b @ p["cand_emb_w"] + p["cand_emb_b"]) * math.sqrt(D2)
    st = (state_b @ p["state_emb_w"] + p["state_emb_b"]) * math.sqrt(D2)
    x = jnp.concatenate([jnp.broadcast_to(st, (S, D2)), cand], axis=-1) + pe
    for l in range(L):
        xn = _ref_layer_norm(x, p["enc_ln_g"][2 * l], p["enc_ln_b"][2 * l])
        x = x + _ref_mha(xn, xn, xn, p["enc_attn_w"], p["enc_attn_b"], 4 * l, H)
        xn = _ref_layer_norm(x, p["enc_ln_g"][2 * l + 1], p["enc_ln_b"][2 * l + 1])
        x = x + _ref_ffn(xn, p["enc_ff_w1"][l], p["enc_ff_b1"][l],
                         p["enc_ff_w2"][l], p["enc_ff_b2"][l])
    memory = _ref_layer_norm(x, p["enc_norm_g"], p["enc_norm_b"])
    y = jnp.ones((1, CANDIDATE_DIM), jnp.float32) @ p["dec_emb_w"] + p["dec_emb_b"]
    for l in range(L):
        yn = _ref_layer_norm(y, p["dec_ln_g"][3 * l], p["dec_ln_b"][3 * l])
        y = y + _ref_mha(yn, yn, yn, p["dec_self_w"], p["dec_self_b"], 4 * l, H)
        yn = _ref_layer_norm(y, p["dec_ln_g"][3 * l + 1], p["dec_ln_b"][3 * l + 1])
        y = y + _ref_mha(yn, memory, memory, p["dec_src_w"], p["dec_src_b"], 4 * l, H)
        yn = _ref_layer_norm(y, p["dec_ln_g"][3 * l + 2], p["dec_ln_b"][3 * l + 2])
        y = y + _ref_ffn(yn, p["dec_ff_w1"][l], p["dec_ff_b1"][l],
                         p["dec_ff_w2"][l], p["dec_ff_b2"][l])
    out = _ref_layer_norm(y, p["dec_norm_g"], p["dec_norm_b"])
    return out @ p["proj_w"] + p["proj_b"]


def seq2slate_reward_reference(user_features, src_features, tgt_out_idx, params):
    B = src_features.shape[0]
    src_seq = src_features[jnp.arange(B)[:, None], tgt_out_idx - 2]
    pe = _positional_encoding(SLATE_SEQ_LEN, DIM_MODEL)
    return jnp.concatenate(
        [_ref_forward_one(user_features[b:b + 1, :], src_seq[b], pe, params)
         for b in range(B)], axis=0)


# ----------------------------- main -------------------------------------------
if __name__ == "__main__":
    key = jax.random.PRNGKey(0)
    k_user, k_cand, k_idx, k_param = jax.random.split(key, 4)

    user_features = jax.random.normal(k_user, (BATCH, STATE_DIM), jnp.float32)
    src_features = jax.random.normal(k_cand, (BATCH, NUM_CANDIDATES, CANDIDATE_DIM),
                                     jnp.float32)
    # tgt_out_idx: per-batch ordering over candidates, offset by 2 (0=pad, 1=start)
    tgt_out_idx = jnp.stack([
        jax.random.permutation(jax.random.fold_in(k_idx, b),
                               NUM_CANDIDATES)[:SLATE_SEQ_LEN] + 2
        for b in range(BATCH)
    ]).astype(jnp.int32)

    params = make_params(k_param)
    packed = jax.tree_util.tree_map(lambda x: x, pack_params(params))

    pred = jax.jit(seq2slate_reward_forward)(user_features, src_features,
                                             tgt_out_idx, packed)
    pred = jax.block_until_ready(pred)

    ref = seq2slate_reward_reference(user_features, src_features, tgt_out_idx, params)
    ref = jax.block_until_ready(ref)

    assert pred.shape == (BATCH, 1)
    np.testing.assert_allclose(np.asarray(pred), np.asarray(ref),
                               rtol=1e-3, atol=1e-3)
    print("KERNEL_OK")
</pallas_src>

<mosaic_0001>
module attributes {stable_mosaic.version = 11 : i64} {
  func.func @_seq2slate_reward_kernel(%arg0: memref<16x16xf32, #tpu.memory_space<vmem>>, %arg1: memref<16x32xf32, #tpu.memory_space<vmem>>, %arg2: memref<51x32xf32, #tpu.memory_space<vmem>>, %arg3: memref<4x64xf32, #tpu.memory_space<vmem>>, %arg4: memref<16x32xf32, #tpu.memory_space<vmem>>, %arg5: memref<8x32x32xf32, #tpu.memory_space<vmem>>, %arg6: memref<2x32x64xf32, #tpu.memory_space<vmem>>, %arg7: memref<2x64x32xf32, #tpu.memory_space<vmem>>, %arg8: memref<4x32x32xf32, #tpu.memory_space<vmem>>, %arg9: memref<8x32x32xf32, #tpu.memory_space<vmem>>, %arg10: memref<2x32x64xf32, #tpu.memory_space<vmem>>, %arg11: memref<2x64x32xf32, #tpu.memory_space<vmem>>, %arg12: memref<2x1xf32, #tpu.memory_space<vmem>>) attributes {dimension_semantics = [], scalar_prefetch = 0 : i64, scratch_operands = 0 : i64, tpu.core_type = #tpu.core_type<tc>} {
    %c0 = arith.constant 0 : index
    %c0_0 = arith.constant 0 : index
    %0 = vector.load %arg2[%c0, %c0_0] : memref<51x32xf32, #tpu.memory_space<vmem>>, vector<51x32xf32>
    %c0_1 = arith.constant 0 : index
    %c0_2 = arith.constant 0 : index
    %1 = vector.load %arg3[%c0_1, %c0_2] : memref<4x64xf32, #tpu.memory_space<vmem>>, vector<4x64xf32>
    %c0_3 = arith.constant 0 : index
    %c0_4 = arith.constant 0 : index
    %2 = vector.load %arg0[%c0_3, %c0_4] : memref<16x16xf32, #tpu.memory_space<vmem>>, vector<16x16xf32>
    %c0_5 = arith.constant 0 : index
    %c0_6 = arith.constant 0 : index
    %3 = vector.load %arg4[%c0_5, %c0_6] : memref<16x32xf32, #tpu.memory_space<vmem>>, vector<16x32xf32>
    %cst = arith.constant dense<0.000000e+00> : vector<16x32xf32>
    %4 = tpu.matmul %2, %3, %cst {dimension_numbers = #tpu.dot_dimension_numbers<[1], [0], [0], [1], [0, 0, 1, 1], [], []>} : vector<16x16xf32>, vector<16x32xf32>, vector<16x32xf32> -> vector<16x32xf32>
    %c0_7 = arith.constant 0 : index
    %c0_8 = arith.constant 0 : index
    %5 = vector.load %arg1[%c0_7, %c0_8] : memref<16x32xf32, #tpu.memory_space<vmem>>, vector<16x32xf32>
    %6 = arith.addf %4, %5 : vector<16x32xf32>
    %7 = vector.extract_strided_slice %0 {offsets = [8, 0], sizes = [1, 32], strides = [1, 1]} : vector<51x32xf32> to vector<1x32xf32>
    %8 = vector.extract_strided_slice %0 {offsets = [12, 0], sizes = [1, 32], strides = [1, 1]} : vector<51x32xf32> to vector<1x32xf32>
    %cst_9 = arith.constant dense<0.000000e+00> : vector<16xf32>
    %9 = vector.multi_reduction <add>, %6, %cst_9 [1] : vector<16x32xf32> to vector<16xf32>
    %10 = vector.shape_cast %9 : vector<16xf32> to vector<16x1xf32>
    %cst_10 = arith.constant 3.200000e+01 : f32
    %11 = vector.broadcast %cst_10 : f32 to vector<16x1xf32>
    %12 = arith.divf %10, %11 : vector<16x1xf32>
    %13 = vector.broadcast %12 : vector<16x1xf32> to vector<16x32xf32>
    %14 = arith.subf %6, %13 : vector<16x32xf32>
    %15 = arith.mulf %14, %14 : vector<16x32xf32>
    %cst_11 = arith.constant dense<0.000000e+00> : vector<16xf32>
    %16 = vector.multi_reduction <add>, %15, %cst_11 [1] : vector<16x32xf32> to vector<16xf32>
    %17 = vector.shape_cast %16 : vector<16xf32> to vector<16x1xf32>
    %cst_12 = arith.constant 3.200000e+01 : f32
    %18 = vector.broadcast %cst_12 : f32 to vector<16x1xf32>
    %19 = arith.divf %17, %18 : vector<16x1xf32>
    %cst_13 = arith.constant 9.99999974E-6 : f32
    %20 = vector.broadcast %cst_13 : f32 to vector<16x1xf32>
    %21 = arith.addf %19, %20 : vector<16x1xf32>
    %22 = math.rsqrt %21 : vector<16x1xf32>
    %23 = vector.broadcast %22 : vector<16x1xf32> to vector<16x32xf32>
    %24 = arith.mulf %14, %23 : vector<16x32xf32>
    %25 = vector.broadcast %7 : vector<1x32xf32> to vector<16x32xf32>
    %26 = arith.mulf %24, %25 : vector<16x32xf32>
    %27 = vector.broadcast %8 : vector<1x32xf32> to vector<16x32xf32>
    %28 = arith.addf %26, %27 : vector<16x32xf32>
    %c0_14 = arith.constant 0 : index
    %c0_15 = arith.constant 0 : index
    %c0_16 = arith.constant 0 : index
    %29 = vector.load %arg5[%c0_14, %c0_15, %c0_16] : memref<8x32x32xf32, #tpu.memory_space<vmem>>, vector<1x32x32xf32>
    %30 = vector.shape_cast %29 : vector<1x32x32xf32> to vector<32x32xf32>
    %c1 = arith.constant 1 : index
    %c0_17 = arith.constant 0 : index
    %c0_18 = arith.constant 0 : index
    %31 = vector.load %arg5[%c1, %c0_17, %c0_18] : memref<8x32x32xf32, #tpu.memory_space<vmem>>, vector<1x32x32xf32>
    %32 = vector.shape_cast %31 : vector<1x32x32xf32> to vector<32x32xf32>
    %c2 = arith.constant 2 : index
    %c0_19 = arith.constant 0 : index
    %c0_20 = arith.constant 0 : index
    %33 = vector.load %arg5[%c2, %c0_19, %c0_20] : memref<8x32x32xf32, #tpu.memory_space<vmem>>, vector<1x32x32xf32>
    %34 = vector.shape_cast %33 : vector<1x32x32xf32> to vector<32x32xf32>
    %c3 = arith.constant 3 : index
    %c0_21 = arith.constant 0 : index
    %c0_22 = arith.constant 0 : index
    %35 = vector.load %arg5[%c3, %c0_21, %c0_22] : memref<8x32x32xf32, #tpu.memory_space<vmem>>, vector<1x32x32xf32>
    %36 = vector.shape_cast %35 : vector<1x32x32xf32> to vector<32x32xf32>
    %cst_23 = arith.constant dense<0.000000e+00> : vector<16x32xf32>
    %37 = tpu.matmul %28, %30, %cst_23 {dimension_numbers = #tpu.dot_dimension_numbers<[1], [0], [0], [1], [0, 0, 1, 1], [], []>} : vector<16x32xf32>, vector<32x32xf32>, vector<16x32xf32> -> vector<16x32xf32>
    %38 = vector.extract_strided_slice %0 {offsets = [0, 0], sizes = [1, 32], strides = [1, 1]} : vector<51x32xf32> to vector<1x32xf32>
    %39 = vector.broadcast %38 : vector<1x32xf32> to vector<16x32xf32>
    %40 = arith.addf %37, %39 : vector<16x32xf32>
    %cst_24 = arith.constant dense<0.000000e+00> : vector<16x32xf32>
    %41 = tpu.matmul %28, %32, %cst_24 {dimension_numbers = #tpu.dot_dimension_numbers<[1], [0], [0], [1], [0, 0, 1, 1], [], []>} : vector<16x32xf32>, vector<32x32xf32>, vector<16x32xf32> -> vector<16x32xf32>
    %42 = vector.extract_strided_slice %0 {offsets = [1, 0], sizes = [1, 32], strides = [1, 1]} : vector<51x32xf32> to vector<1x32xf32>
    %43 = vector.broadcast %42 : vector<1x32xf32> to vector<16x32xf32>
    %44 = arith.addf %41, %43 : vector<16x32xf32>
    %cst_25 = arith.constant dense<0.000000e+00> : vector<16x32xf32>
    %45 = tpu.matmul %28, %34, %cst_25 {dimension_numbers = #tpu.dot_dimension_numbers<[1], [0], [0], [1], [0, 0, 1, 1], [], []>} : vector<16x32xf32>, vector<32x32xf32>, vector<16x32xf32> -> vector<16x32xf32>
    %46 = vector.extract_strided_slice %0 {offsets = [2, 0], sizes = [1, 32], strides = [1, 1]} : vector<51x32xf32> to vector<1x32xf32>
    %47 = vector.broadcast %46 : vector<1x32xf32> to vector<16x32xf32>
    %48 = arith.addf %45, %47 : vector<16x32xf32>
    %49 = vector.extract_strided_slice %0 {offsets = [3, 0], sizes = [1, 32], strides = [1, 1]} : vector<51x32xf32> to vector<1x32xf32>
    %50 = vector.extract_strided_slice %40 {offsets = [0, 0], sizes = [16, 16], strides = [1, 1]} : vector<16x32xf32> to vector<16x16xf32>
    %51 = vector.shape_cast %50 : vector<16x16xf32> to vector<2x8x16xf32>
    %52 = vector.extract_strided_slice %44 {offsets = [0, 0], sizes = [16, 16], strides = [1, 1]} : vector<16x32xf32> to vector<16x16xf32>
    %53 = vector.shape_cast %52 : vector<16x16xf32> to vector<2x8x16xf32>
    %54 = vector.extract_strided_slice %48 {offsets = [0, 0], sizes = [16, 16], strides = [1, 1]} : vector<16x32xf32> to vector<16x16xf32>
    %55 = vector.shape_cast %54 : vector<16x16xf32> to vector<2x8x16xf32>
    "tpu.trace_start"() <{level = 10 : i32, message = "bqd,bkd->bqk"}> : () -> ()
    %cst_26 = arith.constant dense<0.000000e+00> : vector<2x8x8xf32>
    %56 = tpu.matmul %51, %53, %cst_26 {dimension_numbers = #tpu.dot_dimension_numbers<[2], [2], [1], [1], [0, 0, 0, 1, 1, 1], [0], [0]>} : vector<2x8x16xf32>, vector<2x8x16xf32>, vector<2x8x8xf32> -> vector<2x8x8xf32>
    "tpu.trace_stop"() : () -> ()
    %cst_27 = arith.constant 2.500000e-01 : f32
    %57 = vector.broadcast %cst_27 : f32 to vector<2x8x8xf32>
    %58 = arith.mulf %56, %57 : vector<2x8x8xf32>
    %cst_28 = arith.constant dense<0xFF800000> : vector<2x8xf32>
    %59 = vector.multi_reduction <maximumf>, %58, %cst_28 [2] : vector<2x8x8xf32> to vector<2x8xf32>
    %60 = vector.shape_cast %59 : vector<2x8xf32> to vector<2x8x1xf32>
    %61 = vector.broadcast %60 : vector<2x8x1xf32> to vector<2x8x8xf32>
    %62 = arith.subf %58, %61 : vector<2x8x8xf32>
    %63 = math.exp %62 : vector<2x8x8xf32>
    %cst_29 = arith.constant dense<0.000000e+00> : vector<2x8xf32>
    %64 = vector.multi_reduction <add>, %63, %cst_29 [2] : vector<2x8x8xf32> to vector<2x8xf32>
    %65 = vector.shape_cast %64 : vector<2x8xf32> to vector<2x8x1xf32>
    %66 = vector.broadcast %65 : vector<2x8x1xf32> to vector<2x8x8xf32>
    %67 = arith.divf %63, %66 : vector<2x8x8xf32>
    "tpu.trace_start"() <{level = 10 : i32, message = "bqk,bkd->bqd"}> : () -> ()
    %cst_30 = arith.constant dense<0.000000e+00> : vector<2x8x16xf32>
    %68 = tpu.matmul %67, %55, %cst_30 {dimension_numbers = #tpu.dot_dimension_numbers<[2], [1], [1], [2], [0, 0, 0, 1, 1, 2], [0], [0]>} : vector<2x8x8xf32>, vector<2x8x16xf32>, vector<2x8x16xf32> -> vector<2x8x16xf32>
    "tpu.trace_stop"() : () -> ()
    %69 = vector.shape_cast %68 : vector<2x8x16xf32> to vector<16x16xf32>
    %70 = vector.extract_strided_slice %36 {offsets = [0, 0], sizes = [16, 32], strides = [1, 1]} : vector<32x32xf32> to vector<16x32xf32>
    %cst_31 = arith.constant dense<0.000000e+00> : vector<16x32xf32>
    %71 = tpu.matmul %69, %70, %cst_31 {dimension_numbers = #tpu.dot_dimension_numbers<[1], [0], [0], [1], [0, 0, 1, 1], [], []>} : vector<16x16xf32>, vector<16x32xf32>, vector<16x32xf32> -> vector<16x32xf32>
    %72 = vector.broadcast %49 : vector<1x32xf32> to vector<16x32xf32>
    %73 = arith.addf %72, %71 : vector<16x32xf32>
    %74 = vector.extract_strided_slice %40 {offsets = [0, 16], sizes = [16, 16], strides = [1, 1]} : vector<16x32xf32> to vector<16x16xf32>
    %75 = vector.shape_cast %74 : vector<16x16xf32> to vector<2x8x16xf32>
    %76 = vector.extract_strided_slice %44 {offsets = [0, 16], sizes = [16, 16], strides = [1, 1]} : vector<16x32xf32> to vector<16x16xf32>
    %77 = vector.shape_cast %76 : vector<16x16xf32> to vector<2x8x16xf32>
    %78 = vector.extract_strided_slice %48 {offsets = [0, 16], sizes = [16, 16], strides = [1, 1]} : vector<16x32xf32> to vector<16x16xf32>
    %79 = vector.shape_cast %78 : vector<16x16xf32> to vector<2x8x16xf32>
    "tpu.trace_start"() <{level = 10 : i32, message = "bqd,bkd->bqk"}> : () -> ()
    %cst_32 = arith.constant dense<0.000000e+00> : vector<2x8x8xf32>
    %80 = tpu.matmul %75, %77, %cst_32 {dimension_numbers = #tpu.dot_dimension_numbers<[2], [2], [1], [1], [0, 0, 0, 1, 1, 1], [0], [0]>} : vector<2x8x16xf32>, vector<2x8x16xf32>, vector<2x8x8xf32> -> vector<2x8x8xf32>
    "tpu.trace_stop"() : () -> ()
    %cst_33 = arith.constant 2.500000e-01 : f32
    %81 = vector.broadcast %cst_33 : f32 to vector<2x8x8xf32>
    %82 = arith.mulf %80, %81 : vector<2x8x8xf32>
    %cst_34 = arith.constant dense<0xFF800000> : vector<2x8xf32>
    %83 = vector.multi_reduction <maximumf>, %82, %cst_34 [2] : vector<2x8x8xf32> to vector<2x8xf32>
    %84 = vector.shape_cast %83 : vector<2x8xf32> to vector<2x8x1xf32>
    %85 = vector.broadcast %84 : vector<2x8x1xf32> to vector<2x8x8xf32>
    %86 = arith.subf %82, %85 : vector<2x8x8xf32>
    %87 = math.exp %86 : vector<2x8x8xf32>
    %cst_35 = arith.constant dense<0.000000e+00> : vector<2x8xf32>
    %88 = vector.multi_reduction <add>, %87, %cst_35 [2] : vector<2x8x8xf32> to vector<2x8xf32>
    %89 = vector.shape_cast %88 : vector<2x8xf32> to vector<2x8x1xf32>
    %90 = vector.broadcast %89 : vector<2x8x1xf32> to vector<2x8x8xf32>
    %91 = arith.divf %87, %90 : vector<2x8x8xf32>
    "tpu.trace_start"() <{level = 10 : i32, message = "bqk,bkd->bqd"}> : () -> ()
    %cst_36 = arith.constant dense<0.000000e+00> : vector<2x8x16xf32>
    %92 = tpu.matmul %91, %79, %cst_36 {dimension_numbers = #tpu.dot_dimension_numbers<[2], [1], [1], [2], [0, 0, 0, 1, 1, 2], [0], [0]>} : vector<2x8x8xf32>, vector<2x8x16xf32>, vector<2x8x16xf32> -> vector<2x8x16xf32>
    "tpu.trace_stop"() : () -> ()
    %93 = vector.shape_cast %92 : vector<2x8x16xf32> to vector<16x16xf32>
    %94 = vector.extract_strided_slice %36 {offsets = [16, 0], sizes = [16, 32], strides = [1, 1]} : vector<32x32xf32> to vector<16x32xf32>
    %cst_37 = arith.constant dense<0.000000e+00> : vector<16x32xf32>
    %95 = tpu.matmul %93, %94, %cst_37 {dimension_numbers = #tpu.dot_dimension_numbers<[1], [0], [0], [1], [0, 0, 1, 1], [], []>} : vector<16x16xf32>, vector<16x32xf32>, vector<16x32xf32> -> vector<16x32xf32>
    %96 = arith.addf %73, %95 : vector<16x32xf32>
    %97 = arith.addf %6, %96 : vector<16x32xf32>
    %98 = vector.extract_strided_slice %0 {offsets = [9, 0], sizes = [1, 32], strides = [1, 1]} : vector<51x32xf32> to vector<1x32xf32>
    %99 = vector.extract_strided_slice %0 {offsets = [13, 0], sizes = [1, 32], strides = [1, 1]} : vector<51x32xf32> to vector<1x32xf32>
    %cst_38 = arith.constant dense<0.000000e+00> : vector<16xf32>
    %100 = vector.multi_reduction <add>, %97, %cst_38 [1] : vector<16x32xf32> to vector<16xf32>
    %101 = vector.shape_cast %100 : vector<16xf32> to vector<16x1xf32>
    %cst_39 = arith.constant 3.200000e+01 : f32
    %102 = vector.broadcast %cst_39 : f32 to vector<16x1xf32>
    %103 = arith.divf %101, %102 : vector<16x1xf32>
    %104 = vector.broadcast %103 : vector<16x1xf32> to vector<16x32xf32>
    %105 = arith.subf %97, %104 : vector<16x32xf32>
    %106 = arith.mulf %105, %105 : vector<16x32xf32>
    %cst_40 = arith.constant dense<0.000000e+00> : vector<16xf32>
    %107 = vector.multi_reduction <add>, %106, %cst_40 [1] : vector<16x32xf32> to vector<16xf32>
    %108 = vector.shape_cast %107 : vector<16xf32> to vector<16x1xf32>
    %cst_41 = arith.constant 3.200000e+01 : f32
    %109 = vector.broadcast %cst_41 : f32 to vector<16x1xf32>
    %110 = arith.divf %108, %109 : vector<16x1xf32>
    %cst_42 = arith.constant 9.99999974E-6 : f32
    %111 = vector.broadcast %cst_42 : f32 to vector<16x1xf32>
    %112 = arith.addf %110, %111 : vector<16x1xf32>
    %113 = math.rsqrt %112 : vector<16x1xf32>
    %114 = vector.broadcast %113 : vector<16x1xf32> to vector<16x32xf32>
    %115 = arith.mulf %105, %114 : vector<16x32xf32>
    %116 = vector.broadcast %98 : vector<1x32xf32> to vector<16x32xf32>
    %117 = arith.mulf %115, %116 : vector<16x32xf32>
    %118 = vector.broadcast %99 : vector<1x32xf32> to vector<16x32xf32>
    %119 = arith.addf %117, %118 : vector<16x32xf32>
    %120 = vector.extract_strided_slice %1 {offsets = [0, 0], sizes = [1, 64], strides = [1, 1]} : vector<4x64xf32> to vector<1x64xf32>
    %121 = vector.extract_strided_slice %0 {offsets = [16, 0], sizes = [1, 32], strides = [1, 1]} : vector<51x32xf32> to vector<1x32xf32>
    %c0_43 = arith.constant 0 : index
    %c0_44 = arith.constant 0 : index
    %c0_45 = arith.constant 0 : index
    %122 = vector.load %arg6[%c0_43, %c0_44, %c0_45] : memref<2x32x64xf32, #tpu.memory_space<vmem>>, vector<1x32x64xf32>
    %123 = vector.shape_cast %122 : vector<1x32x64xf32> to vector<32x64xf32>
    %cst_46 = arith.constant dense<0.000000e+00> : vector<16x64xf32>
    %124 = tpu.matmul %119, %123, %cst_46 {dimension_numbers = #tpu.dot_dimension_numbers<[1], [0], [0], [1], [0, 0, 1, 1], [], []>} : vector<16x32xf32>, vector<32x64xf32>, vector<16x64xf32> -> vector<16x64xf32>
    %125 = vector.broadcast %120 : vector<1x64xf32> to vector<16x64xf32>
    %126 = arith.addf %124, %125 : vector<16x64xf32>
    %cst_47 = arith.constant 0.000000e+00 : f32
    %127 = vector.broadcast %cst_47 : f32 to vector<16x64xf32>
    %128 = arith.maximumf %126, %127 : vector<16x64xf32>
    %c0_48 = arith.constant 0 : index
    %c0_49 = arith.constant 0 : index
    %c0_50 = arith.constant 0 : index
    %129 = vector.load %arg7[%c0_48, %c0_49, %c0_50] : memref<2x64x32xf32, #tpu.memory_space<vmem>>, vector<1x64x32xf32>
    %130 = vector.shape_cast %129 : vector<1x64x32xf32> to vector<64x32xf32>
    %cst_51 = arith.constant dense<0.000000e+00> : vector<16x32xf32>
    %131 = tpu.matmul %128, %130, %cst_51 {dimension_numbers = #tpu.dot_dimension_numbers<[1], [0], [0], [1], [0, 0, 1, 1], [], []>} : vector<16x64xf32>, vector<64x32xf32>, vector<16x32xf32> -> vector<16x32xf32>
    %132 = vector.broadcast %121 : vector<1x32xf32> to vector<16x32xf32>
    %133 = arith.addf %131, %132 : vector<16x32xf32>
    %134 = arith.addf %97, %133 : vector<16x32xf32>
    %135 = vector.extract_strided_slice %0 {offsets = [10, 0], sizes = [1, 32], strides = [1, 1]} : vector<51x32xf32> to vector<1x32xf32>
    %136 = vector.extract_strided_slice %0 {offsets = [14, 0], sizes = [1, 32], strides = [1, 1]} : vector<51x32xf32> to vector<1x32xf32>
    %cst_52 = arith.constant dense<0.000000e+00> : vector<16xf32>
    %137 = vector.multi_reduction <add>, %134, %cst_52 [1] : vector<16x32xf32> to vector<16xf32>
    %138 = vector.shape_cast %137 : vector<16xf32> to vector<16x1xf32>
    %cst_53 = arith.constant 3.200000e+01 : f32
    %139 = vector.broadcast %cst_53 : f32 to vector<16x1xf32>
    %140 = arith.divf %138, %139 : vector<16x1xf32>
    %141 = vector.broadcast %140 : vector<16x1xf32> to vector<16x32xf32>
    %142 = arith.subf %134, %141 : vector<16x32xf32>
    %143 = arith.mulf %142, %142 : vector<16x32xf32>
    %cst_54 = arith.constant dense<0.000000e+00> : vector<16xf32>
    %144 = vector.multi_reduction <add>, %143, %cst_54 [1] : vector<16x32xf32> to vector<16xf32>
    %145 = vector.shape_cast %144 : vector<16xf32> to vector<16x1xf32>
    %cst_55 = arith.constant 3.200000e+01 : f32
    %146 = vector.broadcast %cst_55 : f32 to vector<16x1xf32>
    %147 = arith.divf %145, %146 : vector<16x1xf32>
    %cst_56 = arith.constant 9.99999974E-6 : f32
    %148 = vector.broadcast %cst_56 : f32 to vector<16x1xf32>
    %149 = arith.addf %147, %148 : vector<16x1xf32>
    %150 = math.rsqrt %149 : vector<16x1xf32>
    %151 = vector.broadcast %150 : vector<16x1xf32> to vector<16x32xf32>
    %152 = arith.mulf %142, %151 : vector<16x32xf32>
    %153 = vector.broadcast %135 : vector<1x32xf32> to vector<16x32xf32>
    %154 = arith.mulf %152, %153 : vector<16x32xf32>
    %155 = vector.broadcast %136 : vector<1x32xf32> to vector<16x32xf32>
    %156 = arith.addf %154, %155 : vector<16x32xf32>
    %c4 = arith.constant 4 : index
    %c0_57 = arith.constant 0 : index
    %c0_58 = arith.constant 0 : index
    %157 = vector.load %arg5[%c4, %c0_57, %c0_58] : memref<8x32x32xf32, #tpu.memory_space<vmem>>, vector<1x32x32xf32>
    %158 = vector.shape_cast %157 : vector<1x32x32xf32> to vector<32x32xf32>
    %c5 = arith.constant 5 : index
    %c0_59 = arith.constant 0 : index
    %c0_60 = arith.constant 0 : index
    %159 = vector.load %arg5[%c5, %c0_59, %c0_60] : memref<8x32x32xf32, #tpu.memory_space<vmem>>, vector<1x32x32xf32>
    %160 = vector.shape_cast %159 : vector<1x32x32xf32> to vector<32x32xf32>
    %c6 = arith.constant 6 : index
    %c0_61 = arith.constant 0 : index
    %c0_62 = arith.constant 0 : index
    %161 = vector.load %arg5[%c6, %c0_61, %c0_62] : memref<8x32x32xf32, #tpu.memory_space<vmem>>, vector<1x32x32xf32>
    %162 = vector.shape_cast %161 : vector<1x32x32xf32> to vector<32x32xf32>
    %c7 = arith.constant 7 : index
    %c0_63 = arith.constant 0 : index
    %c0_64 = arith.constant 0 : index
    %163 = vector.load %arg5[%c7, %c0_63, %c0_64] : memref<8x32x32xf32, #tpu.memory_space<vmem>>, vector<1x32x32xf32>
    %164 = vector.shape_cast %163 : vector<1x32x32xf32> to vector<32x32xf32>
    %cst_65 = arith.constant dense<0.000000e+00> : vector<16x32xf32>
    %165 = tpu.matmul %156, %158, %cst_65 {dimension_numbers = #tpu.dot_dimension_numbers<[1], [0], [0], [1], [0, 0, 1, 1], [], []>} : vector<16x32xf32>, vector<32x32xf32>, vector<16x32xf32> -> vector<16x32xf32>
    %166 = vector.extract_strided_slice %0 {offsets = [4, 0], sizes = [1, 32], strides = [1, 1]} : vector<51x32xf32> to vector<1x32xf32>
    %167 = vector.broadcast %166 : vector<1x32xf32> to vector<16x32xf32>
    %168 = arith.addf %165, %167 : vector<16x32xf32>
    %cst_66 = arith.constant dense<0.000000e+00> : vector<16x32xf32>
    %169 = tpu.matmul %156, %160, %cst_66 {dimension_numbers = #tpu.dot_dimension_numbers<[1], [0], [0], [1], [0, 0, 1, 1], [], []>} : vector<16x32xf32>, vector<32x32xf32>, vector<16x32xf32> -> vector<16x32xf32>
    %170 = vector.extract_strided_slice %0 {offsets = [5, 0], sizes = [1, 32], strides = [1, 1]} : vector<51x32xf32> to vector<1x32xf32>
    %171 = vector.broadcast %170 : vector<1x32xf32> to vector<16x32xf32>
    %172 = arith.addf %169, %171 : vector<16x32xf32>
    %cst_67 = arith.constant dense<0.000000e+00> : vector<16x32xf32>
    %173 = tpu.matmul %156, %162, %cst_67 {dimension_numbers = #tpu.dot_dimension_numbers<[1], [0], [0], [1], [0, 0, 1, 1], [], []>} : vector<16x32xf32>, vector<32x32xf32>, vector<16x32xf32> -> vector<16x32xf32>
    %174 = vector.extract_strided_slice %0 {offsets = [6, 0], sizes = [1, 32], strides = [1, 1]} : vector<51x32xf32> to vector<1x32xf32>
    %175 = vector.broadcast %174 : vector<1x32xf32> to vector<16x32xf32>
    %176 = arith.addf %173, %175 : vector<16x32xf32>
    %177 = vector.extract_strided_slice %0 {offsets = [7, 0], sizes = [1, 32], strides = [1, 1]} : vector<51x32xf32> to vector<1x32xf32>
    %178 = vector.extract_strided_slice %168 {offsets = [0, 0], sizes = [16, 16], strides = [1, 1]} : vector<16x32xf32> to vector<16x16xf32>
    %179 = vector.shape_cast %178 : vector<16x16xf32> to vector<2x8x16xf32>
    %180 = vector.extract_strided_slice %172 {offsets = [0, 0], sizes = [16, 16], strides = [1, 1]} : vector<16x32xf32> to vector<16x16xf32>
    %181 = vector.shape_cast %180 : vector<16x16xf32> to vector<2x8x16xf32>
    %182 = vector.extract_strided_slice %176 {offsets = [0, 0], sizes = [16, 16], strides = [1, 1]} : vector<16x32xf32> to vector<16x16xf32>
    %183 = vector.shape_cast %182 : vector<16x16xf32> to vector<2x8x16xf32>
    "tpu.trace_start"() <{level = 10 : i32, message = "bqd,bkd->bqk"}> : () -> ()
    %cst_68 = arith.constant dense<0.000000e+00> : vector<2x8x8xf32>
    %184 = tpu.matmul %179, %181, %cst_68 {dimension_numbers = #tpu.dot_dimension_numbers<[2], [2], [1], [1], [0, 0, 0, 1, 1, 1], [0], [0]>} : vector<2x8x16xf32>, vector<2x8x16xf32>, vector<2x8x8xf32> -> vector<2x8x8xf32>
    "tpu.trace_stop"() : () -> ()
    %cst_69 = arith.constant 2.500000e-01 : f32
    %185 = vector.broadcast %cst_69 : f32 to vector<2x8x8xf32>
    %186 = arith.mulf %184, %185 : vector<2x8x8xf32>
    %cst_70 = arith.constant dense<0xFF800000> : vector<2x8xf32>
    %187 = vector.multi_reduction <maximumf>, %186, %cst_70 [2] : vector<2x8x8xf32> to vector<2x8xf32>
    %188 = vector.shape_cast %187 : vector<2x8xf32> to vector<2x8x1xf32>
    %189 = vector.broadcast %188 : vector<2x8x1xf32> to vector<2x8x8xf32>
    %190 = arith.subf %186, %189 : vector<2x8x8xf32>
    %191 = math.exp %190 : vector<2x8x8xf32>
    %cst_71 = arith.constant dense<0.000000e+00> : vector<2x8xf32>
    %192 = vector.multi_reduction <add>, %191, %cst_71 [2] : vector<2x8x8xf32> to vector<2x8xf32>
    %193 = vector.shape_cast %192 : vector<2x8xf32> to vector<2x8x1xf32>
    %194 = vector.broadcast %193 : vector<2x8x1xf32> to vector<2x8x8xf32>
    %195 = arith.divf %191, %194 : vector<2x8x8xf32>
    "tpu.trace_start"() <{level = 10 : i32, message = "bqk,bkd->bqd"}> : () -> ()
    %cst_72 = arith.constant dense<0.000000e+00> : vector<2x8x16xf32>
    %196 = tpu.matmul %195, %183, %cst_72 {dimension_numbers = #tpu.dot_dimension_numbers<[2], [1], [1], [2], [0, 0, 0, 1, 1, 2], [0], [0]>} : vector<2x8x8xf32>, vector<2x8x16xf32>, vector<2x8x16xf32> -> vector<2x8x16xf32>
    "tpu.trace_stop"() : () -> ()
    %197 = vector.shape_cast %196 : vector<2x8x16xf32> to vector<16x16xf32>
    %198 = vector.extract_strided_slice %164 {offsets = [0, 0], sizes = [16, 32], strides = [1, 1]} : vector<32x32xf32> to vector<16x32xf32>
    %cst_73 = arith.constant dense<0.000000e+00> : vector<16x32xf32>
    %199 = tpu.matmul %197, %198, %cst_73 {dimension_numbers = #tpu.dot_dimension_numbers<[1], [0], [0], [1], [0, 0, 1, 1], [], []>} : vector<16x16xf32>, vector<16x32xf32>, vector<16x32xf32> -> vector<16x32xf32>
    %200 = vector.broadcast %177 : vector<1x32xf32> to vector<16x32xf32>
    %201 = arith.addf %200, %199 : vector<16x32xf32>
    %202 = vector.extract_strided_slice %168 {offsets = [0, 16], sizes = [16, 16], strides = [1, 1]} : vector<16x32xf32> to vector<16x16xf32>
    %203 = vector.shape_cast %202 : vector<16x16xf32> to vector<2x8x16xf32>
    %204 = vector.extract_strided_slice %172 {offsets = [0, 16], sizes = [16, 16], strides = [1, 1]} : vector<16x32xf32> to vector<16x16xf32>
    %205 = vector.shape_cast %204 : vector<16x16xf32> to vector<2x8x16xf32>
    %206 = vector.extract_strided_slice %176 {offsets = [0, 16], sizes = [16, 16], strides = [1, 1]} : vector<16x32xf32> to vector<16x16xf32>
    %207 = vector.shape_cast %206 : vector<16x16xf32> to vector<2x8x16xf32>
    "tpu.trace_start"() <{level = 10 : i32, message = "bqd,bkd->bqk"}> : () -> ()
    %cst_74 = arith.constant dense<0.000000e+00> : vector<2x8x8xf32>
    %208 = tpu.matmul %203, %205, %cst_74 {dimension_numbers = #tpu.dot_dimension_numbers<[2], [2], [1], [1], [0, 0, 0, 1, 1, 1], [0], [0]>} : vector<2x8x16xf32>, vector<2x8x16xf32>, vector<2x8x8xf32> -> vector<2x8x8xf32>
    "tpu.trace_stop"() : () -> ()
    %cst_75 = arith.constant 2.500000e-01 : f32
    %209 = vector.broadcast %cst_75 : f32 to vector<2x8x8xf32>
    %210 = arith.mulf %208, %209 : vector<2x8x8xf32>
    %cst_76 = arith.constant dense<0xFF800000> : vector<2x8xf32>
    %211 = vector.multi_reduction <maximumf>, %210, %cst_76 [2] : vector<2x8x8xf32> to vector<2x8xf32>
    %212 = vector.shape_cast %211 : vector<2x8xf32> to vector<2x8x1xf32>
    %213 = vector.broadcast %212 : vector<2x8x1xf32> to vector<2x8x8xf32>
    %214 = arith.subf %210, %213 : vector<2x8x8xf32>
    %215 = math.exp %214 : vector<2x8x8xf32>
    %cst_77 = arith.constant dense<0.000000e+00> : vector<2x8xf32>
    %216 = vector.multi_reduction <add>, %215, %cst_77 [2] : vector<2x8x8xf32> to vector<2x8xf32>
    %217 = vector.shape_cast %216 : vector<2x8xf32> to vector<2x8x1xf32>
    %218 = vector.broadcast %217 : vector<2x8x1xf32> to vector<2x8x8xf32>
    %219 = arith.divf %215, %218 : vector<2x8x8xf32>
    "tpu.trace_start"() <{level = 10 : i32, message = "bqk,bkd->bqd"}> : () -> ()
    %cst_78 = arith.constant dense<0.000000e+00> : vector<2x8x16xf32>
    %220 = tpu.matmul %219, %207, %cst_78 {dimension_numbers = #tpu.dot_dimension_numbers<[2], [1], [1], [2], [0, 0, 0, 1, 1, 2], [0], [0]>} : vector<2x8x8xf32>, vector<2x8x16xf32>, vector<2x8x16xf32> -> vector<2x8x16xf32>
    "tpu.trace_stop"() : () -> ()
    %221 = vector.shape_cast %220 : vector<2x8x16xf32> to vector<16x16xf32>
    %222 = vector.extract_strided_slice %164 {offsets = [16, 0], sizes = [16, 32], strides = [1, 1]} : vector<32x32xf32> to vector<16x32xf32>
    %cst_79 = arith.constant dense<0.000000e+00> : vector<16x32xf32>
    %223 = tpu.matmul %221, %222, %cst_79 {dimension_numbers = #tpu.dot_dimension_numbers<[1], [0], [0], [1], [0, 0, 1, 1], [], []>} : vector<16x16xf32>, vector<16x32xf32>, vector<16x32xf32> -> vector<16x32xf32>
    %224 = arith.addf %201, %223 : vector<16x32xf32>
    %225 = arith.addf %134, %224 : vector<16x32xf32>
    %226 = vector.extract_strided_slice %0 {offsets = [11, 0], sizes = [1, 32], strides = [1, 1]} : vector<51x32xf32> to vector<1x32xf32>
    %227 = vector.extract_strided_slice %0 {offsets = [15, 0], sizes = [1, 32], strides = [1, 1]} : vector<51x32xf32> to vector<1x32xf32>
    %cst_80 = arith.constant dense<0.000000e+00> : vector<16xf32>
    %228 = vector.multi_reduction <add>, %225, %cst_80 [1] : vector<16x32xf32> to vector<16xf32>
    %229 = vector.shape_cast %228 : vector<16xf32> to vector<16x1xf32>
    %cst_81 = arith.constant 3.200000e+01 : f32
    %230 = vector.broadcast %cst_81 : f32 to vector<16x1xf32>
    %231 = arith.divf %229, %230 : vector<16x1xf32>
    %232 = vector.broadcast %231 : vector<16x1xf32> to vector<16x32xf32>
    %233 = arith.subf %225, %232 : vector<16x32xf32>
    %234 = arith.mulf %233, %233 : vector<16x32xf32>
    %cst_82 = arith.constant dense<0.000000e+00> : vector<16xf32>
    %235 = vector.multi_reduction <add>, %234, %cst_82 [1] : vector<16x32xf32> to vector<16xf32>
    %236 = vector.shape_cast %235 : vector<16xf32> to vector<16x1xf32>
    %cst_83 = arith.constant 3.200000e+01 : f32
    %237 = vector.broadcast %cst_83 : f32 to vector<16x1xf32>
    %238 = arith.divf %236, %237 : vector<16x1xf32>
    %cst_84 = arith.constant 9.99999974E-6 : f32
    %239 = vector.broadcast %cst_84 : f32 to vector<16x1xf32>
    %240 = arith.addf %238, %239 : vector<16x1xf32>
    %241 = math.rsqrt %240 : vector<16x1xf32>
    %242 = vector.broadcast %241 : vector<16x1xf32> to vector<16x32xf32>
    %243 = arith.mulf %233, %242 : vector<16x32xf32>
    %244 = vector.broadcast %226 : vector<1x32xf32> to vector<16x32xf32>
    %245 = arith.mulf %243, %244 : vector<16x32xf32>
    %246 = vector.broadcast %227 : vector<1x32xf32> to vector<16x32xf32>
    %247 = arith.addf %245, %246 : vector<16x32xf32>
    %248 = vector.extract_strided_slice %1 {offsets = [1, 0], sizes = [1, 64], strides = [1, 1]} : vector<4x64xf32> to vector<1x64xf32>
    %249 = vector.extract_strided_slice %0 {offsets = [17, 0], sizes = [1, 32], strides = [1, 1]} : vector<51x32xf32> to vector<1x32xf32>
    %c1_85 = arith.constant 1 : index
    %c0_86 = arith.constant 0 : index
    %c0_87 = arith.constant 0 : index
    %250 = vector.load %arg6[%c1_85, %c0_86, %c0_87] : memref<2x32x64xf32, #tpu.memory_space<vmem>>, vector<1x32x64xf32>
    %251 = vector.shape_cast %250 : vector<1x32x64xf32> to vector<32x64xf32>
    %cst_88 = arith.constant dense<0.000000e+00> : vector<16x64xf32>
    %252 = tpu.matmul %247, %251, %cst_88 {dimension_numbers = #tpu.dot_dimension_numbers<[1], [0], [0], [1], [0, 0, 1, 1], [], []>} : vector<16x32xf32>, vector<32x64xf32>, vector<16x64xf32> -> vector<16x64xf32>
    %253 = vector.broadcast %248 : vector<1x64xf32> to vector<16x64xf32>
    %254 = arith.addf %252, %253 : vector<16x64xf32>
    %cst_89 = arith.constant 0.000000e+00 : f32
    %255 = vector.broadcast %cst_89 : f32 to vector<16x64xf32>
    %256 = arith.maximumf %254, %255 : vector<16x64xf32>
    %c1_90 = arith.constant 1 : index
    %c0_91 = arith.constant 0 : index
    %c0_92 = arith.constant 0 : index
    %257 = vector.load %arg7[%c1_90, %c0_91, %c0_92] : memref<2x64x32xf32, #tpu.memory_space<vmem>>, vector<1x64x32xf32>
    %258 = vector.shape_cast %257 : vector<1x64x32xf32> to vector<64x32xf32>
    %cst_93 = arith.constant dense<0.000000e+00> : vector<16x32xf32>
    %259 = tpu.matmul %256, %258, %cst_93 {dimension_numbers = #tpu.dot_dimension_numbers<[1], [0], [0], [1], [0, 0, 1, 1], [], []>} : vector<16x64xf32>, vector<64x32xf32>, vector<16x32xf32> -> vector<16x32xf32>
    %260 = vector.broadcast %249 : vector<1x32xf32> to vector<16x32xf32>
    %261 = arith.addf %259, %260 : vector<16x32xf32>
    %262 = arith.addf %225, %261 : vector<16x32xf32>
    %263 = vector.extract_strided_slice %0 {offsets = [18, 0], sizes = [1, 32], strides = [1, 1]} : vector<51x32xf32> to vector<1x32xf32>
    %264 = vector.extract_strided_slice %0 {offsets = [19, 0], sizes = [1, 32], strides = [1, 1]} : vector<51x32xf32> to vector<1x32xf32>
    %cst_94 = arith.constant dense<0.000000e+00> : vector<16xf32>
    %265 = vector.multi_reduction <add>, %262, %cst_94 [1] : vector<16x32xf32> to vector<16xf32>
    %266 = vector.shape_cast %265 : vector<16xf32> to vector<16x1xf32>
    %cst_95 = arith.constant 3.200000e+01 : f32
    %267 = vector.broadcast %cst_95 : f32 to vector<16x1xf32>
    %268 = arith.divf %266, %267 : vector<16x1xf32>
    %269 = vector.broadcast %268 : vector<16x1xf32> to vector<16x32xf32>
    %270 = arith.subf %262, %269 : vector<16x32xf32>
    %271 = arith.mulf %270, %270 : vector<16x32xf32>
    %cst_96 = arith.constant dense<0.000000e+00> : vector<16xf32>
    %272 = vector.multi_reduction <add>, %271, %cst_96 [1] : vector<16x32xf32> to vector<16xf32>
    %273 = vector.shape_cast %272 : vector<16xf32> to vector<16x1xf32>
    %cst_97 = arith.constant 3.200000e+01 : f32
    %274 = vector.broadcast %cst_97 : f32 to vector<16x1xf32>
    %275 = arith.divf %273, %274 : vector<16x1xf32>
    %cst_98 = arith.constant 9.99999974E-6 : f32
    %276 = vector.broadcast %cst_98 : f32 to vector<16x1xf32>
    %277 = arith.addf %275, %276 : vector<16x1xf32>
    %278 = math.rsqrt %277 : vector<16x1xf32>
    %279 = vector.broadcast %278 : vector<16x1xf32> to vector<16x32xf32>
    %280 = arith.mulf %270, %279 : vector<16x32xf32>
    %281 = vector.broadcast %263 : vector<1x32xf32> to vector<16x32xf32>
    %282 = arith.mulf %280, %281 : vector<16x32xf32>
    %283 = vector.broadcast %264 : vector<1x32xf32> to vector<16x32xf32>
    %284 = arith.addf %282, %283 : vector<16x32xf32>
    %285 = vector.extract_strided_slice %0 {offsets = [48, 0], sizes = [1, 32], strides = [1, 1]} : vector<51x32xf32> to vector<1x32xf32>
    %286 = vector.shape_cast %285 : vector<1x32xf32> to vector<1x32xf32>
    %287 = vector.broadcast %286 : vector<1x32xf32> to vector<2x32xf32>
    %288 = vector.extract_strided_slice %0 {offsets = [32, 0], sizes = [1, 32], strides = [1, 1]} : vector<51x32xf32> to vector<1x32xf32>
    %289 = vector.extract_strided_slice %0 {offsets = [38, 0], sizes = [1, 32], strides = [1, 1]} : vector<51x32xf32> to vector<1x32xf32>
    %cst_99 = arith.constant dense<0.000000e+00> : vector<2xf32>
    %290 = vector.multi_reduction <add>, %287, %cst_99 [1] : vector<2x32xf32> to vector<2xf32>
    %291 = vector.shape_cast %290 : vector<2xf32> to vector<2x1xf32>
    %cst_100 = arith.constant 3.200000e+01 : f32
    %292 = vector.broadcast %cst_100 : f32 to vector<2x1xf32>
    %293 = arith.divf %291, %292 : vector<2x1xf32>
    %294 = vector.broadcast %293 : vector<2x1xf32> to vector<2x32xf32>
    %295 = arith.subf %287, %294 : vector<2x32xf32>
    %296 = arith.mulf %295, %295 : vector<2x32xf32>
    %cst_101 = arith.constant dense<0.000000e+00> : vector<2xf32>
    %297 = vector.multi_reduction <add>, %296, %cst_101 [1] : vector<2x32xf32> to vector<2xf32>
    %298 = vector.shape_cast %297 : vector<2xf32> to vector<2x1xf32>
    %cst_102 = arith.constant 3.200000e+01 : f32
    %299 = vector.broadcast %cst_102 : f32 to vector<2x1xf32>
    %300 = arith.divf %298, %299 : vector<2x1xf32>
    %cst_103 = arith.constant 9.99999974E-6 : f32
    %301 = vector.broadcast %cst_103 : f32 to vector<2x1xf32>
    %302 = arith.addf %300, %301 : vector<2x1xf32>
    %303 = math.rsqrt %302 : vector<2x1xf32>
    %304 = vector.broadcast %303 : vector<2x1xf32> to vector<2x32xf32>
    %305 = arith.mulf %295, %304 : vector<2x32xf32>
    %306 = vector.broadcast %288 : vector<1x32xf32> to vector<2x32xf32>
    %307 = arith.mulf %305, %306 : vector<2x32xf32>
    %308 = vector.broadcast %289 : vector<1x32xf32> to vector<2x32xf32>
    %309 = arith.addf %307, %308 : vector<2x32xf32>
    %c0_104 = arith.constant 0 : index
    %c0_105 = arith.constant 0 : index
    %c0_106 = arith.constant 0 : index
    %310 = vector.load %arg8[%c0_104, %c0_105, %c0_106] : memref<4x32x32xf32, #tpu.memory_space<vmem>>, vector<1x32x32xf32>
    %311 = vector.shape_cast %310 : vector<1x32x32xf32> to vector<32x32xf32>
    %cst_107 = arith.constant dense<0.000000e+00> : vector<2x32xf32>
    %312 = tpu.matmul %309, %311, %cst_107 {dimension_numbers = #tpu.dot_dimension_numbers<[1], [0], [0], [1], [0, 0, 1, 1], [], []>} : vector<2x32xf32>, vector<32x32xf32>, vector<2x32xf32> -> vector<2x32xf32>
    %313 = vector.extract_strided_slice %0 {offsets = [20, 0], sizes = [1, 32], strides = [1, 1]} : vector<51x32xf32> to vector<1x32xf32>
    %314 = vector.broadcast %313 : vector<1x32xf32> to vector<2x32xf32>
    %315 = arith.addf %312, %314 : vector<2x32xf32>
    %c1_108 = arith.constant 1 : index
    %c0_109 = arith.constant 0 : index
    %c0_110 = arith.constant 0 : index
    %316 = vector.load %arg8[%c1_108, %c0_109, %c0_110] : memref<4x32x32xf32, #tpu.memory_space<vmem>>, vector<1x32x32xf32>
    %317 = vector.shape_cast %316 : vector<1x32x32xf32> to vector<32x32xf32>
    %cst_111 = arith.constant dense<0.000000e+00> : vector<2x32xf32>
    %318 = tpu.matmul %315, %317, %cst_111 {dimension_numbers = #tpu.dot_dimension_numbers<[1], [0], [0], [1], [0, 0, 1, 1], [], []>} : vector<2x32xf32>, vector<32x32xf32>, vector<2x32xf32> -> vector<2x32xf32>
    %319 = vector.extract_strided_slice %0 {offsets = [21, 0], sizes = [1, 32], strides = [1, 1]} : vector<51x32xf32> to vector<1x32xf32>
    %320 = vector.broadcast %319 : vector<1x32xf32> to vector<2x32xf32>
    %321 = arith.addf %318, %320 : vector<2x32xf32>
    %322 = arith.addf %287, %321 : vector<2x32xf32>
    %323 = vector.extract_strided_slice %0 {offsets = [33, 0], sizes = [1, 32], strides = [1, 1]} : vector<51x32xf32> to vector<1x32xf32>
    %324 = vector.extract_strided_slice %0 {offsets = [39, 0], sizes = [1, 32], strides = [1, 1]} : vector<51x32xf32> to vector<1x32xf32>
    %cst_112 = arith.constant dense<0.000000e+00> : vector<2xf32>
    %325 = vector.multi_reduction <add>, %322, %cst_112 [1] : vector<2x32xf32> to vector<2xf32>
    %326 = vector.shape_cast %325 : vector<2xf32> to vector<2x1xf32>
    %cst_113 = arith.constant 3.200000e+01 : f32
    %327 = vector.broadcast %cst_113 : f32 to vector<2x1xf32>
    %328 = arith.divf %326, %327 : vector<2x1xf32>
    %329 = vector.broadcast %328 : vector<2x1xf32> to vector<2x32xf32>
    %330 = arith.subf %322, %329 : vector<2x32xf32>
    %331 = arith.mulf %330, %330 : vector<2x32xf32>
    %cst_114 = arith.constant dense<0.000000e+00> : vector<2xf32>
    %332 = vector.multi_reduction <add>, %331, %cst_114 [1] : vector<2x32xf32> to vector<2xf32>
    %333 = vector.shape_cast %332 : vector<2xf32> to vector<2x1xf32>
    %cst_115 = arith.constant 3.200000e+01 : f32
    %334 = vector.broadcast %cst_115 : f32 to vector<2x1xf32>
    %335 = arith.divf %333, %334 : vector<2x1xf32>
    %cst_116 = arith.constant 9.99999974E-6 : f32
    %336 = vector.broadcast %cst_116 : f32 to vector<2x1xf32>
    %337 = arith.addf %335, %336 : vector<2x1xf32>
    %338 = math.rsqrt %337 : vector<2x1xf32>
    %339 = vector.broadcast %338 : vector<2x1xf32> to vector<2x32xf32>
    %340 = arith.mulf %330, %339 : vector<2x32xf32>
    %341 = vector.broadcast %323 : vector<1x32xf32> to vector<2x32xf32>
    %342 = arith.mulf %340, %341 : vector<2x32xf32>
    %343 = vector.broadcast %324 : vector<1x32xf32> to vector<2x32xf32>
    %344 = arith.addf %342, %343 : vector<2x32xf32>
    %c0_117 = arith.constant 0 : index
    %c0_118 = arith.constant 0 : index
    %c0_119 = arith.constant 0 : index
    %345 = vector.load %arg9[%c0_117, %c0_118, %c0_119] : memref<8x32x32xf32, #tpu.memory_space<vmem>>, vector<1x32x32xf32>
    %346 = vector.shape_cast %345 : vector<1x32x32xf32> to vector<32x32xf32>
    %c1_120 = arith.constant 1 : index
    %c0_121 = arith.constant 0 : index
    %c0_122 = arith.constant 0 : index
    %347 = vector.load %arg9[%c1_120, %c0_121, %c0_122] : memref<8x32x32xf32, #tpu.memory_space<vmem>>, vector<1x32x32xf32>
    %348 = vector.shape_cast %347 : vector<1x32x32xf32> to vector<32x32xf32>
    %c2_123 = arith.constant 2 : index
    %c0_124 = arith.constant 0 : index
    %c0_125 = arith.constant 0 : index
    %349 = vector.load %arg9[%c2_123, %c0_124, %c0_125] : memref<8x32x32xf32, #tpu.memory_space<vmem>>, vector<1x32x32xf32>
    %350 = vector.shape_cast %349 : vector<1x32x32xf32> to vector<32x32xf32>
    %c3_126 = arith.constant 3 : index
    %c0_127 = arith.constant 0 : index
    %c0_128 = arith.constant 0 : index
    %351 = vector.load %arg9[%c3_126, %c0_127, %c0_128] : memref<8x32x32xf32, #tpu.memory_space<vmem>>, vector<1x32x32xf32>
    %352 = vector.shape_cast %351 : vector<1x32x32xf32> to vector<32x32xf32>
    %cst_129 = arith.constant dense<0.000000e+00> : vector<2x32xf32>
    %353 = tpu.matmul %344, %346, %cst_129 {dimension_numbers = #tpu.dot_dimension_numbers<[1], [0], [0], [1], [0, 0, 1, 1], [], []>} : vector<2x32xf32>, vector<32x32xf32>, vector<2x32xf32> -> vector<2x32xf32>
    %354 = vector.extract_strided_slice %0 {offsets = [24, 0], sizes = [1, 32], strides = [1, 1]} : vector<51x32xf32> to vector<1x32xf32>
    %355 = vector.broadcast %354 : vector<1x32xf32> to vector<2x32xf32>
    %356 = arith.addf %353, %355 : vector<2x32xf32>
    %cst_130 = arith.constant dense<0.000000e+00> : vector<16x32xf32>
    %357 = tpu.matmul %284, %348, %cst_130 {dimension_numbers = #tpu.dot_dimension_numbers<[1], [0], [0], [1], [0, 0, 1, 1], [], []>} : vector<16x32xf32>, vector<32x32xf32>, vector<16x32xf32> -> vector<16x32xf32>
    %358 = vector.extract_strided_slice %0 {offsets = [25, 0], sizes = [1, 32], strides = [1, 1]} : vector<51x32xf32> to vector<1x32xf32>
    %359 = vector.broadcast %358 : vector<1x32xf32> to vector<16x32xf32>
    %360 = arith.addf %357, %359 : vector<16x32xf32>
    %cst_131 = arith.constant dense<0.000000e+00> : vector<16x32xf32>
    %361 = tpu.matmul %284, %350, %cst_131 {dimension_numbers = #tpu.dot_dimension_numbers<[1], [0], [0], [1], [0, 0, 1, 1], [], []>} : vector<16x32xf32>, vector<32x32xf32>, vector<16x32xf32> -> vector<16x32xf32>
    %362 = vector.extract_strided_slice %0 {offsets = [26, 0], sizes = [1, 32], strides = [1, 1]} : vector<51x32xf32> to vector<1x32xf32>
    %363 = vector.broadcast %362 : vector<1x32xf32> to vector<16x32xf32>
    %364 = arith.addf %361, %363 : vector<16x32xf32>
    %365 = vector.extract_strided_slice %0 {offsets = [27, 0], sizes = [1, 32], strides = [1, 1]} : vector<51x32xf32> to vector<1x32xf32>
    %366 = vector.extract_strided_slice %356 {offsets = [0, 0], sizes = [2, 16], strides = [1, 1]} : vector<2x32xf32> to vector<2x16xf32>
    %367 = vector.shape_cast %366 : vector<2x16xf32> to vector<2x1x16xf32>
    %368 = vector.extract_strided_slice %360 {offsets = [0, 0], sizes = [16, 16], strides = [1, 1]} : vector<16x32xf32> to vector<16x16xf32>
    %369 = vector.shape_cast %368 : vector<16x16xf32> to vector<2x8x16xf32>
    %370 = vector.extract_strided_slice %364 {offsets = [0, 0], sizes = [16, 16], strides = [1, 1]} : vector<16x32xf32> to vector<16x16xf32>
    %371 = vector.shape_cast %370 : vector<16x16xf32> to vector<2x8x16xf32>
    "tpu.trace_start"() <{level = 10 : i32, message = "bqd,bkd->bqk"}> : () -> ()
    %cst_132 = arith.constant dense<0.000000e+00> : vector<2x1x8xf32>
    %372 = tpu.matmul %367, %369, %cst_132 {dimension_numbers = #tpu.dot_dimension_numbers<[2], [2], [1], [1], [0, 0, 0, 1, 1, 1], [0], [0]>} : vector<2x1x16xf32>, vector<2x8x16xf32>, vector<2x1x8xf32> -> vector<2x1x8xf32>
    "tpu.trace_stop"() : () -> ()
    %cst_133 = arith.constant 2.500000e-01 : f32
    %373 = vector.broadcast %cst_133 : f32 to vector<2x1x8xf32>
    %374 = arith.mulf %372, %373 : vector<2x1x8xf32>
    %cst_134 = arith.constant dense<0xFF800000> : vector<2x1xf32>
    %375 = vector.multi_reduction <maximumf>, %374, %cst_134 [2] : vector<2x1x8xf32> to vector<2x1xf32>
    %376 = vector.shape_cast %375 : vector<2x1xf32> to vector<2x1x1xf32>
    %377 = vector.broadcast %376 : vector<2x1x1xf32> to vector<2x1x8xf32>
    %378 = arith.subf %374, %377 : vector<2x1x8xf32>
    %379 = math.exp %378 : vector<2x1x8xf32>
    %cst_135 = arith.constant dense<0.000000e+00> : vector<2x1xf32>
    %380 = vector.multi_reduction <add>, %379, %cst_135 [2] : vector<2x1x8xf32> to vector<2x1xf32>
    %381 = vector.shape_cast %380 : vector<2x1xf32> to vector<2x1x1xf32>
    %382 = vector.broadcast %381 : vector<2x1x1xf32> to vector<2x1x8xf32>
    %383 = arith.divf %379, %382 : vector<2x1x8xf32>
    "tpu.trace_start"() <{level = 10 : i32, message = "bqk,bkd->bqd"}> : () -> ()
    %cst_136 = arith.constant dense<0.000000e+00> : vector<2x1x16xf32>
    %384 = tpu.matmul %383, %371, %cst_136 {dimension_numbers = #tpu.dot_dimension_numbers<[2], [1], [1], [2], [0, 0, 0, 1, 1, 2], [0], [0]>} : vector<2x1x8xf32>, vector<2x8x16xf32>, vector<2x1x16xf32> -> vector<2x1x16xf32>
    "tpu.trace_stop"() : () -> ()
    %385 = vector.shape_cast %384 : vector<2x1x16xf32> to vector<2x16xf32>
    %386 = vector.extract_strided_slice %352 {offsets = [0, 0], sizes = [16, 32], strides = [1, 1]} : vector<32x32xf32> to vector<16x32xf32>
    %cst_137 = arith.constant dense<0.000000e+00> : vector<2x32xf32>
    %387 = tpu.matmul %385, %386, %cst_137 {dimension_numbers = #tpu.dot_dimension_numbers<[1], [0], [0], [1], [0, 0, 1, 1], [], []>} : vector<2x16xf32>, vector<16x32xf32>, vector<2x32xf32> -> vector<2x32xf32>
    %388 = vector.broadcast %365 : vector<1x32xf32> to vector<2x32xf32>
    %389 = arith.addf %388, %387 : vector<2x32xf32>
    %390 = vector.extract_strided_slice %356 {offsets = [0, 16], sizes = [2, 16], strides = [1, 1]} : vector<2x32xf32> to vector<2x16xf32>
    %391 = vector.shape_cast %390 : vector<2x16xf32> to vector<2x1x16xf32>
    %392 = vector.extract_strided_slice %360 {offsets = [0, 16], sizes = [16, 16], strides = [1, 1]} : vector<16x32xf32> to vector<16x16xf32>
    %393 = vector.shape_cast %392 : vector<16x16xf32> to vector<2x8x16xf32>
    %394 = vector.extract_strided_slice %364 {offsets = [0, 16], sizes = [16, 16], strides = [1, 1]} : vector<16x32xf32> to vector<16x16xf32>
    %395 = vector.shape_cast %394 : vector<16x16xf32> to vector<2x8x16xf32>
    "tpu.trace_start"() <{level = 10 : i32, message = "bqd,bkd->bqk"}> : () -> ()
    %cst_138 = arith.constant dense<0.000000e+00> : vector<2x1x8xf32>
    %396 = tpu.matmul %391, %393, %cst_138 {dimension_numbers = #tpu.dot_dimension_numbers<[2], [2], [1], [1], [0, 0, 0, 1, 1, 1], [0], [0]>} : vector<2x1x16xf32>, vector<2x8x16xf32>, vector<2x1x8xf32> -> vector<2x1x8xf32>
    "tpu.trace_stop"() : () -> ()
    %cst_139 = arith.constant 2.500000e-01 : f32
    %397 = vector.broadcast %cst_139 : f32 to vector<2x1x8xf32>
    %398 = arith.mulf %396, %397 : vector<2x1x8xf32>
    %cst_140 = arith.constant dense<0xFF800000> : vector<2x1xf32>
    %399 = vector.multi_reduction <maximumf>, %398, %cst_140 [2] : vector<2x1x8xf32> to vector<2x1xf32>
    %400 = vector.shape_cast %399 : vector<2x1xf32> to vector<2x1x1xf32>
    %401 = vector.broadcast %400 : vector<2x1x1xf32> to vector<2x1x8xf32>
    %402 = arith.subf %398, %401 : vector<2x1x8xf32>
    %403 = math.exp %402 : vector<2x1x8xf32>
    %cst_141 = arith.constant dense<0.000000e+00> : vector<2x1xf32>
    %404 = vector.multi_reduction <add>, %403, %cst_141 [2] : vector<2x1x8xf32> to vector<2x1xf32>
    %405 = vector.shape_cast %404 : vector<2x1xf32> to vector<2x1x1xf32>
    %406 = vector.broadcast %405 : vector<2x1x1xf32> to vector<2x1x8xf32>
    %407 = arith.divf %403, %406 : vector<2x1x8xf32>
    "tpu.trace_start"() <{level = 10 : i32, message = "bqk,bkd->bqd"}> : () -> ()
    %cst_142 = arith.constant dense<0.000000e+00> : vector<2x1x16xf32>
    %408 = tpu.matmul %407, %395, %cst_142 {dimension_numbers = #tpu.dot_dimension_numbers<[2], [1], [1], [2], [0, 0, 0, 1, 1, 2], [0], [0]>} : vector<2x1x8xf32>, vector<2x8x16xf32>, vector<2x1x16xf32> -> vector<2x1x16xf32>
    "tpu.trace_stop"() : () -> ()
    %409 = vector.shape_cast %408 : vector<2x1x16xf32> to vector<2x16xf32>
    %410 = vector.extract_strided_slice %352 {offsets = [16, 0], sizes = [16, 32], strides = [1, 1]} : vector<32x32xf32> to vector<16x32xf32>
    %cst_143 = arith.constant dense<0.000000e+00> : vector<2x32xf32>
    %411 = tpu.matmul %409, %410, %cst_143 {dimension_numbers = #tpu.dot_dimension_numbers<[1], [0], [0], [1], [0, 0, 1, 1], [], []>} : vector<2x16xf32>, vector<16x32xf32>, vector<2x32xf32> -> vector<2x32xf32>
    %412 = arith.addf %389, %411 : vector<2x32xf32>
    %413 = arith.addf %322, %412 : vector<2x32xf32>
    %414 = vector.extract_strided_slice %0 {offsets = [34, 0], sizes = [1, 32], strides = [1, 1]} : vector<51x32xf32> to vector<1x32xf32>
    %415 = vector.extract_strided_slice %0 {offsets = [40, 0], sizes = [1, 32], strides = [1, 1]} : vector<51x32xf32> to vector<1x32xf32>
    %cst_144 = arith.constant dense<0.000000e+00> : vector<2xf32>
    %416 = vector.multi_reduction <add>, %413, %cst_144 [1] : vector<2x32xf32> to vector<2xf32>
    %417 = vector.shape_cast %416 : vector<2xf32> to vector<2x1xf32>
    %cst_145 = arith.constant 3.200000e+01 : f32
    %418 = vector.broadcast %cst_145 : f32 to vector<2x1xf32>
    %419 = arith.divf %417, %418 : vector<2x1xf32>
    %420 = vector.broadcast %419 : vector<2x1xf32> to vector<2x32xf32>
    %421 = arith.subf %413, %420 : vector<2x32xf32>
    %422 = arith.mulf %421, %421 : vector<2x32xf32>
    %cst_146 = arith.constant dense<0.000000e+00> : vector<2xf32>
    %423 = vector.multi_reduction <add>, %422, %cst_146 [1] : vector<2x32xf32> to vector<2xf32>
    %424 = vector.shape_cast %423 : vector<2xf32> to vector<2x1xf32>
    %cst_147 = arith.constant 3.200000e+01 : f32
    %425 = vector.broadcast %cst_147 : f32 to vector<2x1xf32>
    %426 = arith.divf %424, %425 : vector<2x1xf32>
    %cst_148 = arith.constant 9.99999974E-6 : f32
    %427 = vector.broadcast %cst_148 : f32 to vector<2x1xf32>
    %428 = arith.addf %426, %427 : vector<2x1xf32>
    %429 = math.rsqrt %428 : vector<2x1xf32>
    %430 = vector.broadcast %429 : vector<2x1xf32> to vector<2x32xf32>
    %431 = arith.mulf %421, %430 : vector<2x32xf32>
    %432 = vector.broadcast %414 : vector<1x32xf32> to vector<2x32xf32>
    %433 = arith.mulf %431, %432 : vector<2x32xf32>
    %434 = vector.broadcast %415 : vector<1x32xf32> to vector<2x32xf32>
    %435 = arith.addf %433, %434 : vector<2x32xf32>
    %436 = vector.extract_strided_slice %1 {offsets = [2, 0], sizes = [1, 64], strides = [1, 1]} : vector<4x64xf32> to vector<1x64xf32>
    %437 = vector.extract_strided_slice %0 {offsets = [44, 0], sizes = [1, 32], strides = [1, 1]} : vector<51x32xf32> to vector<1x32xf32>
    %c0_149 = arith.constant 0 : index
    %c0_150 = arith.constant 0 : index
    %c0_151 = arith.constant 0 : index
    %438 = vector.load %arg10[%c0_149, %c0_150, %c0_151] : memref<2x32x64xf32, #tpu.memory_space<vmem>>, vector<1x32x64xf32>
    %439 = vector.shape_cast %438 : vector<1x32x64xf32> to vector<32x64xf32>
    %cst_152 = arith.constant dense<0.000000e+00> : vector<2x64xf32>
    %440 = tpu.matmul %435, %439, %cst_152 {dimension_numbers = #tpu.dot_dimension_numbers<[1], [0], [0], [1], [0, 0, 1, 1], [], []>} : vector<2x32xf32>, vector<32x64xf32>, vector<2x64xf32> -> vector<2x64xf32>
    %441 = vector.broadcast %436 : vector<1x64xf32> to vector<2x64xf32>
    %442 = arith.addf %440, %441 : vector<2x64xf32>
    %cst_153 = arith.constant 0.000000e+00 : f32
    %443 = vector.broadcast %cst_153 : f32 to vector<2x64xf32>
    %444 = arith.maximumf %442, %443 : vector<2x64xf32>
    %c0_154 = arith.constant 0 : index
    %c0_155 = arith.constant 0 : index
    %c0_156 = arith.constant 0 : index
    %445 = vector.load %arg11[%c0_154, %c0_155, %c0_156] : memref<2x64x32xf32, #tpu.memory_space<vmem>>, vector<1x64x32xf32>
    %446 = vector.shape_cast %445 : vector<1x64x32xf32> to vector<64x32xf32>
    %cst_157 = arith.constant dense<0.000000e+00> : vector<2x32xf32>
    %447 = tpu.matmul %444, %446, %cst_157 {dimension_numbers = #tpu.dot_dimension_numbers<[1], [0], [0], [1], [0, 0, 1, 1], [], []>} : vector<2x64xf32>, vector<64x32xf32>, vector<2x32xf32> -> vector<2x32xf32>
    %448 = vector.broadcast %437 : vector<1x32xf32> to vector<2x32xf32>
    %449 = arith.addf %447, %448 : vector<2x32xf32>
    %450 = arith.addf %413, %449 : vector<2x32xf32>
    %451 = vector.extract_strided_slice %0 {offsets = [35, 0], sizes = [1, 32], strides = [1, 1]} : vector<51x32xf32> to vector<1x32xf32>
    %452 = vector.extract_strided_slice %0 {offsets = [41, 0], sizes = [1, 32], strides = [1, 1]} : vector<51x32xf32> to vector<1x32xf32>
    %cst_158 = arith.constant dense<0.000000e+00> : vector<2xf32>
    %453 = vector.multi_reduction <add>, %450, %cst_158 [1] : vector<2x32xf32> to vector<2xf32>
    %454 = vector.shape_cast %453 : vector<2xf32> to vector<2x1xf32>
    %cst_159 = arith.constant 3.200000e+01 : f32
    %455 = vector.broadcast %cst_159 : f32 to vector<2x1xf32>
    %456 = arith.divf %454, %455 : vector<2x1xf32>
    %457 = vector.broadcast %456 : vector<2x1xf32> to vector<2x32xf32>
    %458 = arith.subf %450, %457 : vector<2x32xf32>
    %459 = arith.mulf %458, %458 : vector<2x32xf32>
    %cst_160 = arith.constant dense<0.000000e+00> : vector<2xf32>
    %460 = vector.multi_reduction <add>, %459, %cst_160 [1] : vector<2x32xf32> to vector<2xf32>
    %461 = vector.shape_cast %460 : vector<2xf32> to vector<2x1xf32>
    %cst_161 = arith.constant 3.200000e+01 : f32
    %462 = vector.broadcast %cst_161 : f32 to vector<2x1xf32>
    %463 = arith.divf %461, %462 : vector<2x1xf32>
    %cst_162 = arith.constant 9.99999974E-6 : f32
    %464 = vector.broadcast %cst_162 : f32 to vector<2x1xf32>
    %465 = arith.addf %463, %464 : vector<2x1xf32>
    %466 = math.rsqrt %465 : vector<2x1xf32>
    %467 = vector.broadcast %466 : vector<2x1xf32> to vector<2x32xf32>
    %468 = arith.mulf %458, %467 : vector<2x32xf32>
    %469 = vector.broadcast %451 : vector<1x32xf32> to vector<2x32xf32>
    %470 = arith.mulf %468, %469 : vector<2x32xf32>
    %471 = vector.broadcast %452 : vector<1x32xf32> to vector<2x32xf32>
    %472 = arith.addf %470, %471 : vector<2x32xf32>
    %c2_163 = arith.constant 2 : index
    %c0_164 = arith.constant 0 : index
    %c0_165 = arith.constant 0 : index
    %473 = vector.load %arg8[%c2_163, %c0_164, %c0_165] : memref<4x32x32xf32, #tpu.memory_space<vmem>>, vector<1x32x32xf32>
    %474 = vector.shape_cast %473 : vector<1x32x32xf32> to vector<32x32xf32>
    %cst_166 = arith.constant dense<0.000000e+00> : vector<2x32xf32>
    %475 = tpu.matmul %472, %474, %cst_166 {dimension_numbers = #tpu.dot_dimension_numbers<[1], [0], [0], [1], [0, 0, 1, 1], [], []>} : vector<2x32xf32>, vector<32x32xf32>, vector<2x32xf32> -> vector<2x32xf32>
    %476 = vector.extract_strided_slice %0 {offsets = [22, 0], sizes = [1, 32], strides = [1, 1]} : vector<51x32xf32> to vector<1x32xf32>
    %477 = vector.broadcast %476 : vector<1x32xf32> to vector<2x32xf32>
    %478 = arith.addf %475, %477 : vector<2x32xf32>
    %c3_167 = arith.constant 3 : index
    %c0_168 = arith.constant 0 : index
    %c0_169 = arith.constant 0 : index
    %479 = vector.load %arg8[%c3_167, %c0_168, %c0_169] : memref<4x32x32xf32, #tpu.memory_space<vmem>>, vector<1x32x32xf32>
    %480 = vector.shape_cast %479 : vector<1x32x32xf32> to vector<32x32xf32>
    %cst_170 = arith.constant dense<0.000000e+00> : vector<2x32xf32>
    %481 = tpu.matmul %478, %480, %cst_170 {dimension_numbers = #tpu.dot_dimension_numbers<[1], [0], [0], [1], [0, 0, 1, 1], [], []>} : vector<2x32xf32>, vector<32x32xf32>, vector<2x32xf32> -> vector<2x32xf32>
    %482 = vector.extract_strided_slice %0 {offsets = [23, 0], sizes = [1, 32], strides = [1, 1]} : vector<51x32xf32> to vector<1x32xf32>
    %483 = vector.broadcast %482 : vector<1x32xf32> to vector<2x32xf32>
    %484 = arith.addf %481, %483 : vector<2x32xf32>
    %485 = arith.addf %450, %484 : vector<2x32xf32>
    %486 = vector.extract_strided_slice %0 {offsets = [36, 0], sizes = [1, 32], strides = [1, 1]} : vector<51x32xf32> to vector<1x32xf32>
    %487 = vector.extract_strided_slice %0 {offsets = [42, 0], sizes = [1, 32], strides = [1, 1]} : vector<51x32xf32> to vector<1x32xf32>
    %cst_171 = arith.constant dense<0.000000e+00> : vector<2xf32>
    %488 = vector.multi_reduction <add>, %485, %cst_171 [1] : vector<2x32xf32> to vector<2xf32>
    %489 = vector.shape_cast %488 : vector<2xf32> to vector<2x1xf32>
    %cst_172 = arith.constant 3.200000e+01 : f32
    %490 = vector.broadcast %cst_172 : f32 to vector<2x1xf32>
    %491 = arith.divf %489, %490 : vector<2x1xf32>
    %492 = vector.broadcast %491 : vector<2x1xf32> to vector<2x32xf32>
    %493 = arith.subf %485, %492 : vector<2x32xf32>
    %494 = arith.mulf %493, %493 : vector<2x32xf32>
    %cst_173 = arith.constant dense<0.000000e+00> : vector<2xf32>
    %495 = vector.multi_reduction <add>, %494, %cst_173 [1] : vector<2x32xf32> to vector<2xf32>
    %496 = vector.shape_cast %495 : vector<2xf32> to vector<2x1xf32>
    %cst_174 = arith.constant 3.200000e+01 : f32
    %497 = vector.broadcast %cst_174 : f32 to vector<2x1xf32>
    %498 = arith.divf %496, %497 : vector<2x1xf32>
    %cst_175 = arith.constant 9.99999974E-6 : f32
    %499 = vector.broadcast %cst_175 : f32 to vector<2x1xf32>
    %500 = arith.addf %498, %499 : vector<2x1xf32>
    %501 = math.rsqrt %500 : vector<2x1xf32>
    %502 = vector.broadcast %501 : vector<2x1xf32> to vector<2x32xf32>
    %503 = arith.mulf %493, %502 : vector<2x32xf32>
    %504 = vector.broadcast %486 : vector<1x32xf32> to vector<2x32xf32>
    %505 = arith.mulf %503, %504 : vector<2x32xf32>
    %506 = vector.broadcast %487 : vector<1x32xf32> to vector<2x32xf32>
    %507 = arith.addf %505, %506 : vector<2x32xf32>
    %c4_176 = arith.constant 4 : index
    %c0_177 = arith.constant 0 : index
    %c0_178 = arith.constant 0 : index
    %508 = vector.load %arg9[%c4_176, %c0_177, %c0_178] : memref<8x32x32xf32, #tpu.memory_space<vmem>>, vector<1x32x32xf32>
    %509 = vector.shape_cast %508 : vector<1x32x32xf32> to vector<32x32xf32>
    %c5_179 = arith.constant 5 : index
    %c0_180 = arith.constant 0 : index
    %c0_181 = arith.constant 0 : index
    %510 = vector.load %arg9[%c5_179, %c0_180, %c0_181] : memref<8x32x32xf32, #tpu.memory_space<vmem>>, vector<1x32x32xf32>
    %511 = vector.shape_cast %510 : vector<1x32x32xf32> to vector<32x32xf32>
    %c6_182 = arith.constant 6 : index
    %c0_183 = arith.constant 0 : index
    %c0_184 = arith.constant 0 : index
    %512 = vector.load %arg9[%c6_182, %c0_183, %c0_184] : memref<8x32x32xf32, #tpu.memory_space<vmem>>, vector<1x32x32xf32>
    %513 = vector.shape_cast %512 : vector<1x32x32xf32> to vector<32x32xf32>
    %c7_185 = arith.constant 7 : index
    %c0_186 = arith.constant 0 : index
    %c0_187 = arith.constant 0 : index
    %514 = vector.load %arg9[%c7_185, %c0_186, %c0_187] : memref<8x32x32xf32, #tpu.memory_space<vmem>>, vector<1x32x32xf32>
    %515 = vector.shape_cast %514 : vector<1x32x32xf32> to vector<32x32xf32>
    %cst_188 = arith.constant dense<0.000000e+00> : vector<2x32xf32>
    %516 = tpu.matmul %507, %509, %cst_188 {dimension_numbers = #tpu.dot_dimension_numbers<[1], [0], [0], [1], [0, 0, 1, 1], [], []>} : vector<2x32xf32>, vector<32x32xf32>, vector<2x32xf32> -> vector<2x32xf32>
    %517 = vector.extract_strided_slice %0 {offsets = [28, 0], sizes = [1, 32], strides = [1, 1]} : vector<51x32xf32> to vector<1x32xf32>
    %518 = vector.broadcast %517 : vector<1x32xf32> to vector<2x32xf32>
    %519 = arith.addf %516, %518 : vector<2x32xf32>
    %cst_189 = arith.constant dense<0.000000e+00> : vector<16x32xf32>
    %520 = tpu.matmul %284, %511, %cst_189 {dimension_numbers = #tpu.dot_dimension_numbers<[1], [0], [0], [1], [0, 0, 1, 1], [], []>} : vector<16x32xf32>, vector<32x32xf32>, vector<16x32xf32> -> vector<16x32xf32>
    %521 = vector.extract_strided_slice %0 {offsets = [29, 0], sizes = [1, 32], strides = [1, 1]} : vector<51x32xf32> to vector<1x32xf32>
    %522 = vector.broadcast %521 : vector<1x32xf32> to vector<16x32xf32>
    %523 = arith.addf %520, %522 : vector<16x32xf32>
    %cst_190 = arith.constant dense<0.000000e+00> : vector<16x32xf32>
    %524 = tpu.matmul %284, %513, %cst_190 {dimension_numbers = #tpu.dot_dimension_numbers<[1], [0], [0], [1], [0, 0, 1, 1], [], []>} : vector<16x32xf32>, vector<32x32xf32>, vector<16x32xf32> -> vector<16x32xf32>
    %525 = vector.extract_strided_slice %0 {offsets = [30, 0], sizes = [1, 32], strides = [1, 1]} : vector<51x32xf32> to vector<1x32xf32>
    %526 = vector.broadcast %525 : vector<1x32xf32> to vector<16x32xf32>
    %527 = arith.addf %524, %526 : vector<16x32xf32>
    %528 = vector.extract_strided_slice %0 {offsets = [31, 0], sizes = [1, 32], strides = [1, 1]} : vector<51x32xf32> to vector<1x32xf32>
    %529 = vector.extract_strided_slice %519 {offsets = [0, 0], sizes = [2, 16], strides = [1, 1]} : vector<2x32xf32> to vector<2x16xf32>
    %530 = vector.shape_cast %529 : vector<2x16xf32> to vector<2x1x16xf32>
    %531 = vector.extract_strided_slice %523 {offsets = [0, 0], sizes = [16, 16], strides = [1, 1]} : vector<16x32xf32> to vector<16x16xf32>
    %532 = vector.shape_cast %531 : vector<16x16xf32> to vector<2x8x16xf32>
    %533 = vector.extract_strided_slice %527 {offsets = [0, 0], sizes = [16, 16], strides = [1, 1]} : vector<16x32xf32> to vector<16x16xf32>
    %534 = vector.shape_cast %533 : vector<16x16xf32> to vector<2x8x16xf32>
    "tpu.trace_start"() <{level = 10 : i32, message = "bqd,bkd->bqk"}> : () -> ()
    %cst_191 = arith.constant dense<0.000000e+00> : vector<2x1x8xf32>
    %535 = tpu.matmul %530, %532, %cst_191 {dimension_numbers = #tpu.dot_dimension_numbers<[2], [2], [1], [1], [0, 0, 0, 1, 1, 1], [0], [0]>} : vector<2x1x16xf32>, vector<2x8x16xf32>, vector<2x1x8xf32> -> vector<2x1x8xf32>
    "tpu.trace_stop"() : () -> ()
    %cst_192 = arith.constant 2.500000e-01 : f32
    %536 = vector.broadcast %cst_192 : f32 to vector<2x1x8xf32>
    %537 = arith.mulf %535, %536 : vector<2x1x8xf32>
    %cst_193 = arith.constant dense<0xFF800000> : vector<2x1xf32>
    %538 = vector.multi_reduction <maximumf>, %537, %cst_193 [2] : vector<2x1x8xf32> to vector<2x1xf32>
    %539 = vector.shape_cast %538 : vector<2x1xf32> to vector<2x1x1xf32>
    %540 = vector.broadcast %539 : vector<2x1x1xf32> to vector<2x1x8xf32>
    %541 = arith.subf %537, %540 : vector<2x1x8xf32>
    %542 = math.exp %541 : vector<2x1x8xf32>
    %cst_194 = arith.constant dense<0.000000e+00> : vector<2x1xf32>
    %543 = vector.multi_reduction <add>, %542, %cst_194 [2] : vector<2x1x8xf32> to vector<2x1xf32>
    %544 = vector.shape_cast %543 : vector<2x1xf32> to vector<2x1x1xf32>
    %545 = vector.broadcast %544 : vector<2x1x1xf32> to vector<2x1x8xf32>
    %546 = arith.divf %542, %545 : vector<2x1x8xf32>
    "tpu.trace_start"() <{level = 10 : i32, message = "bqk,bkd->bqd"}> : () -> ()
    %cst_195 = arith.constant dense<0.000000e+00> : vector<2x1x16xf32>
    %547 = tpu.matmul %546, %534, %cst_195 {dimension_numbers = #tpu.dot_dimension_numbers<[2], [1], [1], [2], [0, 0, 0, 1, 1, 2], [0], [0]>} : vector<2x1x8xf32>, vector<2x8x16xf32>, vector<2x1x16xf32> -> vector<2x1x16xf32>
    "tpu.trace_stop"() : () -> ()
    %548 = vector.shape_cast %547 : vector<2x1x16xf32> to vector<2x16xf32>
    %549 = vector.extract_strided_slice %515 {offsets = [0, 0], sizes = [16, 32], strides = [1, 1]} : vector<32x32xf32> to vector<16x32xf32>
    %cst_196 = arith.constant dense<0.000000e+00> : vector<2x32xf32>
    %550 = tpu.matmul %548, %549, %cst_196 {dimension_numbers = #tpu.dot_dimension_numbers<[1], [0], [0], [1], [0, 0, 1, 1], [], []>} : vector<2x16xf32>, vector<16x32xf32>, vector<2x32xf32> -> vector<2x32xf32>
    %551 = vector.broadcast %528 : vector<1x32xf32> to vector<2x32xf32>
    %552 = arith.addf %551, %550 : vector<2x32xf32>
    %553 = vector.extract_strided_slice %519 {offsets = [0, 16], sizes = [2, 16], strides = [1, 1]} : vector<2x32xf32> to vector<2x16xf32>
    %554 = vector.shape_cast %553 : vector<2x16xf32> to vector<2x1x16xf32>
    %555 = vector.extract_strided_slice %523 {offsets = [0, 16], sizes = [16, 16], strides = [1, 1]} : vector<16x32xf32> to vector<16x16xf32>
    %556 = vector.shape_cast %555 : vector<16x16xf32> to vector<2x8x16xf32>
    %557 = vector.extract_strided_slice %527 {offsets = [0, 16], sizes = [16, 16], strides = [1, 1]} : vector<16x32xf32> to vector<16x16xf32>
    %558 = vector.shape_cast %557 : vector<16x16xf32> to vector<2x8x16xf32>
    "tpu.trace_start"() <{level = 10 : i32, message = "bqd,bkd->bqk"}> : () -> ()
    %cst_197 = arith.constant dense<0.000000e+00> : vector<2x1x8xf32>
    %559 = tpu.matmul %554, %556, %cst_197 {dimension_numbers = #tpu.dot_dimension_numbers<[2], [2], [1], [1], [0, 0, 0, 1, 1, 1], [0], [0]>} : vector<2x1x16xf32>, vector<2x8x16xf32>, vector<2x1x8xf32> -> vector<2x1x8xf32>
    "tpu.trace_stop"() : () -> ()
    %cst_198 = arith.constant 2.500000e-01 : f32
    %560 = vector.broadcast %cst_198 : f32 to vector<2x1x8xf32>
    %561 = arith.mulf %559, %560 : vector<2x1x8xf32>
    %cst_199 = arith.constant dense<0xFF800000> : vector<2x1xf32>
    %562 = vector.multi_reduction <maximumf>, %561, %cst_199 [2] : vector<2x1x8xf32> to vector<2x1xf32>
    %563 = vector.shape_cast %562 : vector<2x1xf32> to vector<2x1x1xf32>
    %564 = vector.broadcast %563 : vector<2x1x1xf32> to vector<2x1x8xf32>
    %565 = arith.subf %561, %564 : vector<2x1x8xf32>
    %566 = math.exp %565 : vector<2x1x8xf32>
    %cst_200 = arith.constant dense<0.000000e+00> : vector<2x1xf32>
    %567 = vector.multi_reduction <add>, %566, %cst_200 [2] : vector<2x1x8xf32> to vector<2x1xf32>
    %568 = vector.shape_cast %567 : vector<2x1xf32> to vector<2x1x1xf32>
    %569 = vector.broadcast %568 : vector<2x1x1xf32> to vector<2x1x8xf32>
    %570 = arith.divf %566, %569 : vector<2x1x8xf32>
    "tpu.trace_start"() <{level = 10 : i32, message = "bqk,bkd->bqd"}> : () -> ()
    %cst_201 = arith.constant dense<0.000000e+00> : vector<2x1x16xf32>
    %571 = tpu.matmul %570, %558, %cst_201 {dimension_numbers = #tpu.dot_dimension_numbers<[2], [1], [1], [2], [0, 0, 0, 1, 1, 2], [0], [0]>} : vector<2x1x8xf32>, vector<2x8x16xf32>, vector<2x1x16xf32> -> vector<2x1x16xf32>
    "tpu.trace_stop"() : () -> ()
    %572 = vector.shape_cast %571 : vector<2x1x16xf32> to vector<2x16xf32>
    %573 = vector.extract_strided_slice %515 {offsets = [16, 0], sizes = [16, 32], strides = [1, 1]} : vector<32x32xf32> to vector<16x32xf32>
    %cst_202 = arith.constant dense<0.000000e+00> : vector<2x32xf32>
    %574 = tpu.matmul %572, %573, %cst_202 {dimension_numbers = #tpu.dot_dimension_numbers<[1], [0], [0], [1], [0, 0, 1, 1], [], []>} : vector<2x16xf32>, vector<16x32xf32>, vector<2x32xf32> -> vector<2x32xf32>
    %575 = arith.addf %552, %574 : vector<2x32xf32>
    %576 = arith.addf %485, %575 : vector<2x32xf32>
    %577 = vector.extract_strided_slice %0 {offsets = [37, 0], sizes = [1, 32], strides = [1, 1]} : vector<51x32xf32> to vector<1x32xf32>
    %578 = vector.extract_strided_slice %0 {offsets = [43, 0], sizes = [1, 32], strides = [1, 1]} : vector<51x32xf32> to vector<1x32xf32>
    %cst_203 = arith.constant dense<0.000000e+00> : vector<2xf32>
    %579 = vector.multi_reduction <add>, %576, %cst_203 [1] : vector<2x32xf32> to vector<2xf32>
    %580 = vector.shape_cast %579 : vector<2xf32> to vector<2x1xf32>
    %cst_204 = arith.constant 3.200000e+01 : f32
    %581 = vector.broadcast %cst_204 : f32 to vector<2x1xf32>
    %582 = arith.divf %580, %581 : vector<2x1xf32>
    %583 = vector.broadcast %582 : vector<2x1xf32> to vector<2x32xf32>
    %584 = arith.subf %576, %583 : vector<2x32xf32>
    %585 = arith.mulf %584, %584 : vector<2x32xf32>
    %cst_205 = arith.constant dense<0.000000e+00> : vector<2xf32>
    %586 = vector.multi_reduction <add>, %585, %cst_205 [1] : vector<2x32xf32> to vector<2xf32>
    %587 = vector.shape_cast %586 : vector<2xf32> to vector<2x1xf32>
    %cst_206 = arith.constant 3.200000e+01 : f32
    %588 = vector.broadcast %cst_206 : f32 to vector<2x1xf32>
    %589 = arith.divf %587, %588 : vector<2x1xf32>
    %cst_207 = arith.constant 9.99999974E-6 : f32
    %590 = vector.broadcast %cst_207 : f32 to vector<2x1xf32>
    %591 = arith.addf %589, %590 : vector<2x1xf32>
    %592 = math.rsqrt %591 : vector<2x1xf32>
    %593 = vector.broadcast %592 : vector<2x1xf32> to vector<2x32xf32>
    %594 = arith.mulf %584, %593 : vector<2x32xf32>
    %595 = vector.broadcast %577 : vector<1x32xf32> to vector<2x32xf32>
    %596 = arith.mulf %594, %595 : vector<2x32xf32>
    %597 = vector.broadcast %578 : vector<1x32xf32> to vector<2x32xf32>
    %598 = arith.addf %596, %597 : vector<2x32xf32>
    %599 = vector.extract_strided_slice %1 {offsets = [3, 0], sizes = [1, 64], strides = [1, 1]} : vector<4x64xf32> to vector<1x64xf32>
    %600 = vector.extract_strided_slice %0 {offsets = [45, 0], sizes = [1, 32], strides = [1, 1]} : vector<51x32xf32> to vector<1x32xf32>
    %c1_208 = arith.constant 1 : index
    %c0_209 = arith.constant 0 : index
    %c0_210 = arith.constant 0 : index
    %601 = vector.load %arg10[%c1_208, %c0_209, %c0_210] : memref<2x32x64xf32, #tpu.memory_space<vmem>>, vector<1x32x64xf32>
    %602 = vector.shape_cast %601 : vector<1x32x64xf32> to vector<32x64xf32>
    %cst_211 = arith.constant dense<0.000000e+00> : vector<2x64xf32>
    %603 = tpu.matmul %598, %602, %cst_211 {dimension_numbers = #tpu.dot_dimension_numbers<[1], [0], [0], [1], [0, 0, 1, 1], [], []>} : vector<2x32xf32>, vector<32x64xf32>, vector<2x64xf32> -> vector<2x64xf32>
    %604 = vector.broadcast %599 : vector<1x64xf32> to vector<2x64xf32>
    %605 = arith.addf %603, %604 : vector<2x64xf32>
    %cst_212 = arith.constant 0.000000e+00 : f32
    %606 = vector.broadcast %cst_212 : f32 to vector<2x64xf32>
    %607 = arith.maximumf %605, %606 : vector<2x64xf32>
    %c1_213 = arith.constant 1 : index
    %c0_214 = arith.constant 0 : index
    %c0_215 = arith.constant 0 : index
    %608 = vector.load %arg11[%c1_213, %c0_214, %c0_215] : memref<2x64x32xf32, #tpu.memory_space<vmem>>, vector<1x64x32xf32>
    %609 = vector.shape_cast %608 : vector<1x64x32xf32> to vector<64x32xf32>
    %cst_216 = arith.constant dense<0.000000e+00> : vector<2x32xf32>
    %610 = tpu.matmul %607, %609, %cst_216 {dimension_numbers = #tpu.dot_dimension_numbers<[1], [0], [0], [1], [0, 0, 1, 1], [], []>} : vector<2x64xf32>, vector<64x32xf32>, vector<2x32xf32> -> vector<2x32xf32>
    %611 = vector.broadcast %600 : vector<1x32xf32> to vector<2x32xf32>
    %612 = arith.addf %610, %611 : vector<2x32xf32>
    %613 = arith.addf %576, %612 : vector<2x32xf32>
    %614 = vector.extract_strided_slice %0 {offsets = [46, 0], sizes = [1, 32], strides = [1, 1]} : vector<51x32xf32> to vector<1x32xf32>
    %615 = vector.extract_strided_slice %0 {offsets = [47, 0], sizes = [1, 32], strides = [1, 1]} : vector<51x32xf32> to vector<1x32xf32>
    %cst_217 = arith.constant dense<0.000000e+00> : vector<2xf32>
    %616 = vector.multi_reduction <add>, %613, %cst_217 [1] : vector<2x32xf32> to vector<2xf32>
    %617 = vector.shape_cast %616 : vector<2xf32> to vector<2x1xf32>
    %cst_218 = arith.constant 3.200000e+01 : f32
    %618 = vector.broadcast %cst_218 : f32 to vector<2x1xf32>
    %619 = arith.divf %617, %618 : vector<2x1xf32>
    %620 = vector.broadcast %619 : vector<2x1xf32> to vector<2x32xf32>
    %621 = arith.subf %613, %620 : vector<2x32xf32>
    %622 = arith.mulf %621, %621 : vector<2x32xf32>
    %cst_219 = arith.constant dense<0.000000e+00> : vector<2xf32>
    %623 = vector.multi_reduction <add>, %622, %cst_219 [1] : vector<2x32xf32> to vector<2xf32>
    %624 = vector.shape_cast %623 : vector<2xf32> to vector<2x1xf32>
    %cst_220 = arith.constant 3.200000e+01 : f32
    %625 = vector.broadcast %cst_220 : f32 to vector<2x1xf32>
    %626 = arith.divf %624, %625 : vector<2x1xf32>
    %cst_221 = arith.constant 9.99999974E-6 : f32
    %627 = vector.broadcast %cst_221 : f32 to vector<2x1xf32>
    %628 = arith.addf %626, %627 : vector<2x1xf32>
    %629 = math.rsqrt %628 : vector<2x1xf32>
    %630 = vector.broadcast %629 : vector<2x1xf32> to vector<2x32xf32>
    %631 = arith.mulf %621, %630 : vector<2x32xf32>
    %632 = vector.broadcast %614 : vector<1x32xf32> to vector<2x32xf32>
    %633 = arith.mulf %631, %632 : vector<2x32xf32>
    %634 = vector.broadcast %615 : vector<1x32xf32> to vector<2x32xf32>
    %635 = arith.addf %633, %634 : vector<2x32xf32>
    %636 = vector.extract_strided_slice %0 {offsets = [49, 0], sizes = [1, 32], strides = [1, 1]} : vector<51x32xf32> to vector<1x32xf32>
    %637 = vector.broadcast %636 : vector<1x32xf32> to vector<2x32xf32>
    %638 = arith.mulf %635, %637 : vector<2x32xf32>
    %cst_222 = arith.constant dense<0.000000e+00> : vector<2xf32>
    %639 = vector.multi_reduction <add>, %638, %cst_222 [1] : vector<2x32xf32> to vector<2xf32>
    %640 = vector.shape_cast %639 : vector<2xf32> to vector<2x1xf32>
    %641 = vector.extract_strided_slice %0 {offsets = [50, 0], sizes = [1, 32], strides = [1, 1]} : vector<51x32xf32> to vector<1x32xf32>
    %642 = vector.extract_strided_slice %641 {offsets = [0, 0], sizes = [1, 1], strides = [1, 1]} : vector<1x32xf32> to vector<1x1xf32>
    %643 = vector.broadcast %642 : vector<1x1xf32> to vector<2x1xf32>
    %644 = arith.addf %640, %643 : vector<2x1xf32>
    %c0_223 = arith.constant 0 : index
    %c0_224 = arith.constant 0 : index
    %645 = vector.load %arg12[%c0_223, %c0_224] : memref<2x1xf32, #tpu.memory_space<vmem>>, vector<2x1xf32>
    tpu.vector_store %arg12[%c0_223, %c0_224], %644 {strides = array<i32>} : memref<2x1xf32, #tpu.memory_space<vmem>>, vector<2x1xf32>,
    return
  }
}

</mosaic_0001>

<llo_original>
// kernel: seq2slate_reward_forward.1
$region0: #{seq2slate_reward_forward.1}
  #allocation0 [shape = 'u32[]', space=smem, size = 0x4, offset = 0x4, fixed_abs, tag = 'smem constant byte address 0x4 - core index']
  #allocation1 [shape = 'u32[144,128]{1,0:T(1,128)}', space=vmem, size = 0x12000, scoped, tag = 'internal scratch']
  %s0 = inlined_call_operand.vmem [shape: f32[16,16], index: 0, kind: input, shape index: {}]
  %s1 = inlined_call_operand.vmem [shape: f32[16,32], index: 1, kind: input, shape index: {}]
  %s2 = inlined_call_operand.vmem [shape: f32[51,32], index: 2, kind: input, shape index: {}]
  %s3 = inlined_call_operand.vmem [shape: f32[4,64], index: 3, kind: input, shape index: {}]
  %s4 = inlined_call_operand.hbm [shape: f32[16,32], index: 4, kind: input, shape index: {}]
  %s5 = inlined_call_operand.vmem [shape: f32[8,32,32], index: 5, kind: input, shape index: {}]
  %s6 = inlined_call_operand.vmem [shape: f32[2,32,64], index: 6, kind: input, shape index: {}]
  %s7 = inlined_call_operand.vmem [shape: f32[2,64,32], index: 7, kind: input, shape index: {}]
  %s8 = inlined_call_operand.vmem [shape: f32[4,32,32], index: 8, kind: input, shape index: {}]
  %s9 = inlined_call_operand.vmem [shape: f32[8,32,32], index: 9, kind: input, shape index: {}]
  %s10 = inlined_call_operand.vmem [shape: f32[2,32,64], index: 10, kind: input, shape index: {}]
  %s11 = inlined_call_operand.vmem [shape: f32[2,64,32], index: 11, kind: input, shape index: {}]
  %s12 = inlined_call_operand.vmem [shape: f32[2,1], index: 12, kind: output, shape index: {}]
  %s13 = sld [smem:[#allocation0]]
  $region62: #{seq2slate_reward_forward.1} parent=0
    _
  %s15 = ssub.s32 1, %s13
  %s16 = scalar_select 0, %s15, %s13
  $region1: #{seq2slate_reward_forward.1} parent=0
    #allocation2 [shape = 'u8[8192]{0}', space=vmem, size = 0x2000, scoped, tag = 'input window, operand 4, single buffered']
    #allocation3 [shape = 's32[1]{0}', space=sflag, size = 0x4, scoped, tag = 'scoped memory for seq2slate_reward_forward.1']
    %17 = vsyncpa [#allocation3], 0
    // Predicated region
    $region2: #{seq2slate_reward_forward.1} parent=1 // pred_check
      _
    $region3: #{seq2slate_reward_forward.1} parent=1 // pred_check_branch
      %19 = sbr.rel (0) target = $region5
    $region4: #{seq2slate_reward_forward.1} parent=1 // pred_region
      _
    $region5: #{seq2slate_reward_forward.1} parent=1 // pred_fallthru
      _
    // Predicated region
    $region6: #{seq2slate_reward_forward.1} parent=1 // pred_check
      _
    $region7: #{seq2slate_reward_forward.1} parent=1 // pred_check_branch
      %21 = sbr.rel (0) target = $region9
    $region8: #{seq2slate_reward_forward.1} parent=1 // pred_region
      _
    $region9: #{seq2slate_reward_forward.1} parent=1 // pred_fallthru
      _
    // Predicated region
    $region10: #{seq2slate_reward_forward.1} parent=1 // pred_check
      _
    $region11: #{seq2slate_reward_forward.1} parent=1 // pred_check_branch
      %23 = sbr.rel (0) target = $region13
    $region12: #{seq2slate_reward_forward.1} parent=1 // pred_region
      _
    $region13: #{seq2slate_reward_forward.1} parent=1 // pred_fallthru
      _
    // Predicated region
    $region14: #{seq2slate_reward_forward.1} parent=1 // pred_check
      _
    $region15: #{seq2slate_reward_forward.1} parent=1 // pred_check_branch
      %25 = sbr.rel (0) target = $region17
    $region16: #{seq2slate_reward_forward.1} parent=1 // pred_region
      _
    $region17: #{seq2slate_reward_forward.1} parent=1 // pred_fallthru
      _
    // Predicated region
    $region18: #{seq2slate_reward_forward.1} parent=1 // pred_check
      _
    $region19: #{seq2slate_reward_forward.1} parent=1 // pred_check_branch
      %27 = sbr.rel (0) target = $region21
    $region20: #{seq2slate_reward_forward.1} parent=1 // pred_region
      %s29 = ssub.s32 256, 256
      %30 = vsyncadd [#allocation3], %s29
      %s31 = sshll.u32 [#allocation2], 4
      %s32 = int_to_ptr.vmem [resolvable:$true] %s31
      %37 = dma.hbm_to_vmem [thread:$0]  %s4, 256, %s32, [#allocation3], 128, 128, 8
    $region21: #{seq2slate_reward_forward.1} parent=1 // pred_fallthru
      _
    // Predicated region
    $region22: #{seq2slate_reward_forward.1} parent=1 // pred_check
      _
    $region23: #{seq2slate_reward_forward.1} parent=1 // pred_check_branch
      %39 = sbr.rel (0) target = $region25
    $region24: #{seq2slate_reward_forward.1} parent=1 // pred_region
      _
    $region25: #{seq2slate_reward_forward.1} parent=1 // pred_fallthru
      _
    // Predicated region
    $region26: #{seq2slate_reward_forward.1} parent=1 // pred_check
      _
    $region27: #{seq2slate_reward_forward.1} parent=1 // pred_check_branch
      %41 = sbr.rel (0) target = $region29
    $region28: #{seq2slate_reward_forward.1} parent=1 // pred_region
      _
    $region29: #{seq2slate_reward_forward.1} parent=1 // pred_fallthru
      _
    // Predicated region
    $region30: #{seq2slate_reward_forward.1} parent=1 // pred_check
      _
    $region31: #{seq2slate_reward_forward.1} parent=1 // pred_check_branch
      %43 = sbr.rel (0) target = $region33
    $region32: #{seq2slate_reward_forward.1} parent=1 // pred_region
      _
    $region33: #{seq2slate_reward_forward.1} parent=1 // pred_fallthru
      _
    // Predicated region
    $region34: #{seq2slate_reward_forward.1} parent=1 // pred_check
      _
    $region35: #{seq2slate_reward_forward.1} parent=1 // pred_check_branch
      %45 = sbr.rel (0) target = $region37
    $region36: #{seq2slate_reward_forward.1} parent=1 // pred_region
      _
    $region37: #{seq2slate_reward_forward.1} parent=1 // pred_fallthru
      _
    // Predicated region
    $region38: #{seq2slate_reward_forward.1} parent=1 // pred_check
      _
    $region39: #{seq2slate_reward_forward.1} parent=1 // pred_check_branch
      %47 = sbr.rel (0) target = $region41
    $region40: #{seq2slate_reward_forward.1} parent=1 // pred_region
      _
    $region41: #{seq2slate_reward_forward.1} parent=1 // pred_fallthru
      _
    // Predicated region
    $region42: #{seq2slate_reward_forward.1} parent=1 // pred_check
      _
    $region43: #{seq2slate_reward_forward.1} parent=1 // pred_check_branch
      %49 = sbr.rel (0) target = $region45
    $region44: #{seq2slate_reward_forward.1} parent=1 // pred_region
      _
    $region45: #{seq2slate_reward_forward.1} parent=1 // pred_fallthru
      _
    // Predicated region
    $region46: #{seq2slate_reward_forward.1} parent=1 // pred_check
      _
    $region47: #{seq2slate_reward_forward.1} parent=1 // pred_check_branch
      %51 = sbr.rel (0) target = $region49
    $region48: #{seq2slate_reward_forward.1} parent=1 // pred_region
      _
    $region49: #{seq2slate_reward_forward.1} parent=1 // pred_fallthru
      _
    // Predicated region
    $region50: #{seq2slate_reward_forward.1} parent=1 // pred_check
      _
    $region51: #{seq2slate_reward_forward.1} parent=1 // pred_check_branch
      %53 = sbr.rel (0) target = $region53
    $region52: #{seq2slate_reward_forward.1} parent=1 // pred_region
      %54 = dma.done [#allocation3], 256
    $region53: #{seq2slate_reward_forward.1} parent=1 // pred_fallthru
      _
    %v55 = vld [vmem:[%s2] sm:$0xff]
    %v56 = vld [vmem:[%s2 + $0x8] sm:$0xff]
    %v57 = vld [vmem:[%s2 + $0x10] sm:$0xff]
    %v58 = vld [vmem:[%s2 + $0x18] sm:$0xff]
    %v59 = vld [vmem:[%s2 + $0x20] sm:$0xff]
    %v60 = vld [vmem:[%s2 + $0x28] sm:$0xff]
    %v61 = vld [vmem:[%s2 + $0x30] sm:$0x7]
    %v62 = vld [vmem:[%s3] sm:$0xf]
    %v63 = vld [vmem:[%s0] sm:$0xff]
    %v64 = vld [vmem:[%s0 + $0x8] sm:$0xff]
    %v65 = vld [vmem:[#allocation2] sm:$0xff]
    %v66 = vld [vmem:[#allocation2 + $0x8] sm:$0xff]
    %v67 = vld [vmem:[%s1] sm:$0xff]
    %v68 = vld [vmem:[%s1 + $0x8] sm:$0xff]
    %vm69 = vcmask 130048
    %v71 = vsel %vm69, %v63, 0
    %v74 = vsel %vm69, %v64, 0
    %76 = vmatprep.subr.mxu0 0.0
    %77 = vmatpush1.msra.mxu0 0.0
    %78 = vmatprep.subr.mxu0 0.0
    %79 = vmatpush1.msra.mxu0 0.0
    %80 = vmatprep.subr.mxu0 0.0
    %81 = vmatpush1.msra.mxu0 0.0
    %82 = vmatprep.subr.mxu0 0.0
    %83 = vmatpush1.msra.mxu0 0.0
    %84 = vmatprep.subr.mxu0 0.0
    %85 = vmatpush1.msra.mxu0 0.0
    %86 = vmatprep.subr.mxu0 0.0
    %87 = vmatpush1.msra.mxu0 0.0
    %88 = vmatprep.subr.mxu0 0.0
    %89 = vmatpush1.msra.mxu0 0.0
    %90 = vmatprep.subr.mxu0 0.0
    %91 = vmatpush1.msra.mxu0 0.0
    %92 = vmatprep.subr.mxu0 0.0
    %93 = vmatpush1.msra.mxu0 0.0
    %94 = vmatprep.subr.mxu0 0.0
    %95 = vmatpush1.msra.mxu0 0.0
    %96 = vmatprep.subr.mxu0 0.0
    %97 = vmatpush1.msra.mxu0 0.0
    %98 = vmatprep.subr.mxu0 0.0
    %99 = vmatpush1.msra.mxu0 0.0
    %100 = vmatprep.subr.mxu0 0.0
    %101 = vmatpush1.msra.mxu0 0.0
    %102 = vmatprep.subr.mxu0 0.0
    %103 = vmatpush1.msra.mxu0 0.0
    %104 = vmatprep.subr.mxu0 0.0
    %105 = vmatpush1.msra.mxu0 %v66
    %106 = vmatprep.subr.mxu0 0.0
    %107 = vmatpush1.msra.mxu0 %v65
    %108 = vmatprep.subr.mxu0 0.0
    %109 = vmatpush2.msra.mxu0 0.0
    %110 = vmatprep.subr.mxu0 0.0
    %111 = vmatpush2.msra.mxu0 0.0
    %112 = vmatprep.subr.mxu0 0.0
    %113 = vmatpush2.msra.mxu0 0.0
    %114 = vmatprep.subr.mxu0 0.0
    %115 = vmatpush2.msra.mxu0 0.0
    %116 = vmatprep.subr.mxu0 0.0
    %117 = vmatpush2.msra.mxu0 0.0
    %118 = vmatprep.subr.mxu0 0.0
    %119 = vmatpush2.msra.mxu0 0.0
    %120 = vmatprep.subr.mxu0 0.0
    %121 = vmatpush2.msra.mxu0 0.0
    %122 = vmatprep.subr.mxu0 0.0
    %123 = vmatpush2.msra.mxu0 0.0
    %124 = vmatprep.subr.mxu0 0.0
    %125 = vmatpush2.msra.mxu0 0.0
    %126 = vmatprep.subr.mxu0 0.0
    %127 = vmatpush2.msra.mxu0 0.0
    %128 = vmatprep.subr.mxu0 0.0
    %129 = vmatpush2.msra.mxu0 0.0
    %130 = vmatprep.subr.mxu0 0.0
    %131 = vmatpush2.msra.mxu0 0.0
    %132 = vmatprep.subr.mxu0 0.0
    %133 = vmatpush2.msra.mxu0 0.0
    %134 = vmatprep.subr.mxu0 0.0
    %135 = vmatpush2.msra.mxu0 0.0
    %136 = vmatprep.subr.mxu0 0.0
    %137 = vmatpush2.msra.mxu0 0.0
    %138 = vmatprep.subr.mxu0 0.0
    %139 = vmatpush2.msra.mxu0 0.0
    %140 = vmatprep.mubr.f32.mxu0 0.0
    %141 = vmatmul.mubr.f32.gmra.mxu0 %v71
    %v142 = vpop.f32.mrf.mxu0
    %v143 = vadd.f32 %v67, %v142
    %v144 = vpop.f32.mrf.mxu0
    %145 = vmatprep.mubr.f32.mxu0 0.0
    %146 = vmatmul.mubr.f32.gmra.mxu0 %v74
    %v147 = vpop.f32.mrf.mxu0
    %v148 = vadd.f32 %v68, %v147
    %v149 = vpop.f32.mrf.mxu0
    %150 = vdwg.mxu0
    %vm151 = vcmask 261120
    %v152 = vsel %vm151, %v143, 0.0
    %153 = vadd.xlane.f32.xlu0 %v152
    %v154 = vpop.xlane.xlu0 %153
    %v155 = vsel %vm151, %v148, 0.0
    %156 = vadd.xlane.f32.xlu0 %v155
    %v157 = vpop.xlane.xlu0 %156
    %v158 = vrcp.pop 32.0
    %v159 = vmul.f32 %v154, %v158
    %v160 = vmul.f32 %v157, %v158
    %v161 = vsub.f32 %v143, %v159
    %v162 = vsub.f32 %v148, %v160
    %v163 = vmul.f32 %v161, %v161
    %v164 = vmul.f32 %v162, %v162
    %v165 = vsel %vm151, %v163, 0.0
    %166 = vadd.xlane.f32.xlu0 %v165
    %v167 = vpop.xlane.xlu0 %166
    %v168 = vsel %vm151, %v164, 0.0
    %169 = vadd.xlane.f32.xlu0 %v168
    %v170 = vpop.xlane.xlu0 %169
    %v171 = vmul.f32 %v167, %v158
    %v172 = vmul.f32 %v170, %v158
    %v173 = vadd.f32 %v171, 1e-05
    %v174 = vadd.f32 %v172, 1e-05
    %v175 = vrsqrt.pop %v173
    %v176 = vrsqrt.pop %v174
    %v177 = vmul.f32 %v161, %v175
    %v178 = vmul.f32 %v162, %v176
    %v179 = vlaneseq
    %v180 = vshrl.u32 %v179, 7
    %v181 = vsub.s32 0, %v180
    %v182 = vrot.slane %v56, %v181
    %v183 = vmul.f32 %v177, %v182
    %v184 = vmul.f32 %v178, %v182
    %v185 = vlaneseq
    %v186 = vshrl.u32 %v185, 7
    %v187 = vsub.s32 4, %v186
    %v188 = vrot.slane %v56, %v187
    %v189 = vadd.f32 %v183, %v188
    %v190 = vadd.f32 %v184, %v188
    %v191 = vld [vmem:[%s5] sm:$0xff]
    %v192 = vld [vmem:[%s5 + $0x8] sm:$0xff]
    %v193 = vld [vmem:[%s5 + $0x10] sm:$0xff]
    %v194 = vld [vmem:[%s5 + $0x18] sm:$0xff]
    %s195 = scalar_lea.vmem %s5, 32
    %v196 = vld [vmem:[%s195] sm:$0xff]
    %v197 = vld [vmem:[%s195 + $0x8] sm:$0xff]
    %v198 = vld [vmem:[%s195 + $0x10] sm:$0xff]
    %v199 = vld [vmem:[%s195 + $0x18] sm:$0xff]
    %s200 = scalar_lea.vmem %s5, 64
    %v201 = vld [vmem:[%s200] sm:$0xff]
    %v202 = vld [vmem:[%s200 + $0x8] sm:$0xff]
    %v203 = vld [vmem:[%s200 + $0x10] sm:$0xff]
    %v204 = vld [vmem:[%s200 + $0x18] sm:$0xff]
    %s205 = scalar_lea.vmem %s5, 96
    %v206 = vld [vmem:[%s205] sm:$0xff]
    %v207 = vld [vmem:[%s205 + $0x8] sm:$0xff]
    %v208 = vld [vmem:[%s205 + $0x10] sm:$0xff]
    %v209 = vld [vmem:[%s205 + $0x18] sm:$0xff]
    %v210 = vlaneseq
    %v211 = vshrl.u32 %v210, 7
    %v212 = vsub.s32 0, %v211
    %v213 = vrot.slane %v55, %v212
    %v215 = vsel %vm151, %v189, 0
    %v218 = vsel %vm151, %v190, 0
    %220 = vmatprep.subr.mxu0 0.0
    %221 = vmatpush1.msra.mxu0 0.0
    %222 = vmatprep.subr.mxu0 0.0
    %223 = vmatpush1.msra.mxu0 0.0
    %224 = vmatprep.subr.mxu0 0.0
    %225 = vmatpush1.msra.mxu0 0.0
    %226 = vmatprep.subr.mxu0 0.0
    %227 = vmatpush1.msra.mxu0 0.0
    %228 = vmatprep.subr.mxu0 0.0
    %229 = vmatpush1.msra.mxu0 0.0
    %230 = vmatprep.subr.mxu0 0.0
    %231 = vmatpush1.msra.mxu0 0.0
    %232 = vmatprep.subr.mxu0 0.0
    %233 = vmatpush1.msra.mxu0 0.0
    %234 = vmatprep.subr.mxu0 0.0
    %235 = vmatpush1.msra.mxu0 0.0
    %236 = vmatprep.subr.mxu0 0.0
    %237 = vmatpush1.msra.mxu0 0.0
    %238 = vmatprep.subr.mxu0 0.0
    %239 = vmatpush1.msra.mxu0 0.0
    %240 = vmatprep.subr.mxu0 0.0
    %241 = vmatpush1.msra.mxu0 0.0
    %242 = vmatprep.subr.mxu0 0.0
    %243 = vmatpush1.msra.mxu0 0.0
    %244 = vmatprep.subr.mxu0 0.0
    %245 = vmatpush1.msra.mxu0 %v194
    %246 = vmatprep.subr.mxu0 0.0
    %247 = vmatpush1.msra.mxu0 %v193
    %248 = vmatprep.subr.mxu0 0.0
    %249 = vmatpush1.msra.mxu0 %v192
    %250 = vmatprep.subr.mxu0 0.0
    %251 = vmatpush1.msra.mxu0 %v191
    %252 = vmatprep.subr.mxu0 0.0
    %253 = vmatpush2.msra.mxu0 0.0
    %254 = vmatprep.subr.mxu0 0.0
    %255 = vmatpush2.msra.mxu0 0.0
    %256 = vmatprep.subr.mxu0 0.0
    %257 = vmatpush2.msra.mxu0 0.0
    %258 = vmatprep.subr.mxu0 0.0
    %259 = vmatpush2.msra.mxu0 0.0
    %260 = vmatprep.subr.mxu0 0.0
    %261 = vmatpush2.msra.mxu0 0.0
    %262 = vmatprep.subr.mxu0 0.0
    %263 = vmatpush2.msra.mxu0 0.0
    %264 = vmatprep.subr.mxu0 0.0
    %265 = vmatpush2.msra.mxu0 0.0
    %266 = vmatprep.subr.mxu0 0.0
    %267 = vmatpush2.msra.mxu0 0.0
    %268 = vmatprep.subr.mxu0 0.0
    %269 = vmatpush2.msra.mxu0 0.0
    %270 = vmatprep.subr.mxu0 0.0
    %271 = vmatpush2.msra.mxu0 0.0
    %272 = vmatprep.subr.mxu0 0.0
    %273 = vmatpush2.msra.mxu0 0.0
    %274 = vmatprep.subr.mxu0 0.0
    %275 = vmatpush2.msra.mxu0 0.0
    %276 = vmatprep.subr.mxu0 0.0
    %277 = vmatpush2.msra.mxu0 0.0
    %278 = vmatprep.subr.mxu0 0.0
    %279 = vmatpush2.msra.mxu0 0.0
    %280 = vmatprep.subr.mxu0 0.0
    %281 = vmatpush2.msra.mxu0 0.0
    %282 = vmatprep.subr.mxu0 0.0
    %283 = vmatpush2.msra.mxu0 0.0
    %284 = vmatprep.mubr.f32.mxu0 0.0
    %285 = vmatmul.mubr.f32.gmra.mxu0 %v215
    %v286 = vpop.f32.mrf.mxu0
    %v287 = vadd.f32 %v213, %v286
    %v288 = vpop.f32.mrf.mxu0
    %289 = vmatprep.mubr.f32.mxu0 0.0
    %290 = vmatmul.mubr.f32.gmra.mxu0 %v218
    %v291 = vpop.f32.mrf.mxu0
    %v292 = vadd.f32 %v213, %v291
    %v293 = vpop.f32.mrf.mxu0
    %294 = vdwg.mxu0
    %v295 = vlaneseq
    %v296 = vshrl.u32 %v295, 7
    %v297 = vsub.s32 1, %v296
    %v298 = vrot.slane %v55, %v297
    %299 = vmatprep.subr.mxu0 0.0
    %300 = vmatpush1.msra.mxu0 0.0
    %301 = vmatprep.subr.mxu0 0.0
    %302 = vmatpush1.msra.mxu0 0.0
    %303 = vmatprep.subr.mxu0 0.0
    %304 = vmatpush1.msra.mxu0 0.0
    %305 = vmatprep.subr.mxu0 0.0
    %306 = vmatpush1.msra.mxu0 0.0
    %307 = vmatprep.subr.mxu0 0.0
    %308 = vmatpush1.msra.mxu0 0.0
    %309 = vmatprep.subr.mxu0 0.0
    %310 = vmatpush1.msra.mxu0 0.0
    %311 = vmatprep.subr.mxu0 0.0
    %312 = vmatpush1.msra.mxu0 0.0
    %313 = vmatprep.subr.mxu0 0.0
    %314 = vmatpush1.msra.mxu0 0.0
    %315 = vmatprep.subr.mxu0 0.0
    %316 = vmatpush1.msra.mxu0 0.0
    %317 = vmatprep.subr.mxu0 0.0
    %318 = vmatpush1.msra.mxu0 0.0
    %319 = vmatprep.subr.mxu0 0.0
    %320 = vmatpush1.msra.mxu0 0.0
    %321 = vmatprep.subr.mxu0 0.0
    %322 = vmatpush1.msra.mxu0 0.0
    %323 = vmatprep.subr.mxu0 0.0
    %324 = vmatpush1.msra.mxu0 %v199
    %325 = vmatprep.subr.mxu0 0.0
    %326 = vmatpush1.msra.mxu0 %v198
    %327 = vmatprep.subr.mxu0 0.0
    %328 = vmatpush1.msra.mxu0 %v197
    %329 = vmatprep.subr.mxu0 0.0
    %330 = vmatpush1.msra.mxu0 %v196
    %331 = vmatprep.subr.mxu0 0.0
    %332 = vmatpush2.msra.mxu0 0.0
    %333 = vmatprep.subr.mxu0 0.0
    %334 = vmatpush2.msra.mxu0 0.0
    %335 = vmatprep.subr.mxu0 0.0
    %336 = vmatpush2.msra.mxu0 0.0
    %337 = vmatprep.subr.mxu0 0.0
    %338 = vmatpush2.msra.mxu0 0.0
    %339 = vmatprep.subr.mxu0 0.0
    %340 = vmatpush2.msra.mxu0 0.0
    %341 = vmatprep.subr.mxu0 0.0
    %342 = vmatpush2.msra.mxu0 0.0
    %343 = vmatprep.subr.mxu0 0.0
    %344 = vmatpush2.msra.mxu0 0.0
    %345 = vmatprep.subr.mxu0 0.0
    %346 = vmatpush2.msra.mxu0 0.0
    %347 = vmatprep.subr.mxu0 0.0
    %348 = vmatpush2.msra.mxu0 0.0
    %349 = vmatprep.subr.mxu0 0.0
    %350 = vmatpush2.msra.mxu0 0.0
    %351 = vmatprep.subr.mxu0 0.0
    %352 = vmatpush2.msra.mxu0 0.0
    %353 = vmatprep.subr.mxu0 0.0
    %354 = vmatpush2.msra.mxu0 0.0
    %355 = vmatprep.subr.mxu0 0.0
    %356 = vmatpush2.msra.mxu0 0.0
    %357 = vmatprep.subr.mxu0 0.0
    %358 = vmatpush2.msra.mxu0 0.0
    %359 = vmatprep.subr.mxu0 0.0
    %360 = vmatpush2.msra.mxu0 0.0
    %361 = vmatprep.subr.mxu0 0.0
    %362 = vmatpush2.msra.mxu0 0.0
    %363 = vmatprep.mubr.f32.mxu0 0.0
    %364 = vmatmul.mubr.f32.gmra.mxu0 %v215
    %v365 = vpop.f32.mrf.mxu0
    %v366 = vadd.f32 %v298, %v365
    %v367 = vpop.f32.mrf.mxu0
    %368 = vmatprep.mubr.f32.mxu0 0.0
    %369 = vmatmul.mubr.f32.gmra.mxu0 %v218
    %v370 = vpop.f32.mrf.mxu0
    %v371 = vadd.f32 %v298, %v370
    %v372 = vpop.f32.mrf.mxu0
    %373 = vdwg.mxu0
    %v374 = vlaneseq
    %v375 = vshrl.u32 %v374, 7
    %v376 = vsub.s32 2, %v375
    %v377 = vrot.slane %v55, %v376
    %378 = vmatprep.subr.mxu0 0.0
    %379 = vmatpush1.msra.mxu0 0.0
    %380 = vmatprep.subr.mxu0 0.0
    %381 = vmatpush1.msra.mxu0 0.0
    %382 = vmatprep.subr.mxu0 0.0
    %383 = vmatpush1.msra.mxu0 0.0
    %384 = vmatprep.subr.mxu0 0.0
    %385 = vmatpush1.msra.mxu0 0.0
    %386 = vmatprep.subr.mxu0 0.0
    %387 = vmatpush1.msra.mxu0 0.0
    %388 = vmatprep.subr.mxu0 0.0
    %389 = vmatpush1.msra.mxu0 0.0
    %390 = vmatprep.subr.mxu0 0.0
    %391 = vmatpush1.msra.mxu0 0.0
    %392 = vmatprep.subr.mxu0 0.0
    %393 = vmatpush1.msra.mxu0 0.0
    %394 = vmatprep.subr.mxu0 0.0
    %395 = vmatpush1.msra.mxu0 0.0
    %396 = vmatprep.subr.mxu0 0.0
    %397 = vmatpush1.msra.mxu0 0.0
    %398 = vmatprep.subr.mxu0 0.0
    %399 = vmatpush1.msra.mxu0 0.0
    %400 = vmatprep.subr.mxu0 0.0
    %401 = vmatpush1.msra.mxu0 0.0
    %402 = vmatprep.subr.mxu0 0.0
    %403 = vmatpush1.msra.mxu0 %v204
    %404 = vmatprep.subr.mxu0 0.0
    %405 = vmatpush1.msra.mxu0 %v203
    %406 = vmatprep.subr.mxu0 0.0
    %407 = vmatpush1.msra.mxu0 %v202
    %408 = vmatprep.subr.mxu0 0.0
    %409 = vmatpush1.msra.mxu0 %v201
    %410 = vmatprep.subr.mxu0 0.0
    %411 = vmatpush2.msra.mxu0 0.0
    %412 = vmatprep.subr.mxu0 0.0
    %413 = vmatpush2.msra.mxu0 0.0
    %414 = vmatprep.subr.mxu0 0.0
    %415 = vmatpush2.msra.mxu0 0.0
    %416 = vmatprep.subr.mxu0 0.0
    %417 = vmatpush2.msra.mxu0 0.0
    %418 = vmatprep.subr.mxu0 0.0
    %419 = vmatpush2.msra.mxu0 0.0
    %420 = vmatprep.subr.mxu0 0.0
    %421 = vmatpush2.msra.mxu0 0.0
    %422 = vmatprep.subr.mxu0 0.0
    %423 = vmatpush2.msra.mxu0 0.0
    %424 = vmatprep.subr.mxu0 0.0
    %425 = vmatpush2.msra.mxu0 0.0
    %426 = vmatprep.subr.mxu0 0.0
    %427 = vmatpush2.msra.mxu0 0.0
    %428 = vmatprep.subr.mxu0 0.0
    %429 = vmatpush2.msra.mxu0 0.0
    %430 = vmatprep.subr.mxu0 0.0
    %431 = vmatpush2.msra.mxu0 0.0
    %432 = vmatprep.subr.mxu0 0.0
    %433 = vmatpush2.msra.mxu0 0.0
    %434 = vmatprep.subr.mxu0 0.0
    %435 = vmatpush2.msra.mxu0 0.0
    %436 = vmatprep.subr.mxu0 0.0
    %437 = vmatpush2.msra.mxu0 0.0
    %438 = vmatprep.subr.mxu0 0.0
    %439 = vmatpush2.msra.mxu0 0.0
    %440 = vmatprep.subr.mxu0 0.0
    %441 = vmatpush2.msra.mxu0 0.0
    %442 = vmatprep.mubr.f32.mxu0 0.0
    %443 = vmatmul.mubr.f32.gmra.mxu0 %v215
    %v444 = vpop.f32.mrf.mxu0
    %v445 = vadd.f32 %v377, %v444
    %v446 = vpop.f32.mrf.mxu0
    %447 = vmatprep.mubr.f32.mxu0 0.0
    %448 = vmatmul.mubr.f32.gmra.mxu0 %v218
    %v449 = vpop.f32.mrf.mxu0
    %v450 = vadd.f32 %v377, %v449
    %v451 = vpop.f32.mrf.mxu0
    %452 = vdwg.mxu0
    %v454 = vsel %vm69, %v287, 0
    %v457 = vsel %vm69, %v366, 0
    %459 = vmatprep.subr.mxu0 0.0
    %460 = vmatpush1.xpose.msra.mxu0 0.0
    %461 = vmatprep.subr.mxu0 0.0
    %462 = vmatpush1.xpose.msra.mxu0 0.0
    %463 = vmatprep.subr.mxu0 0.0
    %464 = vmatpush1.xpose.msra.mxu0 0.0
    %465 = vmatprep.subr.mxu0 0.0
    %466 = vmatpush1.xpose.msra.mxu0 0.0
    %467 = vmatprep.subr.mxu0 0.0
    %468 = vmatpush1.xpose.msra.mxu0 0.0
    %469 = vmatprep.subr.mxu0 0.0
    %470 = vmatpush1.xpose.msra.mxu0 0.0
    %471 = vmatprep.subr.mxu0 0.0
    %472 = vmatpush1.xpose.msra.mxu0 0.0
    %473 = vmatprep.subr.mxu0 0.0
    %474 = vmatpush1.xpose.msra.mxu0 0.0
    %475 = vmatprep.subr.mxu0 0.0
    %476 = vmatpush1.xpose.msra.mxu0 0.0
    %477 = vmatprep.subr.mxu0 0.0
    %478 = vmatpush1.xpose.msra.mxu0 0.0
    %479 = vmatprep.subr.mxu0 0.0
    %480 = vmatpush1.xpose.msra.mxu0 0.0
    %481 = vmatprep.subr.mxu0 0.0
    %482 = vmatpush1.xpose.msra.mxu0 0.0
    %483 = vmatprep.subr.mxu0 0.0
    %484 = vmatpush1.xpose.msra.mxu0 0.0
    %485 = vmatprep.subr.mxu0 0.0
    %486 = vmatpush1.xpose.msra.mxu0 0.0
    %487 = vmatprep.subr.mxu0 0.0
    %488 = vmatpush1.xpose.msra.mxu0 0.0
    %489 = vmatprep.subr.mxu0 0.0
    %490 = vmatpush1.xpose.msra.mxu0 %v457
    %491 = vmatprep.subr.mxu0 0.0
    %492 = vmatpush2.xpose.msra.mxu0 0.0
    %493 = vmatprep.subr.mxu0 0.0
    %494 = vmatpush2.xpose.msra.mxu0 0.0
    %495 = vmatprep.subr.mxu0 0.0
    %496 = vmatpush2.xpose.msra.mxu0 0.0
    %497 = vmatprep.subr.mxu0 0.0
    %498 = vmatpush2.xpose.msra.mxu0 0.0
    %499 = vmatprep.subr.mxu0 0.0
    %500 = vmatpush2.xpose.msra.mxu0 0.0
    %501 = vmatprep.subr.mxu0 0.0
    %502 = vmatpush2.xpose.msra.mxu0 0.0
    %503 = vmatprep.subr.mxu0 0.0
    %504 = vmatpush2.xpose.msra.mxu0 0.0
    %505 = vmatprep.subr.mxu0 0.0
    %506 = vmatpush2.xpose.msra.mxu0 0.0
    %507 = vmatprep.subr.mxu0 0.0
    %508 = vmatpush2.xpose.msra.mxu0 0.0
    %509 = vmatprep.subr.mxu0 0.0
    %510 = vmatpush2.xpose.msra.mxu0 0.0
    %511 = vmatprep.subr.mxu0 0.0
    %512 = vmatpush2.xpose.msra.mxu0 0.0
    %513 = vmatprep.subr.mxu0 0.0
    %514 = vmatpush2.xpose.msra.mxu0 0.0
    %515 = vmatprep.subr.mxu0 0.0
    %516 = vmatpush2.xpose.msra.mxu0 0.0
    %517 = vmatprep.subr.mxu0 0.0
    %518 = vmatpush2.xpose.msra.mxu0 0.0
    %519 = vmatprep.subr.mxu0 0.0
    %520 = vmatpush2.xpose.msra.mxu0 0.0
    %521 = vmatprep.subr.mxu0 0.0
    %522 = vmatpush2.xpose.msra.mxu0 0.0
    %523 = vmatprep.mubr.f32.mxu0 0.0
    %524 = vmatmul.mubr.f32.gmra.mxu0 %v454
    %v525 = vpop.f32.mrf.mxu0
    %v526 = vadd.f32 0.0, %v525
    %v527 = vpop.f32.mrf.mxu0
    %528 = vdwg.mxu0
    %v530 = vsel %vm69, %v292, 0
    %v533 = vsel %vm69, %v371, 0
    %535 = vmatprep.subr.mxu0 0.0
    %536 = vmatpush1.xpose.msra.mxu0 0.0
    %537 = vmatprep.subr.mxu0 0.0
    %538 = vmatpush1.xpose.msra.mxu0 0.0
    %539 = vmatprep.subr.mxu0 0.0
    %540 = vmatpush1.xpose.msra.mxu0 0.0
    %541 = vmatprep.subr.mxu0 0.0
    %542 = vmatpush1.xpose.msra.mxu0 0.0
    %543 = vmatprep.subr.mxu0 0.0
    %544 = vmatpush1.xpose.msra.mxu0 0.0
    %545 = vmatprep.subr.mxu0 0.0
    %546 = vmatpush1.xpose.msra.mxu0 0.0
    %547 = vmatprep.subr.mxu0 0.0
    %548 = vmatpush1.xpose.msra.mxu0 0.0
    %549 = vmatprep.subr.mxu0 0.0
    %550 = vmatpush1.xpose.msra.mxu0 0.0
    %551 = vmatprep.subr.mxu0 0.0
    %552 = vmatpush1.xpose.msra.mxu0 0.0
    %553 = vmatprep.subr.mxu0 0.0
    %554 = vmatpush1.xpose.msra.mxu0 0.0
    %555 = vmatprep.subr.mxu0 0.0
    %556 = vmatpush1.xpose.msra.mxu0 0.0
    %557 = vmatprep.subr.mxu0 0.0
    %558 = vmatpush1.xpose.msra.mxu0 0.0
    %559 = vmatprep.subr.mxu0 0.0
    %560 = vmatpush1.xpose.msra.mxu0 0.0
    %561 = vmatprep.subr.mxu0 0.0
    %562 = vmatpush1.xpose.msra.mxu0 0.0
    %563 = vmatprep.subr.mxu0 0.0
    %564 = vmatpush1.xpose.msra.mxu0 0.0
    %565 = vmatprep.subr.mxu0 0.0
    %566 = vmatpush1.xpose.msra.mxu0 %v533
    %567 = vmatprep.subr.mxu0 0.0
    %568 = vmatpush2.xpose.msra.mxu0 0.0
    %569 = vmatprep.subr.mxu0 0.0
    %570 = vmatpush2.xpose.msra.mxu0 0.0
    %571 = vmatprep.subr.mxu0 0.0
    %572 = vmatpush2.xpose.msra.mxu0 0.0
    %573 = vmatprep.subr.mxu0 0.0
    %574 = vmatpush2.xpose.msra.mxu0 0.0
    %575 = vmatprep.subr.mxu0 0.0
    %576 = vmatpush2.xpose.msra.mxu0 0.0
    %577 = vmatprep.subr.mxu0 0.0
    %578 = vmatpush2.xpose.msra.mxu0 0.0
    %579 = vmatprep.subr.mxu0 0.0
    %580 = vmatpush2.xpose.msra.mxu0 0.0
    %581 = vmatprep.subr.mxu0 0.0
    %582 = vmatpush2.xpose.msra.mxu0 0.0
    %583 = vmatprep.subr.mxu0 0.0
    %584 = vmatpush2.xpose.msra.mxu0 0.0
    %585 = vmatprep.subr.mxu0 0.0
    %586 = vmatpush2.xpose.msra.mxu0 0.0
    %587 = vmatprep.subr.mxu0 0.0
    %588 = vmatpush2.xpose.msra.mxu0 0.0
    %589 = vmatprep.subr.mxu0 0.0
    %590 = vmatpush2.xpose.msra.mxu0 0.0
    %591 = vmatprep.subr.mxu0 0.0
    %592 = vmatpush2.xpose.msra.mxu0 0.0
    %593 = vmatprep.subr.mxu0 0.0
    %594 = vmatpush2.xpose.msra.mxu0 0.0
    %595 = vmatprep.subr.mxu0 0.0
    %596 = vmatpush2.xpose.msra.mxu0 0.0
    %597 = vmatprep.subr.mxu0 0.0
    %598 = vmatpush2.xpose.msra.mxu0 0.0
    %599 = vmatprep.mubr.f32.mxu0 0.0
    %600 = vmatmul.mubr.f32.gmra.mxu0 %v530
    %v601 = vpop.f32.mrf.mxu0
    %v602 = vadd.f32 0.0, %v601
    %v603 = vpop.f32.mrf.mxu0
    %604 = vdwg.mxu0
    %v605 = vmul.f32 %v526, 0.25
    %v606 = vmul.f32 %v602, 0.25
    %vm607 = vcmask 64512
    %v608 = vsel %vm607, %v605, -inf
    %609 = vmax.xlane.f32.xlu0 %v608
    %v610 = vpop.xlane.xlu0 %609
    %v611 = vsel %vm607, %v606, -inf
    %612 = vmax.xlane.f32.xlu0 %v611
    %v613 = vpop.xlane.xlu0 %612
    %v614 = vsub.f32 %v605, %v610
    %v615 = vsub.f32 %v606, %v613
    %v616 = vmul.f32 %v614, 1.442695
    %v617 = vpow.pop %v616
    %v618 = vmul.f32 %v615, 1.442695
    %v619 = vpow.pop %v618
    %v620 = vsel %vm607, %v617, 0.0
    %621 = vadd.xlane.f32.xlu0 %v620
    %v622 = vpop.xlane.xlu0 %621
    %v623 = vsel %vm607, %v619, 0.0
    %624 = vadd.xlane.f32.xlu0 %v623
    %v625 = vpop.xlane.xlu0 %624
    %v626 = vrcp.pop %v622
    %v627 = vmul.f32 %v617, %v626
    %v628 = vrcp.pop %v625
    %v629 = vmul.f32 %v619, %v628
    %v631 = vsel %vm607, %v627, 0
    %633 = vmatprep.subr.mxu0 0.0
    %634 = vmatpush1.msra.mxu0 0.0
    %635 = vmatprep.subr.mxu0 0.0
    %636 = vmatpush1.msra.mxu0 0.0
    %637 = vmatprep.subr.mxu0 0.0
    %638 = vmatpush1.msra.mxu0 0.0
    %639 = vmatprep.subr.mxu0 0.0
    %640 = vmatpush1.msra.mxu0 0.0
    %641 = vmatprep.subr.mxu0 0.0
    %642 = vmatpush1.msra.mxu0 0.0
    %643 = vmatprep.subr.mxu0 0.0
    %644 = vmatpush1.msra.mxu0 0.0
    %645 = vmatprep.subr.mxu0 0.0
    %646 = vmatpush1.msra.mxu0 0.0
    %647 = vmatprep.subr.mxu0 0.0
    %648 = vmatpush1.msra.mxu0 0.0
    %649 = vmatprep.subr.mxu0 0.0
    %650 = vmatpush1.msra.mxu0 0.0
    %651 = vmatprep.subr.mxu0 0.0
    %652 = vmatpush1.msra.mxu0 0.0
    %653 = vmatprep.subr.mxu0 0.0
    %654 = vmatpush1.msra.mxu0 0.0
    %655 = vmatprep.subr.mxu0 0.0
    %656 = vmatpush1.msra.mxu0 0.0
    %657 = vmatprep.subr.mxu0 0.0
    %658 = vmatpush1.msra.mxu0 0.0
    %659 = vmatprep.subr.mxu0 0.0
    %660 = vmatpush1.msra.mxu0 0.0
    %661 = vmatprep.subr.mxu0 0.0
    %662 = vmatpush1.msra.mxu0 0.0
    %663 = vmatprep.subr.mxu0 0.0
    %664 = vmatpush1.msra.mxu0 %v445
    %665 = vmatprep.subr.mxu0 0.0
    %666 = vmatpush2.msra.mxu0 0.0
    %667 = vmatprep.subr.mxu0 0.0
    %668 = vmatpush2.msra.mxu0 0.0
    %669 = vmatprep.subr.mxu0 0.0
    %670 = vmatpush2.msra.mxu0 0.0
    %671 = vmatprep.subr.mxu0 0.0
    %672 = vmatpush2.msra.mxu0 0.0
    %673 = vmatprep.subr.mxu0 0.0
    %674 = vmatpush2.msra.mxu0 0.0
    %675 = vmatprep.subr.mxu0 0.0
    %676 = vmatpush2.msra.mxu0 0.0
    %677 = vmatprep.subr.mxu0 0.0
    %678 = vmatpush2.msra.mxu0 0.0
    %679 = vmatprep.subr.mxu0 0.0
    %680 = vmatpush2.msra.mxu0 0.0
    %681 = vmatprep.subr.mxu0 0.0
    %682 = vmatpush2.msra.mxu0 0.0
    %683 = vmatprep.subr.mxu0 0.0
    %684 = vmatpush2.msra.mxu0 0.0
    %685 = vmatprep.subr.mxu0 0.0
    %686 = vmatpush2.msra.mxu0 0.0
    %687 = vmatprep.subr.mxu0 0.0
    %688 = vmatpush2.msra.mxu0 0.0
    %689 = vmatprep.subr.mxu0 0.0
    %690 = vmatpush2.msra.mxu0 0.0
    %691 = vmatprep.subr.mxu0 0.0
    %692 = vmatpush2.msra.mxu0 0.0
    %693 = vmatprep.subr.mxu0 0.0
    %694 = vmatpush2.msra.mxu0 0.0
    %695 = vmatprep.subr.mxu0 0.0
    %696 = vmatpush2.msra.mxu0 0.0
    %697 = vmatprep.mubr.f32.mxu0 0.0
    %698 = vmatmul.mubr.f32.gmra.mxu0 %v631
    %v699 = vpop.f32.mrf.mxu0
    %v700 = vadd.f32 0.0, %v699
    %v701 = vpop.f32.mrf.mxu0
    %702 = vdwg.mxu0
    %v704 = vsel %vm607, %v629, 0
    %706 = vmatprep.subr.mxu0 0.0
    %707 = vmatpush1.msra.mxu0 0.0
    %708 = vmatprep.subr.mxu0 0.0
    %709 = vmatpush1.msra.mxu0 0.0
    %710 = vmatprep.subr.mxu0 0.0
    %711 = vmatpush1.msra.mxu0 0.0
    %712 = vmatprep.subr.mxu0 0.0
    %713 = vmatpush1.msra.mxu0 0.0
    %714 = vmatprep.subr.mxu0 0.0
    %715 = vmatpush1.msra.mxu0 0.0
    %716 = vmatprep.subr.mxu0 0.0
    %717 = vmatpush1.msra.mxu0 0.0
    %718 = vmatprep.subr.mxu0 0.0
    %719 = vmatpush1.msra.mxu0 0.0
    %720 = vmatprep.subr.mxu0 0.0
    %721 = vmatpush1.msra.mxu0 0.0
    %722 = vmatprep.subr.mxu0 0.0
    %723 = vmatpush1.msra.mxu0 0.0
    %724 = vmatprep.subr.mxu0 0.0
    %725 = vmatpush1.msra.mxu0 0.0
    %726 = vmatprep.subr.mxu0 0.0
    %727 = vmatpush1.msra.mxu0 0.0
    %728 = vmatprep.subr.mxu0 0.0
    %729 = vmatpush1.msra.mxu0 0.0
    %730 = vmatprep.subr.mxu0 0.0
    %731 = vmatpush1.msra.mxu0 0.0
    %732 = vmatprep.subr.mxu0 0.0
    %733 = vmatpush1.msra.mxu0 0.0
    %734 = vmatprep.subr.mxu0 0.0
    %735 = vmatpush1.msra.mxu0 0.0
    %736 = vmatprep.subr.mxu0 0.0
    %737 = vmatpush1.msra.mxu0 %v450
    %738 = vmatprep.subr.mxu0 0.0
    %739 = vmatpush2.msra.mxu0 0.0
    %740 = vmatprep.subr.mxu0 0.0
    %741 = vmatpush2.msra.mxu0 0.0
    %742 = vmatprep.subr.mxu0 0.0
    %743 = vmatpush2.msra.mxu0 0.0
    %744 = vmatprep.subr.mxu0 0.0
    %745 = vmatpush2.msra.mxu0 0.0
    %746 = vmatprep.subr.mxu0 0.0
    %747 = vmatpush2.msra.mxu0 0.0
    %748 = vmatprep.subr.mxu0 0.0
    %749 = vmatpush2.msra.mxu0 0.0
    %750 = vmatprep.subr.mxu0 0.0
    %751 = vmatpush2.msra.mxu0 0.0
    %752 = vmatprep.subr.mxu0 0.0
    %753 = vmatpush2.msra.mxu0 0.0
    %754 = vmatprep.subr.mxu0 0.0
    %755 = vmatpush2.msra.mxu0 0.0
    %756 = vmatprep.subr.mxu0 0.0
    %757 = vmatpush2.msra.mxu0 0.0
    %758 = vmatprep.subr.mxu0 0.0
    %759 = vmatpush2.msra.mxu0 0.0
    %760 = vmatprep.subr.mxu0 0.0
    %761 = vmatpush2.msra.mxu0 0.0
    %762 = vmatprep.subr.mxu0 0.0
    %763 = vmatpush2.msra.mxu0 0.0
    %764 = vmatprep.subr.mxu0 0.0
    %765 = vmatpush2.msra.mxu0 0.0
    %766 = vmatprep.subr.mxu0 0.0
    %767 = vmatpush2.msra.mxu0 0.0
    %768 = vmatprep.subr.mxu0 0.0
    %769 = vmatpush2.msra.mxu0 0.0
    %770 = vmatprep.mubr.f32.mxu0 0.0
    %771 = vmatmul.mubr.f32.gmra.mxu0 %v704
    %v772 = vpop.f32.mrf.mxu0
    %v773 = vadd.f32 0.0, %v772
    %v774 = vpop.f32.mrf.mxu0
    %775 = vdwg.mxu0
    %v777 = vsel %vm69, %v700, 0
    %v780 = vsel %vm69, %v773, 0
    %782 = vmatprep.subr.mxu0 0.0
    %783 = vmatpush1.msra.mxu0 0.0
    %784 = vmatprep.subr.mxu0 0.0
    %785 = vmatpush1.msra.mxu0 0.0
    %786 = vmatprep.subr.mxu0 0.0
    %787 = vmatpush1.msra.mxu0 0.0
    %788 = vmatprep.subr.mxu0 0.0
    %789 = vmatpush1.msra.mxu0 0.0
    %790 = vmatprep.subr.mxu0 0.0
    %791 = vmatpush1.msra.mxu0 0.0
    %792 = vmatprep.subr.mxu0 0.0
    %793 = vmatpush1.msra.mxu0 0.0
    %794 = vmatprep.subr.mxu0 0.0
    %795 = vmatpush1.msra.mxu0 0.0
    %796 = vmatprep.subr.mxu0 0.0
    %797 = vmatpush1.msra.mxu0 0.0
    %798 = vmatprep.subr.mxu0 0.0
    %799 = vmatpush1.msra.mxu0 0.0
    %800 = vmatprep.subr.mxu0 0.0
    %801 = vmatpush1.msra.mxu0 0.0
    %802 = vmatprep.subr.mxu0 0.0
    %803 = vmatpush1.msra.mxu0 0.0
    %804 = vmatprep.subr.mxu0 0.0
    %805 = vmatpush1.msra.mxu0 0.0
    %806 = vmatprep.subr.mxu0 0.0
    %807 = vmatpush1.msra.mxu0 0.0
    %808 = vmatprep.subr.mxu0 0.0
    %809 = vmatpush1.msra.mxu0 0.0
    %810 = vmatprep.subr.mxu0 0.0
    %811 = vmatpush1.msra.mxu0 %v207
    %812 = vmatprep.subr.mxu0 0.0
    %813 = vmatpush1.msra.mxu0 %v206
    %814 = vmatprep.subr.mxu0 0.0
    %815 = vmatpush2.msra.mxu0 0.0
    %816 = vmatprep.subr.mxu0 0.0
    %817 = vmatpush2.msra.mxu0 0.0
    %818 = vmatprep.subr.mxu0 0.0
    %819 = vmatpush2.msra.mxu0 0.0
    %820 = vmatprep.subr.mxu0 0.0
    %821 = vmatpush2.msra.mxu0 0.0
    %822 = vmatprep.subr.mxu0 0.0
    %823 = vmatpush2.msra.mxu0 0.0
    %824 = vmatprep.subr.mxu0 0.0
    %825 = vmatpush2.msra.mxu0 0.0
    %826 = vmatprep.subr.mxu0 0.0
    %827 = vmatpush2.msra.mxu0 0.0
    %828 = vmatprep.subr.mxu0 0.0
    %829 = vmatpush2.msra.mxu0 0.0
    %830 = vmatprep.subr.mxu0 0.0
    %831 = vmatpush2.msra.mxu0 0.0
    %832 = vmatprep.subr.mxu0 0.0
    %833 = vmatpush2.msra.mxu0 0.0
    %834 = vmatprep.subr.mxu0 0.0
    %835 = vmatpush2.msra.mxu0 0.0
    %836 = vmatprep.subr.mxu0 0.0
    %837 = vmatpush2.msra.mxu0 0.0
    %838 = vmatprep.subr.mxu0 0.0
    %839 = vmatpush2.msra.mxu0 0.0
    %840 = vmatprep.subr.mxu0 0.0
    %841 = vmatpush2.msra.mxu0 0.0
    %842 = vmatprep.subr.mxu0 0.0
    %843 = vmatpush2.msra.mxu0 0.0
    %844 = vmatprep.subr.mxu0 0.0
    %845 = vmatpush2.msra.mxu0 0.0
    %846 = vmatprep.mubr.f32.mxu0 0.0
    %847 = vmatmul.mubr.f32.gmra.mxu0 %v777
    %v848 = vpop.f32.mrf.mxu0
    %v849 = vadd.f32 0.0, %v848
    %v850 = vpop.f32.mrf.mxu0
    %851 = vmatprep.mubr.f32.mxu0 0.0
    %852 = vmatmul.mubr.f32.gmra.mxu0 %v780
    %v853 = vpop.f32.mrf.mxu0
    %v854 = vadd.f32 0.0, %v853
    %v855 = vpop.f32.mrf.mxu0
    %856 = vdwg.mxu0
    %v857 = vlaneseq
    %v858 = vshrl.u32 %v857, 7
    %v859 = vsub.s32 3, %v858
    %v860 = vrot.slane %v55, %v859
    %v861 = vadd.f32 %v860, %v849
    %v862 = vadd.f32 %v860, %v854
    %863 = vrot.lane.b32.xlu0 %v287, 112
    %v864 = vpop.permute.xlu0 %863
    %865 = vrot.lane.b32.xlu0 %v366, 112
    %v866 = vpop.permute.xlu0 %865
    %v867 = vsel %vm69, %v864, 0
    %v869 = vsel %vm69, %v866, 0
    %871 = vmatprep.subr.mxu0 0.0
    %872 = vmatpush1.xpose.msra.mxu0 0.0
    %873 = vmatprep.subr.mxu0 0.0
    %874 = vmatpush1.xpose.msra.mxu0 0.0
    %875 = vmatprep.subr.mxu0 0.0
    %876 = vmatpush1.xpose.msra.mxu0 0.0
    %877 = vmatprep.subr.mxu0 0.0
    %878 = vmatpush1.xpose.msra.mxu0 0.0
    %879 = vmatprep.subr.mxu0 0.0
    %880 = vmatpush1.xpose.msra.mxu0 0.0
    %881 = vmatprep.subr.mxu0 0.0
    %882 = vmatpush1.xpose.msra.mxu0 0.0
    %883 = vmatprep.subr.mxu0 0.0
    %884 = vmatpush1.xpose.msra.mxu0 0.0
    %885 = vmatprep.subr.mxu0 0.0
    %886 = vmatpush1.xpose.msra.mxu0 0.0
    %887 = vmatprep.subr.mxu0 0.0
    %888 = vmatpush1.xpose.msra.mxu0 0.0
    %889 = vmatprep.subr.mxu0 0.0
    %890 = vmatpush1.xpose.msra.mxu0 0.0
    %891 = vmatprep.subr.mxu0 0.0
    %892 = vmatpush1.xpose.msra.mxu0 0.0
    %893 = vmatprep.subr.mxu0 0.0
    %894 = vmatpush1.xpose.msra.mxu0 0.0
    %895 = vmatprep.subr.mxu0 0.0
    %896 = vmatpush1.xpose.msra.mxu0 0.0
    %897 = vmatprep.subr.mxu0 0.0
    %898 = vmatpush1.xpose.msra.mxu0 0.0
    %899 = vmatprep.subr.mxu0 0.0
    %900 = vmatpush1.xpose.msra.mxu0 0.0
    %901 = vmatprep.subr.mxu0 0.0
    %902 = vmatpush1.xpose.msra.mxu0 %v869
    %903 = vmatprep.subr.mxu0 0.0
    %904 = vmatpush2.xpose.msra.mxu0 0.0
    %905 = vmatprep.subr.mxu0 0.0
    %906 = vmatpush2.xpose.msra.mxu0 0.0
    %907 = vmatprep.subr.mxu0 0.0
    %908 = vmatpush2.xpose.msra.mxu0 0.0
    %909 = vmatprep.subr.mxu0 0.0
    %910 = vmatpush2.xpose.msra.mxu0 0.0
    %911 = vmatprep.subr.mxu0 0.0
    %912 = vmatpush2.xpose.msra.mxu0 0.0
    %913 = vmatprep.subr.mxu0 0.0
    %914 = vmatpush2.xpose.msra.mxu0 0.0
    %915 = vmatprep.subr.mxu0 0.0
    %916 = vmatpush2.xpose.msra.mxu0 0.0
    %917 = vmatprep.subr.mxu0 0.0
    %918 = vmatpush2.xpose.msra.mxu0 0.0
    %919 = vmatprep.subr.mxu0 0.0
    %920 = vmatpush2.xpose.msra.mxu0 0.0
    %921 = vmatprep.subr.mxu0 0.0
    %922 = vmatpush2.xpose.msra.mxu0 0.0
    %923 = vmatprep.subr.mxu0 0.0
    %924 = vmatpush2.xpose.msra.mxu0 0.0
    %925 = vmatprep.subr.mxu0 0.0
    %926 = vmatpush2.xpose.msra.mxu0 0.0
    %927 = vmatprep.subr.mxu0 0.0
    %928 = vmatpush2.xpose.msra.mxu0 0.0
    %929 = vmatprep.subr.mxu0 0.0
    %930 = vmatpush2.xpose.msra.mxu0 0.0
    %931 = vmatprep.subr.mxu0 0.0
    %932 = vmatpush2.xpose.msra.mxu0 0.0
    %933 = vmatprep.subr.mxu0 0.0
    %934 = vmatpush2.xpose.msra.mxu0 0.0
    %935 = vmatprep.mubr.f32.mxu0 0.0
    %936 = vmatmul.mubr.f32.gmra.mxu0 %v867
    %v937 = vpop.f32.mrf.mxu0
    %v938 = vadd.f32 0.0, %v937
    %v939 = vpop.f32.mrf.mxu0
    %940 = vdwg.mxu0
    %941 = vrot.lane.b32.xlu0 %v292, 112
    %v942 = vpop.permute.xlu0 %941
    %943 = vrot.lane.b32.xlu0 %v371, 112
    %v944 = vpop.permute.xlu0 %943
    %v945 = vsel %vm69, %v942, 0
    %v947 = vsel %vm69, %v944, 0
    %949 = vmatprep.subr.mxu0 0.0
    %950 = vmatpush1.xpose.msra.mxu0 0.0
    %951 = vmatprep.subr.mxu0 0.0
    %952 = vmatpush1.xpose.msra.mxu0 0.0
    %953 = vmatprep.subr.mxu0 0.0
    %954 = vmatpush1.xpose.msra.mxu0 0.0
    %955 = vmatprep.subr.mxu0 0.0
    %956 = vmatpush1.xpose.msra.mxu0 0.0
    %957 = vmatprep.subr.mxu0 0.0
    %958 = vmatpush1.xpose.msra.mxu0 0.0
    %959 = vmatprep.subr.mxu0 0.0
    %960 = vmatpush1.xpose.msra.mxu0 0.0
    %961 = vmatprep.subr.mxu0 0.0
    %962 = vmatpush1.xpose.msra.mxu0 0.0
    %963 = vmatprep.subr.mxu0 0.0
    %964 = vmatpush1.xpose.msra.mxu0 0.0
    %965 = vmatprep.subr.mxu0 0.0
    %966 = vmatpush1.xpose.msra.mxu0 0.0
    %967 = vmatprep.subr.mxu0 0.0
    %968 = vmatpush1.xpose.msra.mxu0 0.0
    %969 = vmatprep.subr.mxu0 0.0
    %970 = vmatpush1.xpose.msra.mxu0 0.0
    %971 = vmatprep.subr.mxu0 0.0
    %972 = vmatpush1.xpose.msra.mxu0 0.0
    %973 = vmatprep.subr.mxu0 0.0
    %974 = vmatpush1.xpose.msra.mxu0 0.0
    %975 = vmatprep.subr.mxu0 0.0
    %976 = vmatpush1.xpose.msra.mxu0 0.0
    %977 = vmatprep.subr.mxu0 0.0
    %978 = vmatpush1.xpose.msra.mxu0 0.0
    %979 = vmatprep.subr.mxu0 0.0
    %980 = vmatpush1.xpose.msra.mxu0 %v947
    %981 = vmatprep.subr.mxu0 0.0
    %982 = vmatpush2.xpose.msra.mxu0 0.0
    %983 = vmatprep.subr.mxu0 0.0
    %984 = vmatpush2.xpose.msra.mxu0 0.0
    %985 = vmatprep.subr.mxu0 0.0
    %986 = vmatpush2.xpose.msra.mxu0 0.0
    %987 = vmatprep.subr.mxu0 0.0
    %988 = vmatpush2.xpose.msra.mxu0 0.0
    %989 = vmatprep.subr.mxu0 0.0
    %990 = vmatpush2.xpose.msra.mxu0 0.0
    %991 = vmatprep.subr.mxu0 0.0
    %992 = vmatpush2.xpose.msra.mxu0 0.0
    %993 = vmatprep.subr.mxu0 0.0
    %994 = vmatpush2.xpose.msra.mxu0 0.0
    %995 = vmatprep.subr.mxu0 0.0
    %996 = vmatpush2.xpose.msra.mxu0 0.0
    %997 = vmatprep.subr.mxu0 0.0
    %998 = vmatpush2.xpose.msra.mxu0 0.0
    %999 = vmatprep.subr.mxu0 0.0
    %1000 = vmatpush2.xpose.msra.mxu0 0.0
    %1001 = vmatprep.subr.mxu0 0.0
    %1002 = vmatpush2.xpose.msra.mxu0 0.0
    %1003 = vmatprep.subr.mxu0 0.0
    %1004 = vmatpush2.xpose.msra.mxu0 0.0
    %1005 = vmatprep.subr.mxu0 0.0
    %1006 = vmatpush2.xpose.msra.mxu0 0.0
    %1007 = vmatprep.subr.mxu0 0.0
    %1008 = vmatpush2.xpose.msra.mxu0 0.0
    %1009 = vmatprep.subr.mxu0 0.0
    %1010 = vmatpush2.xpose.msra.mxu0 0.0
    %1011 = vmatprep.subr.mxu0 0.0
    %1012 = vmatpush2.xpose.msra.mxu0 0.0
    %1013 = vmatprep.mubr.f32.mxu0 0.0
    %1014 = vmatmul.mubr.f32.gmra.mxu0 %v945
    %v1015 = vpop.f32.mrf.mxu0
    %v1016 = vadd.f32 0.0, %v1015
    %v1017 = vpop.f32.mrf.mxu0
    %1018 = vdwg.mxu0
    %v1019 = vmul.f32 %v938, 0.25
    %v1020 = vmul.f32 %v1016, 0.25
    %v1021 = vsel %vm607, %v1019, -inf
    %1022 = vmax.xlane.f32.xlu0 %v1021
    %v1023 = vpop.xlane.xlu0 %1022
    %v1024 = vsel %vm607, %v1020, -inf
    %1025 = vmax.xlane.f32.xlu0 %v1024
    %v1026 = vpop.xlane.xlu0 %1025
    %v1027 = vsub.f32 %v1019, %v1023
    %v1028 = vsub.f32 %v1020, %v1026
    %v1029 = vmul.f32 %v1027, 1.442695
    %v1030 = vpow.pop %v1029
    %v1031 = vmul.f32 %v1028, 1.442695
    %v1032 = vpow.pop %v1031
    %v1033 = vsel %vm607, %v1030, 0.0
    %1034 = vadd.xlane.f32.xlu0 %v1033
    %v1035 = vpop.xlane.xlu0 %1034
    %v1036 = vsel %vm607, %v1032, 0.0
    %1037 = vadd.xlane.f32.xlu0 %v1036
    %v1038 = vpop.xlane.xlu0 %1037
    %v1039 = vrcp.pop %v1035
    %v1040 = vmul.f32 %v1030, %v1039
    %v1041 = vrcp.pop %v1038
    %v1042 = vmul.f32 %v1032, %v1041
    %1044 = vrot.lane.b32.xlu0 %v445, 112
    %v1045 = vpop.permute.xlu0 %1044
    %v1048 = vsel %vm607, %v1040, 0
    %1050 = vmatprep.subr.mxu0 0.0
    %1051 = vmatpush1.msra.mxu0 0.0
    %1052 = vmatprep.subr.mxu0 0.0
    %1053 = vmatpush1.msra.mxu0 0.0
    %1054 = vmatprep.subr.mxu0 0.0
    %1055 = vmatpush1.msra.mxu0 0.0
    %1056 = vmatprep.subr.mxu0 0.0
    %1057 = vmatpush1.msra.mxu0 0.0
    %1058 = vmatprep.subr.mxu0 0.0
    %1059 = vmatpush1.msra.mxu0 0.0
    %1060 = vmatprep.subr.mxu0 0.0
    %1061 = vmatpush1.msra.mxu0 0.0
    %1062 = vmatprep.subr.mxu0 0.0
    %1063 = vmatpush1.msra.mxu0 0.0
    %1064 = vmatprep.subr.mxu0 0.0
    %1065 = vmatpush1.msra.mxu0 0.0
    %1066 = vmatprep.subr.mxu0 0.0
    %1067 = vmatpush1.msra.mxu0 0.0
    %1068 = vmatprep.subr.mxu0 0.0
    %1069 = vmatpush1.msra.mxu0 0.0
    %1070 = vmatprep.subr.mxu0 0.0
    %1071 = vmatpush1.msra.mxu0 0.0
    %1072 = vmatprep.subr.mxu0 0.0
    %1073 = vmatpush1.msra.mxu0 0.0
    %1074 = vmatprep.subr.mxu0 0.0
    %1075 = vmatpush1.msra.mxu0 0.0
    %1076 = vmatprep.subr.mxu0 0.0
    %1077 = vmatpush1.msra.mxu0 0.0
    %1078 = vmatprep.subr.mxu0 0.0
    %1079 = vmatpush1.msra.mxu0 0.0
    %1080 = vmatprep.subr.mxu0 0.0
    %1081 = vmatpush1.msra.mxu0 %v1045
    %1082 = vmatprep.subr.mxu0 0.0
    %1083 = vmatpush2.msra.mxu0 0.0
    %1084 = vmatprep.subr.mxu0 0.0
    %1085 = vmatpush2.msra.mxu0 0.0
    %1086 = vmatprep.subr.mxu0 0.0
    %1087 = vmatpush2.msra.mxu0 0.0
    %1088 = vmatprep.subr.mxu0 0.0
    %1089 = vmatpush2.msra.mxu0 0.0
    %1090 = vmatprep.subr.mxu0 0.0
    %1091 = vmatpush2.msra.mxu0 0.0
    %1092 = vmatprep.subr.mxu0 0.0
    %1093 = vmatpush2.msra.mxu0 0.0
    %1094 = vmatprep.subr.mxu0 0.0
    %1095 = vmatpush2.msra.mxu0 0.0
    %1096 = vmatprep.subr.mxu0 0.0
    %1097 = vmatpush2.msra.mxu0 0.0
    %1098 = vmatprep.subr.mxu0 0.0
    %1099 = vmatpush2.msra.mxu0 0.0
    %1100 = vmatprep.subr.mxu0 0.0
    %1101 = vmatpush2.msra.mxu0 0.0
    %1102 = vmatprep.subr.mxu0 0.0
    %1103 = vmatpush2.msra.mxu0 0.0
    %1104 = vmatprep.subr.mxu0 0.0
    %1105 = vmatpush2.msra.mxu0 0.0
    %1106 = vmatprep.subr.mxu0 0.0
    %1107 = vmatpush2.msra.mxu0 0.0
    %1108 = vmatprep.subr.mxu0 0.0
    %1109 = vmatpush2.msra.mxu0 0.0
    %1110 = vmatprep.subr.mxu0 0.0
    %1111 = vmatpush2.msra.mxu0 0.0
    %1112 = vmatprep.subr.mxu0 0.0
    %1113 = vmatpush2.msra.mxu0 0.0
    %1114 = vmatprep.mubr.f32.mxu0 0.0
    %1115 = vmatmul.mubr.f32.gmra.mxu0 %v1048
    %v1116 = vpop.f32.mrf.mxu0
    %v1117 = vadd.f32 0.0, %v1116
    %v1118 = vpop.f32.mrf.mxu0
    %1119 = vdwg.mxu0
    %1121 = vrot.lane.b32.xlu0 %v450, 112
    %v1122 = vpop.permute.xlu0 %1121
    %v1125 = vsel %vm607, %v1042, 0
    %1127 = vmatprep.subr.mxu0 0.0
    %1128 = vmatpush1.msra.mxu0 0.0
    %1129 = vmatprep.subr.mxu0 0.0
    %1130 = vmatpush1.msra.mxu0 0.0
    %1131 = vmatprep.subr.mxu0 0.0
    %1132 = vmatpush1.msra.mxu0 0.0
    %1133 = vmatprep.subr.mxu0 0.0
    %1134 = vmatpush1.msra.mxu0 0.0
    %1135 = vmatprep.subr.mxu0 0.0
    %1136 = vmatpush1.msra.mxu0 0.0
    %1137 = vmatprep.subr.mxu0 0.0
    %1138 = vmatpush1.msra.mxu0 0.0
    %1139 = vmatprep.subr.mxu0 0.0
    %1140 = vmatpush1.msra.mxu0 0.0
    %1141 = vmatprep.subr.mxu0 0.0
    %1142 = vmatpush1.msra.mxu0 0.0
    %1143 = vmatprep.subr.mxu0 0.0
    %1144 = vmatpush1.msra.mxu0 0.0
    %1145 = vmatprep.subr.mxu0 0.0
    %1146 = vmatpush1.msra.mxu0 0.0
    %1147 = vmatprep.subr.mxu0 0.0
    %1148 = vmatpush1.msra.mxu0 0.0
    %1149 = vmatprep.subr.mxu0 0.0
    %1150 = vmatpush1.msra.mxu0 0.0
    %1151 = vmatprep.subr.mxu0 0.0
    %1152 = vmatpush1.msra.mxu0 0.0
    %1153 = vmatprep.subr.mxu0 0.0
    %1154 = vmatpush1.msra.mxu0 0.0
    %1155 = vmatprep.subr.mxu0 0.0
    %1156 = vmatpush1.msra.mxu0 0.0
    %1157 = vmatprep.subr.mxu0 0.0
    %1158 = vmatpush1.msra.mxu0 %v1122
    %1159 = vmatprep.subr.mxu0 0.0
    %1160 = vmatpush2.msra.mxu0 0.0
    %1161 = vmatprep.subr.mxu0 0.0
    %1162 = vmatpush2.msra.mxu0 0.0
    %1163 = vmatprep.subr.mxu0 0.0
    %1164 = vmatpush2.msra.mxu0 0.0
    %1165 = vmatprep.subr.mxu0 0.0
    %1166 = vmatpush2.msra.mxu0 0.0
    %1167 = vmatprep.subr.mxu0 0.0
    %1168 = vmatpush2.msra.mxu0 0.0
    %1169 = vmatprep.subr.mxu0 0.0
    %1170 = vmatpush2.msra.mxu0 0.0
    %1171 = vmatprep.subr.mxu0 0.0
    %1172 = vmatpush2.msra.mxu0 0.0
    %1173 = vmatprep.subr.mxu0 0.0
    %1174 = vmatpush2.msra.mxu0 0.0
    %1175 = vmatprep.subr.mxu0 0.0
    %1176 = vmatpush2.msra.mxu0 0.0
    %1177 = vmatprep.subr.mxu0 0.0
    %1178 = vmatpush2.msra.mxu0 0.0
    %1179 = vmatprep.subr.mxu0 0.0
    %1180 = vmatpush2.msra.mxu0 0.0
    %1181 = vmatprep.subr.mxu0 0.0
    %1182 = vmatpush2.msra.mxu0 0.0
    %1183 = vmatprep.subr.mxu0 0.0
    %1184 = vmatpush2.msra.mxu0 0.0
    %1185 = vmatprep.subr.mxu0 0.0
    %1186 = vmatpush2.msra.mxu0 0.0
    %1187 = vmatprep.subr.mxu0 0.0
    %1188 = vmatpush2.msra.mxu0 0.0
    %1189 = vmatprep.subr.mxu0 0.0
    %1190 = vmatpush2.msra.mxu0 0.0
    %1191 = vmatprep.mubr.f32.mxu0 0.0
    %1192 = vmatmul.mubr.f32.gmra.mxu0 %v1125
    %v1193 = vpop.f32.mrf.mxu0
    %v1194 = vadd.f32 0.0, %v1193
    %v1195 = vpop.f32.mrf.mxu0
    %1196 = vdwg.mxu0
    %v1198 = vsel %vm69, %v1117, 0
    %v1201 = vsel %vm69, %v1194, 0
    %1203 = vmatprep.subr.mxu0 0.0
    %1204 = vmatpush1.msra.mxu0 0.0
    %1205 = vmatprep.subr.mxu0 0.0
    %1206 = vmatpush1.msra.mxu0 0.0
    %1207 = vmatprep.subr.mxu0 0.0
    %1208 = vmatpush1.msra.mxu0 0.0
    %1209 = vmatprep.subr.mxu0 0.0
    %1210 = vmatpush1.msra.mxu0 0.0
    %1211 = vmatprep.subr.mxu0 0.0
    %1212 = vmatpush1.msra.mxu0 0.0
    %1213 = vmatprep.subr.mxu0 0.0
    %1214 = vmatpush1.msra.mxu0 0.0
    %1215 = vmatprep.subr.mxu0 0.0
    %1216 = vmatpush1.msra.mxu0 0.0
    %1217 = vmatprep.subr.mxu0 0.0
    %1218 = vmatpush1.msra.mxu0 0.0
    %1219 = vmatprep.subr.mxu0 0.0
    %1220 = vmatpush1.msra.mxu0 0.0
    %1221 = vmatprep.subr.mxu0 0.0
    %1222 = vmatpush1.msra.mxu0 0.0
    %1223 = vmatprep.subr.mxu0 0.0
    %1224 = vmatpush1.msra.mxu0 0.0
    %1225 = vmatprep.subr.mxu0 0.0
    %1226 = vmatpush1.msra.mxu0 0.0
    %1227 = vmatprep.subr.mxu0 0.0
    %1228 = vmatpush1.msra.mxu0 0.0
    %1229 = vmatprep.subr.mxu0 0.0
    %1230 = vmatpush1.msra.mxu0 0.0
    %1231 = vmatprep.subr.mxu0 0.0
    %1232 = vmatpush1.msra.mxu0 %v209
    %1233 = vmatprep.subr.mxu0 0.0
    %1234 = vmatpush1.msra.mxu0 %v208
    %1235 = vmatprep.subr.mxu0 0.0
    %1236 = vmatpush2.msra.mxu0 0.0
    %1237 = vmatprep.subr.mxu0 0.0
    %1238 = vmatpush2.msra.mxu0 0.0
    %1239 = vmatprep.subr.mxu0 0.0
    %1240 = vmatpush2.msra.mxu0 0.0
    %1241 = vmatprep.subr.mxu0 0.0
    %1242 = vmatpush2.msra.mxu0 0.0
    %1243 = vmatprep.subr.mxu0 0.0
    %1244 = vmatpush2.msra.mxu0 0.0
    %1245 = vmatprep.subr.mxu0 0.0
    %1246 = vmatpush2.msra.mxu0 0.0
    %1247 = vmatprep.subr.mxu0 0.0
    %1248 = vmatpush2.msra.mxu0 0.0
    %1249 = vmatprep.subr.mxu0 0.0
    %1250 = vmatpush2.msra.mxu0 0.0
    %1251 = vmatprep.subr.mxu0 0.0
    %1252 = vmatpush2.msra.mxu0 0.0
    %1253 = vmatprep.subr.mxu0 0.0
    %1254 = vmatpush2.msra.mxu0 0.0
    %1255 = vmatprep.subr.mxu0 0.0
    %1256 = vmatpush2.msra.mxu0 0.0
    %1257 = vmatprep.subr.mxu0 0.0
    %1258 = vmatpush2.msra.mxu0 0.0
    %1259 = vmatprep.subr.mxu0 0.0
    %1260 = vmatpush2.msra.mxu0 0.0
    %1261 = vmatprep.subr.mxu0 0.0
    %1262 = vmatpush2.msra.mxu0 0.0
    %1263 = vmatprep.subr.mxu0 0.0
    %1264 = vmatpush2.msra.mxu0 0.0
    %1265 = vmatprep.subr.mxu0 0.0
    %1266 = vmatpush2.msra.mxu0 0.0
    %1267 = vmatprep.mubr.f32.mxu0 0.0
    %1268 = vmatmul.mubr.f32.gmra.mxu0 %v1198
    %v1269 = vpop.f32.mrf.mxu0
    %v1270 = vadd.f32 0.0, %v1269
    %v1271 = vpop.f32.mrf.mxu0
    %1272 = vmatprep.mubr.f32.mxu0 0.0
    %1273 = vmatmul.mubr.f32.gmra.mxu0 %v1201
    %v1274 = vpop.f32.mrf.mxu0
    %v1275 = vadd.f32 0.0, %v1274
    %v1276 = vpop.f32.mrf.mxu0
    %1277 = vdwg.mxu0
    %v1278 = vadd.f32 %v861, %v1270
    %v1279 = vadd.f32 %v862, %v1275
    %v1280 = vadd.f32 %v143, %v1278
    %v1281 = vadd.f32 %v148, %v1279
    %v1282 = vsel %vm151, %v1280, 0.0
    %1283 = vadd.xlane.f32.xlu0 %v1282
    %v1284 = vpop.xlane.xlu0 %1283
    %v1285 = vsel %vm151, %v1281, 0.0
    %1286 = vadd.xlane.f32.xlu0 %v1285
    %v1287 = vpop.xlane.xlu0 %1286
    %v1288 = vmul.f32 %v1284, %v158
    %v1289 = vmul.f32 %v1287, %v158
    %v1290 = vsub.f32 %v1280, %v1288
    %v1291 = vsub.f32 %v1281, %v1289
    %v1292 = vmul.f32 %v1290, %v1290
    %v1293 = vmul.f32 %v1291, %v1291
    %v1294 = vsel %vm151, %v1292, 0.0
    %1295 = vadd.xlane.f32.xlu0 %v1294
    %v1296 = vpop.xlane.xlu0 %1295
    %v1297 = vsel %vm151, %v1293, 0.0
    %1298 = vadd.xlane.f32.xlu0 %v1297
    %v1299 = vpop.xlane.xlu0 %1298
    %v1300 = vmul.f32 %v1296, %v158
    %v1301 = vmul.f32 %v1299, %v158
    %v1302 = vadd.f32 %v1300, 1e-05
    %v1303 = vadd.f32 %v1301, 1e-05
    %v1304 = vrsqrt.pop %v1302
    %v1305 = vrsqrt.pop %v1303
    %v1306 = vmul.f32 %v1290, %v1304
    %v1307 = vmul.f32 %v1291, %v1305
    %v1308 = vlaneseq
    %v1309 = vshrl.u32 %v1308, 7
    %v1310 = vsub.s32 1, %v1309
    %v1311 = vrot.slane %v56, %v1310
    %v1312 = vmul.f32 %v1306, %v1311
    %v1313 = vmul.f32 %v1307, %v1311
    %v1314 = vlaneseq
    %v1315 = vshrl.u32 %v1314, 7
    %v1316 = vsub.s32 5, %v1315
    %v1317 = vrot.slane %v56, %v1316
    %v1318 = vadd.f32 %v1312, %v1317
    %v1319 = vadd.f32 %v1313, %v1317
    %v1320 = vld [vmem:[%s6] sm:$0xff]
    %v1321 = vld [vmem:[%s6 + $0x8] sm:$0xff]
    %v1322 = vld [vmem:[%s6 + $0x10] sm:$0xff]
    %v1323 = vld [vmem:[%s6 + $0x18] sm:$0xff]
    %v1324 = vlaneseq
    %v1325 = vshrl.u32 %v1324, 7
    %v1326 = vsub.s32 0, %v1325
    %v1327 = vrot.slane %v62, %v1326
    %v1329 = vsel %vm151, %v1318, 0
    %v1332 = vsel %vm151, %v1319, 0
    %1334 = vmatprep.subr.mxu0 0.0
    %1335 = vmatpush1.msra.mxu0 0.0
    %1336 = vmatprep.subr.mxu0 0.0
    %1337 = vmatpush1.msra.mxu0 0.0
    %1338 = vmatprep.subr.mxu0 0.0
    %1339 = vmatpush1.msra.mxu0 0.0
    %1340 = vmatprep.subr.mxu0 0.0
    %1341 = vmatpush1.msra.mxu0 0.0
    %1342 = vmatprep.subr.mxu0 0.0
    %1343 = vmatpush1.msra.mxu0 0.0
    %1344 = vmatprep.subr.mxu0 0.0
    %1345 = vmatpush1.msra.mxu0 0.0
    %1346 = vmatprep.subr.mxu0 0.0
    %1347 = vmatpush1.msra.mxu0 0.0
    %1348 = vmatprep.subr.mxu0 0.0
    %1349 = vmatpush1.msra.mxu0 0.0
    %1350 = vmatprep.subr.mxu0 0.0
    %1351 = vmatpush1.msra.mxu0 0.0
    %1352 = vmatprep.subr.mxu0 0.0
    %1353 = vmatpush1.msra.mxu0 0.0
    %1354 = vmatprep.subr.mxu0 0.0
    %1355 = vmatpush1.msra.mxu0 0.0
    %1356 = vmatprep.subr.mxu0 0.0
    %1357 = vmatpush1.msra.mxu0 0.0
    %1358 = vmatprep.subr.mxu0 0.0
    %1359 = vmatpush1.msra.mxu0 %v1323
    %1360 = vmatprep.subr.mxu0 0.0
    %1361 = vmatpush1.msra.mxu0 %v1322
    %1362 = vmatprep.subr.mxu0 0.0
    %1363 = vmatpush1.msra.mxu0 %v1321
    %1364 = vmatprep.subr.mxu0 0.0
    %1365 = vmatpush1.msra.mxu0 %v1320
    %1366 = vmatprep.subr.mxu0 0.0
    %1367 = vmatpush2.msra.mxu0 0.0
    %1368 = vmatprep.subr.mxu0 0.0
    %1369 = vmatpush2.msra.mxu0 0.0
    %1370 = vmatprep.subr.mxu0 0.0
    %1371 = vmatpush2.msra.mxu0 0.0
    %1372 = vmatprep.subr.mxu0 0.0
    %1373 = vmatpush2.msra.mxu0 0.0
    %1374 = vmatprep.subr.mxu0 0.0
    %1375 = vmatpush2.msra.mxu0 0.0
    %1376 = vmatprep.subr.mxu0 0.0
    %1377 = vmatpush2.msra.mxu0 0.0
    %1378 = vmatprep.subr.mxu0 0.0
    %1379 = vmatpush2.msra.mxu0 0.0
    %1380 = vmatprep.subr.mxu0 0.0
    %1381 = vmatpush2.msra.mxu0 0.0
    %1382 = vmatprep.subr.mxu0 0.0
    %1383 = vmatpush2.msra.mxu0 0.0
    %1384 = vmatprep.subr.mxu0 0.0
    %1385 = vmatpush2.msra.mxu0 0.0
    %1386 = vmatprep.subr.mxu0 0.0
    %1387 = vmatpush2.msra.mxu0 0.0
    %1388 = vmatprep.subr.mxu0 0.0
    %1389 = vmatpush2.msra.mxu0 0.0
    %1390 = vmatprep.subr.mxu0 0.0
    %1391 = vmatpush2.msra.mxu0 0.0
    %1392 = vmatprep.subr.mxu0 0.0
    %1393 = vmatpush2.msra.mxu0 0.0
    %1394 = vmatprep.subr.mxu0 0.0
    %1395 = vmatpush2.msra.mxu0 0.0
    %1396 = vmatprep.subr.mxu0 0.0
    %1397 = vmatpush2.msra.mxu0 0.0
    %1398 = vmatprep.mubr.f32.mxu0 0.0
    %1399 = vmatmul.mubr.f32.gmra.mxu0 %v1329
    %v1400 = vpop.f32.mrf.mxu0
    %v1401 = vadd.f32 %v1327, %v1400
    %v1402 = vpop.f32.mrf.mxu0
    %1403 = vmatprep.mubr.f32.mxu0 0.0
    %1404 = vmatmul.mubr.f32.gmra.mxu0 %v1332
    %v1405 = vpop.f32.mrf.mxu0
    %v1406 = vadd.f32 %v1327, %v1405
    %v1407 = vpop.f32.mrf.mxu0
    %1408 = vdwg.mxu0
    %v1409 = vmax.f32 %v1401, 0.0
    %v1410 = vmax.f32 %v1406, 0.0
    %v1411 = vld [vmem:[%s7] sm:$0xff]
    %v1412 = vld [vmem:[%s7 + $0x8] sm:$0xff]
    %v1413 = vld [vmem:[%s7 + $0x10] sm:$0xff]
    %v1414 = vld [vmem:[%s7 + $0x18] sm:$0xff]
    %v1415 = vld [vmem:[%s7 + $0x20] sm:$0xff]
    %v1416 = vld [vmem:[%s7 + $0x28] sm:$0xff]
    %v1417 = vld [vmem:[%s7 + $0x30] sm:$0xff]
    %v1418 = vld [vmem:[%s7 + $0x38] sm:$0xff]
    %v1419 = vlaneseq
    %v1420 = vshrl.u32 %v1419, 7
    %v1421 = vsub.s32 0, %v1420
    %v1422 = vrot.slane %v57, %v1421
    %vm1423 = vcmask 523264
    %v1425 = vsel %vm1423, %v1409, 0
    %v1428 = vsel %vm1423, %v1410, 0
    %1430 = vmatprep.subr.mxu0 0.0
    %1431 = vmatpush1.msra.mxu0 0.0
    %1432 = vmatprep.subr.mxu0 0.0
    %1433 = vmatpush1.msra.mxu0 0.0
    %1434 = vmatprep.subr.mxu0 0.0
    %1435 = vmatpush1.msra.mxu0 0.0
    %1436 = vmatprep.subr.mxu0 0.0
    %1437 = vmatpush1.msra.mxu0 0.0
    %1438 = vmatprep.subr.mxu0 0.0
    %1439 = vmatpush1.msra.mxu0 0.0
    %1440 = vmatprep.subr.mxu0 0.0
    %1441 = vmatpush1.msra.mxu0 0.0
    %1442 = vmatprep.subr.mxu0 0.0
    %1443 = vmatpush1.msra.mxu0 0.0
    %1444 = vmatprep.subr.mxu0 0.0
    %1445 = vmatpush1.msra.mxu0 0.0
    %1446 = vmatprep.subr.mxu0 0.0
    %1447 = vmatpush1.msra.mxu0 %v1418
    %1448 = vmatprep.subr.mxu0 0.0
    %1449 = vmatpush1.msra.mxu0 %v1417
    %1450 = vmatprep.subr.mxu0 0.0
    %1451 = vmatpush1.msra.mxu0 %v1416
    %1452 = vmatprep.subr.mxu0 0.0
    %1453 = vmatpush1.msra.mxu0 %v1415
    %1454 = vmatprep.subr.mxu0 0.0
    %1455 = vmatpush1.msra.mxu0 %v1414
    %1456 = vmatprep.subr.mxu0 0.0
    %1457 = vmatpush1.msra.mxu0 %v1413
    %1458 = vmatprep.subr.mxu0 0.0
    %1459 = vmatpush1.msra.mxu0 %v1412
    %1460 = vmatprep.subr.mxu0 0.0
    %1461 = vmatpush1.msra.mxu0 %v1411
    %1462 = vmatprep.subr.mxu0 0.0
    %1463 = vmatpush2.msra.mxu0 0.0
    %1464 = vmatprep.subr.mxu0 0.0
    %1465 = vmatpush2.msra.mxu0 0.0
    %1466 = vmatprep.subr.mxu0 0.0
    %1467 = vmatpush2.msra.mxu0 0.0
    %1468 = vmatprep.subr.mxu0 0.0
    %1469 = vmatpush2.msra.mxu0 0.0
    %1470 = vmatprep.subr.mxu0 0.0
    %1471 = vmatpush2.msra.mxu0 0.0
    %1472 = vmatprep.subr.mxu0 0.0
    %1473 = vmatpush2.msra.mxu0 0.0
    %1474 = vmatprep.subr.mxu0 0.0
    %1475 = vmatpush2.msra.mxu0 0.0
    %1476 = vmatprep.subr.mxu0 0.0
    %1477 = vmatpush2.msra.mxu0 0.0
    %1478 = vmatprep.subr.mxu0 0.0
    %1479 = vmatpush2.msra.mxu0 0.0
    %1480 = vmatprep.subr.mxu0 0.0
    %1481 = vmatpush2.msra.mxu0 0.0
    %1482 = vmatprep.subr.mxu0 0.0
    %1483 = vmatpush2.msra.mxu0 0.0
    %1484 = vmatprep.subr.mxu0 0.0
    %1485 = vmatpush2.msra.mxu0 0.0
    %1486 = vmatprep.subr.mxu0 0.0
    %1487 = vmatpush2.msra.mxu0 0.0
    %1488 = vmatprep.subr.mxu0 0.0
    %1489 = vmatpush2.msra.mxu0 0.0
    %1490 = vmatprep.subr.mxu0 0.0
    %1491 = vmatpush2.msra.mxu0 0.0
    %1492 = vmatprep.subr.mxu0 0.0
    %1493 = vmatpush2.msra.mxu0 0.0
    %1494 = vmatprep.mubr.f32.mxu0 0.0
    %1495 = vmatmul.mubr.f32.gmra.mxu0 %v1425
    %v1496 = vpop.f32.mrf.mxu0
    %v1497 = vadd.f32 %v1422, %v1496
    %v1498 = vpop.f32.mrf.mxu0
    %1499 = vmatprep.mubr.f32.mxu0 0.0
    %1500 = vmatmul.mubr.f32.gmra.mxu0 %v1428
    %v1501 = vpop.f32.mrf.mxu0
    %v1502 = vadd.f32 %v1422, %v1501
    %v1503 = vpop.f32.mrf.mxu0
    %1504 = vdwg.mxu0
    %v1505 = vadd.f32 %v1280, %v1497
    %v1506 = vadd.f32 %v1281, %v1502
    %v1507 = vsel %vm151, %v1505, 0.0
    %1508 = vadd.xlane.f32.xlu0 %v1507
    %v1509 = vpop.xlane.xlu0 %1508
    %v1510 = vsel %vm151, %v1506, 0.0
    %1511 = vadd.xlane.f32.xlu0 %v1510
    %v1512 = vpop.xlane.xlu0 %1511
    %v1513 = vmul.f32 %v1509, %v158
    %v1514 = vmul.f32 %v1512, %v158
    %v1515 = vsub.f32 %v1505, %v1513
    %v1516 = vsub.f32 %v1506, %v1514
    %v1517 = vmul.f32 %v1515, %v1515
    %v1518 = vmul.f32 %v1516, %v1516
    %v1519 = vsel %vm151, %v1517, 0.0
    %1520 = vadd.xlane.f32.xlu0 %v1519
    %v1521 = vpop.xlane.xlu0 %1520
    %v1522 = vsel %vm151, %v1518, 0.0
    %1523 = vadd.xlane.f32.xlu0 %v1522
    %v1524 = vpop.xlane.xlu0 %1523
    %v1525 = vmul.f32 %v1521, %v158
    %v1526 = vmul.f32 %v1524, %v158
    %v1527 = vadd.f32 %v1525, 1e-05
    %v1528 = vadd.f32 %v1526, 1e-05
    %v1529 = vrsqrt.pop %v1527
    %v1530 = vrsqrt.pop %v1528
    %v1531 = vmul.f32 %v1515, %v1529
    %v1532 = vmul.f32 %v1516, %v1530
    %v1533 = vlaneseq
    %v1534 = vshrl.u32 %v1533, 7
    %v1535 = vsub.s32 2, %v1534
    %v1536 = vrot.slane %v56, %v1535
    %v1537 = vmul.f32 %v1531, %v1536
    %v1538 = vmul.f32 %v1532, %v1536
    %v1539 = vlaneseq
    %v1540 = vshrl.u32 %v1539, 7
    %v1541 = vsub.s32 6, %v1540
    %v1542 = vrot.slane %v56, %v1541
    %v1543 = vadd.f32 %v1537, %v1542
    %v1544 = vadd.f32 %v1538, %v1542
    %s1545 = scalar_lea.vmem %s5, 128
    %v1546 = vld [vmem:[%s1545] sm:$0xff]
    %v1547 = vld [vmem:[%s1545 + $0x8] sm:$0xff]
    %v1548 = vld [vmem:[%s1545 + $0x10] sm:$0xff]
    %v1549 = vld [vmem:[%s1545 + $0x18] sm:$0xff]
    %s1550 = scalar_lea.vmem %s5, 160
    %v1551 = vld [vmem:[%s1550] sm:$0xff]
    %v1552 = vld [vmem:[%s1550 + $0x8] sm:$0xff]
    %v1553 = vld [vmem:[%s1550 + $0x10] sm:$0xff]
    %v1554 = vld [vmem:[%s1550 + $0x18] sm:$0xff]
    %s1555 = scalar_lea.vmem %s5, 192
    %v1556 = vld [vmem:[%s1555] sm:$0xff]
    %v1557 = vld [vmem:[%s1555 + $0x8] sm:$0xff]
    %v1558 = vld [vmem:[%s1555 + $0x10] sm:$0xff]
    %v1559 = vld [vmem:[%s1555 + $0x18] sm:$0xff]
    %s1560 = scalar_lea.vmem %s5, 224
    %v1561 = vld [vmem:[%s1560] sm:$0xff]
    %v1562 = vld [vmem:[%s1560 + $0x8] sm:$0xff]
    %v1563 = vld [vmem:[%s1560 + $0x10] sm:$0xff]
    %v1564 = vld [vmem:[%s1560 + $0x18] sm:$0xff]
    %v1565 = vlaneseq
    %v1566 = vshrl.u32 %v1565, 7
    %v1567 = vsub.s32 4, %v1566
    %v1568 = vrot.slane %v55, %v1567
    %v1570 = vsel %vm151, %v1543, 0
    %v1573 = vsel %vm151, %v1544, 0
    %1575 = vmatprep.subr.mxu0 0.0
    %1576 = vmatpush1.msra.mxu0 0.0
    %1577 = vmatprep.subr.mxu0 0.0
    %1578 = vmatpush1.msra.mxu0 0.0
    %1579 = vmatprep.subr.mxu0 0.0
    %1580 = vmatpush1.msra.mxu0 0.0
    %1581 = vmatprep.subr.mxu0 0.0
    %1582 = vmatpush1.msra.mxu0 0.0
    %1583 = vmatprep.subr.mxu0 0.0
    %1584 = vmatpush1.msra.mxu0 0.0
    %1585 = vmatprep.subr.mxu0 0.0
    %1586 = vmatpush1.msra.mxu0 0.0
    %1587 = vmatprep.subr.mxu0 0.0
    %1588 = vmatpush1.msra.mxu0 0.0
    %1589 = vmatprep.subr.mxu0 0.0
    %1590 = vmatpush1.msra.mxu0 0.0
    %1591 = vmatprep.subr.mxu0 0.0
    %1592 = vmatpush1.msra.mxu0 0.0
    %1593 = vmatprep.subr.mxu0 0.0
    %1594 = vmatpush1.msra.mxu0 0.0
    %1595 = vmatprep.subr.mxu0 0.0
    %1596 = vmatpush1.msra.mxu0 0.0
    %1597 = vmatprep.subr.mxu0 0.0
    %1598 = vmatpush1.msra.mxu0 0.0
    %1599 = vmatprep.subr.mxu0 0.0
    %1600 = vmatpush1.msra.mxu0 %v1549
    %1601 = vmatprep.subr.mxu0 0.0
    %1602 = vmatpush1.msra.mxu0 %v1548
    %1603 = vmatprep.subr.mxu0 0.0
    %1604 = vmatpush1.msra.mxu0 %v1547
    %1605 = vmatprep.subr.mxu0 0.0
    %1606 = vmatpush1.msra.mxu0 %v1546
    %1607 = vmatprep.subr.mxu0 0.0
    %1608 = vmatpush2.msra.mxu0 0.0
    %1609 = vmatprep.subr.mxu0 0.0
    %1610 = vmatpush2.msra.mxu0 0.0
    %1611 = vmatprep.subr.mxu0 0.0
    %1612 = vmatpush2.msra.mxu0 0.0
    %1613 = vmatprep.subr.mxu0 0.0
    %1614 = vmatpush2.msra.mxu0 0.0
    %1615 = vmatprep.subr.mxu0 0.0
    %1616 = vmatpush2.msra.mxu0 0.0
    %1617 = vmatprep.subr.mxu0 0.0
    %1618 = vmatpush2.msra.mxu0 0.0
    %1619 = vmatprep.subr.mxu0 0.0
    %1620 = vmatpush2.msra.mxu0 0.0
    %1621 = vmatprep.subr.mxu0 0.0
    %1622 = vmatpush2.msra.mxu0 0.0
    %1623 = vmatprep.subr.mxu0 0.0
    %1624 = vmatpush2.msra.mxu0 0.0
    %1625 = vmatprep.subr.mxu0 0.0
    %1626 = vmatpush2.msra.mxu0 0.0
    %1627 = vmatprep.subr.mxu0 0.0
    %1628 = vmatpush2.msra.mxu0 0.0
    %1629 = vmatprep.subr.mxu0 0.0
    %1630 = vmatpush2.msra.mxu0 0.0
    %1631 = vmatprep.subr.mxu0 0.0
    %1632 = vmatpush2.msra.mxu0 0.0
    %1633 = vmatprep.subr.mxu0 0.0
    %1634 = vmatpush2.msra.mxu0 0.0
    %1635 = vmatprep.subr.mxu0 0.0
    %1636 = vmatpush2.msra.mxu0 0.0
    %1637 = vmatprep.subr.mxu0 0.0
    %1638 = vmatpush2.msra.mxu0 0.0
    %1639 = vmatprep.mubr.f32.mxu0 0.0
    %1640 = vmatmul.mubr.f32.gmra.mxu0 %v1570
    %v1641 = vpop.f32.mrf.mxu0
    %v1642 = vadd.f32 %v1568, %v1641
    %v1643 = vpop.f32.mrf.mxu0
    %1644 = vmatprep.mubr.f32.mxu0 0.0
    %1645 = vmatmul.mubr.f32.gmra.mxu0 %v1573
    %v1646 = vpop.f32.mrf.mxu0
    %v1647 = vadd.f32 %v1568, %v1646
    %v1648 = vpop.f32.mrf.mxu0
    %1649 = vdwg.mxu0
    %v1650 = vlaneseq
    %v1651 = vshrl.u32 %v1650, 7
    %v1652 = vsub.s32 5, %v1651
    %v1653 = vrot.slane %v55, %v1652
    %1654 = vmatprep.subr.mxu0 0.0
    %1655 = vmatpush1.msra.mxu0 0.0
    %1656 = vmatprep.subr.mxu0 0.0
    %1657 = vmatpush1.msra.mxu0 0.0
    %1658 = vmatprep.subr.mxu0 0.0
    %1659 = vmatpush1.msra.mxu0 0.0
    %1660 = vmatprep.subr.mxu0 0.0
    %1661 = vmatpush1.msra.mxu0 0.0
    %1662 = vmatprep.subr.mxu0 0.0
    %1663 = vmatpush1.msra.mxu0 0.0
    %1664 = vmatprep.subr.mxu0 0.0
    %1665 = vmatpush1.msra.mxu0 0.0
    %1666 = vmatprep.subr.mxu0 0.0
    %1667 = vmatpush1.msra.mxu0 0.0
    %1668 = vmatprep.subr.mxu0 0.0
    %1669 = vmatpush1.msra.mxu0 0.0
    %1670 = vmatprep.subr.mxu0 0.0
    %1671 = vmatpush1.msra.mxu0 0.0
    %1672 = vmatprep.subr.mxu0 0.0
    %1673 = vmatpush1.msra.mxu0 0.0
    %1674 = vmatprep.subr.mxu0 0.0
    %1675 = vmatpush1.msra.mxu0 0.0
    %1676 = vmatprep.subr.mxu0 0.0
    %1677 = vmatpush1.msra.mxu0 0.0
    %1678 = vmatprep.subr.mxu0 0.0
    %1679 = vmatpush1.msra.mxu0 %v1554
    %1680 = vmatprep.subr.mxu0 0.0
    %1681 = vmatpush1.msra.mxu0 %v1553
    %1682 = vmatprep.subr.mxu0 0.0
    %1683 = vmatpush1.msra.mxu0 %v1552
    %1684 = vmatprep.subr.mxu0 0.0
    %1685 = vmatpush1.msra.mxu0 %v1551
    %1686 = vmatprep.subr.mxu0 0.0
    %1687 = vmatpush2.msra.mxu0 0.0
    %1688 = vmatprep.subr.mxu0 0.0
    %1689 = vmatpush2.msra.mxu0 0.0
    %1690 = vmatprep.subr.mxu0 0.0
    %1691 = vmatpush2.msra.mxu0 0.0
    %1692 = vmatprep.subr.mxu0 0.0
    %1693 = vmatpush2.msra.mxu0 0.0
    %1694 = vmatprep.subr.mxu0 0.0
    %1695 = vmatpush2.msra.mxu0 0.0
    %1696 = vmatprep.subr.mxu0 0.0
    %1697 = vmatpush2.msra.mxu0 0.0
    %1698 = vmatprep.subr.mxu0 0.0
    %1699 = vmatpush2.msra.mxu0 0.0
    %1700 = vmatprep.subr.mxu0 0.0
    %1701 = vmatpush2.msra.mxu0 0.0
    %1702 = vmatprep.subr.mxu0 0.0
    %1703 = vmatpush2.msra.mxu0 0.0
    %1704 = vmatprep.subr.mxu0 0.0
    %1705 = vmatpush2.msra.mxu0 0.0
    %1706 = vmatprep.subr.mxu0 0.0
    %1707 = vmatpush2.msra.mxu0 0.0
    %1708 = vmatprep.subr.mxu0 0.0
    %1709 = vmatpush2.msra.mxu0 0.0
    %1710 = vmatprep.subr.mxu0 0.0
    %1711 = vmatpush2.msra.mxu0 0.0
    %1712 = vmatprep.subr.mxu0 0.0
    %1713 = vmatpush2.msra.mxu0 0.0
    %1714 = vmatprep.subr.mxu0 0.0
    %1715 = vmatpush2.msra.mxu0 0.0
    %1716 = vmatprep.subr.mxu0 0.0
    %1717 = vmatpush2.msra.mxu0 0.0
    %1718 = vmatprep.mubr.f32.mxu0 0.0
    %1719 = vmatmul.mubr.f32.gmra.mxu0 %v1570
    %v1720 = vpop.f32.mrf.mxu0
    %v1721 = vadd.f32 %v1653, %v1720
    %v1722 = vpop.f32.mrf.mxu0
    %1723 = vmatprep.mubr.f32.mxu0 0.0
    %1724 = vmatmul.mubr.f32.gmra.mxu0 %v1573
    %v1725 = vpop.f32.mrf.mxu0
    %v1726 = vadd.f32 %v1653, %v1725
    %v1727 = vpop.f32.mrf.mxu0
    %1728 = vdwg.mxu0
    %v1729 = vlaneseq
    %v1730 = vshrl.u32 %v1729, 7
    %v1731 = vsub.s32 6, %v1730
    %v1732 = vrot.slane %v55, %v1731
    %1733 = vmatprep.subr.mxu0 0.0
    %1734 = vmatpush1.msra.mxu0 0.0
    %1735 = vmatprep.subr.mxu0 0.0
    %1736 = vmatpush1.msra.mxu0 0.0
    %1737 = vmatprep.subr.mxu0 0.0
    %1738 = vmatpush1.msra.mxu0 0.0
    %1739 = vmatprep.subr.mxu0 0.0
    %1740 = vmatpush1.msra.mxu0 0.0
    %1741 = vmatprep.subr.mxu0 0.0
    %1742 = vmatpush1.msra.mxu0 0.0
    %1743 = vmatprep.subr.mxu0 0.0
    %1744 = vmatpush1.msra.mxu0 0.0
    %1745 = vmatprep.subr.mxu0 0.0
    %1746 = vmatpush1.msra.mxu0 0.0
    %1747 = vmatprep.subr.mxu0 0.0
    %1748 = vmatpush1.msra.mxu0 0.0
    %1749 = vmatprep.subr.mxu0 0.0
    %1750 = vmatpush1.msra.mxu0 0.0
    %1751 = vmatprep.subr.mxu0 0.0
    %1752 = vmatpush1.msra.mxu0 0.0
    %1753 = vmatprep.subr.mxu0 0.0
    %1754 = vmatpush1.msra.mxu0 0.0
    %1755 = vmatprep.subr.mxu0 0.0
    %1756 = vmatpush1.msra.mxu0 0.0
    %1757 = vmatprep.subr.mxu0 0.0
    %1758 = vmatpush1.msra.mxu0 %v1559
    %1759 = vmatprep.subr.mxu0 0.0
    %1760 = vmatpush1.msra.mxu0 %v1558
    %1761 = vmatprep.subr.mxu0 0.0
    %1762 = vmatpush1.msra.mxu0 %v1557
    %1763 = vmatprep.subr.mxu0 0.0
    %1764 = vmatpush1.msra.mxu0 %v1556
    %1765 = vmatprep.subr.mxu0 0.0
    %1766 = vmatpush2.msra.mxu0 0.0
    %1767 = vmatprep.subr.mxu0 0.0
    %1768 = vmatpush2.msra.mxu0 0.0
    %1769 = vmatprep.subr.mxu0 0.0
    %1770 = vmatpush2.msra.mxu0 0.0
    %1771 = vmatprep.subr.mxu0 0.0
    %1772 = vmatpush2.msra.mxu0 0.0
    %1773 = vmatprep.subr.mxu0 0.0
    %1774 = vmatpush2.msra.mxu0 0.0
    %1775 = vmatprep.subr.mxu0 0.0
    %1776 = vmatpush2.msra.mxu0 0.0
    %1777 = vmatprep.subr.mxu0 0.0
    %1778 = vmatpush2.msra.mxu0 0.0
    %1779 = vmatprep.subr.mxu0 0.0
    %1780 = vmatpush2.msra.mxu0 0.0
    %1781 = vmatprep.subr.mxu0 0.0
    %1782 = vmatpush2.msra.mxu0 0.0
    %1783 = vmatprep.subr.mxu0 0.0
    %1784 = vmatpush2.msra.mxu0 0.0
    %1785 = vmatprep.subr.mxu0 0.0
    %1786 = vmatpush2.msra.mxu0 0.0
    %1787 = vmatprep.subr.mxu0 0.0
    %1788 = vmatpush2.msra.mxu0 0.0
    %1789 = vmatprep.subr.mxu0 0.0
    %1790 = vmatpush2.msra.mxu0 0.0
    %1791 = vmatprep.subr.mxu0 0.0
    %1792 = vmatpush2.msra.mxu0 0.0
    %1793 = vmatprep.subr.mxu0 0.0
    %1794 = vmatpush2.msra.mxu0 0.0
    %1795 = vmatprep.subr.mxu0 0.0
    %1796 = vmatpush2.msra.mxu0 0.0
    %1797 = vmatprep.mubr.f32.mxu0 0.0
    %1798 = vmatmul.mubr.f32.gmra.mxu0 %v1570
    %v1799 = vpop.f32.mrf.mxu0
    %v1800 = vadd.f32 %v1732, %v1799
    %v1801 = vpop.f32.mrf.mxu0
    %1802 = vmatprep.mubr.f32.mxu0 0.0
    %1803 = vmatmul.mubr.f32.gmra.mxu0 %v1573
    %v1804 = vpop.f32.mrf.mxu0
    %v1805 = vadd.f32 %v1732, %v1804
    %v1806 = vpop.f32.mrf.mxu0
    %1807 = vdwg.mxu0
    %v1809 = vsel %vm69, %v1642, 0
    %v1812 = vsel %vm69, %v1721, 0
    %1814 = vmatprep.subr.mxu0 0.0
    %1815 = vmatpush1.xpose.msra.mxu0 0.0
    %1816 = vmatprep.subr.mxu0 0.0
    %1817 = vmatpush1.xpose.msra.mxu0 0.0
    %1818 = vmatprep.subr.mxu0 0.0
    %1819 = vmatpush1.xpose.msra.mxu0 0.0
    %1820 = vmatprep.subr.mxu0 0.0
    %1821 = vmatpush1.xpose.msra.mxu0 0.0
    %1822 = vmatprep.subr.mxu0 0.0
    %1823 = vmatpush1.xpose.msra.mxu0 0.0
    %1824 = vmatprep.subr.mxu0 0.0
    %1825 = vmatpush1.xpose.msra.mxu0 0.0
    %1826 = vmatprep.subr.mxu0 0.0
    %1827 = vmatpush1.xpose.msra.mxu0 0.0
    %1828 = vmatprep.subr.mxu0 0.0
    %1829 = vmatpush1.xpose.msra.mxu0 0.0
    %1830 = vmatprep.subr.mxu0 0.0
    %1831 = vmatpush1.xpose.msra.mxu0 0.0
    %1832 = vmatprep.subr.mxu0 0.0
    %1833 = vmatpush1.xpose.msra.mxu0 0.0
    %1834 = vmatprep.subr.mxu0 0.0
    %1835 = vmatpush1.xpose.msra.mxu0 0.0
    %1836 = vmatprep.subr.mxu0 0.0
    %1837 = vmatpush1.xpose.msra.mxu0 0.0
    %1838 = vmatprep.subr.mxu0 0.0
    %1839 = vmatpush1.xpose.msra.mxu0 0.0
    %1840 = vmatprep.subr.mxu0 0.0
    %1841 = vmatpush1.xpose.msra.mxu0 0.0
    %1842 = vmatprep.subr.mxu0 0.0
    %1843 = vmatpush1.xpose.msra.mxu0 0.0
    %1844 = vmatprep.subr.mxu0 0.0
    %1845 = vmatpush1.xpose.msra.mxu0 %v1812
    %1846 = vmatprep.subr.mxu0 0.0
    %1847 = vmatpush2.xpose.msra.mxu0 0.0
    %1848 = vmatprep.subr.mxu0 0.0
    %1849 = vmatpush2.xpose.msra.mxu0 0.0
    %1850 = vmatprep.subr.mxu0 0.0
    %1851 = vmatpush2.xpose.msra.mxu0 0.0
    %1852 = vmatprep.subr.mxu0 0.0
    %1853 = vmatpush2.xpose.msra.mxu0 0.0
    %1854 = vmatprep.subr.mxu0 0.0
    %1855 = vmatpush2.xpose.msra.mxu0 0.0
    %1856 = vmatprep.subr.mxu0 0.0
    %1857 = vmatpush2.xpose.msra.mxu0 0.0
    %1858 = vmatprep.subr.mxu0 0.0
    %1859 = vmatpush2.xpose.msra.mxu0 0.0
    %1860 = vmatprep.subr.mxu0 0.0
    %1861 = vmatpush2.xpose.msra.mxu0 0.0
    %1862 = vmatprep.subr.mxu0 0.0
    %1863 = vmatpush2.xpose.msra.mxu0 0.0
    %1864 = vmatprep.subr.mxu0 0.0
    %1865 = vmatpush2.xpose.msra.mxu0 0.0
    %1866 = vmatprep.subr.mxu0 0.0
    %1867 = vmatpush2.xpose.msra.mxu0 0.0
    %1868 = vmatprep.subr.mxu0 0.0
    %1869 = vmatpush2.xpose.msra.mxu0 0.0
    %1870 = vmatprep.subr.mxu0 0.0
    %1871 = vmatpush2.xpose.msra.mxu0 0.0
    %1872 = vmatprep.subr.mxu0 0.0
    %1873 = vmatpush2.xpose.msra.mxu0 0.0
    %1874 = vmatprep.subr.mxu0 0.0
    %1875 = vmatpush2.xpose.msra.mxu0 0.0
    %1876 = vmatprep.subr.mxu0 0.0
    %1877 = vmatpush2.xpose.msra.mxu0 0.0
    %1878 = vmatprep.mubr.f32.mxu0 0.0
    %1879 = vmatmul.mubr.f32.gmra.mxu0 %v1809
    %v1880 = vpop.f32.mrf.mxu0
    %v1881 = vadd.f32 0.0, %v1880
    %v1882 = vpop.f32.mrf.mxu0
    %1883 = vdwg.mxu0
    %v1885 = vsel %vm69, %v1647, 0
    %v1888 = vsel %vm69, %v1726, 0
    %1890 = vmatprep.subr.mxu0 0.0
    %1891 = vmatpush1.xpose.msra.mxu0 0.0
    %1892 = vmatprep.subr.mxu0 0.0
    %1893 = vmatpush1.xpose.msra.mxu0 0.0
    %1894 = vmatprep.subr.mxu0 0.0
    %1895 = vmatpush1.xpose.msra.mxu0 0.0
    %1896 = vmatprep.subr.mxu0 0.0
    %1897 = vmatpush1.xpose.msra.mxu0 0.0
    %1898 = vmatprep.subr.mxu0 0.0
    %1899 = vmatpush1.xpose.msra.mxu0 0.0
    %1900 = vmatprep.subr.mxu0 0.0
    %1901 = vmatpush1.xpose.msra.mxu0 0.0
    %1902 = vmatprep.subr.mxu0 0.0
    %1903 = vmatpush1.xpose.msra.mxu0 0.0
    %1904 = vmatprep.subr.mxu0 0.0
    %1905 = vmatpush1.xpose.msra.mxu0 0.0
    %1906 = vmatprep.subr.mxu0 0.0
    %1907 = vmatpush1.xpose.msra.mxu0 0.0
    %1908 = vmatprep.subr.mxu0 0.0
    %1909 = vmatpush1.xpose.msra.mxu0 0.0
    %1910 = vmatprep.subr.mxu0 0.0
    %1911 = vmatpush1.xpose.msra.mxu0 0.0
    %1912 = vmatprep.subr.mxu0 0.0
    %1913 = vmatpush1.xpose.msra.mxu0 0.0
    %1914 = vmatprep.subr.mxu0 0.0
    %1915 = vmatpush1.xpose.msra.mxu0 0.0
    %1916 = vmatprep.subr.mxu0 0.0
    %1917 = vmatpush1.xpose.msra.mxu0 0.0
    %1918 = vmatprep.subr.mxu0 0.0
    %1919 = vmatpush1.xpose.msra.mxu0 0.0
    %1920 = vmatprep.subr.mxu0 0.0
    %1921 = vmatpush1.xpose.msra.mxu0 %v1888
    %1922 = vmatprep.subr.mxu0 0.0
    %1923 = vmatpush2.xpose.msra.mxu0 0.0
    %1924 = vmatprep.subr.mxu0 0.0
    %1925 = vmatpush2.xpose.msra.mxu0 0.0
    %1926 = vmatprep.subr.mxu0 0.0
    %1927 = vmatpush2.xpose.msra.mxu0 0.0
    %1928 = vmatprep.subr.mxu0 0.0
    %1929 = vmatpush2.xpose.msra.mxu0 0.0
    %1930 = vmatprep.subr.mxu0 0.0
    %1931 = vmatpush2.xpose.msra.mxu0 0.0
    %1932 = vmatprep.subr.mxu0 0.0
    %1933 = vmatpush2.xpose.msra.mxu0 0.0
    %1934 = vmatprep.subr.mxu0 0.0
    %1935 = vmatpush2.xpose.msra.mxu0 0.0
    %1936 = vmatprep.subr.mxu0 0.0
    %1937 = vmatpush2.xpose.msra.mxu0 0.0
    %1938 = vmatprep.subr.mxu0 0.0
    %1939 = vmatpush2.xpose.msra.mxu0 0.0
    %1940 = vmatprep.subr.mxu0 0.0
    %1941 = vmatpush2.xpose.msra.mxu0 0.0
    %1942 = vmatprep.subr.mxu0 0.0
    %1943 = vmatpush2.xpose.msra.mxu0 0.0
    %1944 = vmatprep.subr.mxu0 0.0
    %1945 = vmatpush2.xpose.msra.mxu0 0.0
    %1946 = vmatprep.subr.mxu0 0.0
    %1947 = vmatpush2.xpose.msra.mxu0 0.0
    %1948 = vmatprep.subr.mxu0 0.0
    %1949 = vmatpush2.xpose.msra.mxu0 0.0
    %1950 = vmatprep.subr.mxu0 0.0
    %1951 = vmatpush2.xpose.msra.mxu0 0.0
    %1952 = vmatprep.subr.mxu0 0.0
    %1953 = vmatpush2.xpose.msra.mxu0 0.0
    %1954 = vmatprep.mubr.f32.mxu0 0.0
    %1955 = vmatmul.mubr.f32.gmra.mxu0 %v1885
    %v1956 = vpop.f32.mrf.mxu0
    %v1957 = vadd.f32 0.0, %v1956
    %v1958 = vpop.f32.mrf.mxu0
    %1959 = vdwg.mxu0
    %v1960 = vmul.f32 %v1881, 0.25
    %v1961 = vmul.f32 %v1957, 0.25
    %v1962 = vsel %vm607, %v1960, -inf
    %1963 = vmax.xlane.f32.xlu0 %v1962
    %v1964 = vpop.xlane.xlu0 %1963
    %v1965 = vsel %vm607, %v1961, -inf
    %1966 = vmax.xlane.f32.xlu0 %v1965
    %v1967 = vpop.xlane.xlu0 %1966
    %v1968 = vsub.f32 %v1960, %v1964
    %v1969 = vsub.f32 %v1961, %v1967
    %v1970 = vmul.f32 %v1968, 1.442695
    %v1971 = vpow.pop %v1970
    %v1972 = vmul.f32 %v1969, 1.442695
    %v1973 = vpow.pop %v1972
    %v1974 = vsel %vm607, %v1971, 0.0
    %1975 = vadd.xlane.f32.xlu0 %v1974
    %v1976 = vpop.xlane.xlu0 %1975
    %v1977 = vsel %vm607, %v1973, 0.0
    %1978 = vadd.xlane.f32.xlu0 %v1977
    %v1979 = vpop.xlane.xlu0 %1978
    %v1980 = vrcp.pop %v1976
    %v1981 = vmul.f32 %v1971, %v1980
    %v1982 = vrcp.pop %v1979
    %v1983 = vmul.f32 %v1973, %v1982
    %v1985 = vsel %vm607, %v1981, 0
    %1987 = vmatprep.subr.mxu0 0.0
    %1988 = vmatpush1.msra.mxu0 0.0
    %1989 = vmatprep.subr.mxu0 0.0
    %1990 = vmatpush1.msra.mxu0 0.0
    %1991 = vmatprep.subr.mxu0 0.0
    %1992 = vmatpush1.msra.mxu0 0.0
    %1993 = vmatprep.subr.mxu0 0.0
    %1994 = vmatpush1.msra.mxu0 0.0
    %1995 = vmatprep.subr.mxu0 0.0
    %1996 = vmatpush1.msra.mxu0 0.0
    %1997 = vmatprep.subr.mxu0 0.0
    %1998 = vmatpush1.msra.mxu0 0.0
    %1999 = vmatprep.subr.mxu0 0.0
    %2000 = vmatpush1.msra.mxu0 0.0
    %2001 = vmatprep.subr.mxu0 0.0
    %2002 = vmatpush1.msra.mxu0 0.0
    %2003 = vmatprep.subr.mxu0 0.0
    %2004 = vmatpush1.msra.mxu0 0.0
    %2005 = vmatprep.subr.mxu0 0.0
    %2006 = vmatpush1.msra.mxu0 0.0
    %2007 = vmatprep.subr.mxu0 0.0
    %2008 = vmatpush1.msra.mxu0 0.0
    %2009 = vmatprep.subr.mxu0 0.0
    %2010 = vmatpush1.msra.mxu0 0.0
    %2011 = vmatprep.subr.mxu0 0.0
    %2012 = vmatpush1.msra.mxu0 0.0
    %2013 = vmatprep.subr.mxu0 0.0
    %2014 = vmatpush1.msra.mxu0 0.0
    %2015 = vmatprep.subr.mxu0 0.0
    %2016 = vmatpush1.msra.mxu0 0.0
    %2017 = vmatprep.subr.mxu0 0.0
    %2018 = vmatpush1.msra.mxu0 %v1800
    %2019 = vmatprep.subr.mxu0 0.0
    %2020 = vmatpush2.msra.mxu0 0.0
    %2021 = vmatprep.subr.mxu0 0.0
    %2022 = vmatpush2.msra.mxu0 0.0
    %2023 = vmatprep.subr.mxu0 0.0
    %2024 = vmatpush2.msra.mxu0 0.0
    %2025 = vmatprep.subr.mxu0 0.0
    %2026 = vmatpush2.msra.mxu0 0.0
    %2027 = vmatprep.subr.mxu0 0.0
    %2028 = vmatpush2.msra.mxu0 0.0
    %2029 = vmatprep.subr.mxu0 0.0
    %2030 = vmatpush2.msra.mxu0 0.0
    %2031 = vmatprep.subr.mxu0 0.0
    %2032 = vmatpush2.msra.mxu0 0.0
    %2033 = vmatprep.subr.mxu0 0.0
    %2034 = vmatpush2.msra.mxu0 0.0
    %2035 = vmatprep.subr.mxu0 0.0
    %2036 = vmatpush2.msra.mxu0 0.0
    %2037 = vmatprep.subr.mxu0 0.0
    %2038 = vmatpush2.msra.mxu0 0.0
    %2039 = vmatprep.subr.mxu0 0.0
    %2040 = vmatpush2.msra.mxu0 0.0
    %2041 = vmatprep.subr.mxu0 0.0
    %2042 = vmatpush2.msra.mxu0 0.0
    %2043 = vmatprep.subr.mxu0 0.0
    %2044 = vmatpush2.msra.mxu0 0.0
    %2045 = vmatprep.subr.mxu0 0.0
    %2046 = vmatpush2.msra.mxu0 0.0
    %2047 = vmatprep.subr.mxu0 0.0
    %2048 = vmatpush2.msra.mxu0 0.0
    %2049 = vmatprep.subr.mxu0 0.0
    %2050 = vmatpush2.msra.mxu0 0.0
    %2051 = vmatprep.mubr.f32.mxu0 0.0
    %2052 = vmatmul.mubr.f32.gmra.mxu0 %v1985
    %v2053 = vpop.f32.mrf.mxu0
    %v2054 = vadd.f32 0.0, %v2053
    %v2055 = vpop.f32.mrf.mxu0
    %2056 = vdwg.mxu0
    %v2058 = vsel %vm607, %v1983, 0
    %2060 = vmatprep.subr.mxu0 0.0
    %2061 = vmatpush1.msra.mxu0 0.0
    %2062 = vmatprep.subr.mxu0 0.0
    %2063 = vmatpush1.msra.mxu0 0.0
    %2064 = vmatprep.subr.mxu0 0.0
    %2065 = vmatpush1.msra.mxu0 0.0
    %2066 = vmatprep.subr.mxu0 0.0
    %2067 = vmatpush1.msra.mxu0 0.0
    %2068 = vmatprep.subr.mxu0 0.0
    %2069 = vmatpush1.msra.mxu0 0.0
    %2070 = vmatprep.subr.mxu0 0.0
    %2071 = vmatpush1.msra.mxu0 0.0
    %2072 = vmatprep.subr.mxu0 0.0
    %2073 = vmatpush1.msra.mxu0 0.0
    %2074 = vmatprep.subr.mxu0 0.0
    %2075 = vmatpush1.msra.mxu0 0.0
    %2076 = vmatprep.subr.mxu0 0.0
    %2077 = vmatpush1.msra.mxu0 0.0
    %2078 = vmatprep.subr.mxu0 0.0
    %2079 = vmatpush1.msra.mxu0 0.0
    %2080 = vmatprep.subr.mxu0 0.0
    %2081 = vmatpush1.msra.mxu0 0.0
    %2082 = vmatprep.subr.mxu0 0.0
    %2083 = vmatpush1.msra.mxu0 0.0
    %2084 = vmatprep.subr.mxu0 0.0
    %2085 = vmatpush1.msra.mxu0 0.0
    %2086 = vmatprep.subr.mxu0 0.0
    %2087 = vmatpush1.msra.mxu0 0.0
    %2088 = vmatprep.subr.mxu0 0.0
    %2089 = vmatpush1.msra.mxu0 0.0
    %2090 = vmatprep.subr.mxu0 0.0
    %2091 = vmatpush1.msra.mxu0 %v1805
    %2092 = vmatprep.subr.mxu0 0.0
    %2093 = vmatpush2.msra.mxu0 0.0
    %2094 = vmatprep.subr.mxu0 0.0
    %2095 = vmatpush2.msra.mxu0 0.0
    %2096 = vmatprep.subr.mxu0 0.0
    %2097 = vmatpush2.msra.mxu0 0.0
    %2098 = vmatprep.subr.mxu0 0.0
    %2099 = vmatpush2.msra.mxu0 0.0
    %2100 = vmatprep.subr.mxu0 0.0
    %2101 = vmatpush2.msra.mxu0 0.0
    %2102 = vmatprep.subr.mxu0 0.0
    %2103 = vmatpush2.msra.mxu0 0.0
    %2104 = vmatprep.subr.mxu0 0.0
    %2105 = vmatpush2.msra.mxu0 0.0
    %2106 = vmatprep.subr.mxu0 0.0
    %2107 = vmatpush2.msra.mxu0 0.0
    %2108 = vmatprep.subr.mxu0 0.0
    %2109 = vmatpush2.msra.mxu0 0.0
    %2110 = vmatprep.subr.mxu0 0.0
    %2111 = vmatpush2.msra.mxu0 0.0
    %2112 = vmatprep.subr.mxu0 0.0
    %2113 = vmatpush2.msra.mxu0 0.0
    %2114 = vmatprep.subr.mxu0 0.0
    %2115 = vmatpush2.msra.mxu0 0.0
    %2116 = vmatprep.subr.mxu0 0.0
    %2117 = vmatpush2.msra.mxu0 0.0
    %2118 = vmatprep.subr.mxu0 0.0
    %2119 = vmatpush2.msra.mxu0 0.0
    %2120 = vmatprep.subr.mxu0 0.0
    %2121 = vmatpush2.msra.mxu0 0.0
    %2122 = vmatprep.subr.mxu0 0.0
    %2123 = vmatpush2.msra.mxu0 0.0
    %2124 = vmatprep.mubr.f32.mxu0 0.0
    %2125 = vmatmul.mubr.f32.gmra.mxu0 %v2058
    %v2126 = vpop.f32.mrf.mxu0
    %v2127 = vadd.f32 0.0, %v2126
    %v2128 = vpop.f32.mrf.mxu0
    %2129 = vdwg.mxu0
    %v2131 = vsel %vm69, %v2054, 0
    %v2134 = vsel %vm69, %v2127, 0
    %2136 = vmatprep.subr.mxu0 0.0
    %2137 = vmatpush1.msra.mxu0 0.0
    %2138 = vmatprep.subr.mxu0 0.0
    %2139 = vmatpush1.msra.mxu0 0.0
    %2140 = vmatprep.subr.mxu0 0.0
    %2141 = vmatpush1.msra.mxu0 0.0
    %2142 = vmatprep.subr.mxu0 0.0
    %2143 = vmatpush1.msra.mxu0 0.0
    %2144 = vmatprep.subr.mxu0 0.0
    %2145 = vmatpush1.msra.mxu0 0.0
    %2146 = vmatprep.subr.mxu0 0.0
    %2147 = vmatpush1.msra.mxu0 0.0
    %2148 = vmatprep.subr.mxu0 0.0
    %2149 = vmatpush1.msra.mxu0 0.0
    %2150 = vmatprep.subr.mxu0 0.0
    %2151 = vmatpush1.msra.mxu0 0.0
    %2152 = vmatprep.subr.mxu0 0.0
    %2153 = vmatpush1.msra.mxu0 0.0
    %2154 = vmatprep.subr.mxu0 0.0
    %2155 = vmatpush1.msra.mxu0 0.0
    %2156 = vmatprep.subr.mxu0 0.0
    %2157 = vmatpush1.msra.mxu0 0.0
    %2158 = vmatprep.subr.mxu0 0.0
    %2159 = vmatpush1.msra.mxu0 0.0
    %2160 = vmatprep.subr.mxu0 0.0
    %2161 = vmatpush1.msra.mxu0 0.0
    %2162 = vmatprep.subr.mxu0 0.0
    %2163 = vmatpush1.msra.mxu0 0.0
    %2164 = vmatprep.subr.mxu0 0.0
    %2165 = vmatpush1.msra.mxu0 %v1562
    %2166 = vmatprep.subr.mxu0 0.0
    %2167 = vmatpush1.msra.mxu0 %v1561
    %2168 = vmatprep.subr.mxu0 0.0
    %2169 = vmatpush2.msra.mxu0 0.0
    %2170 = vmatprep.subr.mxu0 0.0
    %2171 = vmatpush2.msra.mxu0 0.0
    %2172 = vmatprep.subr.mxu0 0.0
    %2173 = vmatpush2.msra.mxu0 0.0
    %2174 = vmatprep.subr.mxu0 0.0
    %2175 = vmatpush2.msra.mxu0 0.0
    %2176 = vmatprep.subr.mxu0 0.0
    %2177 = vmatpush2.msra.mxu0 0.0
    %2178 = vmatprep.subr.mxu0 0.0
    %2179 = vmatpush2.msra.mxu0 0.0
    %2180 = vmatprep.subr.mxu0 0.0
    %2181 = vmatpush2.msra.mxu0 0.0
    %2182 = vmatprep.subr.mxu0 0.0
    %2183 = vmatpush2.msra.mxu0 0.0
    %2184 = vmatprep.subr.mxu0 0.0
    %2185 = vmatpush2.msra.mxu0 0.0
    %2186 = vmatprep.subr.mxu0 0.0
    %2187 = vmatpush2.msra.mxu0 0.0
    %2188 = vmatprep.subr.mxu0 0.0
    %2189 = vmatpush2.msra.mxu0 0.0
    %2190 = vmatprep.subr.mxu0 0.0
    %2191 = vmatpush2.msra.mxu0 0.0
    %2192 = vmatprep.subr.mxu0 0.0
    %2193 = vmatpush2.msra.mxu0 0.0
    %2194 = vmatprep.subr.mxu0 0.0
    %2195 = vmatpush2.msra.mxu0 0.0
    %2196 = vmatprep.subr.mxu0 0.0
    %2197 = vmatpush2.msra.mxu0 0.0
    %2198 = vmatprep.subr.mxu0 0.0
    %2199 = vmatpush2.msra.mxu0 0.0
    %2200 = vmatprep.mubr.f32.mxu0 0.0
    %2201 = vmatmul.mubr.f32.gmra.mxu0 %v2131
    %v2202 = vpop.f32.mrf.mxu0
    %v2203 = vadd.f32 0.0, %v2202
    %v2204 = vpop.f32.mrf.mxu0
    %2205 = vmatprep.mubr.f32.mxu0 0.0
    %2206 = vmatmul.mubr.f32.gmra.mxu0 %v2134
    %v2207 = vpop.f32.mrf.mxu0
    %v2208 = vadd.f32 0.0, %v2207
    %v2209 = vpop.f32.mrf.mxu0
    %2210 = vdwg.mxu0
    %v2211 = vlaneseq
    %v2212 = vshrl.u32 %v2211, 7
    %v2213 = vsub.s32 7, %v2212
    %v2214 = vrot.slane %v55, %v2213
    %v2215 = vadd.f32 %v2214, %v2203
    %v2216 = vadd.f32 %v2214, %v2208
    %2217 = vrot.lane.b32.xlu0 %v1642, 112
    %v2218 = vpop.permute.xlu0 %2217
    %2219 = vrot.lane.b32.xlu0 %v1721, 112
    %v2220 = vpop.permute.xlu0 %2219
    %v2221 = vsel %vm69, %v2218, 0
    %v2223 = vsel %vm69, %v2220, 0
    %2225 = vmatprep.subr.mxu0 0.0
    %2226 = vmatpush1.xpose.msra.mxu0 0.0
    %2227 = vmatprep.subr.mxu0 0.0
    %2228 = vmatpush1.xpose.msra.mxu0 0.0
    %2229 = vmatprep.subr.mxu0 0.0
    %2230 = vmatpush1.xpose.msra.mxu0 0.0
    %2231 = vmatprep.subr.mxu0 0.0
    %2232 = vmatpush1.xpose.msra.mxu0 0.0
    %2233 = vmatprep.subr.mxu0 0.0
    %2234 = vmatpush1.xpose.msra.mxu0 0.0
    %2235 = vmatprep.subr.mxu0 0.0
    %2236 = vmatpush1.xpose.msra.mxu0 0.0
    %2237 = vmatprep.subr.mxu0 0.0
    %2238 = vmatpush1.xpose.msra.mxu0 0.0
    %2239 = vmatprep.subr.mxu0 0.0
    %2240 = vmatpush1.xpose.msra.mxu0 0.0
    %2241 = vmatprep.subr.mxu0 0.0
    %2242 = vmatpush1.xpose.msra.mxu0 0.0
    %2243 = vmatprep.subr.mxu0 0.0
    %2244 = vmatpush1.xpose.msra.mxu0 0.0
    %2245 = vmatprep.subr.mxu0 0.0
    %2246 = vmatpush1.xpose.msra.mxu0 0.0
    %2247 = vmatprep.subr.mxu0 0.0
    %2248 = vmatpush1.xpose.msra.mxu0 0.0
    %2249 = vmatprep.subr.mxu0 0.0
    %2250 = vmatpush1.xpose.msra.mxu0 0.0
    %2251 = vmatprep.subr.mxu0 0.0
    %2252 = vmatpush1.xpose.msra.mxu0 0.0
    %2253 = vmatprep.subr.mxu0 0.0
    %2254 = vmatpush1.xpose.msra.mxu0 0.0
    %2255 = vmatprep.subr.mxu0 0.0
    %2256 = vmatpush1.xpose.msra.mxu0 %v2223
    %2257 = vmatprep.subr.mxu0 0.0
    %2258 = vmatpush2.xpose.msra.mxu0 0.0
    %2259 = vmatprep.subr.mxu0 0.0
    %2260 = vmatpush2.xpose.msra.mxu0 0.0
    %2261 = vmatprep.subr.mxu0 0.0
    %2262 = vmatpush2.xpose.msra.mxu0 0.0
    %2263 = vmatprep.subr.mxu0 0.0
    %2264 = vmatpush2.xpose.msra.mxu0 0.0
    %2265 = vmatprep.subr.mxu0 0.0
    %2266 = vmatpush2.xpose.msra.mxu0 0.0
    %2267 = vmatprep.subr.mxu0 0.0
    %2268 = vmatpush2.xpose.msra.mxu0 0.0
    %2269 = vmatprep.subr.mxu0 0.0
    %2270 = vmatpush2.xpose.msra.mxu0 0.0
    %2271 = vmatprep.subr.mxu0 0.0
    %2272 = vmatpush2.xpose.msra.mxu0 0.0
    %2273 = vmatprep.subr.mxu0 0.0
    %2274 = vmatpush2.xpose.msra.mxu0 0.0
    %2275 = vmatprep.subr.mxu0 0.0
    %2276 = vmatpush2.xpose.msra.mxu0 0.0
    %2277 = vmatprep.subr.mxu0 0.0
    %2278 = vmatpush2.xpose.msra.mxu0 0.0
    %2279 = vmatprep.subr.mxu0 0.0
    %2280 = vmatpush2.xpose.msra.mxu0 0.0
    %2281 = vmatprep.subr.mxu0 0.0
    %2282 = vmatpush2.xpose.msra.mxu0 0.0
    %2283 = vmatprep.subr.mxu0 0.0
    %2284 = vmatpush2.xpose.msra.mxu0 0.0
    %2285 = vmatprep.subr.mxu0 0.0
    %2286 = vmatpush2.xpose.msra.mxu0 0.0
    %2287 = vmatprep.subr.mxu0 0.0
    %2288 = vmatpush2.xpose.msra.mxu0 0.0
    %2289 = vmatprep.mubr.f32.mxu0 0.0
    %2290 = vmatmul.mubr.f32.gmra.mxu0 %v2221
    %v2291 = vpop.f32.mrf.mxu0
    %v2292 = vadd.f32 0.0, %v2291
    %v2293 = vpop.f32.mrf.mxu0
    %2294 = vdwg.mxu0
    %2295 = vrot.lane.b32.xlu0 %v1647, 112
    %v2296 = vpop.permute.xlu0 %2295
    %2297 = vrot.lane.b32.xlu0 %v1726, 112
    %v2298 = vpop.permute.xlu0 %2297
    %v2299 = vsel %vm69, %v2296, 0
    %v2301 = vsel %vm69, %v2298, 0
    %2303 = vmatprep.subr.mxu0 0.0
    %2304 = vmatpush1.xpose.msra.mxu0 0.0
    %2305 = vmatprep.subr.mxu0 0.0
    %2306 = vmatpush1.xpose.msra.mxu0 0.0
    %2307 = vmatprep.subr.mxu0 0.0
    %2308 = vmatpush1.xpose.msra.mxu0 0.0
    %2309 = vmatprep.subr.mxu0 0.0
    %2310 = vmatpush1.xpose.msra.mxu0 0.0
    %2311 = vmatprep.subr.mxu0 0.0
    %2312 = vmatpush1.xpose.msra.mxu0 0.0
    %2313 = vmatprep.subr.mxu0 0.0
    %2314 = vmatpush1.xpose.msra.mxu0 0.0
    %2315 = vmatprep.subr.mxu0 0.0
    %2316 = vmatpush1.xpose.msra.mxu0 0.0
    %2317 = vmatprep.subr.mxu0 0.0
    %2318 = vmatpush1.xpose.msra.mxu0 0.0
    %2319 = vmatprep.subr.mxu0 0.0
    %2320 = vmatpush1.xpose.msra.mxu0 0.0
    %2321 = vmatprep.subr.mxu0 0.0
    %2322 = vmatpush1.xpose.msra.mxu0 0.0
    %2323 = vmatprep.subr.mxu0 0.0
    %2324 = vmatpush1.xpose.msra.mxu0 0.0
    %2325 = vmatprep.subr.mxu0 0.0
    %2326 = vmatpush1.xpose.msra.mxu0 0.0
    %2327 = vmatprep.subr.mxu0 0.0
    %2328 = vmatpush1.xpose.msra.mxu0 0.0
    %2329 = vmatprep.subr.mxu0 0.0
    %2330 = vmatpush1.xpose.msra.mxu0 0.0
    %2331 = vmatprep.subr.mxu0 0.0
    %2332 = vmatpush1.xpose.msra.mxu0 0.0
    %2333 = vmatprep.subr.mxu0 0.0
    %2334 = vmatpush1.xpose.msra.mxu0 %v2301
    %2335 = vmatprep.subr.mxu0 0.0
    %2336 = vmatpush2.xpose.msra.mxu0 0.0
    %2337 = vmatprep.subr.mxu0 0.0
    %2338 = vmatpush2.xpose.msra.mxu0 0.0
    %2339 = vmatprep.subr.mxu0 0.0
    %2340 = vmatpush2.xpose.msra.mxu0 0.0
    %2341 = vmatprep.subr.mxu0 0.0
    %2342 = vmatpush2.xpose.msra.mxu0 0.0
    %2343 = vmatprep.subr.mxu0 0.0
    %2344 = vmatpush2.xpose.msra.mxu0 0.0
    %2345 = vmatprep.subr.mxu0 0.0
    %2346 = vmatpush2.xpose.msra.mxu0 0.0
    %2347 = vmatprep.subr.mxu0 0.0
    %2348 = vmatpush2.xpose.msra.mxu0 0.0
    %2349 = vmatprep.subr.mxu0 0.0
    %2350 = vmatpush2.xpose.msra.mxu0 0.0
    %2351 = vmatprep.subr.mxu0 0.0
    %2352 = vmatpush2.xpose.msra.mxu0 0.0
    %2353 = vmatprep.subr.mxu0 0.0
    %2354 = vmatpush2.xpose.msra.mxu0 0.0
    %2355 = vmatprep.subr.mxu0 0.0
    %2356 = vmatpush2.xpose.msra.mxu0 0.0
    %2357 = vmatprep.subr.mxu0 0.0
    %2358 = vmatpush2.xpose.msra.mxu0 0.0
    %2359 = vmatprep.subr.mxu0 0.0
    %2360 = vmatpush2.xpose.msra.mxu0 0.0
    %2361 = vmatprep.subr.mxu0 0.0
    %2362 = vmatpush2.xpose.msra.mxu0 0.0
    %2363 = vmatprep.subr.mxu0 0.0
    %2364 = vmatpush2.xpose.msra.mxu0 0.0
    %2365 = vmatprep.subr.mxu0 0.0
    %2366 = vmatpush2.xpose.msra.mxu0 0.0
    %2367 = vmatprep.mubr.f32.mxu0 0.0
    %2368 = vmatmul.mubr.f32.gmra.mxu0 %v2299
    %v2369 = vpop.f32.mrf.mxu0
    %v2370 = vadd.f32 0.0, %v2369
    %v2371 = vpop.f32.mrf.mxu0
    %2372 = vdwg.mxu0
    %v2373 = vmul.f32 %v2292, 0.25
    %v2374 = vmul.f32 %v2370, 0.25
    %v2375 = vsel %vm607, %v2373, -inf
    %2376 = vmax.xlane.f32.xlu0 %v2375
    %v2377 = vpop.xlane.xlu0 %2376
    %v2378 = vsel %vm607, %v2374, -inf
    %2379 = vmax.xlane.f32.xlu0 %v2378
    %v2380 = vpop.xlane.xlu0 %2379
    %v2381 = vsub.f32 %v2373, %v2377
    %v2382 = vsub.f32 %v2374, %v2380
    %v2383 = vmul.f32 %v2381, 1.442695
    %v2384 = vpow.pop %v2383
    %v2385 = vmul.f32 %v2382, 1.442695
    %v2386 = vpow.pop %v2385
    %v2387 = vsel %vm607, %v2384, 0.0
    %2388 = vadd.xlane.f32.xlu0 %v2387
    %v2389 = vpop.xlane.xlu0 %2388
    %v2390 = vsel %vm607, %v2386, 0.0
    %2391 = vadd.xlane.f32.xlu0 %v2390
    %v2392 = vpop.xlane.xlu0 %2391
    %v2393 = vrcp.pop %v2389
    %v2394 = vmul.f32 %v2384, %v2393
    %v2395 = vrcp.pop %v2392
    %v2396 = vmul.f32 %v2386, %v2395
    %2398 = vrot.lane.b32.xlu0 %v1800, 112
    %v2399 = vpop.permute.xlu0 %2398
    %v2402 = vsel %vm607, %v2394, 0
    %2404 = vmatprep.subr.mxu0 0.0
    %2405 = vmatpush1.msra.mxu0 0.0
    %2406 = vmatprep.subr.mxu0 0.0
    %2407 = vmatpush1.msra.mxu0 0.0
    %2408 = vmatprep.subr.mxu0 0.0
    %2409 = vmatpush1.msra.mxu0 0.0
    %2410 = vmatprep.subr.mxu0 0.0
    %2411 = vmatpush1.msra.mxu0 0.0
    %2412 = vmatprep.subr.mxu0 0.0
    %2413 = vmatpush1.msra.mxu0 0.0
    %2414 = vmatprep.subr.mxu0 0.0
    %2415 = vmatpush1.msra.mxu0 0.0
    %2416 = vmatprep.subr.mxu0 0.0
    %2417 = vmatpush1.msra.mxu0 0.0
    %2418 = vmatprep.subr.mxu0 0.0
    %2419 = vmatpush1.msra.mxu0 0.0
    %2420 = vmatprep.subr.mxu0 0.0
    %2421 = vmatpush1.msra.mxu0 0.0
    %2422 = vmatprep.subr.mxu0 0.0
    %2423 = vmatpush1.msra.mxu0 0.0
    %2424 = vmatprep.subr.mxu0 0.0
    %2425 = vmatpush1.msra.mxu0 0.0
    %2426 = vmatprep.subr.mxu0 0.0
    %2427 = vmatpush1.msra.mxu0 0.0
    %2428 = vmatprep.subr.mxu0 0.0
    %2429 = vmatpush1.msra.mxu0 0.0
    %2430 = vmatprep.subr.mxu0 0.0
    %2431 = vmatpush1.msra.mxu0 0.0
    %2432 = vmatprep.subr.mxu0 0.0
    %2433 = vmatpush1.msra.mxu0 0.0
    %2434 = vmatprep.subr.mxu0 0.0
    %2435 = vmatpush1.msra.mxu0 %v2399
    %2436 = vmatprep.subr.mxu0 0.0
    %2437 = vmatpush2.msra.mxu0 0.0
    %2438 = vmatprep.subr.mxu0 0.0
    %2439 = vmatpush2.msra.mxu0 0.0
    %2440 = vmatprep.subr.mxu0 0.0
    %2441 = vmatpush2.msra.mxu0 0.0
    %2442 = vmatprep.subr.mxu0 0.0
    %2443 = vmatpush2.msra.mxu0 0.0
    %2444 = vmatprep.subr.mxu0 0.0
    %2445 = vmatpush2.msra.mxu0 0.0
    %2446 = vmatprep.subr.mxu0 0.0
    %2447 = vmatpush2.msra.mxu0 0.0
    %2448 = vmatprep.subr.mxu0 0.0
    %2449 = vmatpush2.msra.mxu0 0.0
    %2450 = vmatprep.subr.mxu0 0.0
    %2451 = vmatpush2.msra.mxu0 0.0
    %2452 = vmatprep.subr.mxu0 0.0
    %2453 = vmatpush2.msra.mxu0 0.0
    %2454 = vmatprep.subr.mxu0 0.0
    %2455 = vmatpush2.msra.mxu0 0.0
    %2456 = vmatprep.subr.mxu0 0.0
    %2457 = vmatpush2.msra.mxu0 0.0
    %2458 = vmatprep.subr.mxu0 0.0
    %2459 = vmatpush2.msra.mxu0 0.0
    %2460 = vmatprep.subr.mxu0 0.0
    %2461 = vmatpush2.msra.mxu0 0.0
    %2462 = vmatprep.subr.mxu0 0.0
    %2463 = vmatpush2.msra.mxu0 0.0
    %2464 = vmatprep.subr.mxu0 0.0
    %2465 = vmatpush2.msra.mxu0 0.0
    %2466 = vmatprep.subr.mxu0 0.0
    %2467 = vmatpush2.msra.mxu0 0.0
    %2468 = vmatprep.mubr.f32.mxu0 0.0
    %2469 = vmatmul.mubr.f32.gmra.mxu0 %v2402
    %v2470 = vpop.f32.mrf.mxu0
    %v2471 = vadd.f32 0.0, %v2470
    %v2472 = vpop.f32.mrf.mxu0
    %2473 = vdwg.mxu0
    %2475 = vrot.lane.b32.xlu0 %v1805, 112
    %v2476 = vpop.permute.xlu0 %2475
    %v2479 = vsel %vm607, %v2396, 0
    %2481 = vmatprep.subr.mxu0 0.0
    %2482 = vmatpush1.msra.mxu0 0.0
    %2483 = vmatprep.subr.mxu0 0.0
    %2484 = vmatpush1.msra.mxu0 0.0
    %2485 = vmatprep.subr.mxu0 0.0
    %2486 = vmatpush1.msra.mxu0 0.0
    %2487 = vmatprep.subr.mxu0 0.0
    %2488 = vmatpush1.msra.mxu0 0.0
    %2489 = vmatprep.subr.mxu0 0.0
    %2490 = vmatpush1.msra.mxu0 0.0
    %2491 = vmatprep.subr.mxu0 0.0
    %2492 = vmatpush1.msra.mxu0 0.0
    %2493 = vmatprep.subr.mxu0 0.0
    %2494 = vmatpush1.msra.mxu0 0.0
    %2495 = vmatprep.subr.mxu0 0.0
    %2496 = vmatpush1.msra.mxu0 0.0
    %2497 = vmatprep.subr.mxu0 0.0
    %2498 = vmatpush1.msra.mxu0 0.0
    %2499 = vmatprep.subr.mxu0 0.0
    %2500 = vmatpush1.msra.mxu0 0.0
    %2501 = vmatprep.subr.mxu0 0.0
    %2502 = vmatpush1.msra.mxu0 0.0
    %2503 = vmatprep.subr.mxu0 0.0
    %2504 = vmatpush1.msra.mxu0 0.0
    %2505 = vmatprep.subr.mxu0 0.0
    %2506 = vmatpush1.msra.mxu0 0.0
    %2507 = vmatprep.subr.mxu0 0.0
    %2508 = vmatpush1.msra.mxu0 0.0
    %2509 = vmatprep.subr.mxu0 0.0
    %2510 = vmatpush1.msra.mxu0 0.0
    %2511 = vmatprep.subr.mxu0 0.0
    %2512 = vmatpush1.msra.mxu0 %v2476
    %2513 = vmatprep.subr.mxu0 0.0
    %2514 = vmatpush2.msra.mxu0 0.0
    %2515 = vmatprep.subr.mxu0 0.0
    %2516 = vmatpush2.msra.mxu0 0.0
    %2517 = vmatprep.subr.mxu0 0.0
    %2518 = vmatpush2.msra.mxu0 0.0
    %2519 = vmatprep.subr.mxu0 0.0
    %2520 = vmatpush2.msra.mxu0 0.0
    %2521 = vmatprep.subr.mxu0 0.0
    %2522 = vmatpush2.msra.mxu0 0.0
    %2523 = vmatprep.subr.mxu0 0.0
    %2524 = vmatpush2.msra.mxu0 0.0
    %2525 = vmatprep.subr.mxu0 0.0
    %2526 = vmatpush2.msra.mxu0 0.0
    %2527 = vmatprep.subr.mxu0 0.0
    %2528 = vmatpush2.msra.mxu0 0.0
    %2529 = vmatprep.subr.mxu0 0.0
    %2530 = vmatpush2.msra.mxu0 0.0
    %2531 = vmatprep.subr.mxu0 0.0
    %2532 = vmatpush2.msra.mxu0 0.0
    %2533 = vmatprep.subr.mxu0 0.0
    %2534 = vmatpush2.msra.mxu0 0.0
    %2535 = vmatprep.subr.mxu0 0.0
    %2536 = vmatpush2.msra.mxu0 0.0
    %2537 = vmatprep.subr.mxu0 0.0
    %2538 = vmatpush2.msra.mxu0 0.0
    %2539 = vmatprep.subr.mxu0 0.0
    %2540 = vmatpush2.msra.mxu0 0.0
    %2541 = vmatprep.subr.mxu0 0.0
    %2542 = vmatpush2.msra.mxu0 0.0
    %2543 = vmatprep.subr.mxu0 0.0
    %2544 = vmatpush2.msra.mxu0 0.0
    %2545 = vmatprep.mubr.f32.mxu0 0.0
    %2546 = vmatmul.mubr.f32.gmra.mxu0 %v2479
    %v2547 = vpop.f32.mrf.mxu0
    %v2548 = vadd.f32 0.0, %v2547
    %v2549 = vpop.f32.mrf.mxu0
    %2550 = vdwg.mxu0
    %v2552 = vsel %vm69, %v2471, 0
    %v2555 = vsel %vm69, %v2548, 0
    %2557 = vmatprep.subr.mxu0 0.0
    %2558 = vmatpush1.msra.mxu0 0.0
    %2559 = vmatprep.subr.mxu0 0.0
    %2560 = vmatpush1.msra.mxu0 0.0
    %2561 = vmatprep.subr.mxu0 0.0
    %2562 = vmatpush1.msra.mxu0 0.0
    %2563 = vmatprep.subr.mxu0 0.0
    %2564 = vmatpush1.msra.mxu0 0.0
    %2565 = vmatprep.subr.mxu0 0.0
    %2566 = vmatpush1.msra.mxu0 0.0
    %2567 = vmatprep.subr.mxu0 0.0
    %2568 = vmatpush1.msra.mxu0 0.0
    %2569 = vmatprep.subr.mxu0 0.0
    %2570 = vmatpush1.msra.mxu0 0.0
    %2571 = vmatprep.subr.mxu0 0.0
    %2572 = vmatpush1.msra.mxu0 0.0
    %2573 = vmatprep.subr.mxu0 0.0
    %2574 = vmatpush1.msra.mxu0 0.0
    %2575 = vmatprep.subr.mxu0 0.0
    %2576 = vmatpush1.msra.mxu0 0.0
    %2577 = vmatprep.subr.mxu0 0.0
    %2578 = vmatpush1.msra.mxu0 0.0
    %2579 = vmatprep.subr.mxu0 0.0
    %2580 = vmatpush1.msra.mxu0 0.0
    %2581 = vmatprep.subr.mxu0 0.0
    %2582 = vmatpush1.msra.mxu0 0.0
    %2583 = vmatprep.subr.mxu0 0.0
    %2584 = vmatpush1.msra.mxu0 0.0
    %2585 = vmatprep.subr.mxu0 0.0
    %2586 = vmatpush1.msra.mxu0 %v1564
    %2587 = vmatprep.subr.mxu0 0.0
    %2588 = vmatpush1.msra.mxu0 %v1563
    %2589 = vmatprep.subr.mxu0 0.0
    %2590 = vmatpush2.msra.mxu0 0.0
    %2591 = vmatprep.subr.mxu0 0.0
    %2592 = vmatpush2.msra.mxu0 0.0
    %2593 = vmatprep.subr.mxu0 0.0
    %2594 = vmatpush2.msra.mxu0 0.0
    %2595 = vmatprep.subr.mxu0 0.0
    %2596 = vmatpush2.msra.mxu0 0.0
    %2597 = vmatprep.subr.mxu0 0.0
    %2598 = vmatpush2.msra.mxu0 0.0
    %2599 = vmatprep.subr.mxu0 0.0
    %2600 = vmatpush2.msra.mxu0 0.0
    %2601 = vmatprep.subr.mxu0 0.0
    %2602 = vmatpush2.msra.mxu0 0.0
    %2603 = vmatprep.subr.mxu0 0.0
    %2604 = vmatpush2.msra.mxu0 0.0
    %2605 = vmatprep.subr.mxu0 0.0
    %2606 = vmatpush2.msra.mxu0 0.0
    %2607 = vmatprep.subr.mxu0 0.0
    %2608 = vmatpush2.msra.mxu0 0.0
    %2609 = vmatprep.subr.mxu0 0.0
    %2610 = vmatpush2.msra.mxu0 0.0
    %2611 = vmatprep.subr.mxu0 0.0
    %2612 = vmatpush2.msra.mxu0 0.0
    %2613 = vmatprep.subr.mxu0 0.0
    %2614 = vmatpush2.msra.mxu0 0.0
    %2615 = vmatprep.subr.mxu0 0.0
    %2616 = vmatpush2.msra.mxu0 0.0
    %2617 = vmatprep.subr.mxu0 0.0
    %2618 = vmatpush2.msra.mxu0 0.0
    %2619 = vmatprep.subr.mxu0 0.0
    %2620 = vmatpush2.msra.mxu0 0.0
    %2621 = vmatprep.mubr.f32.mxu0 0.0
    %2622 = vmatmul.mubr.f32.gmra.mxu0 %v2552
    %v2623 = vpop.f32.mrf.mxu0
    %v2624 = vadd.f32 0.0, %v2623
    %v2625 = vpop.f32.mrf.mxu0
    %2626 = vmatprep.mubr.f32.mxu0 0.0
    %2627 = vmatmul.mubr.f32.gmra.mxu0 %v2555
    %v2628 = vpop.f32.mrf.mxu0
    %v2629 = vadd.f32 0.0, %v2628
    %v2630 = vpop.f32.mrf.mxu0
    %2631 = vdwg.mxu0
    %v2632 = vadd.f32 %v2215, %v2624
    %v2633 = vadd.f32 %v2216, %v2629
    %v2634 = vadd.f32 %v1505, %v2632
    %v2635 = vadd.f32 %v1506, %v2633
    %v2636 = vsel %vm151, %v2634, 0.0
    %2637 = vadd.xlane.f32.xlu0 %v2636
    %v2638 = vpop.xlane.xlu0 %2637
    %v2639 = vsel %vm151, %v2635, 0.0
    %2640 = vadd.xlane.f32.xlu0 %v2639
    %v2641 = vpop.xlane.xlu0 %2640
    %v2642 = vmul.f32 %v2638, %v158
    %v2643 = vmul.f32 %v2641, %v158
    %v2644 = vsub.f32 %v2634, %v2642
    %v2645 = vsub.f32 %v2635, %v2643
    %v2646 = vmul.f32 %v2644, %v2644
    %v2647 = vmul.f32 %v2645, %v2645
    %v2648 = vsel %vm151, %v2646, 0.0
    %2649 = vadd.xlane.f32.xlu0 %v2648
    %v2650 = vpop.xlane.xlu0 %2649
    %v2651 = vsel %vm151, %v2647, 0.0
    %2652 = vadd.xlane.f32.xlu0 %v2651
    %v2653 = vpop.xlane.xlu0 %2652
    %v2654 = vmul.f32 %v2650, %v158
    %v2655 = vmul.f32 %v2653, %v158
    %v2656 = vadd.f32 %v2654, 1e-05
    %v2657 = vadd.f32 %v2655, 1e-05
    %v2658 = vrsqrt.pop %v2656
    %v2659 = vrsqrt.pop %v2657
    %v2660 = vmul.f32 %v2644, %v2658
    %v2661 = vmul.f32 %v2645, %v2659
    %v2662 = vlaneseq
    %v2663 = vshrl.u32 %v2662, 7
    %v2664 = vsub.s32 3, %v2663
    %v2665 = vrot.slane %v56, %v2664
    %v2666 = vmul.f32 %v2660, %v2665
    %v2667 = vmul.f32 %v2661, %v2665
    %v2668 = vlaneseq
    %v2669 = vshrl.u32 %v2668, 7
    %v2670 = vsub.s32 7, %v2669
    %v2671 = vrot.slane %v56, %v2670
    %v2672 = vadd.f32 %v2666, %v2671
    %v2673 = vadd.f32 %v2667, %v2671
    %s2674 = scalar_lea.vmem %s6, 32
    %v2675 = vld [vmem:[%s2674] sm:$0xff]
    %v2676 = vld [vmem:[%s2674 + $0x8] sm:$0xff]
    %v2677 = vld [vmem:[%s2674 + $0x10] sm:$0xff]
    %v2678 = vld [vmem:[%s2674 + $0x18] sm:$0xff]
    %v2679 = vlaneseq
    %v2680 = vshrl.u32 %v2679, 7
    %v2681 = vsub.s32 1, %v2680
    %v2682 = vrot.slane %v62, %v2681
    %v2684 = vsel %vm151, %v2672, 0
    %v2687 = vsel %vm151, %v2673, 0
    %2689 = vmatprep.subr.mxu0 0.0
    %2690 = vmatpush1.msra.mxu0 0.0
    %2691 = vmatprep.subr.mxu0 0.0
    %2692 = vmatpush1.msra.mxu0 0.0
    %2693 = vmatprep.subr.mxu0 0.0
    %2694 = vmatpush1.msra.mxu0 0.0
    %2695 = vmatprep.subr.mxu0 0.0
    %2696 = vmatpush1.msra.mxu0 0.0
    %2697 = vmatprep.subr.mxu0 0.0
    %2698 = vmatpush1.msra.mxu0 0.0
    %2699 = vmatprep.subr.mxu0 0.0
    %2700 = vmatpush1.msra.mxu0 0.0
    %2701 = vmatprep.subr.mxu0 0.0
    %2702 = vmatpush1.msra.mxu0 0.0
    %2703 = vmatprep.subr.mxu0 0.0
    %2704 = vmatpush1.msra.mxu0 0.0
    %2705 = vmatprep.subr.mxu0 0.0
    %2706 = vmatpush1.msra.mxu0 0.0
    %2707 = vmatprep.subr.mxu0 0.0
    %2708 = vmatpush1.msra.mxu0 0.0
    %2709 = vmatprep.subr.mxu0 0.0
    %2710 = vmatpush1.msra.mxu0 0.0
    %2711 = vmatprep.subr.mxu0 0.0
    %2712 = vmatpush1.msra.mxu0 0.0
    %2713 = vmatprep.subr.mxu0 0.0
    %2714 = vmatpush1.msra.mxu0 %v2678
    %2715 = vmatprep.subr.mxu0 0.0
    %2716 = vmatpush1.msra.mxu0 %v2677
    %2717 = vmatprep.subr.mxu0 0.0
    %2718 = vmatpush1.msra.mxu0 %v2676
    %2719 = vmatprep.subr.mxu0 0.0
    %2720 = vmatpush1.msra.mxu0 %v2675
    %2721 = vmatprep.subr.mxu0 0.0
    %2722 = vmatpush2.msra.mxu0 0.0
    %2723 = vmatprep.subr.mxu0 0.0
    %2724 = vmatpush2.msra.mxu0 0.0
    %2725 = vmatprep.subr.mxu0 0.0
    %2726 = vmatpush2.msra.mxu0 0.0
    %2727 = vmatprep.subr.mxu0 0.0
    %2728 = vmatpush2.msra.mxu0 0.0
    %2729 = vmatprep.subr.mxu0 0.0
    %2730 = vmatpush2.msra.mxu0 0.0
    %2731 = vmatprep.subr.mxu0 0.0
    %2732 = vmatpush2.msra.mxu0 0.0
    %2733 = vmatprep.subr.mxu0 0.0
    %2734 = vmatpush2.msra.mxu0 0.0
    %2735 = vmatprep.subr.mxu0 0.0
    %2736 = vmatpush2.msra.mxu0 0.0
    %2737 = vmatprep.subr.mxu0 0.0
    %2738 = vmatpush2.msra.mxu0 0.0
    %2739 = vmatprep.subr.mxu0 0.0
    %2740 = vmatpush2.msra.mxu0 0.0
    %2741 = vmatprep.subr.mxu0 0.0
    %2742 = vmatpush2.msra.mxu0 0.0
    %2743 = vmatprep.subr.mxu0 0.0
    %2744 = vmatpush2.msra.mxu0 0.0
    %2745 = vmatprep.subr.mxu0 0.0
    %2746 = vmatpush2.msra.mxu0 0.0
    %2747 = vmatprep.subr.mxu0 0.0
    %2748 = vmatpush2.msra.mxu0 0.0
    %2749 = vmatprep.subr.mxu0 0.0
    %2750 = vmatpush2.msra.mxu0 0.0
    %2751 = vmatprep.subr.mxu0 0.0
    %2752 = vmatpush2.msra.mxu0 0.0
    %2753 = vmatprep.mubr.f32.mxu0 0.0
    %2754 = vmatmul.mubr.f32.gmra.mxu0 %v2684
    %v2755 = vpop.f32.mrf.mxu0
    %v2756 = vadd.f32 %v2682, %v2755
    %v2757 = vpop.f32.mrf.mxu0
    %2758 = vmatprep.mubr.f32.mxu0 0.0
    %2759 = vmatmul.mubr.f32.gmra.mxu0 %v2687
    %v2760 = vpop.f32.mrf.mxu0
    %v2761 = vadd.f32 %v2682, %v2760
    %v2762 = vpop.f32.mrf.mxu0
    %2763 = vdwg.mxu0
    %v2764 = vmax.f32 %v2756, 0.0
    %v2765 = vmax.f32 %v2761, 0.0
    %s2766 = scalar_lea.vmem %s7, 64
    %v2767 = vld [vmem:[%s2766] sm:$0xff]
    %v2768 = vld [vmem:[%s2766 + $0x8] sm:$0xff]
    %v2769 = vld [vmem:[%s2766 + $0x10] sm:$0xff]
    %v2770 = vld [vmem:[%s2766 + $0x18] sm:$0xff]
    %v2771 = vld [vmem:[%s2766 + $0x20] sm:$0xff]
    %v2772 = vld [vmem:[%s2766 + $0x28] sm:$0xff]
    %v2773 = vld [vmem:[%s2766 + $0x30] sm:$0xff]
    %v2774 = vld [vmem:[%s2766 + $0x38] sm:$0xff]
    %v2775 = vlaneseq
    %v2776 = vshrl.u32 %v2775, 7
    %v2777 = vsub.s32 1, %v2776
    %v2778 = vrot.slane %v57, %v2777
    %v2780 = vsel %vm1423, %v2764, 0
    %v2783 = vsel %vm1423, %v2765, 0
    %2785 = vmatprep.subr.mxu0 0.0
    %2786 = vmatpush1.msra.mxu0 0.0
    %2787 = vmatprep.subr.mxu0 0.0
    %2788 = vmatpush1.msra.mxu0 0.0
    %2789 = vmatprep.subr.mxu0 0.0
    %2790 = vmatpush1.msra.mxu0 0.0
    %2791 = vmatprep.subr.mxu0 0.0
    %2792 = vmatpush1.msra.mxu0 0.0
    %2793 = vmatprep.subr.mxu0 0.0
    %2794 = vmatpush1.msra.mxu0 0.0
    %2795 = vmatprep.subr.mxu0 0.0
    %2796 = vmatpush1.msra.mxu0 0.0
    %2797 = vmatprep.subr.mxu0 0.0
    %2798 = vmatpush1.msra.mxu0 0.0
    %2799 = vmatprep.subr.mxu0 0.0
    %2800 = vmatpush1.msra.mxu0 0.0
    %2801 = vmatprep.subr.mxu0 0.0
    %2802 = vmatpush1.msra.mxu0 %v2774
    %2803 = vmatprep.subr.mxu0 0.0
    %2804 = vmatpush1.msra.mxu0 %v2773
    %2805 = vmatprep.subr.mxu0 0.0
    %2806 = vmatpush1.msra.mxu0 %v2772
    %2807 = vmatprep.subr.mxu0 0.0
    %2808 = vmatpush1.msra.mxu0 %v2771
    %2809 = vmatprep.subr.mxu0 0.0
    %2810 = vmatpush1.msra.mxu0 %v2770
    %2811 = vmatprep.subr.mxu0 0.0
    %2812 = vmatpush1.msra.mxu0 %v2769
    %2813 = vmatprep.subr.mxu0 0.0
    %2814 = vmatpush1.msra.mxu0 %v2768
    %2815 = vmatprep.subr.mxu0 0.0
    %2816 = vmatpush1.msra.mxu0 %v2767
    %2817 = vmatprep.subr.mxu0 0.0
    %2818 = vmatpush2.msra.mxu0 0.0
    %2819 = vmatprep.subr.mxu0 0.0
    %2820 = vmatpush2.msra.mxu0 0.0
    %2821 = vmatprep.subr.mxu0 0.0
    %2822 = vmatpush2.msra.mxu0 0.0
    %2823 = vmatprep.subr.mxu0 0.0
    %2824 = vmatpush2.msra.mxu0 0.0
    %2825 = vmatprep.subr.mxu0 0.0
    %2826 = vmatpush2.msra.mxu0 0.0
    %2827 = vmatprep.subr.mxu0 0.0
    %2828 = vmatpush2.msra.mxu0 0.0
    %2829 = vmatprep.subr.mxu0 0.0
    %2830 = vmatpush2.msra.mxu0 0.0
    %2831 = vmatprep.subr.mxu0 0.0
    %2832 = vmatpush2.msra.mxu0 0.0
    %2833 = vmatprep.subr.mxu0 0.0
    %2834 = vmatpush2.msra.mxu0 0.0
    %2835 = vmatprep.subr.mxu0 0.0
    %2836 = vmatpush2.msra.mxu0 0.0
    %2837 = vmatprep.subr.mxu0 0.0
    %2838 = vmatpush2.msra.mxu0 0.0
    %2839 = vmatprep.subr.mxu0 0.0
    %2840 = vmatpush2.msra.mxu0 0.0
    %2841 = vmatprep.subr.mxu0 0.0
    %2842 = vmatpush2.msra.mxu0 0.0
    %2843 = vmatprep.subr.mxu0 0.0
    %2844 = vmatpush2.msra.mxu0 0.0
    %2845 = vmatprep.subr.mxu0 0.0
    %2846 = vmatpush2.msra.mxu0 0.0
    %2847 = vmatprep.subr.mxu0 0.0
    %2848 = vmatpush2.msra.mxu0 0.0
    %2849 = vmatprep.mubr.f32.mxu0 0.0
    %2850 = vmatmul.mubr.f32.gmra.mxu0 %v2780
    %v2851 = vpop.f32.mrf.mxu0
    %v2852 = vadd.f32 %v2778, %v2851
    %v2853 = vpop.f32.mrf.mxu0
    %2854 = vmatprep.mubr.f32.mxu0 0.0
    %2855 = vmatmul.mubr.f32.gmra.mxu0 %v2783
    %v2856 = vpop.f32.mrf.mxu0
    %v2857 = vadd.f32 %v2778, %v2856
    %v2858 = vpop.f32.mrf.mxu0
    %2859 = vdwg.mxu0
    %v2860 = vadd.f32 %v2634, %v2852
    %v2861 = vadd.f32 %v2635, %v2857
    %v2862 = vsel %vm151, %v2860, 0.0
    %2863 = vadd.xlane.f32.xlu0 %v2862
    %v2864 = vpop.xlane.xlu0 %2863
    %v2865 = vsel %vm151, %v2861, 0.0
    %2866 = vadd.xlane.f32.xlu0 %v2865
    %v2867 = vpop.xlane.xlu0 %2866
    %v2868 = vmul.f32 %v2864, %v158
    %v2869 = vmul.f32 %v2867, %v158
    %v2870 = vsub.f32 %v2860, %v2868
    %v2871 = vsub.f32 %v2861, %v2869
    %v2872 = vmul.f32 %v2870, %v2870
    %v2873 = vmul.f32 %v2871, %v2871
    %v2874 = vsel %vm151, %v2872, 0.0
    %2875 = vadd.xlane.f32.xlu0 %v2874
    %v2876 = vpop.xlane.xlu0 %2875
    %v2877 = vsel %vm151, %v2873, 0.0
    %2878 = vadd.xlane.f32.xlu0 %v2877
    %v2879 = vpop.xlane.xlu0 %2878
    %v2880 = vmul.f32 %v2876, %v158
    %v2881 = vmul.f32 %v2879, %v158
    %v2882 = vadd.f32 %v2880, 1e-05
    %v2883 = vadd.f32 %v2881, 1e-05
    %v2884 = vrsqrt.pop %v2882
    %v2885 = vrsqrt.pop %v2883
    %v2886 = vmul.f32 %v2870, %v2884
    %v2887 = vmul.f32 %v2871, %v2885
    %v2888 = vlaneseq
    %v2889 = vshrl.u32 %v2888, 7
    %v2890 = vsub.s32 2, %v2889
    %v2891 = vrot.slane %v57, %v2890
    %v2892 = vmul.f32 %v2886, %v2891
    %v2893 = vmul.f32 %v2887, %v2891
    %v2894 = vlaneseq
    %v2895 = vshrl.u32 %v2894, 7
    %v2896 = vsub.s32 3, %v2895
    %v2897 = vrot.slane %v57, %v2896
    %v2898 = vadd.f32 %v2892, %v2897
    %v2899 = vadd.f32 %v2893, %v2897
    %v2900 = vlaneseq
    %v2901 = vshrl.u32 %v2900, 7
    %v2902 = vsub.s32 0, %v2901
    %v2903 = vrot.slane %v61, %v2902
    %v2904 = vsel %vm151, %v2903, 0.0
    %2905 = vadd.xlane.f32.xlu0 %v2904
    %v2906 = vpop.xlane.xlu0 %2905
    %v2907 = vmul.f32 %v2906, %v158
    %v2908 = vsub.f32 %v2903, %v2907
    %v2909 = vmul.f32 %v2908, %v2908
    %v2910 = vsel %vm151, %v2909, 0.0
    %2911 = vadd.xlane.f32.xlu0 %v2910
    %v2912 = vpop.xlane.xlu0 %2911
    %v2913 = vmul.f32 %v2912, %v158
    %v2914 = vadd.f32 %v2913, 1e-05
    %v2915 = vrsqrt.pop %v2914
    %v2916 = vmul.f32 %v2908, %v2915
    %v2917 = vlaneseq
    %v2918 = vshrl.u32 %v2917, 7
    %v2919 = vsub.s32 0, %v2918
    %v2920 = vrot.slane %v59, %v2919
    %v2921 = vmul.f32 %v2916, %v2920
    %v2922 = vlaneseq
    %v2923 = vshrl.u32 %v2922, 7
    %v2924 = vsub.s32 6, %v2923
    %v2925 = vrot.slane %v59, %v2924
    %v2926 = vadd.f32 %v2921, %v2925
    %v2927 = vld [vmem:[%s8] sm:$0xff]
    %v2928 = vld [vmem:[%s8 + $0x8] sm:$0xff]
    %v2929 = vld [vmem:[%s8 + $0x10] sm:$0xff]
    %v2930 = vld [vmem:[%s8 + $0x18] sm:$0xff]
    %v2931 = vlaneseq
    %v2932 = vshrl.u32 %v2931, 7
    %v2933 = vsub.s32 4, %v2932
    %v2934 = vrot.slane %v57, %v2933
    %v2936 = vsel %vm151, %v2926, 0
    %2938 = vmatprep.subr.mxu0 0.0
    %2939 = vmatpush1.msra.mxu0 0.0
    %2940 = vmatprep.subr.mxu0 0.0
    %2941 = vmatpush1.msra.mxu0 0.0
    %2942 = vmatprep.subr.mxu0 0.0
    %2943 = vmatpush1.msra.mxu0 0.0
    %2944 = vmatprep.subr.mxu0 0.0
    %2945 = vmatpush1.msra.mxu0 0.0
    %2946 = vmatprep.subr.mxu0 0.0
    %2947 = vmatpush1.msra.mxu0 0.0
    %2948 = vmatprep.subr.mxu0 0.0
    %2949 = vmatpush1.msra.mxu0 0.0
    %2950 = vmatprep.subr.mxu0 0.0
    %2951 = vmatpush1.msra.mxu0 0.0
    %2952 = vmatprep.subr.mxu0 0.0
    %2953 = vmatpush1.msra.mxu0 0.0
    %2954 = vmatprep.subr.mxu0 0.0
    %2955 = vmatpush1.msra.mxu0 0.0
    %2956 = vmatprep.subr.mxu0 0.0
    %2957 = vmatpush1.msra.mxu0 0.0
    %2958 = vmatprep.subr.mxu0 0.0
    %2959 = vmatpush1.msra.mxu0 0.0
    %2960 = vmatprep.subr.mxu0 0.0
    %2961 = vmatpush1.msra.mxu0 0.0
    %2962 = vmatprep.subr.mxu0 0.0
    %2963 = vmatpush1.msra.mxu0 %v2930
    %2964 = vmatprep.subr.mxu0 0.0
    %2965 = vmatpush1.msra.mxu0 %v2929
    %2966 = vmatprep.subr.mxu0 0.0
    %2967 = vmatpush1.msra.mxu0 %v2928
    %2968 = vmatprep.subr.mxu0 0.0
    %2969 = vmatpush1.msra.mxu0 %v2927
    %2970 = vmatprep.subr.mxu0 0.0
    %2971 = vmatpush2.msra.mxu0 0.0
    %2972 = vmatprep.subr.mxu0 0.0
    %2973 = vmatpush2.msra.mxu0 0.0
    %2974 = vmatprep.subr.mxu0 0.0
    %2975 = vmatpush2.msra.mxu0 0.0
    %2976 = vmatprep.subr.mxu0 0.0
    %2977 = vmatpush2.msra.mxu0 0.0
    %2978 = vmatprep.subr.mxu0 0.0
    %2979 = vmatpush2.msra.mxu0 0.0
    %2980 = vmatprep.subr.mxu0 0.0
    %2981 = vmatpush2.msra.mxu0 0.0
    %2982 = vmatprep.subr.mxu0 0.0
    %2983 = vmatpush2.msra.mxu0 0.0
    %2984 = vmatprep.subr.mxu0 0.0
    %2985 = vmatpush2.msra.mxu0 0.0
    %2986 = vmatprep.subr.mxu0 0.0
    %2987 = vmatpush2.msra.mxu0 0.0
    %2988 = vmatprep.subr.mxu0 0.0
    %2989 = vmatpush2.msra.mxu0 0.0
    %2990 = vmatprep.subr.mxu0 0.0
    %2991 = vmatpush2.msra.mxu0 0.0
    %2992 = vmatprep.subr.mxu0 0.0
    %2993 = vmatpush2.msra.mxu0 0.0
    %2994 = vmatprep.subr.mxu0 0.0
    %2995 = vmatpush2.msra.mxu0 0.0
    %2996 = vmatprep.subr.mxu0 0.0
    %2997 = vmatpush2.msra.mxu0 0.0
    %2998 = vmatprep.subr.mxu0 0.0
    %2999 = vmatpush2.msra.mxu0 0.0
    %3000 = vmatprep.subr.mxu0 0.0
    %3001 = vmatpush2.msra.mxu0 0.0
    %3002 = vmatprep.mubr.f32.mxu0 0.0
    %3003 = vmatmul.mubr.f32.gmra.mxu0 %v2936
    %v3004 = vpop.f32.mrf.mxu0
    %v3005 = vadd.f32 %v2934, %v3004
    %v3006 = vpop.f32.mrf.mxu0
    %3007 = vdwg.mxu0
    %s3008 = scalar_lea.vmem %s8, 32
    %v3009 = vld [vmem:[%s3008] sm:$0xff]
    %v3010 = vld [vmem:[%s3008 + $0x8] sm:$0xff]
    %v3011 = vld [vmem:[%s3008 + $0x10] sm:$0xff]
    %v3012 = vld [vmem:[%s3008 + $0x18] sm:$0xff]
    %v3013 = vlaneseq
    %v3014 = vshrl.u32 %v3013, 7
    %v3015 = vsub.s32 5, %v3014
    %v3016 = vrot.slane %v57, %v3015
    %v3018 = vsel %vm151, %v3005, 0
    %3020 = vmatprep.subr.mxu0 0.0
    %3021 = vmatpush1.msra.mxu0 0.0
    %3022 = vmatprep.subr.mxu0 0.0
    %3023 = vmatpush1.msra.mxu0 0.0
    %3024 = vmatprep.subr.mxu0 0.0
    %3025 = vmatpush1.msra.mxu0 0.0
    %3026 = vmatprep.subr.mxu0 0.0
    %3027 = vmatpush1.msra.mxu0 0.0
    %3028 = vmatprep.subr.mxu0 0.0
    %3029 = vmatpush1.msra.mxu0 0.0
    %3030 = vmatprep.subr.mxu0 0.0
    %3031 = vmatpush1.msra.mxu0 0.0
    %3032 = vmatprep.subr.mxu0 0.0
    %3033 = vmatpush1.msra.mxu0 0.0
    %3034 = vmatprep.subr.mxu0 0.0
    %3035 = vmatpush1.msra.mxu0 0.0
    %3036 = vmatprep.subr.mxu0 0.0
    %3037 = vmatpush1.msra.mxu0 0.0
    %3038 = vmatprep.subr.mxu0 0.0
    %3039 = vmatpush1.msra.mxu0 0.0
    %3040 = vmatprep.subr.mxu0 0.0
    %3041 = vmatpush1.msra.mxu0 0.0
    %3042 = vmatprep.subr.mxu0 0.0
    %3043 = vmatpush1.msra.mxu0 0.0
    %3044 = vmatprep.subr.mxu0 0.0
    %3045 = vmatpush1.msra.mxu0 %v3012
    %3046 = vmatprep.subr.mxu0 0.0
    %3047 = vmatpush1.msra.mxu0 %v3011
    %3048 = vmatprep.subr.mxu0 0.0
    %3049 = vmatpush1.msra.mxu0 %v3010
    %3050 = vmatprep.subr.mxu0 0.0
    %3051 = vmatpush1.msra.mxu0 %v3009
    %3052 = vmatprep.subr.mxu0 0.0
    %3053 = vmatpush2.msra.mxu0 0.0
    %3054 = vmatprep.subr.mxu0 0.0
    %3055 = vmatpush2.msra.mxu0 0.0
    %3056 = vmatprep.subr.mxu0 0.0
    %3057 = vmatpush2.msra.mxu0 0.0
    %3058 = vmatprep.subr.mxu0 0.0
    %3059 = vmatpush2.msra.mxu0 0.0
    %3060 = vmatprep.subr.mxu0 0.0
    %3061 = vmatpush2.msra.mxu0 0.0
    %3062 = vmatprep.subr.mxu0 0.0
    %3063 = vmatpush2.msra.mxu0 0.0
    %3064 = vmatprep.subr.mxu0 0.0
    %3065 = vmatpush2.msra.mxu0 0.0
    %3066 = vmatprep.subr.mxu0 0.0
    %3067 = vmatpush2.msra.mxu0 0.0
    %3068 = vmatprep.subr.mxu0 0.0
    %3069 = vmatpush2.msra.mxu0 0.0
    %3070 = vmatprep.subr.mxu0 0.0
    %3071 = vmatpush2.msra.mxu0 0.0
    %3072 = vmatprep.subr.mxu0 0.0
    %3073 = vmatpush2.msra.mxu0 0.0
    %3074 = vmatprep.subr.mxu0 0.0
    %3075 = vmatpush2.msra.mxu0 0.0
    %3076 = vmatprep.subr.mxu0 0.0
    %3077 = vmatpush2.msra.mxu0 0.0
    %3078 = vmatprep.subr.mxu0 0.0
    %3079 = vmatpush2.msra.mxu0 0.0
    %3080 = vmatprep.subr.mxu0 0.0
    %3081 = vmatpush2.msra.mxu0 0.0
    %3082 = vmatprep.subr.mxu0 0.0
    %3083 = vmatpush2.msra.mxu0 0.0
    %3084 = vmatprep.mubr.f32.mxu0 0.0
    %3085 = vmatmul.mubr.f32.gmra.mxu0 %v3018
    %v3086 = vpop.f32.mrf.mxu0
    %v3087 = vadd.f32 %v3016, %v3086
    %v3088 = vpop.f32.mrf.mxu0
    %3089 = vdwg.mxu0
    %v3090 = vadd.f32 %v2903, %v3087
    %vm3091 = vcmask 254976
    %v3092 = vsel %vm3091, %v3090, 0.0
    %3093 = vadd.xlane.f32.xlu0 %v3092
    %v3094 = vpop.xlane.xlu0 %3093
    %v3095 = vmul.f32 %v3094, %v158
    %v3096 = vsub.f32 %v3090, %v3095
    %v3097 = vmul.f32 %v3096, %v3096
    %v3098 = vsel %vm3091, %v3097, 0.0
    %3099 = vadd.xlane.f32.xlu0 %v3098
    %v3100 = vpop.xlane.xlu0 %3099
    %v3101 = vmul.f32 %v3100, %v158
    %v3102 = vadd.f32 %v3101, 1e-05
    %v3103 = vrsqrt.pop %v3102
    %v3104 = vmul.f32 %v3096, %v3103
    %v3105 = vlaneseq
    %v3106 = vshrl.u32 %v3105, 7
    %v3107 = vsub.s32 1, %v3106
    %v3108 = vrot.slane %v59, %v3107
    %v3109 = vmul.f32 %v3104, %v3108
    %v3110 = vlaneseq
    %v3111 = vshrl.u32 %v3110, 7
    %v3112 = vsub.s32 7, %v3111
    %v3113 = vrot.slane %v59, %v3112
    %v3114 = vadd.f32 %v3109, %v3113
    %v3115 = vld [vmem:[%s9] sm:$0xff]
    %v3116 = vld [vmem:[%s9 + $0x8] sm:$0xff]
    %v3117 = vld [vmem:[%s9 + $0x10] sm:$0xff]
    %v3118 = vld [vmem:[%s9 + $0x18] sm:$0xff]
    %s3119 = scalar_lea.vmem %s9, 32
    %v3120 = vld [vmem:[%s3119] sm:$0xff]
    %v3121 = vld [vmem:[%s3119 + $0x8] sm:$0xff]
    %v3122 = vld [vmem:[%s3119 + $0x10] sm:$0xff]
    %v3123 = vld [vmem:[%s3119 + $0x18] sm:$0xff]
    %s3124 = scalar_lea.vmem %s9, 64
    %v3125 = vld [vmem:[%s3124] sm:$0xff]
    %v3126 = vld [vmem:[%s3124 + $0x8] sm:$0xff]
    %v3127 = vld [vmem:[%s3124 + $0x10] sm:$0xff]
    %v3128 = vld [vmem:[%s3124 + $0x18] sm:$0xff]
    %s3129 = scalar_lea.vmem %s9, 96
    %v3130 = vld [vmem:[%s3129] sm:$0xff]
    %v3131 = vld [vmem:[%s3129 + $0x8] sm:$0xff]
    %v3132 = vld [vmem:[%s3129 + $0x10] sm:$0xff]
    %v3133 = vld [vmem:[%s3129 + $0x18] sm:$0xff]
    %v3134 = vlaneseq
    %v3135 = vshrl.u32 %v3134, 7
    %v3136 = vsub.s32 0, %v3135
    %v3137 = vrot.slane %v58, %v3136
    %v3139 = vsel %vm151, %v3114, 0
    %3141 = vmatprep.subr.mxu0 0.0
    %3142 = vmatpush1.msra.mxu0 0.0
    %3143 = vmatprep.subr.mxu0 0.0
    %3144 = vmatpush1.msra.mxu0 0.0
    %3145 = vmatprep.subr.mxu0 0.0
    %3146 = vmatpush1.msra.mxu0 0.0
    %3147 = vmatprep.subr.mxu0 0.0
    %3148 = vmatpush1.msra.mxu0 0.0
    %3149 = vmatprep.subr.mxu0 0.0
    %3150 = vmatpush1.msra.mxu0 0.0
    %3151 = vmatprep.subr.mxu0 0.0
    %3152 = vmatpush1.msra.mxu0 0.0
    %3153 = vmatprep.subr.mxu0 0.0
    %3154 = vmatpush1.msra.mxu0 0.0
    %3155 = vmatprep.subr.mxu0 0.0
    %3156 = vmatpush1.msra.mxu0 0.0
    %3157 = vmatprep.subr.mxu0 0.0
    %3158 = vmatpush1.msra.mxu0 0.0
    %3159 = vmatprep.subr.mxu0 0.0
    %3160 = vmatpush1.msra.mxu0 0.0
    %3161 = vmatprep.subr.mxu0 0.0
    %3162 = vmatpush1.msra.mxu0 0.0
    %3163 = vmatprep.subr.mxu0 0.0
    %3164 = vmatpush1.msra.mxu0 0.0
    %3165 = vmatprep.subr.mxu0 0.0
    %3166 = vmatpush1.msra.mxu0 %v3118
    %3167 = vmatprep.subr.mxu0 0.0
    %3168 = vmatpush1.msra.mxu0 %v3117
    %3169 = vmatprep.subr.mxu0 0.0
    %3170 = vmatpush1.msra.mxu0 %v3116
    %3171 = vmatprep.subr.mxu0 0.0
    %3172 = vmatpush1.msra.mxu0 %v3115
    %3173 = vmatprep.subr.mxu0 0.0
    %3174 = vmatpush2.msra.mxu0 0.0
    %3175 = vmatprep.subr.mxu0 0.0
    %3176 = vmatpush2.msra.mxu0 0.0
    %3177 = vmatprep.subr.mxu0 0.0
    %3178 = vmatpush2.msra.mxu0 0.0
    %3179 = vmatprep.subr.mxu0 0.0
    %3180 = vmatpush2.msra.mxu0 0.0
    %3181 = vmatprep.subr.mxu0 0.0
    %3182 = vmatpush2.msra.mxu0 0.0
    %3183 = vmatprep.subr.mxu0 0.0
    %3184 = vmatpush2.msra.mxu0 0.0
    %3185 = vmatprep.subr.mxu0 0.0
    %3186 = vmatpush2.msra.mxu0 0.0
    %3187 = vmatprep.subr.mxu0 0.0
    %3188 = vmatpush2.msra.mxu0 0.0
    %3189 = vmatprep.subr.mxu0 0.0
    %3190 = vmatpush2.msra.mxu0 0.0
    %3191 = vmatprep.subr.mxu0 0.0
    %3192 = vmatpush2.msra.mxu0 0.0
    %3193 = vmatprep.subr.mxu0 0.0
    %3194 = vmatpush2.msra.mxu0 0.0
    %3195 = vmatprep.subr.mxu0 0.0
    %3196 = vmatpush2.msra.mxu0 0.0
    %3197 = vmatprep.subr.mxu0 0.0
    %3198 = vmatpush2.msra.mxu0 0.0
    %3199 = vmatprep.subr.mxu0 0.0
    %3200 = vmatpush2.msra.mxu0 0.0
    %3201 = vmatprep.subr.mxu0 0.0
    %3202 = vmatpush2.msra.mxu0 0.0
    %3203 = vmatprep.subr.mxu0 0.0
    %3204 = vmatpush2.msra.mxu0 0.0
    %3205 = vmatprep.mubr.f32.mxu0 0.0
    %3206 = vmatmul.mubr.f32.gmra.mxu0 %v3139
    %v3207 = vpop.f32.mrf.mxu0
    %v3208 = vadd.f32 %v3137, %v3207
    %v3209 = vpop.f32.mrf.mxu0
    %3210 = vdwg.mxu0
    %v3211 = vlaneseq
    %v3212 = vshrl.u32 %v3211, 7
    %v3213 = vsub.s32 1, %v3212
    %v3214 = vrot.slane %v58, %v3213
    %v3216 = vsel %vm151, %v2898, 0
    %v3219 = vsel %vm151, %v2899, 0
    %3221 = vmatprep.subr.mxu0 0.0
    %3222 = vmatpush1.msra.mxu0 0.0
    %3223 = vmatprep.subr.mxu0 0.0
    %3224 = vmatpush1.msra.mxu0 0.0
    %3225 = vmatprep.subr.mxu0 0.0
    %3226 = vmatpush1.msra.mxu0 0.0
    %3227 = vmatprep.subr.mxu0 0.0
    %3228 = vmatpush1.msra.mxu0 0.0
    %3229 = vmatprep.subr.mxu0 0.0
    %3230 = vmatpush1.msra.mxu0 0.0
    %3231 = vmatprep.subr.mxu0 0.0
    %3232 = vmatpush1.msra.mxu0 0.0
    %3233 = vmatprep.subr.mxu0 0.0
    %3234 = vmatpush1.msra.mxu0 0.0
    %3235 = vmatprep.subr.mxu0 0.0
    %3236 = vmatpush1.msra.mxu0 0.0
    %3237 = vmatprep.subr.mxu0 0.0
    %3238 = vmatpush1.msra.mxu0 0.0
    %3239 = vmatprep.subr.mxu0 0.0
    %3240 = vmatpush1.msra.mxu0 0.0
    %3241 = vmatprep.subr.mxu0 0.0
    %3242 = vmatpush1.msra.mxu0 0.0
    %3243 = vmatprep.subr.mxu0 0.0
    %3244 = vmatpush1.msra.mxu0 0.0
    %3245 = vmatprep.subr.mxu0 0.0
    %3246 = vmatpush1.msra.mxu0 %v3123
    %3247 = vmatprep.subr.mxu0 0.0
    %3248 = vmatpush1.msra.mxu0 %v3122
    %3249 = vmatprep.subr.mxu0 0.0
    %3250 = vmatpush1.msra.mxu0 %v3121
    %3251 = vmatprep.subr.mxu0 0.0
    %3252 = vmatpush1.msra.mxu0 %v3120
    %3253 = vmatprep.subr.mxu0 0.0
    %3254 = vmatpush2.msra.mxu0 0.0
    %3255 = vmatprep.subr.mxu0 0.0
    %3256 = vmatpush2.msra.mxu0 0.0
    %3257 = vmatprep.subr.mxu0 0.0
    %3258 = vmatpush2.msra.mxu0 0.0
    %3259 = vmatprep.subr.mxu0 0.0
    %3260 = vmatpush2.msra.mxu0 0.0
    %3261 = vmatprep.subr.mxu0 0.0
    %3262 = vmatpush2.msra.mxu0 0.0
    %3263 = vmatprep.subr.mxu0 0.0
    %3264 = vmatpush2.msra.mxu0 0.0
    %3265 = vmatprep.subr.mxu0 0.0
    %3266 = vmatpush2.msra.mxu0 0.0
    %3267 = vmatprep.subr.mxu0 0.0
    %3268 = vmatpush2.msra.mxu0 0.0
    %3269 = vmatprep.subr.mxu0 0.0
    %3270 = vmatpush2.msra.mxu0 0.0
    %3271 = vmatprep.subr.mxu0 0.0
    %3272 = vmatpush2.msra.mxu0 0.0
    %3273 = vmatprep.subr.mxu0 0.0
    %3274 = vmatpush2.msra.mxu0 0.0
    %3275 = vmatprep.subr.mxu0 0.0
    %3276 = vmatpush2.msra.mxu0 0.0
    %3277 = vmatprep.subr.mxu0 0.0
    %3278 = vmatpush2.msra.mxu0 0.0
    %3279 = vmatprep.subr.mxu0 0.0
    %3280 = vmatpush2.msra.mxu0 0.0
    %3281 = vmatprep.subr.mxu0 0.0
    %3282 = vmatpush2.msra.mxu0 0.0
    %3283 = vmatprep.subr.mxu0 0.0
    %3284 = vmatpush2.msra.mxu0 0.0
    %3285 = vmatprep.mubr.f32.mxu0 0.0
    %3286 = vmatmul.mubr.f32.gmra.mxu0 %v3216
    %v3287 = vpop.f32.mrf.mxu0
    %v3288 = vadd.f32 %v3214, %v3287
    %v3289 = vpop.f32.mrf.mxu0
    %3290 = vmatprep.mubr.f32.mxu0 0.0
    %3291 = vmatmul.mubr.f32.gmra.mxu0 %v3219
    %v3292 = vpop.f32.mrf.mxu0
    %v3293 = vadd.f32 %v3214, %v3292
    %v3294 = vpop.f32.mrf.mxu0
    %3295 = vdwg.mxu0
    %v3296 = vlaneseq
    %v3297 = vshrl.u32 %v3296, 7
    %v3298 = vsub.s32 2, %v3297
    %v3299 = vrot.slane %v58, %v3298
    %3300 = vmatprep.subr.mxu0 0.0
    %3301 = vmatpush1.msra.mxu0 0.0
    %3302 = vmatprep.subr.mxu0 0.0
    %3303 = vmatpush1.msra.mxu0 0.0
    %3304 = vmatprep.subr.mxu0 0.0
    %3305 = vmatpush1.msra.mxu0 0.0
    %3306 = vmatprep.subr.mxu0 0.0
    %3307 = vmatpush1.msra.mxu0 0.0
    %3308 = vmatprep.subr.mxu0 0.0
    %3309 = vmatpush1.msra.mxu0 0.0
    %3310 = vmatprep.subr.mxu0 0.0
    %3311 = vmatpush1.msra.mxu0 0.0
    %3312 = vmatprep.subr.mxu0 0.0
    %3313 = vmatpush1.msra.mxu0 0.0
    %3314 = vmatprep.subr.mxu0 0.0
    %3315 = vmatpush1.msra.mxu0 0.0
    %3316 = vmatprep.subr.mxu0 0.0
    %3317 = vmatpush1.msra.mxu0 0.0
    %3318 = vmatprep.subr.mxu0 0.0
    %3319 = vmatpush1.msra.mxu0 0.0
    %3320 = vmatprep.subr.mxu0 0.0
    %3321 = vmatpush1.msra.mxu0 0.0
    %3322 = vmatprep.subr.mxu0 0.0
    %3323 = vmatpush1.msra.mxu0 0.0
    %3324 = vmatprep.subr.mxu0 0.0
    %3325 = vmatpush1.msra.mxu0 %v3128
    %3326 = vmatprep.subr.mxu0 0.0
    %3327 = vmatpush1.msra.mxu0 %v3127
    %3328 = vmatprep.subr.mxu0 0.0
    %3329 = vmatpush1.msra.mxu0 %v3126
    %3330 = vmatprep.subr.mxu0 0.0
    %3331 = vmatpush1.msra.mxu0 %v3125
    %3332 = vmatprep.subr.mxu0 0.0
    %3333 = vmatpush2.msra.mxu0 0.0
    %3334 = vmatprep.subr.mxu0 0.0
    %3335 = vmatpush2.msra.mxu0 0.0
    %3336 = vmatprep.subr.mxu0 0.0
    %3337 = vmatpush2.msra.mxu0 0.0
    %3338 = vmatprep.subr.mxu0 0.0
    %3339 = vmatpush2.msra.mxu0 0.0
    %3340 = vmatprep.subr.mxu0 0.0
    %3341 = vmatpush2.msra.mxu0 0.0
    %3342 = vmatprep.subr.mxu0 0.0
    %3343 = vmatpush2.msra.mxu0 0.0
    %3344 = vmatprep.subr.mxu0 0.0
    %3345 = vmatpush2.msra.mxu0 0.0
    %3346 = vmatprep.subr.mxu0 0.0
    %3347 = vmatpush2.msra.mxu0 0.0
    %3348 = vmatprep.subr.mxu0 0.0
    %3349 = vmatpush2.msra.mxu0 0.0
    %3350 = vmatprep.subr.mxu0 0.0
    %3351 = vmatpush2.msra.mxu0 0.0
    %3352 = vmatprep.subr.mxu0 0.0
    %3353 = vmatpush2.msra.mxu0 0.0
    %3354 = vmatprep.subr.mxu0 0.0
    %3355 = vmatpush2.msra.mxu0 0.0
    %3356 = vmatprep.subr.mxu0 0.0
    %3357 = vmatpush2.msra.mxu0 0.0
    %3358 = vmatprep.subr.mxu0 0.0
    %3359 = vmatpush2.msra.mxu0 0.0
    %3360 = vmatprep.subr.mxu0 0.0
    %3361 = vmatpush2.msra.mxu0 0.0
    %3362 = vmatprep.subr.mxu0 0.0
    %3363 = vmatpush2.msra.mxu0 0.0
    %3364 = vmatprep.mubr.f32.mxu0 0.0
    %3365 = vmatmul.mubr.f32.gmra.mxu0 %v3216
    %v3366 = vpop.f32.mrf.mxu0
    %v3367 = vadd.f32 %v3299, %v3366
    %v3368 = vpop.f32.mrf.mxu0
    %3369 = vmatprep.mubr.f32.mxu0 0.0
    %3370 = vmatmul.mubr.f32.gmra.mxu0 %v3219
    %v3371 = vpop.f32.mrf.mxu0
    %v3372 = vadd.f32 %v3299, %v3371
    %v3373 = vpop.f32.mrf.mxu0
    %3374 = vdwg.mxu0
    %v3377 = vunpack.c.l.s4 1966171168
    %v3378 = vunpack.c.0.s8 %v3377
    %v3379 = vlaneseq
    %v3380 = vshrl.u32 %v3379, 7
    %v3381 = vsub.s32 %v3378, %v3380
    %v3382 = vrot.slane %v3208, %v3381
    %v3383 = vcombine.high %v3382, %v3382
    %v3385 = vunpack.c.l.s4 1966171168
    %v3386 = vunpack.c.0.s8 %v3385
    %v3387 = vlaneseq
    %v3388 = vshrl.u32 %v3387, 7
    %v3389 = vsub.s32 %v3386, %v3388
    %v3390 = vrot.slane %v3382, %v3389
    %v3392 = vunpack.c.l.s4 1966171168
    %v3393 = vunpack.c.0.s8 %v3392
    %v3394 = vlaneseq
    %v3395 = vshrl.u32 %v3394, 7
    %v3396 = vsub.s32 %v3393, %v3395
    %v3397 = vrot.slane %v3383, %v3396
    %v3398 = vsel %vm69, %v3390, 0
    %v3401 = vsel %vm69, %v3288, 0
    %3403 = vmatprep.subr.mxu0 0.0
    %3404 = vmatpush1.xpose.msra.mxu0 0.0
    %3405 = vmatprep.subr.mxu0 0.0
    %3406 = vmatpush1.xpose.msra.mxu0 0.0
    %3407 = vmatprep.subr.mxu0 0.0
    %3408 = vmatpush1.xpose.msra.mxu0 0.0
    %3409 = vmatprep.subr.mxu0 0.0
    %3410 = vmatpush1.xpose.msra.mxu0 0.0
    %3411 = vmatprep.subr.mxu0 0.0
    %3412 = vmatpush1.xpose.msra.mxu0 0.0
    %3413 = vmatprep.subr.mxu0 0.0
    %3414 = vmatpush1.xpose.msra.mxu0 0.0
    %3415 = vmatprep.subr.mxu0 0.0
    %3416 = vmatpush1.xpose.msra.mxu0 0.0
    %3417 = vmatprep.subr.mxu0 0.0
    %3418 = vmatpush1.xpose.msra.mxu0 0.0
    %3419 = vmatprep.subr.mxu0 0.0
    %3420 = vmatpush1.xpose.msra.mxu0 0.0
    %3421 = vmatprep.subr.mxu0 0.0
    %3422 = vmatpush1.xpose.msra.mxu0 0.0
    %3423 = vmatprep.subr.mxu0 0.0
    %3424 = vmatpush1.xpose.msra.mxu0 0.0
    %3425 = vmatprep.subr.mxu0 0.0
    %3426 = vmatpush1.xpose.msra.mxu0 0.0
    %3427 = vmatprep.subr.mxu0 0.0
    %3428 = vmatpush1.xpose.msra.mxu0 0.0
    %3429 = vmatprep.subr.mxu0 0.0
    %3430 = vmatpush1.xpose.msra.mxu0 0.0
    %3431 = vmatprep.subr.mxu0 0.0
    %3432 = vmatpush1.xpose.msra.mxu0 0.0
    %3433 = vmatprep.subr.mxu0 0.0
    %3434 = vmatpush1.xpose.msra.mxu0 %v3401
    %3435 = vmatprep.subr.mxu0 0.0
    %3436 = vmatpush2.xpose.msra.mxu0 0.0
    %3437 = vmatprep.subr.mxu0 0.0
    %3438 = vmatpush2.xpose.msra.mxu0 0.0
    %3439 = vmatprep.subr.mxu0 0.0
    %3440 = vmatpush2.xpose.msra.mxu0 0.0
    %3441 = vmatprep.subr.mxu0 0.0
    %3442 = vmatpush2.xpose.msra.mxu0 0.0
    %3443 = vmatprep.subr.mxu0 0.0
    %3444 = vmatpush2.xpose.msra.mxu0 0.0
    %3445 = vmatprep.subr.mxu0 0.0
    %3446 = vmatpush2.xpose.msra.mxu0 0.0
    %3447 = vmatprep.subr.mxu0 0.0
    %3448 = vmatpush2.xpose.msra.mxu0 0.0
    %3449 = vmatprep.subr.mxu0 0.0
    %3450 = vmatpush2.xpose.msra.mxu0 0.0
    %3451 = vmatprep.subr.mxu0 0.0
    %3452 = vmatpush2.xpose.msra.mxu0 0.0
    %3453 = vmatprep.subr.mxu0 0.0
    %3454 = vmatpush2.xpose.msra.mxu0 0.0
    %3455 = vmatprep.subr.mxu0 0.0
    %3456 = vmatpush2.xpose.msra.mxu0 0.0
    %3457 = vmatprep.subr.mxu0 0.0
    %3458 = vmatpush2.xpose.msra.mxu0 0.0
    %3459 = vmatprep.subr.mxu0 0.0
    %3460 = vmatpush2.xpose.msra.mxu0 0.0
    %3461 = vmatprep.subr.mxu0 0.0
    %3462 = vmatpush2.xpose.msra.mxu0 0.0
    %3463 = vmatprep.subr.mxu0 0.0
    %3464 = vmatpush2.xpose.msra.mxu0 0.0
    %3465 = vmatprep.subr.mxu0 0.0
    %3466 = vmatpush2.xpose.msra.mxu0 0.0
    %3467 = vmatprep.mubr.f32.mxu0 0.0
    %3468 = vmatmul.mubr.f32.gmra.mxu0 %v3398
    %v3469 = vpop.f32.mrf.mxu0
    %v3470 = vadd.f32 0.0, %v3469
    %v3471 = vpop.f32.mrf.mxu0
    %3472 = vdwg.mxu0
    %v3473 = vsel %vm69, %v3397, 0
    %v3476 = vsel %vm69, %v3293, 0
    %3478 = vmatprep.subr.mxu0 0.0
    %3479 = vmatpush1.xpose.msra.mxu0 0.0
    %3480 = vmatprep.subr.mxu0 0.0
    %3481 = vmatpush1.xpose.msra.mxu0 0.0
    %3482 = vmatprep.subr.mxu0 0.0
    %3483 = vmatpush1.xpose.msra.mxu0 0.0
    %3484 = vmatprep.subr.mxu0 0.0
    %3485 = vmatpush1.xpose.msra.mxu0 0.0
    %3486 = vmatprep.subr.mxu0 0.0
    %3487 = vmatpush1.xpose.msra.mxu0 0.0
    %3488 = vmatprep.subr.mxu0 0.0
    %3489 = vmatpush1.xpose.msra.mxu0 0.0
    %3490 = vmatprep.subr.mxu0 0.0
    %3491 = vmatpush1.xpose.msra.mxu0 0.0
    %3492 = vmatprep.subr.mxu0 0.0
    %3493 = vmatpush1.xpose.msra.mxu0 0.0
    %3494 = vmatprep.subr.mxu0 0.0
    %3495 = vmatpush1.xpose.msra.mxu0 0.0
    %3496 = vmatprep.subr.mxu0 0.0
    %3497 = vmatpush1.xpose.msra.mxu0 0.0
    %3498 = vmatprep.subr.mxu0 0.0
    %3499 = vmatpush1.xpose.msra.mxu0 0.0
    %3500 = vmatprep.subr.mxu0 0.0
    %3501 = vmatpush1.xpose.msra.mxu0 0.0
    %3502 = vmatprep.subr.mxu0 0.0
    %3503 = vmatpush1.xpose.msra.mxu0 0.0
    %3504 = vmatprep.subr.mxu0 0.0
    %3505 = vmatpush1.xpose.msra.mxu0 0.0
    %3506 = vmatprep.subr.mxu0 0.0
    %3507 = vmatpush1.xpose.msra.mxu0 0.0
    %3508 = vmatprep.subr.mxu0 0.0
    %3509 = vmatpush1.xpose.msra.mxu0 %v3476
    %3510 = vmatprep.subr.mxu0 0.0
    %3511 = vmatpush2.xpose.msra.mxu0 0.0
    %3512 = vmatprep.subr.mxu0 0.0
    %3513 = vmatpush2.xpose.msra.mxu0 0.0
    %3514 = vmatprep.subr.mxu0 0.0
    %3515 = vmatpush2.xpose.msra.mxu0 0.0
    %3516 = vmatprep.subr.mxu0 0.0
    %3517 = vmatpush2.xpose.msra.mxu0 0.0
    %3518 = vmatprep.subr.mxu0 0.0
    %3519 = vmatpush2.xpose.msra.mxu0 0.0
    %3520 = vmatprep.subr.mxu0 0.0
    %3521 = vmatpush2.xpose.msra.mxu0 0.0
    %3522 = vmatprep.subr.mxu0 0.0
    %3523 = vmatpush2.xpose.msra.mxu0 0.0
    %3524 = vmatprep.subr.mxu0 0.0
    %3525 = vmatpush2.xpose.msra.mxu0 0.0
    %3526 = vmatprep.subr.mxu0 0.0
    %3527 = vmatpush2.xpose.msra.mxu0 0.0
    %3528 = vmatprep.subr.mxu0 0.0
    %3529 = vmatpush2.xpose.msra.mxu0 0.0
    %3530 = vmatprep.subr.mxu0 0.0
    %3531 = vmatpush2.xpose.msra.mxu0 0.0
    %3532 = vmatprep.subr.mxu0 0.0
    %3533 = vmatpush2.xpose.msra.mxu0 0.0
    %3534 = vmatprep.subr.mxu0 0.0
    %3535 = vmatpush2.xpose.msra.mxu0 0.0
    %3536 = vmatprep.subr.mxu0 0.0
    %3537 = vmatpush2.xpose.msra.mxu0 0.0
    %3538 = vmatprep.subr.mxu0 0.0
    %3539 = vmatpush2.xpose.msra.mxu0 0.0
    %3540 = vmatprep.subr.mxu0 0.0
    %3541 = vmatpush2.xpose.msra.mxu0 0.0
    %3542 = vmatprep.mubr.f32.mxu0 0.0
    %3543 = vmatmul.mubr.f32.gmra.mxu0 %v3473
    %v3544 = vpop.f32.mrf.mxu0
    %v3545 = vadd.f32 0.0, %v3544
    %v3546 = vpop.f32.mrf.mxu0
    %3547 = vdwg.mxu0
    %v3548 = vmul.f32 %v3470, 0.25
    %v3549 = vmul.f32 %v3545, 0.25
    %vm3550 = vcmask 57344
    %v3551 = vsel %vm3550, %v3548, -inf
    %3552 = vmax.xlane.f32.xlu0 %v3551
    %v3553 = vpop.xlane.xlu0 %3552
    %v3554 = vsel %vm3550, %v3549, -inf
    %3555 = vmax.xlane.f32.xlu0 %v3554
    %v3556 = vpop.xlane.xlu0 %3555
    %v3557 = vsub.f32 %v3548, %v3553
    %v3558 = vsub.f32 %v3549, %v3556
    %v3559 = vmul.f32 %v3557, 1.442695
    %v3560 = vpow.pop %v3559
    %v3561 = vmul.f32 %v3558, 1.442695
    %v3562 = vpow.pop %v3561
    %v3563 = vsel %vm3550, %v3560, 0.0
    %3564 = vadd.xlane.f32.xlu0 %v3563
    %v3565 = vpop.xlane.xlu0 %3564
    %v3566 = vsel %vm3550, %v3562, 0.0
    %3567 = vadd.xlane.f32.xlu0 %v3566
    %v3568 = vpop.xlane.xlu0 %3567
    %v3569 = vrcp.pop %v3565
    %v3570 = vmul.f32 %v3560, %v3569
    %v3571 = vrcp.pop %v3568
    %v3572 = vmul.f32 %v3562, %v3571
    %v3574 = vsel %vm607, %v3570, 0
    %3576 = vmatprep.subr.mxu0 0.0
    %3577 = vmatpush1.msra.mxu0 0.0
    %3578 = vmatprep.subr.mxu0 0.0
    %3579 = vmatpush1.msra.mxu0 0.0
    %3580 = vmatprep.subr.mxu0 0.0
    %3581 = vmatpush1.msra.mxu0 0.0
    %3582 = vmatprep.subr.mxu0 0.0
    %3583 = vmatpush1.msra.mxu0 0.0
    %3584 = vmatprep.subr.mxu0 0.0
    %3585 = vmatpush1.msra.mxu0 0.0
    %3586 = vmatprep.subr.mxu0 0.0
    %3587 = vmatpush1.msra.mxu0 0.0
    %3588 = vmatprep.subr.mxu0 0.0
    %3589 = vmatpush1.msra.mxu0 0.0
    %3590 = vmatprep.subr.mxu0 0.0
    %3591 = vmatpush1.msra.mxu0 0.0
    %3592 = vmatprep.subr.mxu0 0.0
    %3593 = vmatpush1.msra.mxu0 0.0
    %3594 = vmatprep.subr.mxu0 0.0
    %3595 = vmatpush1.msra.mxu0 0.0
    %3596 = vmatprep.subr.mxu0 0.0
    %3597 = vmatpush1.msra.mxu0 0.0
    %3598 = vmatprep.subr.mxu0 0.0
    %3599 = vmatpush1.msra.mxu0 0.0
    %3600 = vmatprep.subr.mxu0 0.0
    %3601 = vmatpush1.msra.mxu0 0.0
    %3602 = vmatprep.subr.mxu0 0.0
    %3603 = vmatpush1.msra.mxu0 0.0
    %3604 = vmatprep.subr.mxu0 0.0
    %3605 = vmatpush1.msra.mxu0 0.0
    %3606 = vmatprep.subr.mxu0 0.0
    %3607 = vmatpush1.msra.mxu0 %v3367
    %3608 = vmatprep.subr.mxu0 0.0
    %3609 = vmatpush2.msra.mxu0 0.0
    %3610 = vmatprep.subr.mxu0 0.0
    %3611 = vmatpush2.msra.mxu0 0.0
    %3612 = vmatprep.subr.mxu0 0.0
    %3613 = vmatpush2.msra.mxu0 0.0
    %3614 = vmatprep.subr.mxu0 0.0
    %3615 = vmatpush2.msra.mxu0 0.0
    %3616 = vmatprep.subr.mxu0 0.0
    %3617 = vmatpush2.msra.mxu0 0.0
    %3618 = vmatprep.subr.mxu0 0.0
    %3619 = vmatpush2.msra.mxu0 0.0
    %3620 = vmatprep.subr.mxu0 0.0
    %3621 = vmatpush2.msra.mxu0 0.0
    %3622 = vmatprep.subr.mxu0 0.0
    %3623 = vmatpush2.msra.mxu0 0.0
    %3624 = vmatprep.subr.mxu0 0.0
    %3625 = vmatpush2.msra.mxu0 0.0
    %3626 = vmatprep.subr.mxu0 0.0
    %3627 = vmatpush2.msra.mxu0 0.0
    %3628 = vmatprep.subr.mxu0 0.0
    %3629 = vmatpush2.msra.mxu0 0.0
    %3630 = vmatprep.subr.mxu0 0.0
    %3631 = vmatpush2.msra.mxu0 0.0
    %3632 = vmatprep.subr.mxu0 0.0
    %3633 = vmatpush2.msra.mxu0 0.0
    %3634 = vmatprep.subr.mxu0 0.0
    %3635 = vmatpush2.msra.mxu0 0.0
    %3636 = vmatprep.subr.mxu0 0.0
    %3637 = vmatpush2.msra.mxu0 0.0
    %3638 = vmatprep.subr.mxu0 0.0
    %3639 = vmatpush2.msra.mxu0 0.0
    %3640 = vmatprep.mubr.f32.mxu0 0.0
    %3641 = vmatmul.mubr.f32.gmra.mxu0 %v3574
    %v3642 = vpop.f32.mrf.mxu0
    %v3643 = vadd.f32 0.0, %v3642
    %v3644 = vpop.f32.mrf.mxu0
    %3645 = vdwg.mxu0
    %v3647 = vsel %vm607, %v3572, 0
    %3649 = vmatprep.subr.mxu0 0.0
    %3650 = vmatpush1.msra.mxu0 0.0
    %3651 = vmatprep.subr.mxu0 0.0
    %3652 = vmatpush1.msra.mxu0 0.0
    %3653 = vmatprep.subr.mxu0 0.0
    %3654 = vmatpush1.msra.mxu0 0.0
    %3655 = vmatprep.subr.mxu0 0.0
    %3656 = vmatpush1.msra.mxu0 0.0
    %3657 = vmatprep.subr.mxu0 0.0
    %3658 = vmatpush1.msra.mxu0 0.0
    %3659 = vmatprep.subr.mxu0 0.0
    %3660 = vmatpush1.msra.mxu0 0.0
    %3661 = vmatprep.subr.mxu0 0.0
    %3662 = vmatpush1.msra.mxu0 0.0
    %3663 = vmatprep.subr.mxu0 0.0
    %3664 = vmatpush1.msra.mxu0 0.0
    %3665 = vmatprep.subr.mxu0 0.0
    %3666 = vmatpush1.msra.mxu0 0.0
    %3667 = vmatprep.subr.mxu0 0.0
    %3668 = vmatpush1.msra.mxu0 0.0
    %3669 = vmatprep.subr.mxu0 0.0
    %3670 = vmatpush1.msra.mxu0 0.0
    %3671 = vmatprep.subr.mxu0 0.0
    %3672 = vmatpush1.msra.mxu0 0.0
    %3673 = vmatprep.subr.mxu0 0.0
    %3674 = vmatpush1.msra.mxu0 0.0
    %3675 = vmatprep.subr.mxu0 0.0
    %3676 = vmatpush1.msra.mxu0 0.0
    %3677 = vmatprep.subr.mxu0 0.0
    %3678 = vmatpush1.msra.mxu0 0.0
    %3679 = vmatprep.subr.mxu0 0.0
    %3680 = vmatpush1.msra.mxu0 %v3372
    %3681 = vmatprep.subr.mxu0 0.0
    %3682 = vmatpush2.msra.mxu0 0.0
    %3683 = vmatprep.subr.mxu0 0.0
    %3684 = vmatpush2.msra.mxu0 0.0
    %3685 = vmatprep.subr.mxu0 0.0
    %3686 = vmatpush2.msra.mxu0 0.0
    %3687 = vmatprep.subr.mxu0 0.0
    %3688 = vmatpush2.msra.mxu0 0.0
    %3689 = vmatprep.subr.mxu0 0.0
    %3690 = vmatpush2.msra.mxu0 0.0
    %3691 = vmatprep.subr.mxu0 0.0
    %3692 = vmatpush2.msra.mxu0 0.0
    %3693 = vmatprep.subr.mxu0 0.0
    %3694 = vmatpush2.msra.mxu0 0.0
    %3695 = vmatprep.subr.mxu0 0.0
    %3696 = vmatpush2.msra.mxu0 0.0
    %3697 = vmatprep.subr.mxu0 0.0
    %3698 = vmatpush2.msra.mxu0 0.0
    %3699 = vmatprep.subr.mxu0 0.0
    %3700 = vmatpush2.msra.mxu0 0.0
    %3701 = vmatprep.subr.mxu0 0.0
    %3702 = vmatpush2.msra.mxu0 0.0
    %3703 = vmatprep.subr.mxu0 0.0
    %3704 = vmatpush2.msra.mxu0 0.0
    %3705 = vmatprep.subr.mxu0 0.0
    %3706 = vmatpush2.msra.mxu0 0.0
    %3707 = vmatprep.subr.mxu0 0.0
    %3708 = vmatpush2.msra.mxu0 0.0
    %3709 = vmatprep.subr.mxu0 0.0
    %3710 = vmatpush2.msra.mxu0 0.0
    %3711 = vmatprep.subr.mxu0 0.0
    %3712 = vmatpush2.msra.mxu0 0.0
    %3713 = vmatprep.mubr.f32.mxu0 0.0
    %3714 = vmatmul.mubr.f32.gmra.mxu0 %v3647
    %v3715 = vpop.f32.mrf.mxu0
    %v3716 = vadd.f32 0.0, %v3715
    %v3717 = vpop.f32.mrf.mxu0
    %3718 = vdwg.mxu0
    %v3721 = vrot.slane %v3716, 7
    %vm3722 = vcmask 1041409
    %v3723 = vsel %vm3722, %v3721, %v3643
    %v3724 = vsel %vm69, %v3723, 0
    %3726 = vmatprep.subr.mxu0 0.0
    %3727 = vmatpush1.msra.mxu0 0.0
    %3728 = vmatprep.subr.mxu0 0.0
    %3729 = vmatpush1.msra.mxu0 0.0
    %3730 = vmatprep.subr.mxu0 0.0
    %3731 = vmatpush1.msra.mxu0 0.0
    %3732 = vmatprep.subr.mxu0 0.0
    %3733 = vmatpush1.msra.mxu0 0.0
    %3734 = vmatprep.subr.mxu0 0.0
    %3735 = vmatpush1.msra.mxu0 0.0
    %3736 = vmatprep.subr.mxu0 0.0
    %3737 = vmatpush1.msra.mxu0 0.0
    %3738 = vmatprep.subr.mxu0 0.0
    %3739 = vmatpush1.msra.mxu0 0.0
    %3740 = vmatprep.subr.mxu0 0.0
    %3741 = vmatpush1.msra.mxu0 0.0
    %3742 = vmatprep.subr.mxu0 0.0
    %3743 = vmatpush1.msra.mxu0 0.0
    %3744 = vmatprep.subr.mxu0 0.0
    %3745 = vmatpush1.msra.mxu0 0.0
    %3746 = vmatprep.subr.mxu0 0.0
    %3747 = vmatpush1.msra.mxu0 0.0
    %3748 = vmatprep.subr.mxu0 0.0
    %3749 = vmatpush1.msra.mxu0 0.0
    %3750 = vmatprep.subr.mxu0 0.0
    %3751 = vmatpush1.msra.mxu0 0.0
    %3752 = vmatprep.subr.mxu0 0.0
    %3753 = vmatpush1.msra.mxu0 0.0
    %3754 = vmatprep.subr.mxu0 0.0
    %3755 = vmatpush1.msra.mxu0 %v3131
    %3756 = vmatprep.subr.mxu0 0.0
    %3757 = vmatpush1.msra.mxu0 %v3130
    %3758 = vmatprep.subr.mxu0 0.0
    %3759 = vmatpush2.msra.mxu0 0.0
    %3760 = vmatprep.subr.mxu0 0.0
    %3761 = vmatpush2.msra.mxu0 0.0
    %3762 = vmatprep.subr.mxu0 0.0
    %3763 = vmatpush2.msra.mxu0 0.0
    %3764 = vmatprep.subr.mxu0 0.0
    %3765 = vmatpush2.msra.mxu0 0.0
    %3766 = vmatprep.subr.mxu0 0.0
    %3767 = vmatpush2.msra.mxu0 0.0
    %3768 = vmatprep.subr.mxu0 0.0
    %3769 = vmatpush2.msra.mxu0 0.0
    %3770 = vmatprep.subr.mxu0 0.0
    %3771 = vmatpush2.msra.mxu0 0.0
    %3772 = vmatprep.subr.mxu0 0.0
    %3773 = vmatpush2.msra.mxu0 0.0
    %3774 = vmatprep.subr.mxu0 0.0
    %3775 = vmatpush2.msra.mxu0 0.0
    %3776 = vmatprep.subr.mxu0 0.0
    %3777 = vmatpush2.msra.mxu0 0.0
    %3778 = vmatprep.subr.mxu0 0.0
    %3779 = vmatpush2.msra.mxu0 0.0
    %3780 = vmatprep.subr.mxu0 0.0
    %3781 = vmatpush2.msra.mxu0 0.0
    %3782 = vmatprep.subr.mxu0 0.0
    %3783 = vmatpush2.msra.mxu0 0.0
    %3784 = vmatprep.subr.mxu0 0.0
    %3785 = vmatpush2.msra.mxu0 0.0
    %3786 = vmatprep.subr.mxu0 0.0
    %3787 = vmatpush2.msra.mxu0 0.0
    %3788 = vmatprep.subr.mxu0 0.0
    %3789 = vmatpush2.msra.mxu0 0.0
    %3790 = vmatprep.mubr.f32.mxu0 0.0
    %3791 = vmatmul.mubr.f32.gmra.mxu0 %v3724
    %v3792 = vpop.f32.mrf.mxu0
    %v3793 = vadd.f32 0.0, %v3792
    %v3794 = vpop.f32.mrf.mxu0
    %3795 = vdwg.mxu0
    %v3796 = vlaneseq
    %v3797 = vshrl.u32 %v3796, 7
    %v3798 = vsub.s32 3, %v3797
    %v3799 = vrot.slane %v58, %v3798
    %v3800 = vadd.f32 %v3799, %v3793
    %v3801 = vlaneseq
    %v3802 = vshrl.u32 %v3801, 7
    %v3803 = vsub.s32 0, %v3802
    %v3804 = vrot.slane %v3390, %v3803
    %3805 = vrot.lane.b32.xlu0 %v3804, 112
    %v3806 = vpop.permute.xlu0 %3805
    %3807 = vrot.lane.b32.xlu0 %v3288, 112
    %v3808 = vpop.permute.xlu0 %3807
    %v3809 = vsel %vm69, %v3806, 0
    %v3811 = vsel %vm69, %v3808, 0
    %3813 = vmatprep.subr.mxu0 0.0
    %3814 = vmatpush1.xpose.msra.mxu0 0.0
    %3815 = vmatprep.subr.mxu0 0.0
    %3816 = vmatpush1.xpose.msra.mxu0 0.0
    %3817 = vmatprep.subr.mxu0 0.0
    %3818 = vmatpush1.xpose.msra.mxu0 0.0
    %3819 = vmatprep.subr.mxu0 0.0
    %3820 = vmatpush1.xpose.msra.mxu0 0.0
    %3821 = vmatprep.subr.mxu0 0.0
    %3822 = vmatpush1.xpose.msra.mxu0 0.0
    %3823 = vmatprep.subr.mxu0 0.0
    %3824 = vmatpush1.xpose.msra.mxu0 0.0
    %3825 = vmatprep.subr.mxu0 0.0
    %3826 = vmatpush1.xpose.msra.mxu0 0.0
    %3827 = vmatprep.subr.mxu0 0.0
    %3828 = vmatpush1.xpose.msra.mxu0 0.0
    %3829 = vmatprep.subr.mxu0 0.0
    %3830 = vmatpush1.xpose.msra.mxu0 0.0
    %3831 = vmatprep.subr.mxu0 0.0
    %3832 = vmatpush1.xpose.msra.mxu0 0.0
    %3833 = vmatprep.subr.mxu0 0.0
    %3834 = vmatpush1.xpose.msra.mxu0 0.0
    %3835 = vmatprep.subr.mxu0 0.0
    %3836 = vmatpush1.xpose.msra.mxu0 0.0
    %3837 = vmatprep.subr.mxu0 0.0
    %3838 = vmatpush1.xpose.msra.mxu0 0.0
    %3839 = vmatprep.subr.mxu0 0.0
    %3840 = vmatpush1.xpose.msra.mxu0 0.0
    %3841 = vmatprep.subr.mxu0 0.0
    %3842 = vmatpush1.xpose.msra.mxu0 0.0
    %3843 = vmatprep.subr.mxu0 0.0
    %3844 = vmatpush1.xpose.msra.mxu0 %v3811
    %3845 = vmatprep.subr.mxu0 0.0
    %3846 = vmatpush2.xpose.msra.mxu0 0.0
    %3847 = vmatprep.subr.mxu0 0.0
    %3848 = vmatpush2.xpose.msra.mxu0 0.0
    %3849 = vmatprep.subr.mxu0 0.0
    %3850 = vmatpush2.xpose.msra.mxu0 0.0
    %3851 = vmatprep.subr.mxu0 0.0
    %3852 = vmatpush2.xpose.msra.mxu0 0.0
    %3853 = vmatprep.subr.mxu0 0.0
    %3854 = vmatpush2.xpose.msra.mxu0 0.0
    %3855 = vmatprep.subr.mxu0 0.0
    %3856 = vmatpush2.xpose.msra.mxu0 0.0
    %3857 = vmatprep.subr.mxu0 0.0
    %3858 = vmatpush2.xpose.msra.mxu0 0.0
    %3859 = vmatprep.subr.mxu0 0.0
    %3860 = vmatpush2.xpose.msra.mxu0 0.0
    %3861 = vmatprep.subr.mxu0 0.0
    %3862 = vmatpush2.xpose.msra.mxu0 0.0
    %3863 = vmatprep.subr.mxu0 0.0
    %3864 = vmatpush2.xpose.msra.mxu0 0.0
    %3865 = vmatprep.subr.mxu0 0.0
    %3866 = vmatpush2.xpose.msra.mxu0 0.0
    %3867 = vmatprep.subr.mxu0 0.0
    %3868 = vmatpush2.xpose.msra.mxu0 0.0
    %3869 = vmatprep.subr.mxu0 0.0
    %3870 = vmatpush2.xpose.msra.mxu0 0.0
    %3871 = vmatprep.subr.mxu0 0.0
    %3872 = vmatpush2.xpose.msra.mxu0 0.0
    %3873 = vmatprep.subr.mxu0 0.0
    %3874 = vmatpush2.xpose.msra.mxu0 0.0
    %3875 = vmatprep.subr.mxu0 0.0
    %3876 = vmatpush2.xpose.msra.mxu0 0.0
    %3877 = vmatprep.mubr.f32.mxu0 0.0
    %3878 = vmatmul.mubr.f32.gmra.mxu0 %v3809
    %v3879 = vpop.f32.mrf.mxu0
    %v3880 = vadd.f32 0.0, %v3879
    %v3881 = vpop.f32.mrf.mxu0
    %3882 = vdwg.mxu0
    %v3883 = vlaneseq
    %v3884 = vshrl.u32 %v3883, 7
    %v3885 = vsub.s32 0, %v3884
    %v3886 = vrot.slane %v3397, %v3885
    %3887 = vrot.lane.b32.xlu0 %v3886, 112
    %v3888 = vpop.permute.xlu0 %3887
    %3889 = vrot.lane.b32.xlu0 %v3293, 112
    %v3890 = vpop.permute.xlu0 %3889
    %v3891 = vsel %vm69, %v3888, 0
    %v3893 = vsel %vm69, %v3890, 0
    %3895 = vmatprep.subr.mxu0 0.0
    %3896 = vmatpush1.xpose.msra.mxu0 0.0
    %3897 = vmatprep.subr.mxu0 0.0
    %3898 = vmatpush1.xpose.msra.mxu0 0.0
    %3899 = vmatprep.subr.mxu0 0.0
    %3900 = vmatpush1.xpose.msra.mxu0 0.0
    %3901 = vmatprep.subr.mxu0 0.0
    %3902 = vmatpush1.xpose.msra.mxu0 0.0
    %3903 = vmatprep.subr.mxu0 0.0
    %3904 = vmatpush1.xpose.msra.mxu0 0.0
    %3905 = vmatprep.subr.mxu0 0.0
    %3906 = vmatpush1.xpose.msra.mxu0 0.0
    %3907 = vmatprep.subr.mxu0 0.0
    %3908 = vmatpush1.xpose.msra.mxu0 0.0
    %3909 = vmatprep.subr.mxu0 0.0
    %3910 = vmatpush1.xpose.msra.mxu0 0.0
    %3911 = vmatprep.subr.mxu0 0.0
    %3912 = vmatpush1.xpose.msra.mxu0 0.0
    %3913 = vmatprep.subr.mxu0 0.0
    %3914 = vmatpush1.xpose.msra.mxu0 0.0
    %3915 = vmatprep.subr.mxu0 0.0
    %3916 = vmatpush1.xpose.msra.mxu0 0.0
    %3917 = vmatprep.subr.mxu0 0.0
    %3918 = vmatpush1.xpose.msra.mxu0 0.0
    %3919 = vmatprep.subr.mxu0 0.0
    %3920 = vmatpush1.xpose.msra.mxu0 0.0
    %3921 = vmatprep.subr.mxu0 0.0
    %3922 = vmatpush1.xpose.msra.mxu0 0.0
    %3923 = vmatprep.subr.mxu0 0.0
    %3924 = vmatpush1.xpose.msra.mxu0 0.0
    %3925 = vmatprep.subr.mxu0 0.0
    %3926 = vmatpush1.xpose.msra.mxu0 %v3893
    %3927 = vmatprep.subr.mxu0 0.0
    %3928 = vmatpush2.xpose.msra.mxu0 0.0
    %3929 = vmatprep.subr.mxu0 0.0
    %3930 = vmatpush2.xpose.msra.mxu0 0.0
    %3931 = vmatprep.subr.mxu0 0.0
    %3932 = vmatpush2.xpose.msra.mxu0 0.0
    %3933 = vmatprep.subr.mxu0 0.0
    %3934 = vmatpush2.xpose.msra.mxu0 0.0
    %3935 = vmatprep.subr.mxu0 0.0
    %3936 = vmatpush2.xpose.msra.mxu0 0.0
    %3937 = vmatprep.subr.mxu0 0.0
    %3938 = vmatpush2.xpose.msra.mxu0 0.0
    %3939 = vmatprep.subr.mxu0 0.0
    %3940 = vmatpush2.xpose.msra.mxu0 0.0
    %3941 = vmatprep.subr.mxu0 0.0
    %3942 = vmatpush2.xpose.msra.mxu0 0.0
    %3943 = vmatprep.subr.mxu0 0.0
    %3944 = vmatpush2.xpose.msra.mxu0 0.0
    %3945 = vmatprep.subr.mxu0 0.0
    %3946 = vmatpush2.xpose.msra.mxu0 0.0
    %3947 = vmatprep.subr.mxu0 0.0
    %3948 = vmatpush2.xpose.msra.mxu0 0.0
    %3949 = vmatprep.subr.mxu0 0.0
    %3950 = vmatpush2.xpose.msra.mxu0 0.0
    %3951 = vmatprep.subr.mxu0 0.0
    %3952 = vmatpush2.xpose.msra.mxu0 0.0
    %3953 = vmatprep.subr.mxu0 0.0
    %3954 = vmatpush2.xpose.msra.mxu0 0.0
    %3955 = vmatprep.subr.mxu0 0.0
    %3956 = vmatpush2.xpose.msra.mxu0 0.0
    %3957 = vmatprep.subr.mxu0 0.0
    %3958 = vmatpush2.xpose.msra.mxu0 0.0
    %3959 = vmatprep.mubr.f32.mxu0 0.0
    %3960 = vmatmul.mubr.f32.gmra.mxu0 %v3891
    %v3961 = vpop.f32.mrf.mxu0
    %v3962 = vadd.f32 0.0, %v3961
    %v3963 = vpop.f32.mrf.mxu0
    %3964 = vdwg.mxu0
    %v3965 = vmul.f32 %v3880, 0.25
    %v3966 = vmul.f32 %v3962, 0.25
    %v3967 = vsel %vm3550, %v3965, -inf
    %3968 = vmax.xlane.f32.xlu0 %v3967
    %v3969 = vpop.xlane.xlu0 %3968
    %v3970 = vsel %vm3550, %v3966, -inf
    %3971 = vmax.xlane.f32.xlu0 %v3970
    %v3972 = vpop.xlane.xlu0 %3971
    %v3973 = vsub.f32 %v3965, %v3969
    %v3974 = vsub.f32 %v3966, %v3972
    %v3975 = vmul.f32 %v3973, 1.442695
    %v3976 = vpow.pop %v3975
    %v3977 = vmul.f32 %v3974, 1.442695
    %v3978 = vpow.pop %v3977
    %v3979 = vsel %vm3550, %v3976, 0.0
    %3980 = vadd.xlane.f32.xlu0 %v3979
    %v3981 = vpop.xlane.xlu0 %3980
    %v3982 = vsel %vm3550, %v3978, 0.0
    %3983 = vadd.xlane.f32.xlu0 %v3982
    %v3984 = vpop.xlane.xlu0 %3983
    %v3985 = vrcp.pop %v3981
    %v3986 = vmul.f32 %v3976, %v3985
    %v3987 = vrcp.pop %v3984
    %v3988 = vmul.f32 %v3978, %v3987
    %3990 = vrot.lane.b32.xlu0 %v3367, 112
    %v3991 = vpop.permute.xlu0 %3990
    %v3994 = vsel %vm607, %v3986, 0
    %3996 = vmatprep.subr.mxu0 0.0
    %3997 = vmatpush1.msra.mxu0 0.0
    %3998 = vmatprep.subr.mxu0 0.0
    %3999 = vmatpush1.msra.mxu0 0.0
    %4000 = vmatprep.subr.mxu0 0.0
    %4001 = vmatpush1.msra.mxu0 0.0
    %4002 = vmatprep.subr.mxu0 0.0
    %4003 = vmatpush1.msra.mxu0 0.0
    %4004 = vmatprep.subr.mxu0 0.0
    %4005 = vmatpush1.msra.mxu0 0.0
    %4006 = vmatprep.subr.mxu0 0.0
    %4007 = vmatpush1.msra.mxu0 0.0
    %4008 = vmatprep.subr.mxu0 0.0
    %4009 = vmatpush1.msra.mxu0 0.0
    %4010 = vmatprep.subr.mxu0 0.0
    %4011 = vmatpush1.msra.mxu0 0.0
    %4012 = vmatprep.subr.mxu0 0.0
    %4013 = vmatpush1.msra.mxu0 0.0
    %4014 = vmatprep.subr.mxu0 0.0
    %4015 = vmatpush1.msra.mxu0 0.0
    %4016 = vmatprep.subr.mxu0 0.0
    %4017 = vmatpush1.msra.mxu0 0.0
    %4018 = vmatprep.subr.mxu0 0.0
    %4019 = vmatpush1.msra.mxu0 0.0
    %4020 = vmatprep.subr.mxu0 0.0
    %4021 = vmatpush1.msra.mxu0 0.0
    %4022 = vmatprep.subr.mxu0 0.0
    %4023 = vmatpush1.msra.mxu0 0.0
    %4024 = vmatprep.subr.mxu0 0.0
    %4025 = vmatpush1.msra.mxu0 0.0
    %4026 = vmatprep.subr.mxu0 0.0
    %4027 = vmatpush1.msra.mxu0 %v3991
    %4028 = vmatprep.subr.mxu0 0.0
    %4029 = vmatpush2.msra.mxu0 0.0
    %4030 = vmatprep.subr.mxu0 0.0
    %4031 = vmatpush2.msra.mxu0 0.0
    %4032 = vmatprep.subr.mxu0 0.0
    %4033 = vmatpush2.msra.mxu0 0.0
    %4034 = vmatprep.subr.mxu0 0.0
    %4035 = vmatpush2.msra.mxu0 0.0
    %4036 = vmatprep.subr.mxu0 0.0
    %4037 = vmatpush2.msra.mxu0 0.0
    %4038 = vmatprep.subr.mxu0 0.0
    %4039 = vmatpush2.msra.mxu0 0.0
    %4040 = vmatprep.subr.mxu0 0.0
    %4041 = vmatpush2.msra.mxu0 0.0
    %4042 = vmatprep.subr.mxu0 0.0
    %4043 = vmatpush2.msra.mxu0 0.0
    %4044 = vmatprep.subr.mxu0 0.0
    %4045 = vmatpush2.msra.mxu0 0.0
    %4046 = vmatprep.subr.mxu0 0.0
    %4047 = vmatpush2.msra.mxu0 0.0
    %4048 = vmatprep.subr.mxu0 0.0
    %4049 = vmatpush2.msra.mxu0 0.0
    %4050 = vmatprep.subr.mxu0 0.0
    %4051 = vmatpush2.msra.mxu0 0.0
    %4052 = vmatprep.subr.mxu0 0.0
    %4053 = vmatpush2.msra.mxu0 0.0
    %4054 = vmatprep.subr.mxu0 0.0
    %4055 = vmatpush2.msra.mxu0 0.0
    %4056 = vmatprep.subr.mxu0 0.0
    %4057 = vmatpush2.msra.mxu0 0.0
    %4058 = vmatprep.subr.mxu0 0.0
    %4059 = vmatpush2.msra.mxu0 0.0
    %4060 = vmatprep.mubr.f32.mxu0 0.0
    %4061 = vmatmul.mubr.f32.gmra.mxu0 %v3994
    %v4062 = vpop.f32.mrf.mxu0
    %v4063 = vadd.f32 0.0, %v4062
    %v4064 = vpop.f32.mrf.mxu0
    %4065 = vdwg.mxu0
    %4067 = vrot.lane.b32.xlu0 %v3372, 112
    %v4068 = vpop.permute.xlu0 %4067
    %v4071 = vsel %vm607, %v3988, 0
    %4073 = vmatprep.subr.mxu0 0.0
    %4074 = vmatpush1.msra.mxu0 0.0
    %4075 = vmatprep.subr.mxu0 0.0
    %4076 = vmatpush1.msra.mxu0 0.0
    %4077 = vmatprep.subr.mxu0 0.0
    %4078 = vmatpush1.msra.mxu0 0.0
    %4079 = vmatprep.subr.mxu0 0.0
    %4080 = vmatpush1.msra.mxu0 0.0
    %4081 = vmatprep.subr.mxu0 0.0
    %4082 = vmatpush1.msra.mxu0 0.0
    %4083 = vmatprep.subr.mxu0 0.0
    %4084 = vmatpush1.msra.mxu0 0.0
    %4085 = vmatprep.subr.mxu0 0.0
    %4086 = vmatpush1.msra.mxu0 0.0
    %4087 = vmatprep.subr.mxu0 0.0
    %4088 = vmatpush1.msra.mxu0 0.0
    %4089 = vmatprep.subr.mxu0 0.0
    %4090 = vmatpush1.msra.mxu0 0.0
    %4091 = vmatprep.subr.mxu0 0.0
    %4092 = vmatpush1.msra.mxu0 0.0
    %4093 = vmatprep.subr.mxu0 0.0
    %4094 = vmatpush1.msra.mxu0 0.0
    %4095 = vmatprep.subr.mxu0 0.0
    %4096 = vmatpush1.msra.mxu0 0.0
    %4097 = vmatprep.subr.mxu0 0.0
    %4098 = vmatpush1.msra.mxu0 0.0
    %4099 = vmatprep.subr.mxu0 0.0
    %4100 = vmatpush1.msra.mxu0 0.0
    %4101 = vmatprep.subr.mxu0 0.0
    %4102 = vmatpush1.msra.mxu0 0.0
    %4103 = vmatprep.subr.mxu0 0.0
    %4104 = vmatpush1.msra.mxu0 %v4068
    %4105 = vmatprep.subr.mxu0 0.0
    %4106 = vmatpush2.msra.mxu0 0.0
    %4107 = vmatprep.subr.mxu0 0.0
    %4108 = vmatpush2.msra.mxu0 0.0
    %4109 = vmatprep.subr.mxu0 0.0
    %4110 = vmatpush2.msra.mxu0 0.0
    %4111 = vmatprep.subr.mxu0 0.0
    %4112 = vmatpush2.msra.mxu0 0.0
    %4113 = vmatprep.subr.mxu0 0.0
    %4114 = vmatpush2.msra.mxu0 0.0
    %4115 = vmatprep.subr.mxu0 0.0
    %4116 = vmatpush2.msra.mxu0 0.0
    %4117 = vmatprep.subr.mxu0 0.0
    %4118 = vmatpush2.msra.mxu0 0.0
    %4119 = vmatprep.subr.mxu0 0.0
    %4120 = vmatpush2.msra.mxu0 0.0
    %4121 = vmatprep.subr.mxu0 0.0
    %4122 = vmatpush2.msra.mxu0 0.0
    %4123 = vmatprep.subr.mxu0 0.0
    %4124 = vmatpush2.msra.mxu0 0.0
    %4125 = vmatprep.subr.mxu0 0.0
    %4126 = vmatpush2.msra.mxu0 0.0
    %4127 = vmatprep.subr.mxu0 0.0
    %4128 = vmatpush2.msra.mxu0 0.0
    %4129 = vmatprep.subr.mxu0 0.0
    %4130 = vmatpush2.msra.mxu0 0.0
    %4131 = vmatprep.subr.mxu0 0.0
    %4132 = vmatpush2.msra.mxu0 0.0
    %4133 = vmatprep.subr.mxu0 0.0
    %4134 = vmatpush2.msra.mxu0 0.0
    %4135 = vmatprep.subr.mxu0 0.0
    %4136 = vmatpush2.msra.mxu0 0.0
    %4137 = vmatprep.mubr.f32.mxu0 0.0
    %4138 = vmatmul.mubr.f32.gmra.mxu0 %v4071
    %v4139 = vpop.f32.mrf.mxu0
    %v4140 = vadd.f32 0.0, %v4139
    %v4141 = vpop.f32.mrf.mxu0
    %4142 = vdwg.mxu0
    %v4145 = vrot.slane %v4140, 7
    %v4146 = vsel %vm3722, %v4145, %v4063
    %v4147 = vsel %vm69, %v4146, 0
    %4149 = vmatprep.subr.mxu0 0.0
    %4150 = vmatpush1.msra.mxu0 0.0
    %4151 = vmatprep.subr.mxu0 0.0
    %4152 = vmatpush1.msra.mxu0 0.0
    %4153 = vmatprep.subr.mxu0 0.0
    %4154 = vmatpush1.msra.mxu0 0.0
    %4155 = vmatprep.subr.mxu0 0.0
    %4156 = vmatpush1.msra.mxu0 0.0
    %4157 = vmatprep.subr.mxu0 0.0
    %4158 = vmatpush1.msra.mxu0 0.0
    %4159 = vmatprep.subr.mxu0 0.0
    %4160 = vmatpush1.msra.mxu0 0.0
    %4161 = vmatprep.subr.mxu0 0.0
    %4162 = vmatpush1.msra.mxu0 0.0
    %4163 = vmatprep.subr.mxu0 0.0
    %4164 = vmatpush1.msra.mxu0 0.0
    %4165 = vmatprep.subr.mxu0 0.0
    %4166 = vmatpush1.msra.mxu0 0.0
    %4167 = vmatprep.subr.mxu0 0.0
    %4168 = vmatpush1.msra.mxu0 0.0
    %4169 = vmatprep.subr.mxu0 0.0
    %4170 = vmatpush1.msra.mxu0 0.0
    %4171 = vmatprep.subr.mxu0 0.0
    %4172 = vmatpush1.msra.mxu0 0.0
    %4173 = vmatprep.subr.mxu0 0.0
    %4174 = vmatpush1.msra.mxu0 0.0
    %4175 = vmatprep.subr.mxu0 0.0
    %4176 = vmatpush1.msra.mxu0 0.0
    %4177 = vmatprep.subr.mxu0 0.0
    %4178 = vmatpush1.msra.mxu0 %v3133
    %4179 = vmatprep.subr.mxu0 0.0
    %4180 = vmatpush1.msra.mxu0 %v3132
    %4181 = vmatprep.subr.mxu0 0.0
    %4182 = vmatpush2.msra.mxu0 0.0
    %4183 = vmatprep.subr.mxu0 0.0
    %4184 = vmatpush2.msra.mxu0 0.0
    %4185 = vmatprep.subr.mxu0 0.0
    %4186 = vmatpush2.msra.mxu0 0.0
    %4187 = vmatprep.subr.mxu0 0.0
    %4188 = vmatpush2.msra.mxu0 0.0
    %4189 = vmatprep.subr.mxu0 0.0
    %4190 = vmatpush2.msra.mxu0 0.0
    %4191 = vmatprep.subr.mxu0 0.0
    %4192 = vmatpush2.msra.mxu0 0.0
    %4193 = vmatprep.subr.mxu0 0.0
    %4194 = vmatpush2.msra.mxu0 0.0
    %4195 = vmatprep.subr.mxu0 0.0
    %4196 = vmatpush2.msra.mxu0 0.0
    %4197 = vmatprep.subr.mxu0 0.0
    %4198 = vmatpush2.msra.mxu0 0.0
    %4199 = vmatprep.subr.mxu0 0.0
    %4200 = vmatpush2.msra.mxu0 0.0
    %4201 = vmatprep.subr.mxu0 0.0
    %4202 = vmatpush2.msra.mxu0 0.0
    %4203 = vmatprep.subr.mxu0 0.0
    %4204 = vmatpush2.msra.mxu0 0.0
    %4205 = vmatprep.subr.mxu0 0.0
    %4206 = vmatpush2.msra.mxu0 0.0
    %4207 = vmatprep.subr.mxu0 0.0
    %4208 = vmatpush2.msra.mxu0 0.0
    %4209 = vmatprep.subr.mxu0 0.0
    %4210 = vmatpush2.msra.mxu0 0.0
    %4211 = vmatprep.subr.mxu0 0.0
    %4212 = vmatpush2.msra.mxu0 0.0
    %4213 = vmatprep.mubr.f32.mxu0 0.0
    %4214 = vmatmul.mubr.f32.gmra.mxu0 %v4147
    %v4215 = vpop.f32.mrf.mxu0
    %v4216 = vadd.f32 0.0, %v4215
    %v4217 = vpop.f32.mrf.mxu0
    %4218 = vdwg.mxu0
    %v4219 = vadd.f32 %v3800, %v4216
    %v4220 = vadd.f32 %v3090, %v4219
    %v4221 = vsel %vm3091, %v4220, 0.0
    %4222 = vadd.xlane.f32.xlu0 %v4221
    %v4223 = vpop.xlane.xlu0 %4222
    %v4224 = vmul.f32 %v4223, %v158
    %v4225 = vsub.f32 %v4220, %v4224
    %v4226 = vmul.f32 %v4225, %v4225
    %v4227 = vsel %vm3091, %v4226, 0.0
    %4228 = vadd.xlane.f32.xlu0 %v4227
    %v4229 = vpop.xlane.xlu0 %4228
    %v4230 = vmul.f32 %v4229, %v158
    %v4231 = vadd.f32 %v4230, 1e-05
    %v4232 = vrsqrt.pop %v4231
    %v4233 = vmul.f32 %v4225, %v4232
    %v4234 = vlaneseq
    %v4235 = vshrl.u32 %v4234, 7
    %v4236 = vsub.s32 2, %v4235
    %v4237 = vrot.slane %v59, %v4236
    %v4238 = vmul.f32 %v4233, %v4237
    %v4239 = vlaneseq
    %v4240 = vshrl.u32 %v4239, 7
    %v4241 = vsub.s32 0, %v4240
    %v4242 = vrot.slane %v60, %v4241
    %v4243 = vadd.f32 %v4238, %v4242
    %v4244 = vld [vmem:[%s10] sm:$0xff]
    %v4245 = vld [vmem:[%s10 + $0x8] sm:$0xff]
    %v4246 = vld [vmem:[%s10 + $0x10] sm:$0xff]
    %v4247 = vld [vmem:[%s10 + $0x18] sm:$0xff]
    %v4248 = vlaneseq
    %v4249 = vshrl.u32 %v4248, 7
    %v4250 = vsub.s32 2, %v4249
    %v4251 = vrot.slane %v62, %v4250
    %v4253 = vsel %vm151, %v4243, 0
    %4255 = vmatprep.subr.mxu0 0.0
    %4256 = vmatpush1.msra.mxu0 0.0
    %4257 = vmatprep.subr.mxu0 0.0
    %4258 = vmatpush1.msra.mxu0 0.0
    %4259 = vmatprep.subr.mxu0 0.0
    %4260 = vmatpush1.msra.mxu0 0.0
    %4261 = vmatprep.subr.mxu0 0.0
    %4262 = vmatpush1.msra.mxu0 0.0
    %4263 = vmatprep.subr.mxu0 0.0
    %4264 = vmatpush1.msra.mxu0 0.0
    %4265 = vmatprep.subr.mxu0 0.0
    %4266 = vmatpush1.msra.mxu0 0.0
    %4267 = vmatprep.subr.mxu0 0.0
    %4268 = vmatpush1.msra.mxu0 0.0
    %4269 = vmatprep.subr.mxu0 0.0
    %4270 = vmatpush1.msra.mxu0 0.0
    %4271 = vmatprep.subr.mxu0 0.0
    %4272 = vmatpush1.msra.mxu0 0.0
    %4273 = vmatprep.subr.mxu0 0.0
    %4274 = vmatpush1.msra.mxu0 0.0
    %4275 = vmatprep.subr.mxu0 0.0
    %4276 = vmatpush1.msra.mxu0 0.0
    %4277 = vmatprep.subr.mxu0 0.0
    %4278 = vmatpush1.msra.mxu0 0.0
    %4279 = vmatprep.subr.mxu0 0.0
    %4280 = vmatpush1.msra.mxu0 %v4247
    %4281 = vmatprep.subr.mxu0 0.0
    %4282 = vmatpush1.msra.mxu0 %v4246
    %4283 = vmatprep.subr.mxu0 0.0
    %4284 = vmatpush1.msra.mxu0 %v4245
    %4285 = vmatprep.subr.mxu0 0.0
    %4286 = vmatpush1.msra.mxu0 %v4244
    %4287 = vmatprep.subr.mxu0 0.0
    %4288 = vmatpush2.msra.mxu0 0.0
    %4289 = vmatprep.subr.mxu0 0.0
    %4290 = vmatpush2.msra.mxu0 0.0
    %4291 = vmatprep.subr.mxu0 0.0
    %4292 = vmatpush2.msra.mxu0 0.0
    %4293 = vmatprep.subr.mxu0 0.0
    %4294 = vmatpush2.msra.mxu0 0.0
    %4295 = vmatprep.subr.mxu0 0.0
    %4296 = vmatpush2.msra.mxu0 0.0
    %4297 = vmatprep.subr.mxu0 0.0
    %4298 = vmatpush2.msra.mxu0 0.0
    %4299 = vmatprep.subr.mxu0 0.0
    %4300 = vmatpush2.msra.mxu0 0.0
    %4301 = vmatprep.subr.mxu0 0.0
    %4302 = vmatpush2.msra.mxu0 0.0
    %4303 = vmatprep.subr.mxu0 0.0
    %4304 = vmatpush2.msra.mxu0 0.0
    %4305 = vmatprep.subr.mxu0 0.0
    %4306 = vmatpush2.msra.mxu0 0.0
    %4307 = vmatprep.subr.mxu0 0.0
    %4308 = vmatpush2.msra.mxu0 0.0
    %4309 = vmatprep.subr.mxu0 0.0
    %4310 = vmatpush2.msra.mxu0 0.0
    %4311 = vmatprep.subr.mxu0 0.0
    %4312 = vmatpush2.msra.mxu0 0.0
    %4313 = vmatprep.subr.mxu0 0.0
    %4314 = vmatpush2.msra.mxu0 0.0
    %4315 = vmatprep.subr.mxu0 0.0
    %4316 = vmatpush2.msra.mxu0 0.0
    %4317 = vmatprep.subr.mxu0 0.0
    %4318 = vmatpush2.msra.mxu0 0.0
    %4319 = vmatprep.mubr.f32.mxu0 0.0
    %4320 = vmatmul.mubr.f32.gmra.mxu0 %v4253
    %v4321 = vpop.f32.mrf.mxu0
    %v4322 = vadd.f32 %v4251, %v4321
    %v4323 = vpop.f32.mrf.mxu0
    %4324 = vdwg.mxu0
    %v4325 = vmax.f32 %v4322, 0.0
    %v4326 = vld [vmem:[%s11] sm:$0xff]
    %v4327 = vld [vmem:[%s11 + $0x8] sm:$0xff]
    %v4328 = vld [vmem:[%s11 + $0x10] sm:$0xff]
    %v4329 = vld [vmem:[%s11 + $0x18] sm:$0xff]
    %v4330 = vld [vmem:[%s11 + $0x20] sm:$0xff]
    %v4331 = vld [vmem:[%s11 + $0x28] sm:$0xff]
    %v4332 = vld [vmem:[%s11 + $0x30] sm:$0xff]
    %v4333 = vld [vmem:[%s11 + $0x38] sm:$0xff]
    %v4334 = vlaneseq
    %v4335 = vshrl.u32 %v4334, 7
    %v4336 = vsub.s32 4, %v4335
    %v4337 = vrot.slane %v60, %v4336
    %v4339 = vsel %vm1423, %v4325, 0
    %4341 = vmatprep.subr.mxu0 0.0
    %4342 = vmatpush1.msra.mxu0 0.0
    %4343 = vmatprep.subr.mxu0 0.0
    %4344 = vmatpush1.msra.mxu0 0.0
    %4345 = vmatprep.subr.mxu0 0.0
    %4346 = vmatpush1.msra.mxu0 0.0
    %4347 = vmatprep.subr.mxu0 0.0
    %4348 = vmatpush1.msra.mxu0 0.0
    %4349 = vmatprep.subr.mxu0 0.0
    %4350 = vmatpush1.msra.mxu0 0.0
    %4351 = vmatprep.subr.mxu0 0.0
    %4352 = vmatpush1.msra.mxu0 0.0
    %4353 = vmatprep.subr.mxu0 0.0
    %4354 = vmatpush1.msra.mxu0 0.0
    %4355 = vmatprep.subr.mxu0 0.0
    %4356 = vmatpush1.msra.mxu0 0.0
    %4357 = vmatprep.subr.mxu0 0.0
    %4358 = vmatpush1.msra.mxu0 %v4333
    %4359 = vmatprep.subr.mxu0 0.0
    %4360 = vmatpush1.msra.mxu0 %v4332
    %4361 = vmatprep.subr.mxu0 0.0
    %4362 = vmatpush1.msra.mxu0 %v4331
    %4363 = vmatprep.subr.mxu0 0.0
    %4364 = vmatpush1.msra.mxu0 %v4330
    %4365 = vmatprep.subr.mxu0 0.0
    %4366 = vmatpush1.msra.mxu0 %v4329
    %4367 = vmatprep.subr.mxu0 0.0
    %4368 = vmatpush1.msra.mxu0 %v4328
    %4369 = vmatprep.subr.mxu0 0.0
    %4370 = vmatpush1.msra.mxu0 %v4327
    %4371 = vmatprep.subr.mxu0 0.0
    %4372 = vmatpush1.msra.mxu0 %v4326
    %4373 = vmatprep.subr.mxu0 0.0
    %4374 = vmatpush2.msra.mxu0 0.0
    %4375 = vmatprep.subr.mxu0 0.0
    %4376 = vmatpush2.msra.mxu0 0.0
    %4377 = vmatprep.subr.mxu0 0.0
    %4378 = vmatpush2.msra.mxu0 0.0
    %4379 = vmatprep.subr.mxu0 0.0
    %4380 = vmatpush2.msra.mxu0 0.0
    %4381 = vmatprep.subr.mxu0 0.0
    %4382 = vmatpush2.msra.mxu0 0.0
    %4383 = vmatprep.subr.mxu0 0.0
    %4384 = vmatpush2.msra.mxu0 0.0
    %4385 = vmatprep.subr.mxu0 0.0
    %4386 = vmatpush2.msra.mxu0 0.0
    %4387 = vmatprep.subr.mxu0 0.0
    %4388 = vmatpush2.msra.mxu0 0.0
    %4389 = vmatprep.subr.mxu0 0.0
    %4390 = vmatpush2.msra.mxu0 0.0
    %4391 = vmatprep.subr.mxu0 0.0
    %4392 = vmatpush2.msra.mxu0 0.0
    %4393 = vmatprep.subr.mxu0 0.0
    %4394 = vmatpush2.msra.mxu0 0.0
    %4395 = vmatprep.subr.mxu0 0.0
    %4396 = vmatpush2.msra.mxu0 0.0
    %4397 = vmatprep.subr.mxu0 0.0
    %4398 = vmatpush2.msra.mxu0 0.0
    %4399 = vmatprep.subr.mxu0 0.0
    %4400 = vmatpush2.msra.mxu0 0.0
    %4401 = vmatprep.subr.mxu0 0.0
    %4402 = vmatpush2.msra.mxu0 0.0
    %4403 = vmatprep.subr.mxu0 0.0
    %4404 = vmatpush2.msra.mxu0 0.0
    %4405 = vmatprep.mubr.f32.mxu0 0.0
    %4406 = vmatmul.mubr.f32.gmra.mxu0 %v4339
    %v4407 = vpop.f32.mrf.mxu0
    %v4408 = vadd.f32 %v4337, %v4407
    %v4409 = vpop.f32.mrf.mxu0
    %4410 = vdwg.mxu0
    %v4411 = vadd.f32 %v4220, %v4408
    %v4412 = vsel %vm3091, %v4411, 0.0
    %4413 = vadd.xlane.f32.xlu0 %v4412
    %v4414 = vpop.xlane.xlu0 %4413
    %v4415 = vmul.f32 %v4414, %v158
    %v4416 = vsub.f32 %v4411, %v4415
    %v4417 = vmul.f32 %v4416, %v4416
    %v4418 = vsel %vm3091, %v4417, 0.0
    %4419 = vadd.xlane.f32.xlu0 %v4418
    %v4420 = vpop.xlane.xlu0 %4419
    %v4421 = vmul.f32 %v4420, %v158
    %v4422 = vadd.f32 %v4421, 1e-05
    %v4423 = vrsqrt.pop %v4422
    %v4424 = vmul.f32 %v4416, %v4423
    %v4425 = vlaneseq
    %v4426 = vshrl.u32 %v4425, 7
    %v4427 = vsub.s32 3, %v4426
    %v4428 = vrot.slane %v59, %v4427
    %v4429 = vmul.f32 %v4424, %v4428
    %v4430 = vlaneseq
    %v4431 = vshrl.u32 %v4430, 7
    %v4432 = vsub.s32 1, %v4431
    %v4433 = vrot.slane %v60, %v4432
    %v4434 = vadd.f32 %v4429, %v4433
    %s4435 = scalar_lea.vmem %s8, 64
    %v4436 = vld [vmem:[%s4435] sm:$0xff]
    %v4437 = vld [vmem:[%s4435 + $0x8] sm:$0xff]
    %v4438 = vld [vmem:[%s4435 + $0x10] sm:$0xff]
    %v4439 = vld [vmem:[%s4435 + $0x18] sm:$0xff]
    %v4440 = vlaneseq
    %v4441 = vshrl.u32 %v4440, 7
    %v4442 = vsub.s32 6, %v4441
    %v4443 = vrot.slane %v57, %v4442
    %v4445 = vsel %vm151, %v4434, 0
    %4447 = vmatprep.subr.mxu0 0.0
    %4448 = vmatpush1.msra.mxu0 0.0
    %4449 = vmatprep.subr.mxu0 0.0
    %4450 = vmatpush1.msra.mxu0 0.0
    %4451 = vmatprep.subr.mxu0 0.0
    %4452 = vmatpush1.msra.mxu0 0.0
    %4453 = vmatprep.subr.mxu0 0.0
    %4454 = vmatpush1.msra.mxu0 0.0
    %4455 = vmatprep.subr.mxu0 0.0
    %4456 = vmatpush1.msra.mxu0 0.0
    %4457 = vmatprep.subr.mxu0 0.0
    %4458 = vmatpush1.msra.mxu0 0.0
    %4459 = vmatprep.subr.mxu0 0.0
    %4460 = vmatpush1.msra.mxu0 0.0
    %4461 = vmatprep.subr.mxu0 0.0
    %4462 = vmatpush1.msra.mxu0 0.0
    %4463 = vmatprep.subr.mxu0 0.0
    %4464 = vmatpush1.msra.mxu0 0.0
    %4465 = vmatprep.subr.mxu0 0.0
    %4466 = vmatpush1.msra.mxu0 0.0
    %4467 = vmatprep.subr.mxu0 0.0
    %4468 = vmatpush1.msra.mxu0 0.0
    %4469 = vmatprep.subr.mxu0 0.0
    %4470 = vmatpush1.msra.mxu0 0.0
    %4471 = vmatprep.subr.mxu0 0.0
    %4472 = vmatpush1.msra.mxu0 %v4439
    %4473 = vmatprep.subr.mxu0 0.0
    %4474 = vmatpush1.msra.mxu0 %v4438
    %4475 = vmatprep.subr.mxu0 0.0
    %4476 = vmatpush1.msra.mxu0 %v4437
    %4477 = vmatprep.subr.mxu0 0.0
    %4478 = vmatpush1.msra.mxu0 %v4436
    %4479 = vmatprep.subr.mxu0 0.0
    %4480 = vmatpush2.msra.mxu0 0.0
    %4481 = vmatprep.subr.mxu0 0.0
    %4482 = vmatpush2.msra.mxu0 0.0
    %4483 = vmatprep.subr.mxu0 0.0
    %4484 = vmatpush2.msra.mxu0 0.0
    %4485 = vmatprep.subr.mxu0 0.0
    %4486 = vmatpush2.msra.mxu0 0.0
    %4487 = vmatprep.subr.mxu0 0.0
    %4488 = vmatpush2.msra.mxu0 0.0
    %4489 = vmatprep.subr.mxu0 0.0
    %4490 = vmatpush2.msra.mxu0 0.0
    %4491 = vmatprep.subr.mxu0 0.0
    %4492 = vmatpush2.msra.mxu0 0.0
    %4493 = vmatprep.subr.mxu0 0.0
    %4494 = vmatpush2.msra.mxu0 0.0
    %4495 = vmatprep.subr.mxu0 0.0
    %4496 = vmatpush2.msra.mxu0 0.0
    %4497 = vmatprep.subr.mxu0 0.0
    %4498 = vmatpush2.msra.mxu0 0.0
    %4499 = vmatprep.subr.mxu0 0.0
    %4500 = vmatpush2.msra.mxu0 0.0
    %4501 = vmatprep.subr.mxu0 0.0
    %4502 = vmatpush2.msra.mxu0 0.0
    %4503 = vmatprep.subr.mxu0 0.0
    %4504 = vmatpush2.msra.mxu0 0.0
    %4505 = vmatprep.subr.mxu0 0.0
    %4506 = vmatpush2.msra.mxu0 0.0
    %4507 = vmatprep.subr.mxu0 0.0
    %4508 = vmatpush2.msra.mxu0 0.0
    %4509 = vmatprep.subr.mxu0 0.0
    %4510 = vmatpush2.msra.mxu0 0.0
    %4511 = vmatprep.mubr.f32.mxu0 0.0
    %4512 = vmatmul.mubr.f32.gmra.mxu0 %v4445
    %v4513 = vpop.f32.mrf.mxu0
    %v4514 = vadd.f32 %v4443, %v4513
    %v4515 = vpop.f32.mrf.mxu0
    %4516 = vdwg.mxu0
    %s4517 = scalar_lea.vmem %s8, 96
    %v4518 = vld [vmem:[%s4517] sm:$0xff]
    %v4519 = vld [vmem:[%s4517 + $0x8] sm:$0xff]
    %v4520 = vld [vmem:[%s4517 + $0x10] sm:$0xff]
    %v4521 = vld [vmem:[%s4517 + $0x18] sm:$0xff]
    %v4522 = vlaneseq
    %v4523 = vshrl.u32 %v4522, 7
    %v4524 = vsub.s32 7, %v4523
    %v4525 = vrot.slane %v57, %v4524
    %v4527 = vsel %vm151, %v4514, 0
    %4529 = vmatprep.subr.mxu0 0.0
    %4530 = vmatpush1.msra.mxu0 0.0
    %4531 = vmatprep.subr.mxu0 0.0
    %4532 = vmatpush1.msra.mxu0 0.0
    %4533 = vmatprep.subr.mxu0 0.0
    %4534 = vmatpush1.msra.mxu0 0.0
    %4535 = vmatprep.subr.mxu0 0.0
    %4536 = vmatpush1.msra.mxu0 0.0
    %4537 = vmatprep.subr.mxu0 0.0
    %4538 = vmatpush1.msra.mxu0 0.0
    %4539 = vmatprep.subr.mxu0 0.0
    %4540 = vmatpush1.msra.mxu0 0.0
    %4541 = vmatprep.subr.mxu0 0.0
    %4542 = vmatpush1.msra.mxu0 0.0
    %4543 = vmatprep.subr.mxu0 0.0
    %4544 = vmatpush1.msra.mxu0 0.0
    %4545 = vmatprep.subr.mxu0 0.0
    %4546 = vmatpush1.msra.mxu0 0.0
    %4547 = vmatprep.subr.mxu0 0.0
    %4548 = vmatpush1.msra.mxu0 0.0
    %4549 = vmatprep.subr.mxu0 0.0
    %4550 = vmatpush1.msra.mxu0 0.0
    %4551 = vmatprep.subr.mxu0 0.0
    %4552 = vmatpush1.msra.mxu0 0.0
    %4553 = vmatprep.subr.mxu0 0.0
    %4554 = vmatpush1.msra.mxu0 %v4521
    %4555 = vmatprep.subr.mxu0 0.0
    %4556 = vmatpush1.msra.mxu0 %v4520
    %4557 = vmatprep.subr.mxu0 0.0
    %4558 = vmatpush1.msra.mxu0 %v4519
    %4559 = vmatprep.subr.mxu0 0.0
    %4560 = vmatpush1.msra.mxu0 %v4518
    %4561 = vmatprep.subr.mxu0 0.0
    %4562 = vmatpush2.msra.mxu0 0.0
    %4563 = vmatprep.subr.mxu0 0.0
    %4564 = vmatpush2.msra.mxu0 0.0
    %4565 = vmatprep.subr.mxu0 0.0
    %4566 = vmatpush2.msra.mxu0 0.0
    %4567 = vmatprep.subr.mxu0 0.0
    %4568 = vmatpush2.msra.mxu0 0.0
    %4569 = vmatprep.subr.mxu0 0.0
    %4570 = vmatpush2.msra.mxu0 0.0
    %4571 = vmatprep.subr.mxu0 0.0
    %4572 = vmatpush2.msra.mxu0 0.0
    %4573 = vmatprep.subr.mxu0 0.0
    %4574 = vmatpush2.msra.mxu0 0.0
    %4575 = vmatprep.subr.mxu0 0.0
    %4576 = vmatpush2.msra.mxu0 0.0
    %4577 = vmatprep.subr.mxu0 0.0
    %4578 = vmatpush2.msra.mxu0 0.0
    %4579 = vmatprep.subr.mxu0 0.0
    %4580 = vmatpush2.msra.mxu0 0.0
    %4581 = vmatprep.subr.mxu0 0.0
    %4582 = vmatpush2.msra.mxu0 0.0
    %4583 = vmatprep.subr.mxu0 0.0
    %4584 = vmatpush2.msra.mxu0 0.0
    %4585 = vmatprep.subr.mxu0 0.0
    %4586 = vmatpush2.msra.mxu0 0.0
    %4587 = vmatprep.subr.mxu0 0.0
    %4588 = vmatpush2.msra.mxu0 0.0
    %4589 = vmatprep.subr.mxu0 0.0
    %4590 = vmatpush2.msra.mxu0 0.0
    %4591 = vmatprep.subr.mxu0 0.0
    %4592 = vmatpush2.msra.mxu0 0.0
    %4593 = vmatprep.mubr.f32.mxu0 0.0
    %4594 = vmatmul.mubr.f32.gmra.mxu0 %v4527
    %v4595 = vpop.f32.mrf.mxu0
    %v4596 = vadd.f32 %v4525, %v4595
    %v4597 = vpop.f32.mrf.mxu0
    %4598 = vdwg.mxu0
    %v4599 = vadd.f32 %v4411, %v4596
    %v4600 = vsel %vm3091, %v4599, 0.0
    %4601 = vadd.xlane.f32.xlu0 %v4600
    %v4602 = vpop.xlane.xlu0 %4601
    %v4603 = vmul.f32 %v4602, %v158
    %v4604 = vsub.f32 %v4599, %v4603
    %v4605 = vmul.f32 %v4604, %v4604
    %v4606 = vsel %vm3091, %v4605, 0.0
    %4607 = vadd.xlane.f32.xlu0 %v4606
    %v4608 = vpop.xlane.xlu0 %4607
    %v4609 = vmul.f32 %v4608, %v158
    %v4610 = vadd.f32 %v4609, 1e-05
    %v4611 = vrsqrt.pop %v4610
    %v4612 = vmul.f32 %v4604, %v4611
    %v4613 = vlaneseq
    %v4614 = vshrl.u32 %v4613, 7
    %v4615 = vsub.s32 4, %v4614
    %v4616 = vrot.slane %v59, %v4615
    %v4617 = vmul.f32 %v4612, %v4616
    %v4618 = vlaneseq
    %v4619 = vshrl.u32 %v4618, 7
    %v4620 = vsub.s32 2, %v4619
    %v4621 = vrot.slane %v60, %v4620
    %v4622 = vadd.f32 %v4617, %v4621
    %s4623 = scalar_lea.vmem %s9, 128
    %v4624 = vld [vmem:[%s4623] sm:$0xff]
    %v4625 = vld [vmem:[%s4623 + $0x8] sm:$0xff]
    %v4626 = vld [vmem:[%s4623 + $0x10] sm:$0xff]
    %v4627 = vld [vmem:[%s4623 + $0x18] sm:$0xff]
    %s4628 = scalar_lea.vmem %s9, 160
    %v4629 = vld [vmem:[%s4628] sm:$0xff]
    %v4630 = vld [vmem:[%s4628 + $0x8] sm:$0xff]
    %v4631 = vld [vmem:[%s4628 + $0x10] sm:$0xff]
    %v4632 = vld [vmem:[%s4628 + $0x18] sm:$0xff]
    %s4633 = scalar_lea.vmem %s9, 192
    %v4634 = vld [vmem:[%s4633] sm:$0xff]
    %v4635 = vld [vmem:[%s4633 + $0x8] sm:$0xff]
    %v4636 = vld [vmem:[%s4633 + $0x10] sm:$0xff]
    %v4637 = vld [vmem:[%s4633 + $0x18] sm:$0xff]
    %s4638 = scalar_lea.vmem %s9, 224
    %v4639 = vld [vmem:[%s4638] sm:$0xff]
    %v4640 = vld [vmem:[%s4638 + $0x8] sm:$0xff]
    %v4641 = vld [vmem:[%s4638 + $0x10] sm:$0xff]
    %v4642 = vld [vmem:[%s4638 + $0x18] sm:$0xff]
    %v4643 = vlaneseq
    %v4644 = vshrl.u32 %v4643, 7
    %v4645 = vsub.s32 4, %v4644
    %v4646 = vrot.slane %v58, %v4645
    %v4648 = vsel %vm151, %v4622, 0
    %4650 = vmatprep.subr.mxu0 0.0
    %4651 = vmatpush1.msra.mxu0 0.0
    %4652 = vmatprep.subr.mxu0 0.0
    %4653 = vmatpush1.msra.mxu0 0.0
    %4654 = vmatprep.subr.mxu0 0.0
    %4655 = vmatpush1.msra.mxu0 0.0
    %4656 = vmatprep.subr.mxu0 0.0
    %4657 = vmatpush1.msra.mxu0 0.0
    %4658 = vmatprep.subr.mxu0 0.0
    %4659 = vmatpush1.msra.mxu0 0.0
    %4660 = vmatprep.subr.mxu0 0.0
    %4661 = vmatpush1.msra.mxu0 0.0
    %4662 = vmatprep.subr.mxu0 0.0
    %4663 = vmatpush1.msra.mxu0 0.0
    %4664 = vmatprep.subr.mxu0 0.0
    %4665 = vmatpush1.msra.mxu0 0.0
    %4666 = vmatprep.subr.mxu0 0.0
    %4667 = vmatpush1.msra.mxu0 0.0
    %4668 = vmatprep.subr.mxu0 0.0
    %4669 = vmatpush1.msra.mxu0 0.0
    %4670 = vmatprep.subr.mxu0 0.0
    %4671 = vmatpush1.msra.mxu0 0.0
    %4672 = vmatprep.subr.mxu0 0.0
    %4673 = vmatpush1.msra.mxu0 0.0
    %4674 = vmatprep.subr.mxu0 0.0
    %4675 = vmatpush1.msra.mxu0 %v4627
    %4676 = vmatprep.subr.mxu0 0.0
    %4677 = vmatpush1.msra.mxu0 %v4626
    %4678 = vmatprep.subr.mxu0 0.0
    %4679 = vmatpush1.msra.mxu0 %v4625
    %4680 = vmatprep.subr.mxu0 0.0
    %4681 = vmatpush1.msra.mxu0 %v4624
    %4682 = vmatprep.subr.mxu0 0.0
    %4683 = vmatpush2.msra.mxu0 0.0
    %4684 = vmatprep.subr.mxu0 0.0
    %4685 = vmatpush2.msra.mxu0 0.0
    %4686 = vmatprep.subr.mxu0 0.0
    %4687 = vmatpush2.msra.mxu0 0.0
    %4688 = vmatprep.subr.mxu0 0.0
    %4689 = vmatpush2.msra.mxu0 0.0
    %4690 = vmatprep.subr.mxu0 0.0
    %4691 = vmatpush2.msra.mxu0 0.0
    %4692 = vmatprep.subr.mxu0 0.0
    %4693 = vmatpush2.msra.mxu0 0.0
    %4694 = vmatprep.subr.mxu0 0.0
    %4695 = vmatpush2.msra.mxu0 0.0
    %4696 = vmatprep.subr.mxu0 0.0
    %4697 = vmatpush2.msra.mxu0 0.0
    %4698 = vmatprep.subr.mxu0 0.0
    %4699 = vmatpush2.msra.mxu0 0.0
    %4700 = vmatprep.subr.mxu0 0.0
    %4701 = vmatpush2.msra.mxu0 0.0
    %4702 = vmatprep.subr.mxu0 0.0
    %4703 = vmatpush2.msra.mxu0 0.0
    %4704 = vmatprep.subr.mxu0 0.0
    %4705 = vmatpush2.msra.mxu0 0.0
    %4706 = vmatprep.subr.mxu0 0.0
    %4707 = vmatpush2.msra.mxu0 0.0
    %4708 = vmatprep.subr.mxu0 0.0
    %4709 = vmatpush2.msra.mxu0 0.0
    %4710 = vmatprep.subr.mxu0 0.0
    %4711 = vmatpush2.msra.mxu0 0.0
    %4712 = vmatprep.subr.mxu0 0.0
    %4713 = vmatpush2.msra.mxu0 0.0
    %4714 = vmatprep.mubr.f32.mxu0 0.0
    %4715 = vmatmul.mubr.f32.gmra.mxu0 %v4648
    %v4716 = vpop.f32.mrf.mxu0
    %v4717 = vadd.f32 %v4646, %v4716
    %v4718 = vpop.f32.mrf.mxu0
    %4719 = vdwg.mxu0
    %v4720 = vlaneseq
    %v4721 = vshrl.u32 %v4720, 7
    %v4722 = vsub.s32 5, %v4721
    %v4723 = vrot.slane %v58, %v4722
    %4724 = vmatprep.subr.mxu0 0.0
    %4725 = vmatpush1.msra.mxu0 0.0
    %4726 = vmatprep.subr.mxu0 0.0
    %4727 = vmatpush1.msra.mxu0 0.0
    %4728 = vmatprep.subr.mxu0 0.0
    %4729 = vmatpush1.msra.mxu0 0.0
    %4730 = vmatprep.subr.mxu0 0.0
    %4731 = vmatpush1.msra.mxu0 0.0
    %4732 = vmatprep.subr.mxu0 0.0
    %4733 = vmatpush1.msra.mxu0 0.0
    %4734 = vmatprep.subr.mxu0 0.0
    %4735 = vmatpush1.msra.mxu0 0.0
    %4736 = vmatprep.subr.mxu0 0.0
    %4737 = vmatpush1.msra.mxu0 0.0
    %4738 = vmatprep.subr.mxu0 0.0
    %4739 = vmatpush1.msra.mxu0 0.0
    %4740 = vmatprep.subr.mxu0 0.0
    %4741 = vmatpush1.msra.mxu0 0.0
    %4742 = vmatprep.subr.mxu0 0.0
    %4743 = vmatpush1.msra.mxu0 0.0
    %4744 = vmatprep.subr.mxu0 0.0
    %4745 = vmatpush1.msra.mxu0 0.0
    %4746 = vmatprep.subr.mxu0 0.0
    %4747 = vmatpush1.msra.mxu0 0.0
    %4748 = vmatprep.subr.mxu0 0.0
    %4749 = vmatpush1.msra.mxu0 %v4632
    %4750 = vmatprep.subr.mxu0 0.0
    %4751 = vmatpush1.msra.mxu0 %v4631
    %4752 = vmatprep.subr.mxu0 0.0
    %4753 = vmatpush1.msra.mxu0 %v4630
    %4754 = vmatprep.subr.mxu0 0.0
    %4755 = vmatpush1.msra.mxu0 %v4629
    %4756 = vmatprep.subr.mxu0 0.0
    %4757 = vmatpush2.msra.mxu0 0.0
    %4758 = vmatprep.subr.mxu0 0.0
    %4759 = vmatpush2.msra.mxu0 0.0
    %4760 = vmatprep.subr.mxu0 0.0
    %4761 = vmatpush2.msra.mxu0 0.0
    %4762 = vmatprep.subr.mxu0 0.0
    %4763 = vmatpush2.msra.mxu0 0.0
    %4764 = vmatprep.subr.mxu0 0.0
    %4765 = vmatpush2.msra.mxu0 0.0
    %4766 = vmatprep.subr.mxu0 0.0
    %4767 = vmatpush2.msra.mxu0 0.0
    %4768 = vmatprep.subr.mxu0 0.0
    %4769 = vmatpush2.msra.mxu0 0.0
    %4770 = vmatprep.subr.mxu0 0.0
    %4771 = vmatpush2.msra.mxu0 0.0
    %4772 = vmatprep.subr.mxu0 0.0
    %4773 = vmatpush2.msra.mxu0 0.0
    %4774 = vmatprep.subr.mxu0 0.0
    %4775 = vmatpush2.msra.mxu0 0.0
    %4776 = vmatprep.subr.mxu0 0.0
    %4777 = vmatpush2.msra.mxu0 0.0
    %4778 = vmatprep.subr.mxu0 0.0
    %4779 = vmatpush2.msra.mxu0 0.0
    %4780 = vmatprep.subr.mxu0 0.0
    %4781 = vmatpush2.msra.mxu0 0.0
    %4782 = vmatprep.subr.mxu0 0.0
    %4783 = vmatpush2.msra.mxu0 0.0
    %4784 = vmatprep.subr.mxu0 0.0
    %4785 = vmatpush2.msra.mxu0 0.0
    %4786 = vmatprep.subr.mxu0 0.0
    %4787 = vmatpush2.msra.mxu0 0.0
    %4788 = vmatprep.mubr.f32.mxu0 0.0
    %4789 = vmatmul.mubr.f32.gmra.mxu0 %v3216
    %v4790 = vpop.f32.mrf.mxu0
    %v4791 = vadd.f32 %v4723, %v4790
    %v4792 = vpop.f32.mrf.mxu0
    %4793 = vmatprep.mubr.f32.mxu0 0.0
    %4794 = vmatmul.mubr.f32.gmra.mxu0 %v3219
    %v4795 = vpop.f32.mrf.mxu0
    %v4796 = vadd.f32 %v4723, %v4795
    %v4797 = vpop.f32.mrf.mxu0
    %4798 = vdwg.mxu0
    %v4799 = vlaneseq
    %v4800 = vshrl.u32 %v4799, 7
    %v4801 = vsub.s32 6, %v4800
    %v4802 = vrot.slane %v58, %v4801
    %4803 = vmatprep.subr.mxu0 0.0
    %4804 = vmatpush1.msra.mxu0 0.0
    %4805 = vmatprep.subr.mxu0 0.0
    %4806 = vmatpush1.msra.mxu0 0.0
    %4807 = vmatprep.subr.mxu0 0.0
    %4808 = vmatpush1.msra.mxu0 0.0
    %4809 = vmatprep.subr.mxu0 0.0
    %4810 = vmatpush1.msra.mxu0 0.0
    %4811 = vmatprep.subr.mxu0 0.0
    %4812 = vmatpush1.msra.mxu0 0.0
    %4813 = vmatprep.subr.mxu0 0.0
    %4814 = vmatpush1.msra.mxu0 0.0
    %4815 = vmatprep.subr.mxu0 0.0
    %4816 = vmatpush1.msra.mxu0 0.0
    %4817 = vmatprep.subr.mxu0 0.0
    %4818 = vmatpush1.msra.mxu0 0.0
    %4819 = vmatprep.subr.mxu0 0.0
    %4820 = vmatpush1.msra.mxu0 0.0
    %4821 = vmatprep.subr.mxu0 0.0
    %4822 = vmatpush1.msra.mxu0 0.0
    %4823 = vmatprep.subr.mxu0 0.0
    %4824 = vmatpush1.msra.mxu0 0.0
    %4825 = vmatprep.subr.mxu0 0.0
    %4826 = vmatpush1.msra.mxu0 0.0
    %4827 = vmatprep.subr.mxu0 0.0
    %4828 = vmatpush1.msra.mxu0 %v4637
    %4829 = vmatprep.subr.mxu0 0.0
    %4830 = vmatpush1.msra.mxu0 %v4636
    %4831 = vmatprep.subr.mxu0 0.0
    %4832 = vmatpush1.msra.mxu0 %v4635
    %4833 = vmatprep.subr.mxu0 0.0
    %4834 = vmatpush1.msra.mxu0 %v4634
    %4835 = vmatprep.subr.mxu0 0.0
    %4836 = vmatpush2.msra.mxu0 0.0
    %4837 = vmatprep.subr.mxu0 0.0
    %4838 = vmatpush2.msra.mxu0 0.0
    %4839 = vmatprep.subr.mxu0 0.0
    %4840 = vmatpush2.msra.mxu0 0.0
    %4841 = vmatprep.subr.mxu0 0.0
    %4842 = vmatpush2.msra.mxu0 0.0
    %4843 = vmatprep.subr.mxu0 0.0
    %4844 = vmatpush2.msra.mxu0 0.0
    %4845 = vmatprep.subr.mxu0 0.0
    %4846 = vmatpush2.msra.mxu0 0.0
    %4847 = vmatprep.subr.mxu0 0.0
    %4848 = vmatpush2.msra.mxu0 0.0
    %4849 = vmatprep.subr.mxu0 0.0
    %4850 = vmatpush2.msra.mxu0 0.0
    %4851 = vmatprep.subr.mxu0 0.0
    %4852 = vmatpush2.msra.mxu0 0.0
    %4853 = vmatprep.subr.mxu0 0.0
    %4854 = vmatpush2.msra.mxu0 0.0
    %4855 = vmatprep.subr.mxu0 0.0
    %4856 = vmatpush2.msra.mxu0 0.0
    %4857 = vmatprep.subr.mxu0 0.0
    %4858 = vmatpush2.msra.mxu0 0.0
    %4859 = vmatprep.subr.mxu0 0.0
    %4860 = vmatpush2.msra.mxu0 0.0
    %4861 = vmatprep.subr.mxu0 0.0
    %4862 = vmatpush2.msra.mxu0 0.0
    %4863 = vmatprep.subr.mxu0 0.0
    %4864 = vmatpush2.msra.mxu0 0.0
    %4865 = vmatprep.subr.mxu0 0.0
    %4866 = vmatpush2.msra.mxu0 0.0
    %4867 = vmatprep.mubr.f32.mxu0 0.0
    %4868 = vmatmul.mubr.f32.gmra.mxu0 %v3216
    %v4869 = vpop.f32.mrf.mxu0
    %v4870 = vadd.f32 %v4802, %v4869
    %v4871 = vpop.f32.mrf.mxu0
    %4872 = vmatprep.mubr.f32.mxu0 0.0
    %4873 = vmatmul.mubr.f32.gmra.mxu0 %v3219
    %v4874 = vpop.f32.mrf.mxu0
    %v4875 = vadd.f32 %v4802, %v4874
    %v4876 = vpop.f32.mrf.mxu0
    %4877 = vdwg.mxu0
    %v4880 = vunpack.c.l.s4 1966171168
    %v4881 = vunpack.c.0.s8 %v4880
    %v4882 = vlaneseq
    %v4883 = vshrl.u32 %v4882, 7
    %v4884 = vsub.s32 %v4881, %v4883
    %v4885 = vrot.slane %v4717, %v4884
    %v4886 = vcombine.high %v4885, %v4885
    %v4888 = vunpack.c.l.s4 1966171168
    %v4889 = vunpack.c.0.s8 %v4888
    %v4890 = vlaneseq
    %v4891 = vshrl.u32 %v4890, 7
    %v4892 = vsub.s32 %v4889, %v4891
    %v4893 = vrot.slane %v4885, %v4892
    %v4895 = vunpack.c.l.s4 1966171168
    %v4896 = vunpack.c.0.s8 %v4895
    %v4897 = vlaneseq
    %v4898 = vshrl.u32 %v4897, 7
    %v4899 = vsub.s32 %v4896, %v4898
    %v4900 = vrot.slane %v4886, %v4899
    %v4901 = vsel %vm69, %v4893, 0
    %v4904 = vsel %vm69, %v4791, 0
    %4906 = vmatprep.subr.mxu0 0.0
    %4907 = vmatpush1.xpose.msra.mxu0 0.0
    %4908 = vmatprep.subr.mxu0 0.0
    %4909 = vmatpush1.xpose.msra.mxu0 0.0
    %4910 = vmatprep.subr.mxu0 0.0
    %4911 = vmatpush1.xpose.msra.mxu0 0.0
    %4912 = vmatprep.subr.mxu0 0.0
    %4913 = vmatpush1.xpose.msra.mxu0 0.0
    %4914 = vmatprep.subr.mxu0 0.0
    %4915 = vmatpush1.xpose.msra.mxu0 0.0
    %4916 = vmatprep.subr.mxu0 0.0
    %4917 = vmatpush1.xpose.msra.mxu0 0.0
    %4918 = vmatprep.subr.mxu0 0.0
    %4919 = vmatpush1.xpose.msra.mxu0 0.0
    %4920 = vmatprep.subr.mxu0 0.0
    %4921 = vmatpush1.xpose.msra.mxu0 0.0
    %4922 = vmatprep.subr.mxu0 0.0
    %4923 = vmatpush1.xpose.msra.mxu0 0.0
    %4924 = vmatprep.subr.mxu0 0.0
    %4925 = vmatpush1.xpose.msra.mxu0 0.0
    %4926 = vmatprep.subr.mxu0 0.0
    %4927 = vmatpush1.xpose.msra.mxu0 0.0
    %4928 = vmatprep.subr.mxu0 0.0
    %4929 = vmatpush1.xpose.msra.mxu0 0.0
    %4930 = vmatprep.subr.mxu0 0.0
    %4931 = vmatpush1.xpose.msra.mxu0 0.0
    %4932 = vmatprep.subr.mxu0 0.0
    %4933 = vmatpush1.xpose.msra.mxu0 0.0
    %4934 = vmatprep.subr.mxu0 0.0
    %4935 = vmatpush1.xpose.msra.mxu0 0.0
    %4936 = vmatprep.subr.mxu0 0.0
    %4937 = vmatpush1.xpose.msra.mxu0 %v4904
    %4938 = vmatprep.subr.mxu0 0.0
    %4939 = vmatpush2.xpose.msra.mxu0 0.0
    %4940 = vmatprep.subr.mxu0 0.0
    %4941 = vmatpush2.xpose.msra.mxu0 0.0
    %4942 = vmatprep.subr.mxu0 0.0
    %4943 = vmatpush2.xpose.msra.mxu0 0.0
    %4944 = vmatprep.subr.mxu0 0.0
    %4945 = vmatpush2.xpose.msra.mxu0 0.0
    %4946 = vmatprep.subr.mxu0 0.0
    %4947 = vmatpush2.xpose.msra.mxu0 0.0
    %4948 = vmatprep.subr.mxu0 0.0
    %4949 = vmatpush2.xpose.msra.mxu0 0.0
    %4950 = vmatprep.subr.mxu0 0.0
    %4951 = vmatpush2.xpose.msra.mxu0 0.0
    %4952 = vmatprep.subr.mxu0 0.0
    %4953 = vmatpush2.xpose.msra.mxu0 0.0
    %4954 = vmatprep.subr.mxu0 0.0
    %4955 = vmatpush2.xpose.msra.mxu0 0.0
    %4956 = vmatprep.subr.mxu0 0.0
    %4957 = vmatpush2.xpose.msra.mxu0 0.0
    %4958 = vmatprep.subr.mxu0 0.0
    %4959 = vmatpush2.xpose.msra.mxu0 0.0
    %4960 = vmatprep.subr.mxu0 0.0
    %4961 = vmatpush2.xpose.msra.mxu0 0.0
    %4962 = vmatprep.subr.mxu0 0.0
    %4963 = vmatpush2.xpose.msra.mxu0 0.0
    %4964 = vmatprep.subr.mxu0 0.0
    %4965 = vmatpush2.xpose.msra.mxu0 0.0
    %4966 = vmatprep.subr.mxu0 0.0
    %4967 = vmatpush2.xpose.msra.mxu0 0.0
    %4968 = vmatprep.subr.mxu0 0.0
    %4969 = vmatpush2.xpose.msra.mxu0 0.0
    %4970 = vmatprep.mubr.f32.mxu0 0.0
    %4971 = vmatmul.mubr.f32.gmra.mxu0 %v4901
    %v4972 = vpop.f32.mrf.mxu0
    %v4973 = vadd.f32 0.0, %v4972
    %v4974 = vpop.f32.mrf.mxu0
    %4975 = vdwg.mxu0
    %v4976 = vsel %vm69, %v4900, 0
    %v4979 = vsel %vm69, %v4796, 0
    %4981 = vmatprep.subr.mxu0 0.0
    %4982 = vmatpush1.xpose.msra.mxu0 0.0
    %4983 = vmatprep.subr.mxu0 0.0
    %4984 = vmatpush1.xpose.msra.mxu0 0.0
    %4985 = vmatprep.subr.mxu0 0.0
    %4986 = vmatpush1.xpose.msra.mxu0 0.0
    %4987 = vmatprep.subr.mxu0 0.0
    %4988 = vmatpush1.xpose.msra.mxu0 0.0
    %4989 = vmatprep.subr.mxu0 0.0
    %4990 = vmatpush1.xpose.msra.mxu0 0.0
    %4991 = vmatprep.subr.mxu0 0.0
    %4992 = vmatpush1.xpose.msra.mxu0 0.0
    %4993 = vmatprep.subr.mxu0 0.0
    %4994 = vmatpush1.xpose.msra.mxu0 0.0
    %4995 = vmatprep.subr.mxu0 0.0
    %4996 = vmatpush1.xpose.msra.mxu0 0.0
    %4997 = vmatprep.subr.mxu0 0.0
    %4998 = vmatpush1.xpose.msra.mxu0 0.0
    %4999 = vmatprep.subr.mxu0 0.0
    %5000 = vmatpush1.xpose.msra.mxu0 0.0
    %5001 = vmatprep.subr.mxu0 0.0
    %5002 = vmatpush1.xpose.msra.mxu0 0.0
    %5003 = vmatprep.subr.mxu0 0.0
    %5004 = vmatpush1.xpose.msra.mxu0 0.0
    %5005 = vmatprep.subr.mxu0 0.0
    %5006 = vmatpush1.xpose.msra.mxu0 0.0
    %5007 = vmatprep.subr.mxu0 0.0
    %5008 = vmatpush1.xpose.msra.mxu0 0.0
    %5009 = vmatprep.subr.mxu0 0.0
    %5010 = vmatpush1.xpose.msra.mxu0 0.0
    %5011 = vmatprep.subr.mxu0 0.0
    %5012 = vmatpush1.xpose.msra.mxu0 %v4979
    %5013 = vmatprep.subr.mxu0 0.0
    %5014 = vmatpush2.xpose.msra.mxu0 0.0
    %5015 = vmatprep.subr.mxu0 0.0
    %5016 = vmatpush2.xpose.msra.mxu0 0.0
    %5017 = vmatprep.subr.mxu0 0.0
    %5018 = vmatpush2.xpose.msra.mxu0 0.0
    %5019 = vmatprep.subr.mxu0 0.0
    %5020 = vmatpush2.xpose.msra.mxu0 0.0
    %5021 = vmatprep.subr.mxu0 0.0
    %5022 = vmatpush2.xpose.msra.mxu0 0.0
    %5023 = vmatprep.subr.mxu0 0.0
    %5024 = vmatpush2.xpose.msra.mxu0 0.0
    %5025 = vmatprep.subr.mxu0 0.0
    %5026 = vmatpush2.xpose.msra.mxu0 0.0
    %5027 = vmatprep.subr.mxu0 0.0
    %5028 = vmatpush2.xpose.msra.mxu0 0.0
    %5029 = vmatprep.subr.mxu0 0.0
    %5030 = vmatpush2.xpose.msra.mxu0 0.0
    %5031 = vmatprep.subr.mxu0 0.0
    %5032 = vmatpush2.xpose.msra.mxu0 0.0
    %5033 = vmatprep.subr.mxu0 0.0
    %5034 = vmatpush2.xpose.msra.mxu0 0.0
    %5035 = vmatprep.subr.mxu0 0.0
    %5036 = vmatpush2.xpose.msra.mxu0 0.0
    %5037 = vmatprep.subr.mxu0 0.0
    %5038 = vmatpush2.xpose.msra.mxu0 0.0
    %5039 = vmatprep.subr.mxu0 0.0
    %5040 = vmatpush2.xpose.msra.mxu0 0.0
    %5041 = vmatprep.subr.mxu0 0.0
    %5042 = vmatpush2.xpose.msra.mxu0 0.0
    %5043 = vmatprep.subr.mxu0 0.0
    %5044 = vmatpush2.xpose.msra.mxu0 0.0
    %5045 = vmatprep.mubr.f32.mxu0 0.0
    %5046 = vmatmul.mubr.f32.gmra.mxu0 %v4976
    %v5047 = vpop.f32.mrf.mxu0
    %v5048 = vadd.f32 0.0, %v5047
    %v5049 = vpop.f32.mrf.mxu0
    %5050 = vdwg.mxu0
    %v5051 = vmul.f32 %v4973, 0.25
    %v5052 = vmul.f32 %v5048, 0.25
    %v5053 = vsel %vm3550, %v5051, -inf
    %5054 = vmax.xlane.f32.xlu0 %v5053
    %v5055 = vpop.xlane.xlu0 %5054
    %v5056 = vsel %vm3550, %v5052, -inf
    %5057 = vmax.xlane.f32.xlu0 %v5056
    %v5058 = vpop.xlane.xlu0 %5057
    %v5059 = vsub.f32 %v5051, %v5055
    %v5060 = vsub.f32 %v5052, %v5058
    %v5061 = vmul.f32 %v5059, 1.442695
    %v5062 = vpow.pop %v5061
    %v5063 = vmul.f32 %v5060, 1.442695
    %v5064 = vpow.pop %v5063
    %v5065 = vsel %vm3550, %v5062, 0.0
    %5066 = vadd.xlane.f32.xlu0 %v5065
    %v5067 = vpop.xlane.xlu0 %5066
    %v5068 = vsel %vm3550, %v5064, 0.0
    %5069 = vadd.xlane.f32.xlu0 %v5068
    %v5070 = vpop.xlane.xlu0 %5069
    %v5071 = vrcp.pop %v5067
    %v5072 = vmul.f32 %v5062, %v5071
    %v5073 = vrcp.pop %v5070
    %v5074 = vmul.f32 %v5064, %v5073
    %v5076 = vsel %vm607, %v5072, 0
    %5078 = vmatprep.subr.mxu0 0.0
    %5079 = vmatpush1.msra.mxu0 0.0
    %5080 = vmatprep.subr.mxu0 0.0
    %5081 = vmatpush1.msra.mxu0 0.0
    %5082 = vmatprep.subr.mxu0 0.0
    %5083 = vmatpush1.msra.mxu0 0.0
    %5084 = vmatprep.subr.mxu0 0.0
    %5085 = vmatpush1.msra.mxu0 0.0
    %5086 = vmatprep.subr.mxu0 0.0
    %5087 = vmatpush1.msra.mxu0 0.0
    %5088 = vmatprep.subr.mxu0 0.0
    %5089 = vmatpush1.msra.mxu0 0.0
    %5090 = vmatprep.subr.mxu0 0.0
    %5091 = vmatpush1.msra.mxu0 0.0
    %5092 = vmatprep.subr.mxu0 0.0
    %5093 = vmatpush1.msra.mxu0 0.0
    %5094 = vmatprep.subr.mxu0 0.0
    %5095 = vmatpush1.msra.mxu0 0.0
    %5096 = vmatprep.subr.mxu0 0.0
    %5097 = vmatpush1.msra.mxu0 0.0
    %5098 = vmatprep.subr.mxu0 0.0
    %5099 = vmatpush1.msra.mxu0 0.0
    %5100 = vmatprep.subr.mxu0 0.0
    %5101 = vmatpush1.msra.mxu0 0.0
    %5102 = vmatprep.subr.mxu0 0.0
    %5103 = vmatpush1.msra.mxu0 0.0
    %5104 = vmatprep.subr.mxu0 0.0
    %5105 = vmatpush1.msra.mxu0 0.0
    %5106 = vmatprep.subr.mxu0 0.0
    %5107 = vmatpush1.msra.mxu0 0.0
    %5108 = vmatprep.subr.mxu0 0.0
    %5109 = vmatpush1.msra.mxu0 %v4870
    %5110 = vmatprep.subr.mxu0 0.0
    %5111 = vmatpush2.msra.mxu0 0.0
    %5112 = vmatprep.subr.mxu0 0.0
    %5113 = vmatpush2.msra.mxu0 0.0
    %5114 = vmatprep.subr.mxu0 0.0
    %5115 = vmatpush2.msra.mxu0 0.0
    %5116 = vmatprep.subr.mxu0 0.0
    %5117 = vmatpush2.msra.mxu0 0.0
    %5118 = vmatprep.subr.mxu0 0.0
    %5119 = vmatpush2.msra.mxu0 0.0
    %5120 = vmatprep.subr.mxu0 0.0
    %5121 = vmatpush2.msra.mxu0 0.0
    %5122 = vmatprep.subr.mxu0 0.0
    %5123 = vmatpush2.msra.mxu0 0.0
    %5124 = vmatprep.subr.mxu0 0.0
    %5125 = vmatpush2.msra.mxu0 0.0
    %5126 = vmatprep.subr.mxu0 0.0
    %5127 = vmatpush2.msra.mxu0 0.0
    %5128 = vmatprep.subr.mxu0 0.0
    %5129 = vmatpush2.msra.mxu0 0.0
    %5130 = vmatprep.subr.mxu0 0.0
    %5131 = vmatpush2.msra.mxu0 0.0
    %5132 = vmatprep.subr.mxu0 0.0
    %5133 = vmatpush2.msra.mxu0 0.0
    %5134 = vmatprep.subr.mxu0 0.0
    %5135 = vmatpush2.msra.mxu0 0.0
    %5136 = vmatprep.subr.mxu0 0.0
    %5137 = vmatpush2.msra.mxu0 0.0
    %5138 = vmatprep.subr.mxu0 0.0
    %5139 = vmatpush2.msra.mxu0 0.0
    %5140 = vmatprep.subr.mxu0 0.0
    %5141 = vmatpush2.msra.mxu0 0.0
    %5142 = vmatprep.mubr.f32.mxu0 0.0
    %5143 = vmatmul.mubr.f32.gmra.mxu0 %v5076
    %v5144 = vpop.f32.mrf.mxu0
    %v5145 = vadd.f32 0.0, %v5144
    %v5146 = vpop.f32.mrf.mxu0
    %5147 = vdwg.mxu0
    %v5149 = vsel %vm607, %v5074, 0
    %5151 = vmatprep.subr.mxu0 0.0
    %5152 = vmatpush1.msra.mxu0 0.0
    %5153 = vmatprep.subr.mxu0 0.0
    %5154 = vmatpush1.msra.mxu0 0.0
    %5155 = vmatprep.subr.mxu0 0.0
    %5156 = vmatpush1.msra.mxu0 0.0
    %5157 = vmatprep.subr.mxu0 0.0
    %5158 = vmatpush1.msra.mxu0 0.0
    %5159 = vmatprep.subr.mxu0 0.0
    %5160 = vmatpush1.msra.mxu0 0.0
    %5161 = vmatprep.subr.mxu0 0.0
    %5162 = vmatpush1.msra.mxu0 0.0
    %5163 = vmatprep.subr.mxu0 0.0
    %5164 = vmatpush1.msra.mxu0 0.0
    %5165 = vmatprep.subr.mxu0 0.0
    %5166 = vmatpush1.msra.mxu0 0.0
    %5167 = vmatprep.subr.mxu0 0.0
    %5168 = vmatpush1.msra.mxu0 0.0
    %5169 = vmatprep.subr.mxu0 0.0
    %5170 = vmatpush1.msra.mxu0 0.0
    %5171 = vmatprep.subr.mxu0 0.0
    %5172 = vmatpush1.msra.mxu0 0.0
    %5173 = vmatprep.subr.mxu0 0.0
    %5174 = vmatpush1.msra.mxu0 0.0
    %5175 = vmatprep.subr.mxu0 0.0
    %5176 = vmatpush1.msra.mxu0 0.0
    %5177 = vmatprep.subr.mxu0 0.0
    %5178 = vmatpush1.msra.mxu0 0.0
    %5179 = vmatprep.subr.mxu0 0.0
    %5180 = vmatpush1.msra.mxu0 0.0
    %5181 = vmatprep.subr.mxu0 0.0
    %5182 = vmatpush1.msra.mxu0 %v4875
    %5183 = vmatprep.subr.mxu0 0.0
    %5184 = vmatpush2.msra.mxu0 0.0
    %5185 = vmatprep.subr.mxu0 0.0
    %5186 = vmatpush2.msra.mxu0 0.0
    %5187 = vmatprep.subr.mxu0 0.0
    %5188 = vmatpush2.msra.mxu0 0.0
    %5189 = vmatprep.subr.mxu0 0.0
    %5190 = vmatpush2.msra.mxu0 0.0
    %5191 = vmatprep.subr.mxu0 0.0
    %5192 = vmatpush2.msra.mxu0 0.0
    %5193 = vmatprep.subr.mxu0 0.0
    %5194 = vmatpush2.msra.mxu0 0.0
    %5195 = vmatprep.subr.mxu0 0.0
    %5196 = vmatpush2.msra.mxu0 0.0
    %5197 = vmatprep.subr.mxu0 0.0
    %5198 = vmatpush2.msra.mxu0 0.0
    %5199 = vmatprep.subr.mxu0 0.0
    %5200 = vmatpush2.msra.mxu0 0.0
    %5201 = vmatprep.subr.mxu0 0.0
    %5202 = vmatpush2.msra.mxu0 0.0
    %5203 = vmatprep.subr.mxu0 0.0
    %5204 = vmatpush2.msra.mxu0 0.0
    %5205 = vmatprep.subr.mxu0 0.0
    %5206 = vmatpush2.msra.mxu0 0.0
    %5207 = vmatprep.subr.mxu0 0.0
    %5208 = vmatpush2.msra.mxu0 0.0
    %5209 = vmatprep.subr.mxu0 0.0
    %5210 = vmatpush2.msra.mxu0 0.0
    %5211 = vmatprep.subr.mxu0 0.0
    %5212 = vmatpush2.msra.mxu0 0.0
    %5213 = vmatprep.subr.mxu0 0.0
    %5214 = vmatpush2.msra.mxu0 0.0
    %5215 = vmatprep.mubr.f32.mxu0 0.0
    %5216 = vmatmul.mubr.f32.gmra.mxu0 %v5149
    %v5217 = vpop.f32.mrf.mxu0
    %v5218 = vadd.f32 0.0, %v5217
    %v5219 = vpop.f32.mrf.mxu0
    %5220 = vdwg.mxu0
    %v5223 = vrot.slane %v5218, 7
    %v5224 = vsel %vm3722, %v5223, %v5145
    %v5225 = vsel %vm69, %v5224, 0
    %5227 = vmatprep.subr.mxu0 0.0
    %5228 = vmatpush1.msra.mxu0 0.0
    %5229 = vmatprep.subr.mxu0 0.0
    %5230 = vmatpush1.msra.mxu0 0.0
    %5231 = vmatprep.subr.mxu0 0.0
    %5232 = vmatpush1.msra.mxu0 0.0
    %5233 = vmatprep.subr.mxu0 0.0
    %5234 = vmatpush1.msra.mxu0 0.0
    %5235 = vmatprep.subr.mxu0 0.0
    %5236 = vmatpush1.msra.mxu0 0.0
    %5237 = vmatprep.subr.mxu0 0.0
    %5238 = vmatpush1.msra.mxu0 0.0
    %5239 = vmatprep.subr.mxu0 0.0
    %5240 = vmatpush1.msra.mxu0 0.0
    %5241 = vmatprep.subr.mxu0 0.0
    %5242 = vmatpush1.msra.mxu0 0.0
    %5243 = vmatprep.subr.mxu0 0.0
    %5244 = vmatpush1.msra.mxu0 0.0
    %5245 = vmatprep.subr.mxu0 0.0
    %5246 = vmatpush1.msra.mxu0 0.0
    %5247 = vmatprep.subr.mxu0 0.0
    %5248 = vmatpush1.msra.mxu0 0.0
    %5249 = vmatprep.subr.mxu0 0.0
    %5250 = vmatpush1.msra.mxu0 0.0
    %5251 = vmatprep.subr.mxu0 0.0
    %5252 = vmatpush1.msra.mxu0 0.0
    %5253 = vmatprep.subr.mxu0 0.0
    %5254 = vmatpush1.msra.mxu0 0.0
    %5255 = vmatprep.subr.mxu0 0.0
    %5256 = vmatpush1.msra.mxu0 %v4640
    %5257 = vmatprep.subr.mxu0 0.0
    %5258 = vmatpush1.msra.mxu0 %v4639
    %5259 = vmatprep.subr.mxu0 0.0
    %5260 = vmatpush2.msra.mxu0 0.0
    %5261 = vmatprep.subr.mxu0 0.0
    %5262 = vmatpush2.msra.mxu0 0.0
    %5263 = vmatprep.subr.mxu0 0.0
    %5264 = vmatpush2.msra.mxu0 0.0
    %5265 = vmatprep.subr.mxu0 0.0
    %5266 = vmatpush2.msra.mxu0 0.0
    %5267 = vmatprep.subr.mxu0 0.0
    %5268 = vmatpush2.msra.mxu0 0.0
    %5269 = vmatprep.subr.mxu0 0.0
    %5270 = vmatpush2.msra.mxu0 0.0
    %5271 = vmatprep.subr.mxu0 0.0
    %5272 = vmatpush2.msra.mxu0 0.0
    %5273 = vmatprep.subr.mxu0 0.0
    %5274 = vmatpush2.msra.mxu0 0.0
    %5275 = vmatprep.subr.mxu0 0.0
    %5276 = vmatpush2.msra.mxu0 0.0
    %5277 = vmatprep.subr.mxu0 0.0
    %5278 = vmatpush2.msra.mxu0 0.0
    %5279 = vmatprep.subr.mxu0 0.0
    %5280 = vmatpush2.msra.mxu0 0.0
    %5281 = vmatprep.subr.mxu0 0.0
    %5282 = vmatpush2.msra.mxu0 0.0
    %5283 = vmatprep.subr.mxu0 0.0
    %5284 = vmatpush2.msra.mxu0 0.0
    %5285 = vmatprep.subr.mxu0 0.0
    %5286 = vmatpush2.msra.mxu0 0.0
    %5287 = vmatprep.subr.mxu0 0.0
    %5288 = vmatpush2.msra.mxu0 0.0
    %5289 = vmatprep.subr.mxu0 0.0
    %5290 = vmatpush2.msra.mxu0 0.0
    %5291 = vmatprep.mubr.f32.mxu0 0.0
    %5292 = vmatmul.mubr.f32.gmra.mxu0 %v5225
    %v5293 = vpop.f32.mrf.mxu0
    %v5294 = vadd.f32 0.0, %v5293
    %v5295 = vpop.f32.mrf.mxu0
    %5296 = vdwg.mxu0
    %v5297 = vlaneseq
    %v5298 = vshrl.u32 %v5297, 7
    %v5299 = vsub.s32 7, %v5298
    %v5300 = vrot.slane %v58, %v5299
    %v5301 = vadd.f32 %v5300, %v5294
    %v5302 = vlaneseq
    %v5303 = vshrl.u32 %v5302, 7
    %v5304 = vsub.s32 0, %v5303
    %v5305 = vrot.slane %v4893, %v5304
    %5306 = vrot.lane.b32.xlu0 %v5305, 112
    %v5307 = vpop.permute.xlu0 %5306
    %5308 = vrot.lane.b32.xlu0 %v4791, 112
    %v5309 = vpop.permute.xlu0 %5308
    %v5310 = vsel %vm69, %v5307, 0
    %v5312 = vsel %vm69, %v5309, 0
    %5314 = vmatprep.subr.mxu0 0.0
    %5315 = vmatpush1.xpose.msra.mxu0 0.0
    %5316 = vmatprep.subr.mxu0 0.0
    %5317 = vmatpush1.xpose.msra.mxu0 0.0
    %5318 = vmatprep.subr.mxu0 0.0
    %5319 = vmatpush1.xpose.msra.mxu0 0.0
    %5320 = vmatprep.subr.mxu0 0.0
    %5321 = vmatpush1.xpose.msra.mxu0 0.0
    %5322 = vmatprep.subr.mxu0 0.0
    %5323 = vmatpush1.xpose.msra.mxu0 0.0
    %5324 = vmatprep.subr.mxu0 0.0
    %5325 = vmatpush1.xpose.msra.mxu0 0.0
    %5326 = vmatprep.subr.mxu0 0.0
    %5327 = vmatpush1.xpose.msra.mxu0 0.0
    %5328 = vmatprep.subr.mxu0 0.0
    %5329 = vmatpush1.xpose.msra.mxu0 0.0
    %5330 = vmatprep.subr.mxu0 0.0
    %5331 = vmatpush1.xpose.msra.mxu0 0.0
    %5332 = vmatprep.subr.mxu0 0.0
    %5333 = vmatpush1.xpose.msra.mxu0 0.0
    %5334 = vmatprep.subr.mxu0 0.0
    %5335 = vmatpush1.xpose.msra.mxu0 0.0
    %5336 = vmatprep.subr.mxu0 0.0
    %5337 = vmatpush1.xpose.msra.mxu0 0.0
    %5338 = vmatprep.subr.mxu0 0.0
    %5339 = vmatpush1.xpose.msra.mxu0 0.0
    %5340 = vmatprep.subr.mxu0 0.0
    %5341 = vmatpush1.xpose.msra.mxu0 0.0
    %5342 = vmatprep.subr.mxu0 0.0
    %5343 = vmatpush1.xpose.msra.mxu0 0.0
    %5344 = vmatprep.subr.mxu0 0.0
    %5345 = vmatpush1.xpose.msra.mxu0 %v5312
    %5346 = vmatprep.subr.mxu0 0.0
    %5347 = vmatpush2.xpose.msra.mxu0 0.0
    %5348 = vmatprep.subr.mxu0 0.0
    %5349 = vmatpush2.xpose.msra.mxu0 0.0
    %5350 = vmatprep.subr.mxu0 0.0
    %5351 = vmatpush2.xpose.msra.mxu0 0.0
    %5352 = vmatprep.subr.mxu0 0.0
    %5353 = vmatpush2.xpose.msra.mxu0 0.0
    %5354 = vmatprep.subr.mxu0 0.0
    %5355 = vmatpush2.xpose.msra.mxu0 0.0
    %5356 = vmatprep.subr.mxu0 0.0
    %5357 = vmatpush2.xpose.msra.mxu0 0.0
    %5358 = vmatprep.subr.mxu0 0.0
    %5359 = vmatpush2.xpose.msra.mxu0 0.0
    %5360 = vmatprep.subr.mxu0 0.0
    %5361 = vmatpush2.xpose.msra.mxu0 0.0
    %5362 = vmatprep.subr.mxu0 0.0
    %5363 = vmatpush2.xpose.msra.mxu0 0.0
    %5364 = vmatprep.subr.mxu0 0.0
    %5365 = vmatpush2.xpose.msra.mxu0 0.0
    %5366 = vmatprep.subr.mxu0 0.0
    %5367 = vmatpush2.xpose.msra.mxu0 0.0
    %5368 = vmatprep.subr.mxu0 0.0
    %5369 = vmatpush2.xpose.msra.mxu0 0.0
    %5370 = vmatprep.subr.mxu0 0.0
    %5371 = vmatpush2.xpose.msra.mxu0 0.0
    %5372 = vmatprep.subr.mxu0 0.0
    %5373 = vmatpush2.xpose.msra.mxu0 0.0
    %5374 = vmatprep.subr.mxu0 0.0
    %5375 = vmatpush2.xpose.msra.mxu0 0.0
    %5376 = vmatprep.subr.mxu0 0.0
    %5377 = vmatpush2.xpose.msra.mxu0 0.0
    %5378 = vmatprep.mubr.f32.mxu0 0.0
    %5379 = vmatmul.mubr.f32.gmra.mxu0 %v5310
    %v5380 = vpop.f32.mrf.mxu0
    %v5381 = vadd.f32 0.0, %v5380
    %v5382 = vpop.f32.mrf.mxu0
    %5383 = vdwg.mxu0
    %v5384 = vlaneseq
    %v5385 = vshrl.u32 %v5384, 7
    %v5386 = vsub.s32 0, %v5385
    %v5387 = vrot.slane %v4900, %v5386
    %5388 = vrot.lane.b32.xlu0 %v5387, 112
    %v5389 = vpop.permute.xlu0 %5388
    %5390 = vrot.lane.b32.xlu0 %v4796, 112
    %v5391 = vpop.permute.xlu0 %5390
    %v5392 = vsel %vm69, %v5389, 0
    %v5394 = vsel %vm69, %v5391, 0
    %5396 = vmatprep.subr.mxu0 0.0
    %5397 = vmatpush1.xpose.msra.mxu0 0.0
    %5398 = vmatprep.subr.mxu0 0.0
    %5399 = vmatpush1.xpose.msra.mxu0 0.0
    %5400 = vmatprep.subr.mxu0 0.0
    %5401 = vmatpush1.xpose.msra.mxu0 0.0
    %5402 = vmatprep.subr.mxu0 0.0
    %5403 = vmatpush1.xpose.msra.mxu0 0.0
    %5404 = vmatprep.subr.mxu0 0.0
    %5405 = vmatpush1.xpose.msra.mxu0 0.0
    %5406 = vmatprep.subr.mxu0 0.0
    %5407 = vmatpush1.xpose.msra.mxu0 0.0
    %5408 = vmatprep.subr.mxu0 0.0
    %5409 = vmatpush1.xpose.msra.mxu0 0.0
    %5410 = vmatprep.subr.mxu0 0.0
    %5411 = vmatpush1.xpose.msra.mxu0 0.0
    %5412 = vmatprep.subr.mxu0 0.0
    %5413 = vmatpush1.xpose.msra.mxu0 0.0
    %5414 = vmatprep.subr.mxu0 0.0
    %5415 = vmatpush1.xpose.msra.mxu0 0.0
    %5416 = vmatprep.subr.mxu0 0.0
    %5417 = vmatpush1.xpose.msra.mxu0 0.0
    %5418 = vmatprep.subr.mxu0 0.0
    %5419 = vmatpush1.xpose.msra.mxu0 0.0
    %5420 = vmatprep.subr.mxu0 0.0
    %5421 = vmatpush1.xpose.msra.mxu0 0.0
    %5422 = vmatprep.subr.mxu0 0.0
    %5423 = vmatpush1.xpose.msra.mxu0 0.0
    %5424 = vmatprep.subr.mxu0 0.0
    %5425 = vmatpush1.xpose.msra.mxu0 0.0
    %5426 = vmatprep.subr.mxu0 0.0
    %5427 = vmatpush1.xpose.msra.mxu0 %v5394
    %5428 = vmatprep.subr.mxu0 0.0
    %5429 = vmatpush2.xpose.msra.mxu0 0.0
    %5430 = vmatprep.subr.mxu0 0.0
    %5431 = vmatpush2.xpose.msra.mxu0 0.0
    %5432 = vmatprep.subr.mxu0 0.0
    %5433 = vmatpush2.xpose.msra.mxu0 0.0
    %5434 = vmatprep.subr.mxu0 0.0
    %5435 = vmatpush2.xpose.msra.mxu0 0.0
    %5436 = vmatprep.subr.mxu0 0.0
    %5437 = vmatpush2.xpose.msra.mxu0 0.0
    %5438 = vmatprep.subr.mxu0 0.0
    %5439 = vmatpush2.xpose.msra.mxu0 0.0
    %5440 = vmatprep.subr.mxu0 0.0
    %5441 = vmatpush2.xpose.msra.mxu0 0.0
    %5442 = vmatprep.subr.mxu0 0.0
    %5443 = vmatpush2.xpose.msra.mxu0 0.0
    %5444 = vmatprep.subr.mxu0 0.0
    %5445 = vmatpush2.xpose.msra.mxu0 0.0
    %5446 = vmatprep.subr.mxu0 0.0
    %5447 = vmatpush2.xpose.msra.mxu0 0.0
    %5448 = vmatprep.subr.mxu0 0.0
    %5449 = vmatpush2.xpose.msra.mxu0 0.0
    %5450 = vmatprep.subr.mxu0 0.0
    %5451 = vmatpush2.xpose.msra.mxu0 0.0
    %5452 = vmatprep.subr.mxu0 0.0
    %5453 = vmatpush2.xpose.msra.mxu0 0.0
    %5454 = vmatprep.subr.mxu0 0.0
    %5455 = vmatpush2.xpose.msra.mxu0 0.0
    %5456 = vmatprep.subr.mxu0 0.0
    %5457 = vmatpush2.xpose.msra.mxu0 0.0
    %5458 = vmatprep.subr.mxu0 0.0
    %5459 = vmatpush2.xpose.msra.mxu0 0.0
    %5460 = vmatprep.mubr.f32.mxu0 0.0
    %5461 = vmatmul.mubr.f32.gmra.mxu0 %v5392
    %v5462 = vpop.f32.mrf.mxu0
    %v5463 = vadd.f32 0.0, %v5462
    %v5464 = vpop.f32.mrf.mxu0
    %5465 = vdwg.mxu0
    %v5466 = vmul.f32 %v5381, 0.25
    %v5467 = vmul.f32 %v5463, 0.25
    %v5468 = vsel %vm3550, %v5466, -inf
    %5469 = vmax.xlane.f32.xlu0 %v5468
    %v5470 = vpop.xlane.xlu0 %5469
    %v5471 = vsel %vm3550, %v5467, -inf
    %5472 = vmax.xlane.f32.xlu0 %v5471
    %v5473 = vpop.xlane.xlu0 %5472
    %v5474 = vsub.f32 %v5466, %v5470
    %v5475 = vsub.f32 %v5467, %v5473
    %v5476 = vmul.f32 %v5474, 1.442695
    %v5477 = vpow.pop %v5476
    %v5478 = vmul.f32 %v5475, 1.442695
    %v5479 = vpow.pop %v5478
    %v5480 = vsel %vm3550, %v5477, 0.0
    %5481 = vadd.xlane.f32.xlu0 %v5480
    %v5482 = vpop.xlane.xlu0 %5481
    %v5483 = vsel %vm3550, %v5479, 0.0
    %5484 = vadd.xlane.f32.xlu0 %v5483
    %v5485 = vpop.xlane.xlu0 %5484
    %v5486 = vrcp.pop %v5482
    %v5487 = vmul.f32 %v5477, %v5486
    %v5488 = vrcp.pop %v5485
    %v5489 = vmul.f32 %v5479, %v5488
    %5491 = vrot.lane.b32.xlu0 %v4870, 112
    %v5492 = vpop.permute.xlu0 %5491
    %v5495 = vsel %vm607, %v5487, 0
    %5497 = vmatprep.subr.mxu0 0.0
    %5498 = vmatpush1.msra.mxu0 0.0
    %5499 = vmatprep.subr.mxu0 0.0
    %5500 = vmatpush1.msra.mxu0 0.0
    %5501 = vmatprep.subr.mxu0 0.0
    %5502 = vmatpush1.msra.mxu0 0.0
    %5503 = vmatprep.subr.mxu0 0.0
    %5504 = vmatpush1.msra.mxu0 0.0
    %5505 = vmatprep.subr.mxu0 0.0
    %5506 = vmatpush1.msra.mxu0 0.0
    %5507 = vmatprep.subr.mxu0 0.0
    %5508 = vmatpush1.msra.mxu0 0.0
    %5509 = vmatprep.subr.mxu0 0.0
    %5510 = vmatpush1.msra.mxu0 0.0
    %5511 = vmatprep.subr.mxu0 0.0
    %5512 = vmatpush1.msra.mxu0 0.0
    %5513 = vmatprep.subr.mxu0 0.0
    %5514 = vmatpush1.msra.mxu0 0.0
    %5515 = vmatprep.subr.mxu0 0.0
    %5516 = vmatpush1.msra.mxu0 0.0
    %5517 = vmatprep.subr.mxu0 0.0
    %5518 = vmatpush1.msra.mxu0 0.0
    %5519 = vmatprep.subr.mxu0 0.0
    %5520 = vmatpush1.msra.mxu0 0.0
    %5521 = vmatprep.subr.mxu0 0.0
    %5522 = vmatpush1.msra.mxu0 0.0
    %5523 = vmatprep.subr.mxu0 0.0
    %5524 = vmatpush1.msra.mxu0 0.0
    %5525 = vmatprep.subr.mxu0 0.0
    %5526 = vmatpush1.msra.mxu0 0.0
    %5527 = vmatprep.subr.mxu0 0.0
    %5528 = vmatpush1.msra.mxu0 %v5492
    %5529 = vmatprep.subr.mxu0 0.0
    %5530 = vmatpush2.msra.mxu0 0.0
    %5531 = vmatprep.subr.mxu0 0.0
    %5532 = vmatpush2.msra.mxu0 0.0
    %5533 = vmatprep.subr.mxu0 0.0
    %5534 = vmatpush2.msra.mxu0 0.0
    %5535 = vmatprep.subr.mxu0 0.0
    %5536 = vmatpush2.msra.mxu0 0.0
    %5537 = vmatprep.subr.mxu0 0.0
    %5538 = vmatpush2.msra.mxu0 0.0
    %5539 = vmatprep.subr.mxu0 0.0
    %5540 = vmatpush2.msra.mxu0 0.0
    %5541 = vmatprep.subr.mxu0 0.0
    %5542 = vmatpush2.msra.mxu0 0.0
    %5543 = vmatprep.subr.mxu0 0.0
    %5544 = vmatpush2.msra.mxu0 0.0
    %5545 = vmatprep.subr.mxu0 0.0
    %5546 = vmatpush2.msra.mxu0 0.0
    %5547 = vmatprep.subr.mxu0 0.0
    %5548 = vmatpush2.msra.mxu0 0.0
    %5549 = vmatprep.subr.mxu0 0.0
    %5550 = vmatpush2.msra.mxu0 0.0
    %5551 = vmatprep.subr.mxu0 0.0
    %5552 = vmatpush2.msra.mxu0 0.0
    %5553 = vmatprep.subr.mxu0 0.0
    %5554 = vmatpush2.msra.mxu0 0.0
    %5555 = vmatprep.subr.mxu0 0.0
    %5556 = vmatpush2.msra.mxu0 0.0
    %5557 = vmatprep.subr.mxu0 0.0
    %5558 = vmatpush2.msra.mxu0 0.0
    %5559 = vmatprep.subr.mxu0 0.0
    %5560 = vmatpush2.msra.mxu0 0.0
    %5561 = vmatprep.mubr.f32.mxu0 0.0
    %5562 = vmatmul.mubr.f32.gmra.mxu0 %v5495
    %v5563 = vpop.f32.mrf.mxu0
    %v5564 = vadd.f32 0.0, %v5563
    %v5565 = vpop.f32.mrf.mxu0
    %5566 = vdwg.mxu0
    %5568 = vrot.lane.b32.xlu0 %v4875, 112
    %v5569 = vpop.permute.xlu0 %5568
    %v5572 = vsel %vm607, %v5489, 0
    %5574 = vmatprep.subr.mxu0 0.0
    %5575 = vmatpush1.msra.mxu0 0.0
    %5576 = vmatprep.subr.mxu0 0.0
    %5577 = vmatpush1.msra.mxu0 0.0
    %5578 = vmatprep.subr.mxu0 0.0
    %5579 = vmatpush1.msra.mxu0 0.0
    %5580 = vmatprep.subr.mxu0 0.0
    %5581 = vmatpush1.msra.mxu0 0.0
    %5582 = vmatprep.subr.mxu0 0.0
    %5583 = vmatpush1.msra.mxu0 0.0
    %5584 = vmatprep.subr.mxu0 0.0
    %5585 = vmatpush1.msra.mxu0 0.0
    %5586 = vmatprep.subr.mxu0 0.0
    %5587 = vmatpush1.msra.mxu0 0.0
    %5588 = vmatprep.subr.mxu0 0.0
    %5589 = vmatpush1.msra.mxu0 0.0
    %5590 = vmatprep.subr.mxu0 0.0
    %5591 = vmatpush1.msra.mxu0 0.0
    %5592 = vmatprep.subr.mxu0 0.0
    %5593 = vmatpush1.msra.mxu0 0.0
    %5594 = vmatprep.subr.mxu0 0.0
    %5595 = vmatpush1.msra.mxu0 0.0
    %5596 = vmatprep.subr.mxu0 0.0
    %5597 = vmatpush1.msra.mxu0 0.0
    %5598 = vmatprep.subr.mxu0 0.0
    %5599 = vmatpush1.msra.mxu0 0.0
    %5600 = vmatprep.subr.mxu0 0.0
    %5601 = vmatpush1.msra.mxu0 0.0
    %5602 = vmatprep.subr.mxu0 0.0
    %5603 = vmatpush1.msra.mxu0 0.0
    %5604 = vmatprep.subr.mxu0 0.0
    %5605 = vmatpush1.msra.mxu0 %v5569
    %5606 = vmatprep.subr.mxu0 0.0
    %5607 = vmatpush2.msra.mxu0 0.0
    %5608 = vmatprep.subr.mxu0 0.0
    %5609 = vmatpush2.msra.mxu0 0.0
    %5610 = vmatprep.subr.mxu0 0.0
    %5611 = vmatpush2.msra.mxu0 0.0
    %5612 = vmatprep.subr.mxu0 0.0
    %5613 = vmatpush2.msra.mxu0 0.0
    %5614 = vmatprep.subr.mxu0 0.0
    %5615 = vmatpush2.msra.mxu0 0.0
    %5616 = vmatprep.subr.mxu0 0.0
    %5617 = vmatpush2.msra.mxu0 0.0
    %5618 = vmatprep.subr.mxu0 0.0
    %5619 = vmatpush2.msra.mxu0 0.0
    %5620 = vmatprep.subr.mxu0 0.0
    %5621 = vmatpush2.msra.mxu0 0.0
    %5622 = vmatprep.subr.mxu0 0.0
    %5623 = vmatpush2.msra.mxu0 0.0
    %5624 = vmatprep.subr.mxu0 0.0
    %5625 = vmatpush2.msra.mxu0 0.0
    %5626 = vmatprep.subr.mxu0 0.0
    %5627 = vmatpush2.msra.mxu0 0.0
    %5628 = vmatprep.subr.mxu0 0.0
    %5629 = vmatpush2.msra.mxu0 0.0
    %5630 = vmatprep.subr.mxu0 0.0
    %5631 = vmatpush2.msra.mxu0 0.0
    %5632 = vmatprep.subr.mxu0 0.0
    %5633 = vmatpush2.msra.mxu0 0.0
    %5634 = vmatprep.subr.mxu0 0.0
    %5635 = vmatpush2.msra.mxu0 0.0
    %5636 = vmatprep.subr.mxu0 0.0
    %5637 = vmatpush2.msra.mxu0 0.0
    %5638 = vmatprep.mubr.f32.mxu0 0.0
    %5639 = vmatmul.mubr.f32.gmra.mxu0 %v5572
    %v5640 = vpop.f32.mrf.mxu0
    %v5641 = vadd.f32 0.0, %v5640
    %v5642 = vpop.f32.mrf.mxu0
    %5643 = vdwg.mxu0
    %v5646 = vrot.slane %v5641, 7
    %v5647 = vsel %vm3722, %v5646, %v5564
    %v5648 = vsel %vm69, %v5647, 0
    %5650 = vmatprep.subr.mxu0 0.0
    %5651 = vmatpush1.msra.mxu0 0.0
    %5652 = vmatprep.subr.mxu0 0.0
    %5653 = vmatpush1.msra.mxu0 0.0
    %5654 = vmatprep.subr.mxu0 0.0
    %5655 = vmatpush1.msra.mxu0 0.0
    %5656 = vmatprep.subr.mxu0 0.0
    %5657 = vmatpush1.msra.mxu0 0.0
    %5658 = vmatprep.subr.mxu0 0.0
    %5659 = vmatpush1.msra.mxu0 0.0
    %5660 = vmatprep.subr.mxu0 0.0
    %5661 = vmatpush1.msra.mxu0 0.0
    %5662 = vmatprep.subr.mxu0 0.0
    %5663 = vmatpush1.msra.mxu0 0.0
    %5664 = vmatprep.subr.mxu0 0.0
    %5665 = vmatpush1.msra.mxu0 0.0
    %5666 = vmatprep.subr.mxu0 0.0
    %5667 = vmatpush1.msra.mxu0 0.0
    %5668 = vmatprep.subr.mxu0 0.0
    %5669 = vmatpush1.msra.mxu0 0.0
    %5670 = vmatprep.subr.mxu0 0.0
    %5671 = vmatpush1.msra.mxu0 0.0
    %5672 = vmatprep.subr.mxu0 0.0
    %5673 = vmatpush1.msra.mxu0 0.0
    %5674 = vmatprep.subr.mxu0 0.0
    %5675 = vmatpush1.msra.mxu0 0.0
    %5676 = vmatprep.subr.mxu0 0.0
    %5677 = vmatpush1.msra.mxu0 0.0
    %5678 = vmatprep.subr.mxu0 0.0
    %5679 = vmatpush1.msra.mxu0 %v4642
    %5680 = vmatprep.subr.mxu0 0.0
    %5681 = vmatpush1.msra.mxu0 %v4641
    %5682 = vmatprep.subr.mxu0 0.0
    %5683 = vmatpush2.msra.mxu0 0.0
    %5684 = vmatprep.subr.mxu0 0.0
    %5685 = vmatpush2.msra.mxu0 0.0
    %5686 = vmatprep.subr.mxu0 0.0
    %5687 = vmatpush2.msra.mxu0 0.0
    %5688 = vmatprep.subr.mxu0 0.0
    %5689 = vmatpush2.msra.mxu0 0.0
    %5690 = vmatprep.subr.mxu0 0.0
    %5691 = vmatpush2.msra.mxu0 0.0
    %5692 = vmatprep.subr.mxu0 0.0
    %5693 = vmatpush2.msra.mxu0 0.0
    %5694 = vmatprep.subr.mxu0 0.0
    %5695 = vmatpush2.msra.mxu0 0.0
    %5696 = vmatprep.subr.mxu0 0.0
    %5697 = vmatpush2.msra.mxu0 0.0
    %5698 = vmatprep.subr.mxu0 0.0
    %5699 = vmatpush2.msra.mxu0 0.0
    %5700 = vmatprep.subr.mxu0 0.0
    %5701 = vmatpush2.msra.mxu0 0.0
    %5702 = vmatprep.subr.mxu0 0.0
    %5703 = vmatpush2.msra.mxu0 0.0
    %5704 = vmatprep.subr.mxu0 0.0
    %5705 = vmatpush2.msra.mxu0 0.0
    %5706 = vmatprep.subr.mxu0 0.0
    %5707 = vmatpush2.msra.mxu0 0.0
    %5708 = vmatprep.subr.mxu0 0.0
    %5709 = vmatpush2.msra.mxu0 0.0
    %5710 = vmatprep.subr.mxu0 0.0
    %5711 = vmatpush2.msra.mxu0 0.0
    %5712 = vmatprep.subr.mxu0 0.0
    %5713 = vmatpush2.msra.mxu0 0.0
    %5714 = vmatprep.mubr.f32.mxu0 0.0
    %5715 = vmatmul.mubr.f32.gmra.mxu0 %v5648
    %v5716 = vpop.f32.mrf.mxu0
    %v5717 = vadd.f32 0.0, %v5716
    %v5718 = vpop.f32.mrf.mxu0
    %5719 = vdwg.mxu0
    %v5720 = vadd.f32 %v5301, %v5717
    %v5721 = vadd.f32 %v4599, %v5720
    %v5722 = vsel %vm3091, %v5721, 0.0
    %5723 = vadd.xlane.f32.xlu0 %v5722
    %v5724 = vpop.xlane.xlu0 %5723
    %v5725 = vmul.f32 %v5724, %v158
    %v5726 = vsub.f32 %v5721, %v5725
    %v5727 = vmul.f32 %v5726, %v5726
    %v5728 = vsel %vm3091, %v5727, 0.0
    %5729 = vadd.xlane.f32.xlu0 %v5728
    %v5730 = vpop.xlane.xlu0 %5729
    %v5731 = vmul.f32 %v5730, %v158
    %v5732 = vadd.f32 %v5731, 1e-05
    %v5733 = vrsqrt.pop %v5732
    %v5734 = vmul.f32 %v5726, %v5733
    %v5735 = vlaneseq
    %v5736 = vshrl.u32 %v5735, 7
    %v5737 = vsub.s32 5, %v5736
    %v5738 = vrot.slane %v59, %v5737
    %v5739 = vmul.f32 %v5734, %v5738
    %v5740 = vlaneseq
    %v5741 = vshrl.u32 %v5740, 7
    %v5742 = vsub.s32 3, %v5741
    %v5743 = vrot.slane %v60, %v5742
    %v5744 = vadd.f32 %v5739, %v5743
    %s5745 = scalar_lea.vmem %s10, 32
    %v5746 = vld [vmem:[%s5745] sm:$0xff]
    %v5747 = vld [vmem:[%s5745 + $0x8] sm:$0xff]
    %v5748 = vld [vmem:[%s5745 + $0x10] sm:$0xff]
    %v5749 = vld [vmem:[%s5745 + $0x18] sm:$0xff]
    %v5750 = vlaneseq
    %v5751 = vshrl.u32 %v5750, 7
    %v5752 = vsub.s32 3, %v5751
    %v5753 = vrot.slane %v62, %v5752
    %v5755 = vsel %vm151, %v5744, 0
    %5757 = vmatprep.subr.mxu0 0.0
    %5758 = vmatpush1.msra.mxu0 0.0
    %5759 = vmatprep.subr.mxu0 0.0
    %5760 = vmatpush1.msra.mxu0 0.0
    %5761 = vmatprep.subr.mxu0 0.0
    %5762 = vmatpush1.msra.mxu0 0.0
    %5763 = vmatprep.subr.mxu0 0.0
    %5764 = vmatpush1.msra.mxu0 0.0
    %5765 = vmatprep.subr.mxu0 0.0
    %5766 = vmatpush1.msra.mxu0 0.0
    %5767 = vmatprep.subr.mxu0 0.0
    %5768 = vmatpush1.msra.mxu0 0.0
    %5769 = vmatprep.subr.mxu0 0.0
    %5770 = vmatpush1.msra.mxu0 0.0
    %5771 = vmatprep.subr.mxu0 0.0
    %5772 = vmatpush1.msra.mxu0 0.0
    %5773 = vmatprep.subr.mxu0 0.0
    %5774 = vmatpush1.msra.mxu0 0.0
    %5775 = vmatprep.subr.mxu0 0.0
    %5776 = vmatpush1.msra.mxu0 0.0
    %5777 = vmatprep.subr.mxu0 0.0
    %5778 = vmatpush1.msra.mxu0 0.0
    %5779 = vmatprep.subr.mxu0 0.0
    %5780 = vmatpush1.msra.mxu0 0.0
    %5781 = vmatprep.subr.mxu0 0.0
    %5782 = vmatpush1.msra.mxu0 %v5749
    %5783 = vmatprep.subr.mxu0 0.0
    %5784 = vmatpush1.msra.mxu0 %v5748
    %5785 = vmatprep.subr.mxu0 0.0
    %5786 = vmatpush1.msra.mxu0 %v5747
    %5787 = vmatprep.subr.mxu0 0.0
    %5788 = vmatpush1.msra.mxu0 %v5746
    %5789 = vmatprep.subr.mxu0 0.0
    %5790 = vmatpush2.msra.mxu0 0.0
    %5791 = vmatprep.subr.mxu0 0.0
    %5792 = vmatpush2.msra.mxu0 0.0
    %5793 = vmatprep.subr.mxu0 0.0
    %5794 = vmatpush2.msra.mxu0 0.0
    %5795 = vmatprep.subr.mxu0 0.0
    %5796 = vmatpush2.msra.mxu0 0.0
    %5797 = vmatprep.subr.mxu0 0.0
    %5798 = vmatpush2.msra.mxu0 0.0
    %5799 = vmatprep.subr.mxu0 0.0
    %5800 = vmatpush2.msra.mxu0 0.0
    %5801 = vmatprep.subr.mxu0 0.0
    %5802 = vmatpush2.msra.mxu0 0.0
    %5803 = vmatprep.subr.mxu0 0.0
    %5804 = vmatpush2.msra.mxu0 0.0
    %5805 = vmatprep.subr.mxu0 0.0
    %5806 = vmatpush2.msra.mxu0 0.0
    %5807 = vmatprep.subr.mxu0 0.0
    %5808 = vmatpush2.msra.mxu0 0.0
    %5809 = vmatprep.subr.mxu0 0.0
    %5810 = vmatpush2.msra.mxu0 0.0
    %5811 = vmatprep.subr.mxu0 0.0
    %5812 = vmatpush2.msra.mxu0 0.0
    %5813 = vmatprep.subr.mxu0 0.0
    %5814 = vmatpush2.msra.mxu0 0.0
    %5815 = vmatprep.subr.mxu0 0.0
    %5816 = vmatpush2.msra.mxu0 0.0
    %5817 = vmatprep.subr.mxu0 0.0
    %5818 = vmatpush2.msra.mxu0 0.0
    %5819 = vmatprep.subr.mxu0 0.0
    %5820 = vmatpush2.msra.mxu0 0.0
    %5821 = vmatprep.mubr.f32.mxu0 0.0
    %5822 = vmatmul.mubr.f32.gmra.mxu0 %v5755
    %v5823 = vpop.f32.mrf.mxu0
    %v5824 = vadd.f32 %v5753, %v5823
    %v5825 = vpop.f32.mrf.mxu0
    %5826 = vdwg.mxu0
    %v5827 = vmax.f32 %v5824, 0.0
    %s5828 = scalar_lea.vmem %s11, 64
    %v5829 = vld [vmem:[%s5828] sm:$0xff]
    %v5830 = vld [vmem:[%s5828 + $0x8] sm:$0xff]
    %v5831 = vld [vmem:[%s5828 + $0x10] sm:$0xff]
    %v5832 = vld [vmem:[%s5828 + $0x18] sm:$0xff]
    %v5833 = vld [vmem:[%s5828 + $0x20] sm:$0xff]
    %v5834 = vld [vmem:[%s5828 + $0x28] sm:$0xff]
    %v5835 = vld [vmem:[%s5828 + $0x30] sm:$0xff]
    %v5836 = vld [vmem:[%s5828 + $0x38] sm:$0xff]
    %v5837 = vlaneseq
    %v5838 = vshrl.u32 %v5837, 7
    %v5839 = vsub.s32 5, %v5838
    %v5840 = vrot.slane %v60, %v5839
    %v5842 = vsel %vm1423, %v5827, 0
    %5844 = vmatprep.subr.mxu0 0.0
    %5845 = vmatpush1.msra.mxu0 0.0
    %5846 = vmatprep.subr.mxu0 0.0
    %5847 = vmatpush1.msra.mxu0 0.0
    %5848 = vmatprep.subr.mxu0 0.0
    %5849 = vmatpush1.msra.mxu0 0.0
    %5850 = vmatprep.subr.mxu0 0.0
    %5851 = vmatpush1.msra.mxu0 0.0
    %5852 = vmatprep.subr.mxu0 0.0
    %5853 = vmatpush1.msra.mxu0 0.0
    %5854 = vmatprep.subr.mxu0 0.0
    %5855 = vmatpush1.msra.mxu0 0.0
    %5856 = vmatprep.subr.mxu0 0.0
    %5857 = vmatpush1.msra.mxu0 0.0
    %5858 = vmatprep.subr.mxu0 0.0
    %5859 = vmatpush1.msra.mxu0 0.0
    %5860 = vmatprep.subr.mxu0 0.0
    %5861 = vmatpush1.msra.mxu0 %v5836
    %5862 = vmatprep.subr.mxu0 0.0
    %5863 = vmatpush1.msra.mxu0 %v5835
    %5864 = vmatprep.subr.mxu0 0.0
    %5865 = vmatpush1.msra.mxu0 %v5834
    %5866 = vmatprep.subr.mxu0 0.0
    %5867 = vmatpush1.msra.mxu0 %v5833
    %5868 = vmatprep.subr.mxu0 0.0
    %5869 = vmatpush1.msra.mxu0 %v5832
    %5870 = vmatprep.subr.mxu0 0.0
    %5871 = vmatpush1.msra.mxu0 %v5831
    %5872 = vmatprep.subr.mxu0 0.0
    %5873 = vmatpush1.msra.mxu0 %v5830
    %5874 = vmatprep.subr.mxu0 0.0
    %5875 = vmatpush1.msra.mxu0 %v5829
    %5876 = vmatprep.subr.mxu0 0.0
    %5877 = vmatpush2.msra.mxu0 0.0
    %5878 = vmatprep.subr.mxu0 0.0
    %5879 = vmatpush2.msra.mxu0 0.0
    %5880 = vmatprep.subr.mxu0 0.0
    %5881 = vmatpush2.msra.mxu0 0.0
    %5882 = vmatprep.subr.mxu0 0.0
    %5883 = vmatpush2.msra.mxu0 0.0
    %5884 = vmatprep.subr.mxu0 0.0
    %5885 = vmatpush2.msra.mxu0 0.0
    %5886 = vmatprep.subr.mxu0 0.0
    %5887 = vmatpush2.msra.mxu0 0.0
    %5888 = vmatprep.subr.mxu0 0.0
    %5889 = vmatpush2.msra.mxu0 0.0
    %5890 = vmatprep.subr.mxu0 0.0
    %5891 = vmatpush2.msra.mxu0 0.0
    %5892 = vmatprep.subr.mxu0 0.0
    %5893 = vmatpush2.msra.mxu0 0.0
    %5894 = vmatprep.subr.mxu0 0.0
    %5895 = vmatpush2.msra.mxu0 0.0
    %5896 = vmatprep.subr.mxu0 0.0
    %5897 = vmatpush2.msra.mxu0 0.0
    %5898 = vmatprep.subr.mxu0 0.0
    %5899 = vmatpush2.msra.mxu0 0.0
    %5900 = vmatprep.subr.mxu0 0.0
    %5901 = vmatpush2.msra.mxu0 0.0
    %5902 = vmatprep.subr.mxu0 0.0
    %5903 = vmatpush2.msra.mxu0 0.0
    %5904 = vmatprep.subr.mxu0 0.0
    %5905 = vmatpush2.msra.mxu0 0.0
    %5906 = vmatprep.subr.mxu0 0.0
    %5907 = vmatpush2.msra.mxu0 0.0
    %5908 = vmatprep.mubr.f32.mxu0 0.0
    %5909 = vmatmul.mubr.f32.gmra.mxu0 %v5842
    %v5910 = vpop.f32.mrf.mxu0
    %v5911 = vadd.f32 %v5840, %v5910
    %v5912 = vpop.f32.mrf.mxu0
    %5913 = vdwg.mxu0
    %v5914 = vadd.f32 %v5721, %v5911
    %v5915 = vsel %vm3091, %v5914, 0.0
    %5916 = vadd.xlane.f32.xlu0 %v5915
    %v5917 = vpop.xlane.xlu0 %5916
    %v5918 = vmul.f32 %v5917, %v158
    %v5919 = vsub.f32 %v5914, %v5918
    %v5920 = vmul.f32 %v5919, %v5919
    %v5921 = vsel %vm3091, %v5920, 0.0
    %5922 = vadd.xlane.f32.xlu0 %v5921
    %v5923 = vpop.xlane.xlu0 %5922
    %v5924 = vmul.f32 %v5923, %v158
    %v5925 = vadd.f32 %v5924, 1e-05
    %v5926 = vrsqrt.pop %v5925
    %v5927 = vmul.f32 %v5919, %v5926
    %v5928 = vlaneseq
    %v5929 = vshrl.u32 %v5928, 7
    %v5930 = vsub.s32 6, %v5929
    %v5931 = vrot.slane %v60, %v5930
    %v5932 = vmul.f32 %v5927, %v5931
    %v5933 = vlaneseq
    %v5934 = vshrl.u32 %v5933, 7
    %v5935 = vsub.s32 7, %v5934
    %v5936 = vrot.slane %v60, %v5935
    %v5937 = vadd.f32 %v5932, %v5936
    %v5938 = vlaneseq
    %v5939 = vshrl.u32 %v5938, 7
    %v5940 = vsub.s32 1, %v5939
    %v5941 = vrot.slane %v61, %v5940
    %v5942 = vmul.f32 %v5937, %v5941
    %v5943 = vsel %vm3091, %v5942, 0.0
    %5944 = vadd.xlane.f32.xlu0 %v5943
    %v5945 = vpop.xlane.xlu0 %5944
    %v5946 = vlaneseq
    %v5947 = vshrl.u32 %v5946, 7
    %v5948 = vsub.s32 2, %v5947
    %v5949 = vrot.slane %v61, %v5948
    %v5950 = vadd.f32 %v5945, %v5949
    %vm5951 = vcmask 1024
    %5952 = vst.msk [vmem:[%s12] sm:$0x3] %vm5951, %v5950
    // Predicated region
    $region54: #{seq2slate_reward_forward.1} parent=1 // pred_check
      _
    $region55: #{seq2slate_reward_forward.1} parent=1 // pred_check_branch
      %5954 = sbr.rel (0) target = $region57
    $region56: #{seq2slate_reward_forward.1} parent=1 // pred_region
      _
    $region57: #{seq2slate_reward_forward.1} parent=1 // pred_fallthru
      _
    // Predicated region
    $region58: #{seq2slate_reward_forward.1} parent=1 // pred_check
      _
    $region59: #{seq2slate_reward_forward.1} parent=1 // pred_check_branch
      %5956 = sbr.rel (0) target = $region61
    $region60: #{seq2slate_reward_forward.1} parent=1 // pred_region
      _
    $region61: #{seq2slate_reward_forward.1} parent=1 // pred_fallthru
      _
    %5957 = vsyncpa [#allocation3], 1

</llo_original>
